<compile_context>
chip_gen: v7x
topology: tpu7x:2x2x1
jax: 0.10.0
libtpu: 0.0.40
codegen_flags: <defaults>
</compile_context>

<pallas_src>
import functools

import jax
import jax.numpy as jnp
import numpy as np
from jax.experimental import pallas as pl
from jax.experimental.pallas import tpu as pltpu

SEG = 128   # lanes per batch element
OFF = 16    # lane offset of the valid data inside each segment (halo >= 3 each side)


# ------------------------------------------------------------------ kernel ---
def _shift(x, s):
    """y[:, j] = x[:, j + s]; zero-filled at the global edges (edges are halo)."""
    if s == 0:
        return x
    c, n = x.shape
    z = jnp.zeros((c, abs(s)), x.dtype)
    if s > 0:
        return jnp.concatenate([x[:, s:], z], axis=1)
    return jnp.concatenate([z, x[:, :n + s]], axis=1)


def _conv_fused(h, w_ref, b_ref, mask):
    """Fused-tap 'same' Conv1d as a single MXU matmul.

    h:     (Cin, N) f32, zero outside the valid lanes of each segment.
    w_ref: (Cout, K*Cin) bf16, tap-major columns (cols k*Cin:(k+1)*Cin = W[:, :, k]).
    b_ref: (Cout, 1) f32.
    Returns (Cout, N) f32 with halo lanes re-zeroed.
    """
    cin, _ = h.shape
    w = w_ref[...]
    k_taps = w.shape[1] // cin
    p = (k_taps - 1) // 2
    if k_taps == 1:
        rhs = h
    else:
        rhs = jnp.concatenate([_shift(h, k - p) for k in range(k_taps)], axis=0)
    acc = jnp.dot(w, rhs.astype(w.dtype), preferred_element_type=jnp.float32)
    return (acc + b_ref[...]) * mask


def net_kernel(*refs):
    x_ref, mask_ref, pool_ref = refs[0], refs[1], refs[2]
    out_ref = refs[-1]
    p = refs[3:-1]

    mask = mask_ref[...]                       # (1, N) f32, 1.0 on valid lanes
    x = x_ref[...]                             # (1, N) f32

    # conv1 (Cin=1, K=5): contraction depth 1 -> VPU broadcast multiply-add.
    w1 = p[0][...]                             # (32, 5) f32
    b1 = p[1][...]                             # (32, 1) f32
    k1 = w1.shape[1]
    p1 = (k1 - 1) // 2
    acc = w1[:, 0:1] * _shift(x, -p1)
    for k in range(1, k1):
        acc = acc + w1[:, k:k + 1] * _shift(x, k - p1)
    h = (acc + b1) * mask                      # (32, N)  (no ReLU, matches Net.forward)

    # conv2 (32 -> 64, K=5): fused-tap MXU matmul (no ReLU, matches Net.forward)
    h = _conv_fused(h, p[2], p[3], mask)       # (64, N)

    # residual blocks
    for i in range(3):
        q = p[4 + 8 * i: 12 + 8 * i]
        res = _conv_fused(h, q[6], q[7], mask)                    # conv4, K=1
        t = jnp.maximum(_conv_fused(h, q[0], q[1], mask), 0.0)    # conv1, K=7
        t = jnp.maximum(_conv_fused(t, q[2], q[3], mask), 0.0)    # conv2, K=5
        t = jnp.maximum(_conv_fused(t, q[4], q[5], mask), 0.0)    # conv3, K=3
        h = jnp.maximum(t + res, 0.0)

    # AvgPool1d(L): pool_ref is (N, B) with 1/L on each batch's valid lanes.
    pooled = jnp.dot(h, pool_ref[...], preferred_element_type=jnp.float32)  # (64, B)

    # batched FC head (f32)
    fc1w, fc1b, fc2w, fc2b = p[28], p[29], p[30], p[31]
    y = jnp.dot(fc1w[...], pooled, preferred_element_type=jnp.float32) + fc1b[...]
    y = jnp.dot(fc2w[...], y, preferred_element_type=jnp.float32) + fc2b[...]   # (OUT, B)

    # lane-dense full store of the padded output tile
    pad_r = out_ref.shape[0] - y.shape[0]
    pad_c = out_ref.shape[1] - y.shape[1]
    if pad_c:
        y = jnp.concatenate([y, jnp.zeros((y.shape[0], pad_c), y.dtype)], axis=1)
    if pad_r:
        y = jnp.concatenate([y, jnp.zeros((pad_r, y.shape[1]), y.dtype)], axis=0)
    out_ref[...] = y


# ------------------------------------------------------------- param setup ---
def _conv_names():
    names = [("conv1", 32, 1, 5), ("conv2", 64, 32, 5)]
    for blk in ("block1", "block2", "block3"):
        names += [(f"{blk}.conv1", 64, 64, 7), (f"{blk}.conv2", 64, 64, 5),
                  (f"{blk}.conv3", 64, 64, 3), (f"{blk}.conv4", 64, 64, 1)]
    return names


def init_params(key, n_out=7):
    """Deterministic synthetic params in PyTorch layouts."""
    scale = 0.1
    convs = _conv_names()
    keys = jax.random.split(key, 2 * len(convs) + 4)
    params, ki = {}, 0
    for name, co, ci, k in convs:
        params[name + ".w"] = scale * jax.random.normal(keys[ki], (co, ci, k), jnp.float32); ki += 1
        params[name + ".b"] = scale * jax.random.normal(keys[ki], (co,), jnp.float32); ki += 1
    params["fc1.w"] = scale * jax.random.normal(keys[ki], (32, 64), jnp.float32); ki += 1
    params["fc1.b"] = scale * jax.random.normal(keys[ki], (32,), jnp.float32); ki += 1
    params["fc2.w"] = scale * jax.random.normal(keys[ki], (n_out, 32), jnp.float32); ki += 1
    params["fc2.b"] = scale * jax.random.normal(keys[ki], (n_out,), jnp.float32); ki += 1
    return params


def kernel_param_list(params):
    """Kernel layouts: conv1 -> (32, K) f32 (VPU path); other convs -> tap-major
    stacked (Cout, K*Cin) bf16; biases -> f32 columns; FC stays f32."""
    flat = [params["conv1.w"][:, 0, :].astype(jnp.float32),
            params["conv1.b"].reshape(-1, 1)]
    for name, co, ci, k in _conv_names()[1:]:
        w = params[name + ".w"]                                   # (co, ci, k)
        ws = jnp.transpose(w, (0, 2, 1)).reshape(co, k * ci)      # cols k*ci:(k+1)*ci = W[:,:,k]
        flat.append(ws.astype(jnp.bfloat16))
        flat.append(params[name + ".b"].reshape(-1, 1))
    flat += [params["fc1.w"], params["fc1.b"].reshape(-1, 1),
             params["fc2.w"], params["fc2.b"].reshape(-1, 1)]
    return flat


# ----------------------------------------------------------------- wrapper ---
@jax.jit
def net_forward(x, *flat_params):
    B, C, L = x.shape                       # C == 1
    n_out = flat_params[-1].shape[0]
    N = B * SEG
    out_rows = max(8, ((n_out + 7) // 8) * 8)
    assert OFF >= 3 and SEG - OFF - L >= 3, "need >=3-lane halo per segment"

    # Pack the whole batch into one (1, B*128) row; zero gaps double as halo.
    xp = jnp.pad(x[:, 0, :], ((0, 0), (OFF, SEG - OFF - L)))      # (B, 128)
    x_packed = xp.reshape(1, N).astype(jnp.float32)

    lane = jnp.arange(N)
    valid = ((lane % SEG) >= OFF) & ((lane % SEG) < OFF + L)
    mask = valid.astype(jnp.float32)[None, :]                     # (1, N)
    pool = (jnp.where(valid, 1.0 / L, 0.0)[:, None] *
            (lane[:, None] // SEG == jnp.arange(B)[None, :]).astype(jnp.float32))  # (N, B)

    operands = (x_packed, mask, pool, *flat_params)
    in_specs = [pl.BlockSpec(a.shape, lambda i: (0, 0)) for a in operands]

    out = pl.pallas_call(
        net_kernel,
        out_shape=jax.ShapeDtypeStruct((out_rows, SEG), jnp.float32),
        grid_spec=pltpu.PrefetchScalarGridSpec(
            num_scalar_prefetch=0,
            grid=(1,),                       # whole batch folded into one step
            in_specs=in_specs,
            out_specs=pl.BlockSpec((out_rows, SEG), lambda i: (0, 0)),
        ),
        compiler_params=pltpu.CompilerParams(
            dimension_semantics=("arbitrary",)),
    )(*operands)

    return jnp.squeeze(out[:n_out, :B].T)    # (B, n_out), matches x.squeeze()


# --------------------------------------------------------------- reference ---
def net_reference(x, params):
    def conv(h, name, pad):
        w, b = params[name + ".w"], params[name + ".b"]
        y = jax.lax.conv_general_dilated(h, w, (1,), [(pad, pad)],
                                         dimension_numbers=("NCH", "OIH", "NCH"))
        return y + b.reshape(1, -1, 1)

    def block(h, blk):
        res = conv(h, f"{blk}.conv4", 0)
        t = jax.nn.relu(conv(h, f"{blk}.conv1", 3))
        t = jax.nn.relu(conv(t, f"{blk}.conv2", 2))
        t = jax.nn.relu(conv(t, f"{blk}.conv3", 1))
        return jax.nn.relu(t + res)

    h = conv(x, "conv1", 2)
    h = conv(h, "conv2", 2)
    for blk in ("block1", "block2", "block3"):
        h = block(h, blk)
    pooled = jnp.mean(h, axis=2)            # (B, 64)
    y = pooled @ params["fc1.w"].T + params["fc1.b"]
    y = y @ params["fc2.w"].T + params["fc2.b"]
    return jnp.squeeze(y)


# -------------------------------------------------------------------- main ---
if __name__ == "__main__":
    B, L, OUT = 2, 96, 7                    # Net(input=96, output=7); x: (B, 1, 96)
    key = jax.random.PRNGKey(0)
    kx, kp = jax.random.split(key)
    x = jax.random.normal(kx, (B, 1, L), jnp.float32)
    params = init_params(kp, n_out=OUT)

    flat = kernel_param_list(params)
    out = net_forward(x, *flat)
    jax.block_until_ready(out)

    ref = net_reference(x, params)
    # bf16 MXU inputs (f32 accumulation) put results at the ~1e-2 level vs f32.
    np.testing.assert_allclose(np.asarray(out), np.asarray(ref), rtol=5e-2, atol=1e-1)
    print("KERNEL_OK")
</pallas_src>

<mosaic_0001>
module attributes {stable_mosaic.version = 11 : i64} {
  func.func @net_kernel(%arg0: i32, %arg1: memref<1x256xf32, #tpu.memory_space<vmem>>, %arg2: memref<1x256xf32, #tpu.memory_space<vmem>>, %arg3: memref<256x2xf32, #tpu.memory_space<vmem>>, %arg4: memref<32x5xf32, #tpu.memory_space<vmem>>, %arg5: memref<32x1xf32, #tpu.memory_space<vmem>>, %arg6: memref<64x160xbf16, #tpu.memory_space<vmem>>, %arg7: memref<64x1xf32, #tpu.memory_space<vmem>>, %arg8: memref<64x448xbf16, #tpu.memory_space<vmem>>, %arg9: memref<64x1xf32, #tpu.memory_space<vmem>>, %arg10: memref<64x320xbf16, #tpu.memory_space<vmem>>, %arg11: memref<64x1xf32, #tpu.memory_space<vmem>>, %arg12: memref<64x192xbf16, #tpu.memory_space<vmem>>, %arg13: memref<64x1xf32, #tpu.memory_space<vmem>>, %arg14: memref<64x64xbf16, #tpu.memory_space<vmem>>, %arg15: memref<64x1xf32, #tpu.memory_space<vmem>>, %arg16: memref<64x448xbf16, #tpu.memory_space<vmem>>, %arg17: memref<64x1xf32, #tpu.memory_space<vmem>>, %arg18: memref<64x320xbf16, #tpu.memory_space<vmem>>, %arg19: memref<64x1xf32, #tpu.memory_space<vmem>>, %arg20: memref<64x192xbf16, #tpu.memory_space<vmem>>, %arg21: memref<64x1xf32, #tpu.memory_space<vmem>>, %arg22: memref<64x64xbf16, #tpu.memory_space<vmem>>, %arg23: memref<64x1xf32, #tpu.memory_space<vmem>>, %arg24: memref<64x448xbf16, #tpu.memory_space<vmem>>, %arg25: memref<64x1xf32, #tpu.memory_space<vmem>>, %arg26: memref<64x320xbf16, #tpu.memory_space<vmem>>, %arg27: memref<64x1xf32, #tpu.memory_space<vmem>>, %arg28: memref<64x192xbf16, #tpu.memory_space<vmem>>, %arg29: memref<64x1xf32, #tpu.memory_space<vmem>>, %arg30: memref<64x64xbf16, #tpu.memory_space<vmem>>, %arg31: memref<64x1xf32, #tpu.memory_space<vmem>>, %arg32: memref<32x64xf32, #tpu.memory_space<vmem>>, %arg33: memref<32x1xf32, #tpu.memory_space<vmem>>, %arg34: memref<7x32xf32, #tpu.memory_space<vmem>>, %arg35: memref<7x1xf32, #tpu.memory_space<vmem>>, %arg36: memref<8x128xf32, #tpu.memory_space<vmem>>) attributes {dimension_semantics = [#tpu.dimension_semantics<arbitrary>], iteration_bounds = array<i64: 1>, scalar_prefetch = 0 : i64, scratch_operands = 0 : i64, tpu.core_type = #tpu.core_type<tc>, window_params = [{pipeline_mode = #tpu.pipeline_mode<synchronous>, transform_indices = @transform_0, window_bounds = array<i64: 1, 256>}, {pipeline_mode = #tpu.pipeline_mode<synchronous>, transform_indices = @transform_1, window_bounds = array<i64: 1, 256>}, {pipeline_mode = #tpu.pipeline_mode<synchronous>, transform_indices = @transform_2, window_bounds = array<i64: 256, 2>}, {pipeline_mode = #tpu.pipeline_mode<synchronous>, transform_indices = @transform_3, window_bounds = array<i64: 32, 5>}, {pipeline_mode = #tpu.pipeline_mode<synchronous>, transform_indices = @transform_4, window_bounds = array<i64: 32, 1>}, {pipeline_mode = #tpu.pipeline_mode<synchronous>, transform_indices = @transform_5, window_bounds = array<i64: 64, 160>}, {pipeline_mode = #tpu.pipeline_mode<synchronous>, transform_indices = @transform_6, window_bounds = array<i64: 64, 1>}, {pipeline_mode = #tpu.pipeline_mode<synchronous>, transform_indices = @transform_7, window_bounds = array<i64: 64, 448>}, {pipeline_mode = #tpu.pipeline_mode<synchronous>, transform_indices = @transform_8, window_bounds = array<i64: 64, 1>}, {pipeline_mode = #tpu.pipeline_mode<synchronous>, transform_indices = @transform_9, window_bounds = array<i64: 64, 320>}, {pipeline_mode = #tpu.pipeline_mode<synchronous>, transform_indices = @transform_10, window_bounds = array<i64: 64, 1>}, {pipeline_mode = #tpu.pipeline_mode<synchronous>, transform_indices = @transform_11, window_bounds = array<i64: 64, 192>}, {pipeline_mode = #tpu.pipeline_mode<synchronous>, transform_indices = @transform_12, window_bounds = array<i64: 64, 1>}, {pipeline_mode = #tpu.pipeline_mode<synchronous>, transform_indices = @transform_13, window_bounds = array<i64: 64, 64>}, {pipeline_mode = #tpu.pipeline_mode<synchronous>, transform_indices = @transform_14, window_bounds = array<i64: 64, 1>}, {pipeline_mode = #tpu.pipeline_mode<synchronous>, transform_indices = @transform_15, window_bounds = array<i64: 64, 448>}, {pipeline_mode = #tpu.pipeline_mode<synchronous>, transform_indices = @transform_16, window_bounds = array<i64: 64, 1>}, {pipeline_mode = #tpu.pipeline_mode<synchronous>, transform_indices = @transform_17, window_bounds = array<i64: 64, 320>}, {pipeline_mode = #tpu.pipeline_mode<synchronous>, transform_indices = @transform_18, window_bounds = array<i64: 64, 1>}, {pipeline_mode = #tpu.pipeline_mode<synchronous>, transform_indices = @transform_19, window_bounds = array<i64: 64, 192>}, {pipeline_mode = #tpu.pipeline_mode<synchronous>, transform_indices = @transform_20, window_bounds = array<i64: 64, 1>}, {pipeline_mode = #tpu.pipeline_mode<synchronous>, transform_indices = @transform_21, window_bounds = array<i64: 64, 64>}, {pipeline_mode = #tpu.pipeline_mode<synchronous>, transform_indices = @transform_22, window_bounds = array<i64: 64, 1>}, {pipeline_mode = #tpu.pipeline_mode<synchronous>, transform_indices = @transform_23, window_bounds = array<i64: 64, 448>}, {pipeline_mode = #tpu.pipeline_mode<synchronous>, transform_indices = @transform_24, window_bounds = array<i64: 64, 1>}, {pipeline_mode = #tpu.pipeline_mode<synchronous>, transform_indices = @transform_25, window_bounds = array<i64: 64, 320>}, {pipeline_mode = #tpu.pipeline_mode<synchronous>, transform_indices = @transform_26, window_bounds = array<i64: 64, 1>}, {pipeline_mode = #tpu.pipeline_mode<synchronous>, transform_indices = @transform_27, window_bounds = array<i64: 64, 192>}, {pipeline_mode = #tpu.pipeline_mode<synchronous>, transform_indices = @transform_28, window_bounds = array<i64: 64, 1>}, {pipeline_mode = #tpu.pipeline_mode<synchronous>, transform_indices = @transform_29, window_bounds = array<i64: 64, 64>}, {pipeline_mode = #tpu.pipeline_mode<synchronous>, transform_indices = @transform_30, window_bounds = array<i64: 64, 1>}, {pipeline_mode = #tpu.pipeline_mode<synchronous>, transform_indices = @transform_31, window_bounds = array<i64: 32, 64>}, {pipeline_mode = #tpu.pipeline_mode<synchronous>, transform_indices = @transform_32, window_bounds = array<i64: 32, 1>}, {pipeline_mode = #tpu.pipeline_mode<synchronous>, transform_indices = @transform_33, window_bounds = array<i64: 7, 32>}, {pipeline_mode = #tpu.pipeline_mode<synchronous>, transform_indices = @transform_34, window_bounds = array<i64: 7, 1>}, {pipeline_mode = #tpu.pipeline_mode<synchronous>, transform_indices = @transform_35, window_bounds = array<i64: 8, 128>}]} {
    %c0 = arith.constant 0 : index
    %c0_0 = arith.constant 0 : index
    %0 = vector.load %arg2[%c0, %c0_0] : memref<1x256xf32, #tpu.memory_space<vmem>>, vector<1x256xf32>
    %c0_1 = arith.constant 0 : index
    %c0_2 = arith.constant 0 : index
    %1 = vector.load %arg1[%c0_1, %c0_2] : memref<1x256xf32, #tpu.memory_space<vmem>>, vector<1x256xf32>
    %c0_3 = arith.constant 0 : index
    %c0_4 = arith.constant 0 : index
    %2 = vector.load %arg4[%c0_3, %c0_4] : memref<32x5xf32, #tpu.memory_space<vmem>>, vector<32x5xf32>
    %c0_5 = arith.constant 0 : index
    %c0_6 = arith.constant 0 : index
    %3 = vector.load %arg5[%c0_5, %c0_6] : memref<32x1xf32, #tpu.memory_space<vmem>>, vector<32x1xf32>
    %4 = vector.extract_strided_slice %2 {offsets = [0, 0], sizes = [32, 1], strides = [1, 1]} : vector<32x5xf32> to vector<32x1xf32>
    %cst = arith.constant 0.000000e+00 : f32
    %5 = vector.broadcast %cst : f32 to vector<1x2xf32>
    %6 = vector.extract_strided_slice %1 {offsets = [0, 0], sizes = [1, 254], strides = [1, 1]} : vector<1x256xf32> to vector<1x254xf32>
    %7 = tpu.concatenate %5, %6 in 1 : vector<1x2xf32>, vector<1x254xf32> -> vector<1x256xf32>
    %8 = vector.broadcast %4 : vector<32x1xf32> to vector<32x256xf32>
    %9 = vector.broadcast %7 : vector<1x256xf32> to vector<32x256xf32>
    %10 = arith.mulf %8, %9 : vector<32x256xf32>
    %11 = vector.extract_strided_slice %2 {offsets = [0, 1], sizes = [32, 1], strides = [1, 1]} : vector<32x5xf32> to vector<32x1xf32>
    %cst_7 = arith.constant 0.000000e+00 : f32
    %12 = vector.broadcast %cst_7 : f32 to vector<1x1xf32>
    %13 = vector.extract_strided_slice %1 {offsets = [0, 0], sizes = [1, 255], strides = [1, 1]} : vector<1x256xf32> to vector<1x255xf32>
    %14 = tpu.concatenate %12, %13 in 1 : vector<1x1xf32>, vector<1x255xf32> -> vector<1x256xf32>
    %15 = vector.broadcast %11 : vector<32x1xf32> to vector<32x256xf32>
    %16 = vector.broadcast %14 : vector<1x256xf32> to vector<32x256xf32>
    %17 = arith.mulf %15, %16 : vector<32x256xf32>
    %18 = arith.addf %10, %17 : vector<32x256xf32>
    %19 = vector.extract_strided_slice %2 {offsets = [0, 2], sizes = [32, 1], strides = [1, 1]} : vector<32x5xf32> to vector<32x1xf32>
    %20 = vector.broadcast %19 : vector<32x1xf32> to vector<32x256xf32>
    %21 = vector.broadcast %1 : vector<1x256xf32> to vector<32x256xf32>
    %22 = arith.mulf %20, %21 : vector<32x256xf32>
    %23 = arith.addf %18, %22 : vector<32x256xf32>
    %24 = vector.extract_strided_slice %2 {offsets = [0, 3], sizes = [32, 1], strides = [1, 1]} : vector<32x5xf32> to vector<32x1xf32>
    %cst_8 = arith.constant 0.000000e+00 : f32
    %25 = vector.broadcast %cst_8 : f32 to vector<1x1xf32>
    %26 = vector.extract_strided_slice %1 {offsets = [0, 1], sizes = [1, 255], strides = [1, 1]} : vector<1x256xf32> to vector<1x255xf32>
    %27 = tpu.concatenate %26, %25 in 1 : vector<1x255xf32>, vector<1x1xf32> -> vector<1x256xf32>
    %28 = vector.broadcast %24 : vector<32x1xf32> to vector<32x256xf32>
    %29 = vector.broadcast %27 : vector<1x256xf32> to vector<32x256xf32>
    %30 = arith.mulf %28, %29 : vector<32x256xf32>
    %31 = arith.addf %23, %30 : vector<32x256xf32>
    %32 = vector.extract_strided_slice %2 {offsets = [0, 4], sizes = [32, 1], strides = [1, 1]} : vector<32x5xf32> to vector<32x1xf32>
    %cst_9 = arith.constant 0.000000e+00 : f32
    %33 = vector.broadcast %cst_9 : f32 to vector<1x2xf32>
    %34 = vector.extract_strided_slice %1 {offsets = [0, 2], sizes = [1, 254], strides = [1, 1]} : vector<1x256xf32> to vector<1x254xf32>
    %35 = tpu.concatenate %34, %33 in 1 : vector<1x254xf32>, vector<1x2xf32> -> vector<1x256xf32>
    %36 = vector.broadcast %32 : vector<32x1xf32> to vector<32x256xf32>
    %37 = vector.broadcast %35 : vector<1x256xf32> to vector<32x256xf32>
    %38 = arith.mulf %36, %37 : vector<32x256xf32>
    %39 = arith.addf %31, %38 : vector<32x256xf32>
    %40 = vector.broadcast %3 : vector<32x1xf32> to vector<32x256xf32>
    %41 = arith.addf %39, %40 : vector<32x256xf32>
    %42 = vector.broadcast %0 : vector<1x256xf32> to vector<32x256xf32>
    %43 = arith.mulf %41, %42 : vector<32x256xf32>
    %c0_10 = arith.constant 0 : index
    %c0_11 = arith.constant 0 : index
    %44 = vector.load %arg6[%c0_10, %c0_11] : memref<64x160xbf16, #tpu.memory_space<vmem>>, vector<64x160xbf16>
    %cst_12 = arith.constant 0.000000e+00 : f32
    %45 = vector.broadcast %cst_12 : f32 to vector<32x2xf32>
    %46 = vector.extract_strided_slice %43 {offsets = [0, 0], sizes = [32, 254], strides = [1, 1]} : vector<32x256xf32> to vector<32x254xf32>
    %47 = tpu.concatenate %45, %46 in 1 : vector<32x2xf32>, vector<32x254xf32> -> vector<32x256xf32>
    %cst_13 = arith.constant 0.000000e+00 : f32
    %48 = vector.broadcast %cst_13 : f32 to vector<32x1xf32>
    %49 = vector.extract_strided_slice %43 {offsets = [0, 0], sizes = [32, 255], strides = [1, 1]} : vector<32x256xf32> to vector<32x255xf32>
    %50 = tpu.concatenate %48, %49 in 1 : vector<32x1xf32>, vector<32x255xf32> -> vector<32x256xf32>
    %cst_14 = arith.constant 0.000000e+00 : f32
    %51 = vector.broadcast %cst_14 : f32 to vector<32x1xf32>
    %52 = vector.extract_strided_slice %43 {offsets = [0, 1], sizes = [32, 255], strides = [1, 1]} : vector<32x256xf32> to vector<32x255xf32>
    %53 = tpu.concatenate %52, %51 in 1 : vector<32x255xf32>, vector<32x1xf32> -> vector<32x256xf32>
    %cst_15 = arith.constant 0.000000e+00 : f32
    %54 = vector.broadcast %cst_15 : f32 to vector<32x2xf32>
    %55 = vector.extract_strided_slice %43 {offsets = [0, 2], sizes = [32, 254], strides = [1, 1]} : vector<32x256xf32> to vector<32x254xf32>
    %56 = tpu.concatenate %55, %54 in 1 : vector<32x254xf32>, vector<32x2xf32> -> vector<32x256xf32>
    %57 = tpu.concatenate %47, %50, %43, %53, %56 in 0 : vector<32x256xf32>, vector<32x256xf32>, vector<32x256xf32>, vector<32x256xf32>, vector<32x256xf32> -> vector<160x256xf32>
    %58 = arith.truncf %57 : vector<160x256xf32> to vector<160x256xbf16>
    %cst_16 = arith.constant dense<0.000000e+00> : vector<64x256xf32>
    %59 = tpu.matmul %44, %58, %cst_16 {dimension_numbers = #tpu.dot_dimension_numbers<[1], [0], [0], [1], [0, 0, 1, 1], [], []>} : vector<64x160xbf16>, vector<160x256xbf16>, vector<64x256xf32> -> vector<64x256xf32>
    %c0_17 = arith.constant 0 : index
    %c0_18 = arith.constant 0 : index
    %60 = vector.load %arg7[%c0_17, %c0_18] : memref<64x1xf32, #tpu.memory_space<vmem>>, vector<64x1xf32>
    %61 = vector.broadcast %60 : vector<64x1xf32> to vector<64x256xf32>
    %62 = arith.addf %59, %61 : vector<64x256xf32>
    %63 = vector.broadcast %0 : vector<1x256xf32> to vector<64x256xf32>
    %64 = arith.mulf %62, %63 : vector<64x256xf32>
    %c0_19 = arith.constant 0 : index
    %c0_20 = arith.constant 0 : index
    %65 = vector.load %arg14[%c0_19, %c0_20] : memref<64x64xbf16, #tpu.memory_space<vmem>>, vector<64x64xbf16>
    %66 = arith.truncf %64 : vector<64x256xf32> to vector<64x256xbf16>
    %cst_21 = arith.constant dense<0.000000e+00> : vector<64x256xf32>
    %67 = tpu.matmul %65, %66, %cst_21 {dimension_numbers = #tpu.dot_dimension_numbers<[1], [0], [0], [1], [0, 0, 1, 1], [], []>} : vector<64x64xbf16>, vector<64x256xbf16>, vector<64x256xf32> -> vector<64x256xf32>
    %c0_22 = arith.constant 0 : index
    %c0_23 = arith.constant 0 : index
    %68 = vector.load %arg15[%c0_22, %c0_23] : memref<64x1xf32, #tpu.memory_space<vmem>>, vector<64x1xf32>
    %69 = vector.broadcast %68 : vector<64x1xf32> to vector<64x256xf32>
    %70 = arith.addf %67, %69 : vector<64x256xf32>
    %71 = vector.broadcast %0 : vector<1x256xf32> to vector<64x256xf32>
    %72 = arith.mulf %70, %71 : vector<64x256xf32>
    %c0_24 = arith.constant 0 : index
    %c0_25 = arith.constant 0 : index
    %73 = vector.load %arg8[%c0_24, %c0_25] : memref<64x448xbf16, #tpu.memory_space<vmem>>, vector<64x448xbf16>
    %cst_26 = arith.constant 0.000000e+00 : f32
    %74 = vector.broadcast %cst_26 : f32 to vector<64x3xf32>
    %75 = vector.extract_strided_slice %64 {offsets = [0, 0], sizes = [64, 253], strides = [1, 1]} : vector<64x256xf32> to vector<64x253xf32>
    %76 = tpu.concatenate %74, %75 in 1 : vector<64x3xf32>, vector<64x253xf32> -> vector<64x256xf32>
    %cst_27 = arith.constant 0.000000e+00 : f32
    %77 = vector.broadcast %cst_27 : f32 to vector<64x2xf32>
    %78 = vector.extract_strided_slice %64 {offsets = [0, 0], sizes = [64, 254], strides = [1, 1]} : vector<64x256xf32> to vector<64x254xf32>
    %79 = tpu.concatenate %77, %78 in 1 : vector<64x2xf32>, vector<64x254xf32> -> vector<64x256xf32>
    %cst_28 = arith.constant 0.000000e+00 : f32
    %80 = vector.broadcast %cst_28 : f32 to vector<64x1xf32>
    %81 = vector.extract_strided_slice %64 {offsets = [0, 0], sizes = [64, 255], strides = [1, 1]} : vector<64x256xf32> to vector<64x255xf32>
    %82 = tpu.concatenate %80, %81 in 1 : vector<64x1xf32>, vector<64x255xf32> -> vector<64x256xf32>
    %cst_29 = arith.constant 0.000000e+00 : f32
    %83 = vector.broadcast %cst_29 : f32 to vector<64x1xf32>
    %84 = vector.extract_strided_slice %64 {offsets = [0, 1], sizes = [64, 255], strides = [1, 1]} : vector<64x256xf32> to vector<64x255xf32>
    %85 = tpu.concatenate %84, %83 in 1 : vector<64x255xf32>, vector<64x1xf32> -> vector<64x256xf32>
    %cst_30 = arith.constant 0.000000e+00 : f32
    %86 = vector.broadcast %cst_30 : f32 to vector<64x2xf32>
    %87 = vector.extract_strided_slice %64 {offsets = [0, 2], sizes = [64, 254], strides = [1, 1]} : vector<64x256xf32> to vector<64x254xf32>
    %88 = tpu.concatenate %87, %86 in 1 : vector<64x254xf32>, vector<64x2xf32> -> vector<64x256xf32>
    %cst_31 = arith.constant 0.000000e+00 : f32
    %89 = vector.broadcast %cst_31 : f32 to vector<64x3xf32>
    %90 = vector.extract_strided_slice %64 {offsets = [0, 3], sizes = [64, 253], strides = [1, 1]} : vector<64x256xf32> to vector<64x253xf32>
    %91 = tpu.concatenate %90, %89 in 1 : vector<64x253xf32>, vector<64x3xf32> -> vector<64x256xf32>
    %92 = tpu.concatenate %76, %79, %82, %64, %85, %88, %91 in 0 : vector<64x256xf32>, vector<64x256xf32>, vector<64x256xf32>, vector<64x256xf32>, vector<64x256xf32>, vector<64x256xf32>, vector<64x256xf32> -> vector<448x256xf32>
    %93 = arith.truncf %92 : vector<448x256xf32> to vector<448x256xbf16>
    %cst_32 = arith.constant dense<0.000000e+00> : vector<64x256xf32>
    %94 = tpu.matmul %73, %93, %cst_32 {dimension_numbers = #tpu.dot_dimension_numbers<[1], [0], [0], [1], [0, 0, 1, 1], [], []>} : vector<64x448xbf16>, vector<448x256xbf16>, vector<64x256xf32> -> vector<64x256xf32>
    %c0_33 = arith.constant 0 : index
    %c0_34 = arith.constant 0 : index
    %95 = vector.load %arg9[%c0_33, %c0_34] : memref<64x1xf32, #tpu.memory_space<vmem>>, vector<64x1xf32>
    %96 = vector.broadcast %95 : vector<64x1xf32> to vector<64x256xf32>
    %97 = arith.addf %94, %96 : vector<64x256xf32>
    %98 = vector.broadcast %0 : vector<1x256xf32> to vector<64x256xf32>
    %99 = arith.mulf %97, %98 : vector<64x256xf32>
    %cst_35 = arith.constant 0.000000e+00 : f32
    %100 = vector.broadcast %cst_35 : f32 to vector<64x256xf32>
    %101 = arith.maximumf %99, %100 : vector<64x256xf32>
    %c0_36 = arith.constant 0 : index
    %c0_37 = arith.constant 0 : index
    %102 = vector.load %arg10[%c0_36, %c0_37] : memref<64x320xbf16, #tpu.memory_space<vmem>>, vector<64x320xbf16>
    %cst_38 = arith.constant 0.000000e+00 : f32
    %103 = vector.broadcast %cst_38 : f32 to vector<64x2xf32>
    %104 = vector.extract_strided_slice %101 {offsets = [0, 0], sizes = [64, 254], strides = [1, 1]} : vector<64x256xf32> to vector<64x254xf32>
    %105 = tpu.concatenate %103, %104 in 1 : vector<64x2xf32>, vector<64x254xf32> -> vector<64x256xf32>
    %cst_39 = arith.constant 0.000000e+00 : f32
    %106 = vector.broadcast %cst_39 : f32 to vector<64x1xf32>
    %107 = vector.extract_strided_slice %101 {offsets = [0, 0], sizes = [64, 255], strides = [1, 1]} : vector<64x256xf32> to vector<64x255xf32>
    %108 = tpu.concatenate %106, %107 in 1 : vector<64x1xf32>, vector<64x255xf32> -> vector<64x256xf32>
    %cst_40 = arith.constant 0.000000e+00 : f32
    %109 = vector.broadcast %cst_40 : f32 to vector<64x1xf32>
    %110 = vector.extract_strided_slice %101 {offsets = [0, 1], sizes = [64, 255], strides = [1, 1]} : vector<64x256xf32> to vector<64x255xf32>
    %111 = tpu.concatenate %110, %109 in 1 : vector<64x255xf32>, vector<64x1xf32> -> vector<64x256xf32>
    %cst_41 = arith.constant 0.000000e+00 : f32
    %112 = vector.broadcast %cst_41 : f32 to vector<64x2xf32>
    %113 = vector.extract_strided_slice %101 {offsets = [0, 2], sizes = [64, 254], strides = [1, 1]} : vector<64x256xf32> to vector<64x254xf32>
    %114 = tpu.concatenate %113, %112 in 1 : vector<64x254xf32>, vector<64x2xf32> -> vector<64x256xf32>
    %115 = tpu.concatenate %105, %108, %101, %111, %114 in 0 : vector<64x256xf32>, vector<64x256xf32>, vector<64x256xf32>, vector<64x256xf32>, vector<64x256xf32> -> vector<320x256xf32>
    %116 = arith.truncf %115 : vector<320x256xf32> to vector<320x256xbf16>
    %cst_42 = arith.constant dense<0.000000e+00> : vector<64x256xf32>
    %117 = tpu.matmul %102, %116, %cst_42 {dimension_numbers = #tpu.dot_dimension_numbers<[1], [0], [0], [1], [0, 0, 1, 1], [], []>} : vector<64x320xbf16>, vector<320x256xbf16>, vector<64x256xf32> -> vector<64x256xf32>
    %c0_43 = arith.constant 0 : index
    %c0_44 = arith.constant 0 : index
    %118 = vector.load %arg11[%c0_43, %c0_44] : memref<64x1xf32, #tpu.memory_space<vmem>>, vector<64x1xf32>
    %119 = vector.broadcast %118 : vector<64x1xf32> to vector<64x256xf32>
    %120 = arith.addf %117, %119 : vector<64x256xf32>
    %121 = vector.broadcast %0 : vector<1x256xf32> to vector<64x256xf32>
    %122 = arith.mulf %120, %121 : vector<64x256xf32>
    %cst_45 = arith.constant 0.000000e+00 : f32
    %123 = vector.broadcast %cst_45 : f32 to vector<64x256xf32>
    %124 = arith.maximumf %122, %123 : vector<64x256xf32>
    %c0_46 = arith.constant 0 : index
    %c0_47 = arith.constant 0 : index
    %125 = vector.load %arg12[%c0_46, %c0_47] : memref<64x192xbf16, #tpu.memory_space<vmem>>, vector<64x192xbf16>
    %cst_48 = arith.constant 0.000000e+00 : f32
    %126 = vector.broadcast %cst_48 : f32 to vector<64x1xf32>
    %127 = vector.extract_strided_slice %124 {offsets = [0, 0], sizes = [64, 255], strides = [1, 1]} : vector<64x256xf32> to vector<64x255xf32>
    %128 = tpu.concatenate %126, %127 in 1 : vector<64x1xf32>, vector<64x255xf32> -> vector<64x256xf32>
    %cst_49 = arith.constant 0.000000e+00 : f32
    %129 = vector.broadcast %cst_49 : f32 to vector<64x1xf32>
    %130 = vector.extract_strided_slice %124 {offsets = [0, 1], sizes = [64, 255], strides = [1, 1]} : vector<64x256xf32> to vector<64x255xf32>
    %131 = tpu.concatenate %130, %129 in 1 : vector<64x255xf32>, vector<64x1xf32> -> vector<64x256xf32>
    %132 = tpu.concatenate %128, %124, %131 in 0 : vector<64x256xf32>, vector<64x256xf32>, vector<64x256xf32> -> vector<192x256xf32>
    %133 = arith.truncf %132 : vector<192x256xf32> to vector<192x256xbf16>
    %cst_50 = arith.constant dense<0.000000e+00> : vector<64x256xf32>
    %134 = tpu.matmul %125, %133, %cst_50 {dimension_numbers = #tpu.dot_dimension_numbers<[1], [0], [0], [1], [0, 0, 1, 1], [], []>} : vector<64x192xbf16>, vector<192x256xbf16>, vector<64x256xf32> -> vector<64x256xf32>
    %c0_51 = arith.constant 0 : index
    %c0_52 = arith.constant 0 : index
    %135 = vector.load %arg13[%c0_51, %c0_52] : memref<64x1xf32, #tpu.memory_space<vmem>>, vector<64x1xf32>
    %136 = vector.broadcast %135 : vector<64x1xf32> to vector<64x256xf32>
    %137 = arith.addf %134, %136 : vector<64x256xf32>
    %138 = vector.broadcast %0 : vector<1x256xf32> to vector<64x256xf32>
    %139 = arith.mulf %137, %138 : vector<64x256xf32>
    %cst_53 = arith.constant 0.000000e+00 : f32
    %140 = vector.broadcast %cst_53 : f32 to vector<64x256xf32>
    %141 = arith.maximumf %139, %140 : vector<64x256xf32>
    %142 = arith.addf %141, %72 : vector<64x256xf32>
    %cst_54 = arith.constant 0.000000e+00 : f32
    %143 = vector.broadcast %cst_54 : f32 to vector<64x256xf32>
    %144 = arith.maximumf %142, %143 : vector<64x256xf32>
    %c0_55 = arith.constant 0 : index
    %c0_56 = arith.constant 0 : index
    %145 = vector.load %arg22[%c0_55, %c0_56] : memref<64x64xbf16, #tpu.memory_space<vmem>>, vector<64x64xbf16>
    %146 = arith.truncf %144 : vector<64x256xf32> to vector<64x256xbf16>
    %cst_57 = arith.constant dense<0.000000e+00> : vector<64x256xf32>
    %147 = tpu.matmul %145, %146, %cst_57 {dimension_numbers = #tpu.dot_dimension_numbers<[1], [0], [0], [1], [0, 0, 1, 1], [], []>} : vector<64x64xbf16>, vector<64x256xbf16>, vector<64x256xf32> -> vector<64x256xf32>
    %c0_58 = arith.constant 0 : index
    %c0_59 = arith.constant 0 : index
    %148 = vector.load %arg23[%c0_58, %c0_59] : memref<64x1xf32, #tpu.memory_space<vmem>>, vector<64x1xf32>
    %149 = vector.broadcast %148 : vector<64x1xf32> to vector<64x256xf32>
    %150 = arith.addf %147, %149 : vector<64x256xf32>
    %151 = vector.broadcast %0 : vector<1x256xf32> to vector<64x256xf32>
    %152 = arith.mulf %150, %151 : vector<64x256xf32>
    %c0_60 = arith.constant 0 : index
    %c0_61 = arith.constant 0 : index
    %153 = vector.load %arg16[%c0_60, %c0_61] : memref<64x448xbf16, #tpu.memory_space<vmem>>, vector<64x448xbf16>
    %cst_62 = arith.constant 0.000000e+00 : f32
    %154 = vector.broadcast %cst_62 : f32 to vector<64x3xf32>
    %155 = vector.extract_strided_slice %144 {offsets = [0, 0], sizes = [64, 253], strides = [1, 1]} : vector<64x256xf32> to vector<64x253xf32>
    %156 = tpu.concatenate %154, %155 in 1 : vector<64x3xf32>, vector<64x253xf32> -> vector<64x256xf32>
    %cst_63 = arith.constant 0.000000e+00 : f32
    %157 = vector.broadcast %cst_63 : f32 to vector<64x2xf32>
    %158 = vector.extract_strided_slice %144 {offsets = [0, 0], sizes = [64, 254], strides = [1, 1]} : vector<64x256xf32> to vector<64x254xf32>
    %159 = tpu.concatenate %157, %158 in 1 : vector<64x2xf32>, vector<64x254xf32> -> vector<64x256xf32>
    %cst_64 = arith.constant 0.000000e+00 : f32
    %160 = vector.broadcast %cst_64 : f32 to vector<64x1xf32>
    %161 = vector.extract_strided_slice %144 {offsets = [0, 0], sizes = [64, 255], strides = [1, 1]} : vector<64x256xf32> to vector<64x255xf32>
    %162 = tpu.concatenate %160, %161 in 1 : vector<64x1xf32>, vector<64x255xf32> -> vector<64x256xf32>
    %cst_65 = arith.constant 0.000000e+00 : f32
    %163 = vector.broadcast %cst_65 : f32 to vector<64x1xf32>
    %164 = vector.extract_strided_slice %144 {offsets = [0, 1], sizes = [64, 255], strides = [1, 1]} : vector<64x256xf32> to vector<64x255xf32>
    %165 = tpu.concatenate %164, %163 in 1 : vector<64x255xf32>, vector<64x1xf32> -> vector<64x256xf32>
    %cst_66 = arith.constant 0.000000e+00 : f32
    %166 = vector.broadcast %cst_66 : f32 to vector<64x2xf32>
    %167 = vector.extract_strided_slice %144 {offsets = [0, 2], sizes = [64, 254], strides = [1, 1]} : vector<64x256xf32> to vector<64x254xf32>
    %168 = tpu.concatenate %167, %166 in 1 : vector<64x254xf32>, vector<64x2xf32> -> vector<64x256xf32>
    %cst_67 = arith.constant 0.000000e+00 : f32
    %169 = vector.broadcast %cst_67 : f32 to vector<64x3xf32>
    %170 = vector.extract_strided_slice %144 {offsets = [0, 3], sizes = [64, 253], strides = [1, 1]} : vector<64x256xf32> to vector<64x253xf32>
    %171 = tpu.concatenate %170, %169 in 1 : vector<64x253xf32>, vector<64x3xf32> -> vector<64x256xf32>
    %172 = tpu.concatenate %156, %159, %162, %144, %165, %168, %171 in 0 : vector<64x256xf32>, vector<64x256xf32>, vector<64x256xf32>, vector<64x256xf32>, vector<64x256xf32>, vector<64x256xf32>, vector<64x256xf32> -> vector<448x256xf32>
    %173 = arith.truncf %172 : vector<448x256xf32> to vector<448x256xbf16>
    %cst_68 = arith.constant dense<0.000000e+00> : vector<64x256xf32>
    %174 = tpu.matmul %153, %173, %cst_68 {dimension_numbers = #tpu.dot_dimension_numbers<[1], [0], [0], [1], [0, 0, 1, 1], [], []>} : vector<64x448xbf16>, vector<448x256xbf16>, vector<64x256xf32> -> vector<64x256xf32>
    %c0_69 = arith.constant 0 : index
    %c0_70 = arith.constant 0 : index
    %175 = vector.load %arg17[%c0_69, %c0_70] : memref<64x1xf32, #tpu.memory_space<vmem>>, vector<64x1xf32>
    %176 = vector.broadcast %175 : vector<64x1xf32> to vector<64x256xf32>
    %177 = arith.addf %174, %176 : vector<64x256xf32>
    %178 = vector.broadcast %0 : vector<1x256xf32> to vector<64x256xf32>
    %179 = arith.mulf %177, %178 : vector<64x256xf32>
    %cst_71 = arith.constant 0.000000e+00 : f32
    %180 = vector.broadcast %cst_71 : f32 to vector<64x256xf32>
    %181 = arith.maximumf %179, %180 : vector<64x256xf32>
    %c0_72 = arith.constant 0 : index
    %c0_73 = arith.constant 0 : index
    %182 = vector.load %arg18[%c0_72, %c0_73] : memref<64x320xbf16, #tpu.memory_space<vmem>>, vector<64x320xbf16>
    %cst_74 = arith.constant 0.000000e+00 : f32
    %183 = vector.broadcast %cst_74 : f32 to vector<64x2xf32>
    %184 = vector.extract_strided_slice %181 {offsets = [0, 0], sizes = [64, 254], strides = [1, 1]} : vector<64x256xf32> to vector<64x254xf32>
    %185 = tpu.concatenate %183, %184 in 1 : vector<64x2xf32>, vector<64x254xf32> -> vector<64x256xf32>
    %cst_75 = arith.constant 0.000000e+00 : f32
    %186 = vector.broadcast %cst_75 : f32 to vector<64x1xf32>
    %187 = vector.extract_strided_slice %181 {offsets = [0, 0], sizes = [64, 255], strides = [1, 1]} : vector<64x256xf32> to vector<64x255xf32>
    %188 = tpu.concatenate %186, %187 in 1 : vector<64x1xf32>, vector<64x255xf32> -> vector<64x256xf32>
    %cst_76 = arith.constant 0.000000e+00 : f32
    %189 = vector.broadcast %cst_76 : f32 to vector<64x1xf32>
    %190 = vector.extract_strided_slice %181 {offsets = [0, 1], sizes = [64, 255], strides = [1, 1]} : vector<64x256xf32> to vector<64x255xf32>
    %191 = tpu.concatenate %190, %189 in 1 : vector<64x255xf32>, vector<64x1xf32> -> vector<64x256xf32>
    %cst_77 = arith.constant 0.000000e+00 : f32
    %192 = vector.broadcast %cst_77 : f32 to vector<64x2xf32>
    %193 = vector.extract_strided_slice %181 {offsets = [0, 2], sizes = [64, 254], strides = [1, 1]} : vector<64x256xf32> to vector<64x254xf32>
    %194 = tpu.concatenate %193, %192 in 1 : vector<64x254xf32>, vector<64x2xf32> -> vector<64x256xf32>
    %195 = tpu.concatenate %185, %188, %181, %191, %194 in 0 : vector<64x256xf32>, vector<64x256xf32>, vector<64x256xf32>, vector<64x256xf32>, vector<64x256xf32> -> vector<320x256xf32>
    %196 = arith.truncf %195 : vector<320x256xf32> to vector<320x256xbf16>
    %cst_78 = arith.constant dense<0.000000e+00> : vector<64x256xf32>
    %197 = tpu.matmul %182, %196, %cst_78 {dimension_numbers = #tpu.dot_dimension_numbers<[1], [0], [0], [1], [0, 0, 1, 1], [], []>} : vector<64x320xbf16>, vector<320x256xbf16>, vector<64x256xf32> -> vector<64x256xf32>
    %c0_79 = arith.constant 0 : index
    %c0_80 = arith.constant 0 : index
    %198 = vector.load %arg19[%c0_79, %c0_80] : memref<64x1xf32, #tpu.memory_space<vmem>>, vector<64x1xf32>
    %199 = vector.broadcast %198 : vector<64x1xf32> to vector<64x256xf32>
    %200 = arith.addf %197, %199 : vector<64x256xf32>
    %201 = vector.broadcast %0 : vector<1x256xf32> to vector<64x256xf32>
    %202 = arith.mulf %200, %201 : vector<64x256xf32>
    %cst_81 = arith.constant 0.000000e+00 : f32
    %203 = vector.broadcast %cst_81 : f32 to vector<64x256xf32>
    %204 = arith.maximumf %202, %203 : vector<64x256xf32>
    %c0_82 = arith.constant 0 : index
    %c0_83 = arith.constant 0 : index
    %205 = vector.load %arg20[%c0_82, %c0_83] : memref<64x192xbf16, #tpu.memory_space<vmem>>, vector<64x192xbf16>
    %cst_84 = arith.constant 0.000000e+00 : f32
    %206 = vector.broadcast %cst_84 : f32 to vector<64x1xf32>
    %207 = vector.extract_strided_slice %204 {offsets = [0, 0], sizes = [64, 255], strides = [1, 1]} : vector<64x256xf32> to vector<64x255xf32>
    %208 = tpu.concatenate %206, %207 in 1 : vector<64x1xf32>, vector<64x255xf32> -> vector<64x256xf32>
    %cst_85 = arith.constant 0.000000e+00 : f32
    %209 = vector.broadcast %cst_85 : f32 to vector<64x1xf32>
    %210 = vector.extract_strided_slice %204 {offsets = [0, 1], sizes = [64, 255], strides = [1, 1]} : vector<64x256xf32> to vector<64x255xf32>
    %211 = tpu.concatenate %210, %209 in 1 : vector<64x255xf32>, vector<64x1xf32> -> vector<64x256xf32>
    %212 = tpu.concatenate %208, %204, %211 in 0 : vector<64x256xf32>, vector<64x256xf32>, vector<64x256xf32> -> vector<192x256xf32>
    %213 = arith.truncf %212 : vector<192x256xf32> to vector<192x256xbf16>
    %cst_86 = arith.constant dense<0.000000e+00> : vector<64x256xf32>
    %214 = tpu.matmul %205, %213, %cst_86 {dimension_numbers = #tpu.dot_dimension_numbers<[1], [0], [0], [1], [0, 0, 1, 1], [], []>} : vector<64x192xbf16>, vector<192x256xbf16>, vector<64x256xf32> -> vector<64x256xf32>
    %c0_87 = arith.constant 0 : index
    %c0_88 = arith.constant 0 : index
    %215 = vector.load %arg21[%c0_87, %c0_88] : memref<64x1xf32, #tpu.memory_space<vmem>>, vector<64x1xf32>
    %216 = vector.broadcast %215 : vector<64x1xf32> to vector<64x256xf32>
    %217 = arith.addf %214, %216 : vector<64x256xf32>
    %218 = vector.broadcast %0 : vector<1x256xf32> to vector<64x256xf32>
    %219 = arith.mulf %217, %218 : vector<64x256xf32>
    %cst_89 = arith.constant 0.000000e+00 : f32
    %220 = vector.broadcast %cst_89 : f32 to vector<64x256xf32>
    %221 = arith.maximumf %219, %220 : vector<64x256xf32>
    %222 = arith.addf %221, %152 : vector<64x256xf32>
    %cst_90 = arith.constant 0.000000e+00 : f32
    %223 = vector.broadcast %cst_90 : f32 to vector<64x256xf32>
    %224 = arith.maximumf %222, %223 : vector<64x256xf32>
    %c0_91 = arith.constant 0 : index
    %c0_92 = arith.constant 0 : index
    %225 = vector.load %arg30[%c0_91, %c0_92] : memref<64x64xbf16, #tpu.memory_space<vmem>>, vector<64x64xbf16>
    %226 = arith.truncf %224 : vector<64x256xf32> to vector<64x256xbf16>
    %cst_93 = arith.constant dense<0.000000e+00> : vector<64x256xf32>
    %227 = tpu.matmul %225, %226, %cst_93 {dimension_numbers = #tpu.dot_dimension_numbers<[1], [0], [0], [1], [0, 0, 1, 1], [], []>} : vector<64x64xbf16>, vector<64x256xbf16>, vector<64x256xf32> -> vector<64x256xf32>
    %c0_94 = arith.constant 0 : index
    %c0_95 = arith.constant 0 : index
    %228 = vector.load %arg31[%c0_94, %c0_95] : memref<64x1xf32, #tpu.memory_space<vmem>>, vector<64x1xf32>
    %229 = vector.broadcast %228 : vector<64x1xf32> to vector<64x256xf32>
    %230 = arith.addf %227, %229 : vector<64x256xf32>
    %231 = vector.broadcast %0 : vector<1x256xf32> to vector<64x256xf32>
    %232 = arith.mulf %230, %231 : vector<64x256xf32>
    %c0_96 = arith.constant 0 : index
    %c0_97 = arith.constant 0 : index
    %233 = vector.load %arg24[%c0_96, %c0_97] : memref<64x448xbf16, #tpu.memory_space<vmem>>, vector<64x448xbf16>
    %cst_98 = arith.constant 0.000000e+00 : f32
    %234 = vector.broadcast %cst_98 : f32 to vector<64x3xf32>
    %235 = vector.extract_strided_slice %224 {offsets = [0, 0], sizes = [64, 253], strides = [1, 1]} : vector<64x256xf32> to vector<64x253xf32>
    %236 = tpu.concatenate %234, %235 in 1 : vector<64x3xf32>, vector<64x253xf32> -> vector<64x256xf32>
    %cst_99 = arith.constant 0.000000e+00 : f32
    %237 = vector.broadcast %cst_99 : f32 to vector<64x2xf32>
    %238 = vector.extract_strided_slice %224 {offsets = [0, 0], sizes = [64, 254], strides = [1, 1]} : vector<64x256xf32> to vector<64x254xf32>
    %239 = tpu.concatenate %237, %238 in 1 : vector<64x2xf32>, vector<64x254xf32> -> vector<64x256xf32>
    %cst_100 = arith.constant 0.000000e+00 : f32
    %240 = vector.broadcast %cst_100 : f32 to vector<64x1xf32>
    %241 = vector.extract_strided_slice %224 {offsets = [0, 0], sizes = [64, 255], strides = [1, 1]} : vector<64x256xf32> to vector<64x255xf32>
    %242 = tpu.concatenate %240, %241 in 1 : vector<64x1xf32>, vector<64x255xf32> -> vector<64x256xf32>
    %cst_101 = arith.constant 0.000000e+00 : f32
    %243 = vector.broadcast %cst_101 : f32 to vector<64x1xf32>
    %244 = vector.extract_strided_slice %224 {offsets = [0, 1], sizes = [64, 255], strides = [1, 1]} : vector<64x256xf32> to vector<64x255xf32>
    %245 = tpu.concatenate %244, %243 in 1 : vector<64x255xf32>, vector<64x1xf32> -> vector<64x256xf32>
    %cst_102 = arith.constant 0.000000e+00 : f32
    %246 = vector.broadcast %cst_102 : f32 to vector<64x2xf32>
    %247 = vector.extract_strided_slice %224 {offsets = [0, 2], sizes = [64, 254], strides = [1, 1]} : vector<64x256xf32> to vector<64x254xf32>
    %248 = tpu.concatenate %247, %246 in 1 : vector<64x254xf32>, vector<64x2xf32> -> vector<64x256xf32>
    %cst_103 = arith.constant 0.000000e+00 : f32
    %249 = vector.broadcast %cst_103 : f32 to vector<64x3xf32>
    %250 = vector.extract_strided_slice %224 {offsets = [0, 3], sizes = [64, 253], strides = [1, 1]} : vector<64x256xf32> to vector<64x253xf32>
    %251 = tpu.concatenate %250, %249 in 1 : vector<64x253xf32>, vector<64x3xf32> -> vector<64x256xf32>
    %252 = tpu.concatenate %236, %239, %242, %224, %245, %248, %251 in 0 : vector<64x256xf32>, vector<64x256xf32>, vector<64x256xf32>, vector<64x256xf32>, vector<64x256xf32>, vector<64x256xf32>, vector<64x256xf32> -> vector<448x256xf32>
    %253 = arith.truncf %252 : vector<448x256xf32> to vector<448x256xbf16>
    %cst_104 = arith.constant dense<0.000000e+00> : vector<64x256xf32>
    %254 = tpu.matmul %233, %253, %cst_104 {dimension_numbers = #tpu.dot_dimension_numbers<[1], [0], [0], [1], [0, 0, 1, 1], [], []>} : vector<64x448xbf16>, vector<448x256xbf16>, vector<64x256xf32> -> vector<64x256xf32>
    %c0_105 = arith.constant 0 : index
    %c0_106 = arith.constant 0 : index
    %255 = vector.load %arg25[%c0_105, %c0_106] : memref<64x1xf32, #tpu.memory_space<vmem>>, vector<64x1xf32>
    %256 = vector.broadcast %255 : vector<64x1xf32> to vector<64x256xf32>
    %257 = arith.addf %254, %256 : vector<64x256xf32>
    %258 = vector.broadcast %0 : vector<1x256xf32> to vector<64x256xf32>
    %259 = arith.mulf %257, %258 : vector<64x256xf32>
    %cst_107 = arith.constant 0.000000e+00 : f32
    %260 = vector.broadcast %cst_107 : f32 to vector<64x256xf32>
    %261 = arith.maximumf %259, %260 : vector<64x256xf32>
    %c0_108 = arith.constant 0 : index
    %c0_109 = arith.constant 0 : index
    %262 = vector.load %arg26[%c0_108, %c0_109] : memref<64x320xbf16, #tpu.memory_space<vmem>>, vector<64x320xbf16>
    %cst_110 = arith.constant 0.000000e+00 : f32
    %263 = vector.broadcast %cst_110 : f32 to vector<64x2xf32>
    %264 = vector.extract_strided_slice %261 {offsets = [0, 0], sizes = [64, 254], strides = [1, 1]} : vector<64x256xf32> to vector<64x254xf32>
    %265 = tpu.concatenate %263, %264 in 1 : vector<64x2xf32>, vector<64x254xf32> -> vector<64x256xf32>
    %cst_111 = arith.constant 0.000000e+00 : f32
    %266 = vector.broadcast %cst_111 : f32 to vector<64x1xf32>
    %267 = vector.extract_strided_slice %261 {offsets = [0, 0], sizes = [64, 255], strides = [1, 1]} : vector<64x256xf32> to vector<64x255xf32>
    %268 = tpu.concatenate %266, %267 in 1 : vector<64x1xf32>, vector<64x255xf32> -> vector<64x256xf32>
    %cst_112 = arith.constant 0.000000e+00 : f32
    %269 = vector.broadcast %cst_112 : f32 to vector<64x1xf32>
    %270 = vector.extract_strided_slice %261 {offsets = [0, 1], sizes = [64, 255], strides = [1, 1]} : vector<64x256xf32> to vector<64x255xf32>
    %271 = tpu.concatenate %270, %269 in 1 : vector<64x255xf32>, vector<64x1xf32> -> vector<64x256xf32>
    %cst_113 = arith.constant 0.000000e+00 : f32
    %272 = vector.broadcast %cst_113 : f32 to vector<64x2xf32>
    %273 = vector.extract_strided_slice %261 {offsets = [0, 2], sizes = [64, 254], strides = [1, 1]} : vector<64x256xf32> to vector<64x254xf32>
    %274 = tpu.concatenate %273, %272 in 1 : vector<64x254xf32>, vector<64x2xf32> -> vector<64x256xf32>
    %275 = tpu.concatenate %265, %268, %261, %271, %274 in 0 : vector<64x256xf32>, vector<64x256xf32>, vector<64x256xf32>, vector<64x256xf32>, vector<64x256xf32> -> vector<320x256xf32>
    %276 = arith.truncf %275 : vector<320x256xf32> to vector<320x256xbf16>
    %cst_114 = arith.constant dense<0.000000e+00> : vector<64x256xf32>
    %277 = tpu.matmul %262, %276, %cst_114 {dimension_numbers = #tpu.dot_dimension_numbers<[1], [0], [0], [1], [0, 0, 1, 1], [], []>} : vector<64x320xbf16>, vector<320x256xbf16>, vector<64x256xf32> -> vector<64x256xf32>
    %c0_115 = arith.constant 0 : index
    %c0_116 = arith.constant 0 : index
    %278 = vector.load %arg27[%c0_115, %c0_116] : memref<64x1xf32, #tpu.memory_space<vmem>>, vector<64x1xf32>
    %279 = vector.broadcast %278 : vector<64x1xf32> to vector<64x256xf32>
    %280 = arith.addf %277, %279 : vector<64x256xf32>
    %281 = vector.broadcast %0 : vector<1x256xf32> to vector<64x256xf32>
    %282 = arith.mulf %280, %281 : vector<64x256xf32>
    %cst_117 = arith.constant 0.000000e+00 : f32
    %283 = vector.broadcast %cst_117 : f32 to vector<64x256xf32>
    %284 = arith.maximumf %282, %283 : vector<64x256xf32>
    %c0_118 = arith.constant 0 : index
    %c0_119 = arith.constant 0 : index
    %285 = vector.load %arg28[%c0_118, %c0_119] : memref<64x192xbf16, #tpu.memory_space<vmem>>, vector<64x192xbf16>
    %cst_120 = arith.constant 0.000000e+00 : f32
    %286 = vector.broadcast %cst_120 : f32 to vector<64x1xf32>
    %287 = vector.extract_strided_slice %284 {offsets = [0, 0], sizes = [64, 255], strides = [1, 1]} : vector<64x256xf32> to vector<64x255xf32>
    %288 = tpu.concatenate %286, %287 in 1 : vector<64x1xf32>, vector<64x255xf32> -> vector<64x256xf32>
    %cst_121 = arith.constant 0.000000e+00 : f32
    %289 = vector.broadcast %cst_121 : f32 to vector<64x1xf32>
    %290 = vector.extract_strided_slice %284 {offsets = [0, 1], sizes = [64, 255], strides = [1, 1]} : vector<64x256xf32> to vector<64x255xf32>
    %291 = tpu.concatenate %290, %289 in 1 : vector<64x255xf32>, vector<64x1xf32> -> vector<64x256xf32>
    %292 = tpu.concatenate %288, %284, %291 in 0 : vector<64x256xf32>, vector<64x256xf32>, vector<64x256xf32> -> vector<192x256xf32>
    %293 = arith.truncf %292 : vector<192x256xf32> to vector<192x256xbf16>
    %cst_122 = arith.constant dense<0.000000e+00> : vector<64x256xf32>
    %294 = tpu.matmul %285, %293, %cst_122 {dimension_numbers = #tpu.dot_dimension_numbers<[1], [0], [0], [1], [0, 0, 1, 1], [], []>} : vector<64x192xbf16>, vector<192x256xbf16>, vector<64x256xf32> -> vector<64x256xf32>
    %c0_123 = arith.constant 0 : index
    %c0_124 = arith.constant 0 : index
    %295 = vector.load %arg29[%c0_123, %c0_124] : memref<64x1xf32, #tpu.memory_space<vmem>>, vector<64x1xf32>
    %296 = vector.broadcast %295 : vector<64x1xf32> to vector<64x256xf32>
    %297 = arith.addf %294, %296 : vector<64x256xf32>
    %298 = vector.broadcast %0 : vector<1x256xf32> to vector<64x256xf32>
    %299 = arith.mulf %297, %298 : vector<64x256xf32>
    %cst_125 = arith.constant 0.000000e+00 : f32
    %300 = vector.broadcast %cst_125 : f32 to vector<64x256xf32>
    %301 = arith.maximumf %299, %300 : vector<64x256xf32>
    %302 = arith.addf %301, %232 : vector<64x256xf32>
    %cst_126 = arith.constant 0.000000e+00 : f32
    %303 = vector.broadcast %cst_126 : f32 to vector<64x256xf32>
    %304 = arith.maximumf %302, %303 : vector<64x256xf32>
    %c0_127 = arith.constant 0 : index
    %c0_128 = arith.constant 0 : index
    %305 = vector.load %arg3[%c0_127, %c0_128] : memref<256x2xf32, #tpu.memory_space<vmem>>, vector<256x2xf32>
    %cst_129 = arith.constant dense<0.000000e+00> : vector<64x2xf32>
    %306 = tpu.matmul %304, %305, %cst_129 {dimension_numbers = #tpu.dot_dimension_numbers<[1], [0], [0], [1], [0, 0, 1, 1], [], []>} : vector<64x256xf32>, vector<256x2xf32>, vector<64x2xf32> -> vector<64x2xf32>
    %c0_130 = arith.constant 0 : index
    %c0_131 = arith.constant 0 : index
    %307 = vector.load %arg32[%c0_130, %c0_131] : memref<32x64xf32, #tpu.memory_space<vmem>>, vector<32x64xf32>
    %cst_132 = arith.constant dense<0.000000e+00> : vector<32x2xf32>
    %308 = tpu.matmul %307, %306, %cst_132 {dimension_numbers = #tpu.dot_dimension_numbers<[1], [0], [0], [1], [0, 0, 1, 1], [], []>} : vector<32x64xf32>, vector<64x2xf32>, vector<32x2xf32> -> vector<32x2xf32>
    %c0_133 = arith.constant 0 : index
    %c0_134 = arith.constant 0 : index
    %309 = vector.load %arg33[%c0_133, %c0_134] : memref<32x1xf32, #tpu.memory_space<vmem>>, vector<32x1xf32>
    %310 = vector.broadcast %309 : vector<32x1xf32> to vector<32x2xf32>
    %311 = arith.addf %308, %310 : vector<32x2xf32>
    %c0_135 = arith.constant 0 : index
    %c0_136 = arith.constant 0 : index
    %312 = vector.load %arg34[%c0_135, %c0_136] : memref<7x32xf32, #tpu.memory_space<vmem>>, vector<7x32xf32>
    %cst_137 = arith.constant dense<0.000000e+00> : vector<7x2xf32>
    %313 = tpu.matmul %312, %311, %cst_137 {dimension_numbers = #tpu.dot_dimension_numbers<[1], [0], [0], [1], [0, 0, 1, 1], [], []>} : vector<7x32xf32>, vector<32x2xf32>, vector<7x2xf32> -> vector<7x2xf32>
    %c0_138 = arith.constant 0 : index
    %c0_139 = arith.constant 0 : index
    %314 = vector.load %arg35[%c0_138, %c0_139] : memref<7x1xf32, #tpu.memory_space<vmem>>, vector<7x1xf32>
    %315 = vector.broadcast %314 : vector<7x1xf32> to vector<7x2xf32>
    %316 = arith.addf %313, %315 : vector<7x2xf32>
    %cst_140 = arith.constant 0.000000e+00 : f32
    %317 = vector.broadcast %cst_140 : f32 to vector<7x126xf32>
    %318 = tpu.concatenate %316, %317 in 1 : vector<7x2xf32>, vector<7x126xf32> -> vector<7x128xf32>
    %cst_141 = arith.constant 0.000000e+00 : f32
    %319 = vector.broadcast %cst_141 : f32 to vector<1x128xf32>
    %320 = tpu.concatenate %318, %319 in 0 : vector<7x128xf32>, vector<1x128xf32> -> vector<8x128xf32>
    %c0_142 = arith.constant 0 : index
    %c0_143 = arith.constant 0 : index
    %321 = vector.load %arg36[%c0_142, %c0_143] : memref<8x128xf32, #tpu.memory_space<vmem>>, vector<8x128xf32>
    tpu.vector_store %arg36[%c0_142, %c0_143], %320 {strides = array<i32>} : memref<8x128xf32, #tpu.memory_space<vmem>>, vector<8x128xf32>,
    return
  }
  func.func @transform_0(%arg0: i32) -> (i32, i32) {
    %c0_i32 = arith.constant 0 : i32
    %c0_i32_0 = arith.constant 0 : i32
    %c0_i32_1 = arith.constant 0 : i32
    return %c0_i32, %c0_i32_0 : i32, i32
  }
  func.func @transform_1(%arg0: i32) -> (i32, i32) {
    %c0_i32 = arith.constant 0 : i32
    %c0_i32_0 = arith.constant 0 : i32
    %c0_i32_1 = arith.constant 0 : i32
    return %c0_i32, %c0_i32_0 : i32, i32
  }
  func.func @transform_2(%arg0: i32) -> (i32, i32) {
    %c0_i32 = arith.constant 0 : i32
    %c0_i32_0 = arith.constant 0 : i32
    %c0_i32_1 = arith.constant 0 : i32
    return %c0_i32, %c0_i32_0 : i32, i32
  }
  func.func @transform_3(%arg0: i32) -> (i32, i32) {
    %c0_i32 = arith.constant 0 : i32
    %c0_i32_0 = arith.constant 0 : i32
    %c0_i32_1 = arith.constant 0 : i32
    return %c0_i32, %c0_i32_0 : i32, i32
  }
  func.func @transform_4(%arg0: i32) -> (i32, i32) {
    %c0_i32 = arith.constant 0 : i32
    %c0_i32_0 = arith.constant 0 : i32
    %c0_i32_1 = arith.constant 0 : i32
    return %c0_i32, %c0_i32_0 : i32, i32
  }
  func.func @transform_5(%arg0: i32) -> (i32, i32) {
    %c0_i32 = arith.constant 0 : i32
    %c0_i32_0 = arith.constant 0 : i32
    %c0_i32_1 = arith.constant 0 : i32
    return %c0_i32, %c0_i32_0 : i32, i32
  }
  func.func @transform_6(%arg0: i32) -> (i32, i32) {
    %c0_i32 = arith.constant 0 : i32
    %c0_i32_0 = arith.constant 0 : i32
    %c0_i32_1 = arith.constant 0 : i32
    return %c0_i32, %c0_i32_0 : i32, i32
  }
  func.func @transform_7(%arg0: i32) -> (i32, i32) {
    %c0_i32 = arith.constant 0 : i32
    %c0_i32_0 = arith.constant 0 : i32
    %c0_i32_1 = arith.constant 0 : i32
    return %c0_i32, %c0_i32_0 : i32, i32
  }
  func.func @transform_8(%arg0: i32) -> (i32, i32) {
    %c0_i32 = arith.constant 0 : i32
    %c0_i32_0 = arith.constant 0 : i32
    %c0_i32_1 = arith.constant 0 : i32
    return %c0_i32, %c0_i32_0 : i32, i32
  }
  func.func @transform_9(%arg0: i32) -> (i32, i32) {
    %c0_i32 = arith.constant 0 : i32
    %c0_i32_0 = arith.constant 0 : i32
    %c0_i32_1 = arith.constant 0 : i32
    return %c0_i32, %c0_i32_0 : i32, i32
  }
  func.func @transform_10(%arg0: i32) -> (i32, i32) {
    %c0_i32 = arith.constant 0 : i32
    %c0_i32_0 = arith.constant 0 : i32
    %c0_i32_1 = arith.constant 0 : i32
    return %c0_i32, %c0_i32_0 : i32, i32
  }
  func.func @transform_11(%arg0: i32) -> (i32, i32) {
    %c0_i32 = arith.constant 0 : i32
    %c0_i32_0 = arith.constant 0 : i32
    %c0_i32_1 = arith.constant 0 : i32
    return %c0_i32, %c0_i32_0 : i32, i32
  }
  func.func @transform_12(%arg0: i32) -> (i32, i32) {
    %c0_i32 = arith.constant 0 : i32
    %c0_i32_0 = arith.constant 0 : i32
    %c0_i32_1 = arith.constant 0 : i32
    return %c0_i32, %c0_i32_0 : i32, i32
  }
  func.func @transform_13(%arg0: i32) -> (i32, i32) {
    %c0_i32 = arith.constant 0 : i32
    %c0_i32_0 = arith.constant 0 : i32
    %c0_i32_1 = arith.constant 0 : i32
    return %c0_i32, %c0_i32_0 : i32, i32
  }
  func.func @transform_14(%arg0: i32) -> (i32, i32) {
    %c0_i32 = arith.constant 0 : i32
    %c0_i32_0 = arith.constant 0 : i32
    %c0_i32_1 = arith.constant 0 : i32
    return %c0_i32, %c0_i32_0 : i32, i32
  }
  func.func @transform_15(%arg0: i32) -> (i32, i32) {
    %c0_i32 = arith.constant 0 : i32
    %c0_i32_0 = arith.constant 0 : i32
    %c0_i32_1 = arith.constant 0 : i32
    return %c0_i32, %c0_i32_0 : i32, i32
  }
  func.func @transform_16(%arg0: i32) -> (i32, i32) {
    %c0_i32 = arith.constant 0 : i32
    %c0_i32_0 = arith.constant 0 : i32
    %c0_i32_1 = arith.constant 0 : i32
    return %c0_i32, %c0_i32_0 : i32, i32
  }
  func.func @transform_17(%arg0: i32) -> (i32, i32) {
    %c0_i32 = arith.constant 0 : i32
    %c0_i32_0 = arith.constant 0 : i32
    %c0_i32_1 = arith.constant 0 : i32
    return %c0_i32, %c0_i32_0 : i32, i32
  }
  func.func @transform_18(%arg0: i32) -> (i32, i32) {
    %c0_i32 = arith.constant 0 : i32
    %c0_i32_0 = arith.constant 0 : i32
    %c0_i32_1 = arith.constant 0 : i32
    return %c0_i32, %c0_i32_0 : i32, i32
  }
  func.func @transform_19(%arg0: i32) -> (i32, i32) {
    %c0_i32 = arith.constant 0 : i32
    %c0_i32_0 = arith.constant 0 : i32
    %c0_i32_1 = arith.constant 0 : i32
    return %c0_i32, %c0_i32_0 : i32, i32
  }
  func.func @transform_20(%arg0: i32) -> (i32, i32) {
    %c0_i32 = arith.constant 0 : i32
    %c0_i32_0 = arith.constant 0 : i32
    %c0_i32_1 = arith.constant 0 : i32
    return %c0_i32, %c0_i32_0 : i32, i32
  }
  func.func @transform_21(%arg0: i32) -> (i32, i32) {
    %c0_i32 = arith.constant 0 : i32
    %c0_i32_0 = arith.constant 0 : i32
    %c0_i32_1 = arith.constant 0 : i32
    return %c0_i32, %c0_i32_0 : i32, i32
  }
  func.func @transform_22(%arg0: i32) -> (i32, i32) {
    %c0_i32 = arith.constant 0 : i32
    %c0_i32_0 = arith.constant 0 : i32
    %c0_i32_1 = arith.constant 0 : i32
    return %c0_i32, %c0_i32_0 : i32, i32
  }
  func.func @transform_23(%arg0: i32) -> (i32, i32) {
    %c0_i32 = arith.constant 0 : i32
    %c0_i32_0 = arith.constant 0 : i32
    %c0_i32_1 = arith.constant 0 : i32
    return %c0_i32, %c0_i32_0 : i32, i32
  }
  func.func @transform_24(%arg0: i32) -> (i32, i32) {
    %c0_i32 = arith.constant 0 : i32
    %c0_i32_0 = arith.constant 0 : i32
    %c0_i32_1 = arith.constant 0 : i32
    return %c0_i32, %c0_i32_0 : i32, i32
  }
  func.func @transform_25(%arg0: i32) -> (i32, i32) {
    %c0_i32 = arith.constant 0 : i32
    %c0_i32_0 = arith.constant 0 : i32
    %c0_i32_1 = arith.constant 0 : i32
    return %c0_i32, %c0_i32_0 : i32, i32
  }
  func.func @transform_26(%arg0: i32) -> (i32, i32) {
    %c0_i32 = arith.constant 0 : i32
    %c0_i32_0 = arith.constant 0 : i32
    %c0_i32_1 = arith.constant 0 : i32
    return %c0_i32, %c0_i32_0 : i32, i32
  }
  func.func @transform_27(%arg0: i32) -> (i32, i32) {
    %c0_i32 = arith.constant 0 : i32
    %c0_i32_0 = arith.constant 0 : i32
    %c0_i32_1 = arith.constant 0 : i32
    return %c0_i32, %c0_i32_0 : i32, i32
  }
  func.func @transform_28(%arg0: i32) -> (i32, i32) {
    %c0_i32 = arith.constant 0 : i32
    %c0_i32_0 = arith.constant 0 : i32
    %c0_i32_1 = arith.constant 0 : i32
    return %c0_i32, %c0_i32_0 : i32, i32
  }
  func.func @transform_29(%arg0: i32) -> (i32, i32) {
    %c0_i32 = arith.constant 0 : i32
    %c0_i32_0 = arith.constant 0 : i32
    %c0_i32_1 = arith.constant 0 : i32
    return %c0_i32, %c0_i32_0 : i32, i32
  }
  func.func @transform_30(%arg0: i32) -> (i32, i32) {
    %c0_i32 = arith.constant 0 : i32
    %c0_i32_0 = arith.constant 0 : i32
    %c0_i32_1 = arith.constant 0 : i32
    return %c0_i32, %c0_i32_0 : i32, i32
  }
  func.func @transform_31(%arg0: i32) -> (i32, i32) {
    %c0_i32 = arith.constant 0 : i32
    %c0_i32_0 = arith.constant 0 : i32
    %c0_i32_1 = arith.constant 0 : i32
    return %c0_i32, %c0_i32_0 : i32, i32
  }
  func.func @transform_32(%arg0: i32) -> (i32, i32) {
    %c0_i32 = arith.constant 0 : i32
    %c0_i32_0 = arith.constant 0 : i32
    %c0_i32_1 = arith.constant 0 : i32
    return %c0_i32, %c0_i32_0 : i32, i32
  }
  func.func @transform_33(%arg0: i32) -> (i32, i32) {
    %c0_i32 = arith.constant 0 : i32
    %c0_i32_0 = arith.constant 0 : i32
    %c0_i32_1 = arith.constant 0 : i32
    return %c0_i32, %c0_i32_0 : i32, i32
  }
  func.func @transform_34(%arg0: i32) -> (i32, i32) {
    %c0_i32 = arith.constant 0 : i32
    %c0_i32_0 = arith.constant 0 : i32
    %c0_i32_1 = arith.constant 0 : i32
    return %c0_i32, %c0_i32_0 : i32, i32
  }
  func.func @transform_35(%arg0: i32) -> (i32, i32) {
    %c0_i32 = arith.constant 0 : i32
    %c0_i32_0 = arith.constant 0 : i32
    %c0_i32_1 = arith.constant 0 : i32
    return %c0_i32, %c0_i32_0 : i32, i32
  }
}

</mosaic_0001>

<llo_original>
// kernel: net_forward.1
$region0: #{net_forward.1}
  #allocation0 [shape = 'u32[]', space=smem, size = 0x4, offset = 0x4, fixed_abs, tag = 'smem constant byte address 0x4 - core index']
  #allocation1 [shape = 'u32[144,128]{1,0:T(1,128)}', space=vmem, size = 0x12000, scoped, tag = 'internal scratch']
  %s0 = inlined_call_operand.smem [shape: u32[36], index: -1, kind: input, shape index: {}]
  %s1 = sld [smem:[%s0]]
  %s2 = scalar_lea.smem %s0, 1
  %s3 = sld [smem:[%s2]]
  %s4 = scalar_lea.smem %s0, 2
  %s5 = sld [smem:[%s4]]
  %s6 = scalar_lea.smem %s0, 3
  %s7 = sld [smem:[%s6]]
  %s8 = scalar_lea.smem %s0, 4
  %s9 = sld [smem:[%s8]]
  %s10 = scalar_lea.smem %s0, 5
  %s11 = sld [smem:[%s10]]
  %s12 = scalar_lea.smem %s0, 6
  %s13 = sld [smem:[%s12]]
  %s14 = scalar_lea.smem %s0, 7
  %s15 = sld [smem:[%s14]]
  %s16 = scalar_lea.smem %s0, 8
  %s17 = sld [smem:[%s16]]
  %s18 = scalar_lea.smem %s0, 9
  %s19 = sld [smem:[%s18]]
  %s20 = scalar_lea.smem %s0, 10
  %s21 = sld [smem:[%s20]]
  %s22 = scalar_lea.smem %s0, 11
  %s23 = sld [smem:[%s22]]
  %s24 = scalar_lea.smem %s0, 12
  %s25 = sld [smem:[%s24]]
  %s26 = scalar_lea.smem %s0, 13
  %s27 = sld [smem:[%s26]]
  %s28 = scalar_lea.smem %s0, 14
  %s29 = sld [smem:[%s28]]
  %s30 = scalar_lea.smem %s0, 15
  %s31 = sld [smem:[%s30]]
  %s32 = scalar_lea.smem %s0, 16
  %s33 = sld [smem:[%s32]]
  %s34 = scalar_lea.smem %s0, 17
  %s35 = sld [smem:[%s34]]
  %s36 = scalar_lea.smem %s0, 18
  %s37 = sld [smem:[%s36]]
  %s38 = scalar_lea.smem %s0, 19
  %s39 = sld [smem:[%s38]]
  %s40 = scalar_lea.smem %s0, 20
  %s41 = sld [smem:[%s40]]
  %s42 = scalar_lea.smem %s0, 21
  %s43 = sld [smem:[%s42]]
  %s44 = scalar_lea.smem %s0, 22
  %s45 = sld [smem:[%s44]]
  %s46 = scalar_lea.smem %s0, 23
  %s47 = sld [smem:[%s46]]
  %s48 = scalar_lea.smem %s0, 24
  %s49 = sld [smem:[%s48]]
  %s50 = scalar_lea.smem %s0, 25
  %s51 = sld [smem:[%s50]]
  %s52 = scalar_lea.smem %s0, 26
  %s53 = sld [smem:[%s52]]
  %s54 = scalar_lea.smem %s0, 27
  %s55 = sld [smem:[%s54]]
  %s56 = scalar_lea.smem %s0, 28
  %s57 = sld [smem:[%s56]]
  %s58 = scalar_lea.smem %s0, 29
  %s59 = sld [smem:[%s58]]
  %s60 = scalar_lea.smem %s0, 30
  %s61 = sld [smem:[%s60]]
  %s62 = scalar_lea.smem %s0, 31
  %s63 = sld [smem:[%s62]]
  %s64 = scalar_lea.smem %s0, 32
  %s65 = sld [smem:[%s64]]
  %s66 = scalar_lea.smem %s0, 33
  %s67 = sld [smem:[%s66]]
  %s68 = scalar_lea.smem %s0, 34
  %s69 = sld [smem:[%s68]]
  %s70 = scalar_lea.smem %s0, 35
  %s71 = sld [smem:[%s70]]
  %s72 = sld [smem:[#allocation0]]
  $region150: #{net_forward.1} parent=0
    _
  %s74 = ssub.s32 1, %s72
  %s75 = scalar_select 0, %s74, %s72
  // Predicated region
  $region2: #{net_forward.1} parent=0 // pred_check
    _
  $region3: #{net_forward.1} parent=0 // pred_check_branch
    %77 = sbr.rel (0) target = $region5
  $region4: #{net_forward.1} parent=0 // pred_region
    _
  $region5: #{net_forward.1} parent=0 // pred_fallthru
    _
  // Predicated region
  $region6: #{net_forward.1} parent=0 // pred_check
    _
  $region7: #{net_forward.1} parent=0 // pred_check_branch
    %79 = sbr.rel (0) target = $region9
  $region8: #{net_forward.1} parent=0 // pred_region
    _
  $region9: #{net_forward.1} parent=0 // pred_fallthru
    _
  // Predicated region
  $region10: #{net_forward.1} parent=0 // pred_check
    _
  $region11: #{net_forward.1} parent=0 // pred_check_branch
    %81 = sbr.rel (0) target = $region13
  $region12: #{net_forward.1} parent=0 // pred_region
    _
  $region13: #{net_forward.1} parent=0 // pred_fallthru
    _
  // Predicated region
  $region14: #{net_forward.1} parent=0 // pred_check
    _
  $region15: #{net_forward.1} parent=0 // pred_check_branch
    %83 = sbr.rel (0) target = $region17
  $region16: #{net_forward.1} parent=0 // pred_region
    _
  $region17: #{net_forward.1} parent=0 // pred_fallthru
    _
  // Predicated region
  $region18: #{net_forward.1} parent=0 // pred_check
    _
  $region19: #{net_forward.1} parent=0 // pred_check_branch
    %85 = sbr.rel (0) target = $region21
  $region20: #{net_forward.1} parent=0 // pred_region
    _
  $region21: #{net_forward.1} parent=0 // pred_fallthru
    _
  // Predicated region
  $region22: #{net_forward.1} parent=0 // pred_check
    _
  $region23: #{net_forward.1} parent=0 // pred_check_branch
    %87 = sbr.rel (0) target = $region25
  $region24: #{net_forward.1} parent=0 // pred_region
    _
  $region25: #{net_forward.1} parent=0 // pred_fallthru
    _
  // Predicated region
  $region26: #{net_forward.1} parent=0 // pred_check
    _
  $region27: #{net_forward.1} parent=0 // pred_check_branch
    %89 = sbr.rel (0) target = $region29
  $region28: #{net_forward.1} parent=0 // pred_region
    _
  $region29: #{net_forward.1} parent=0 // pred_fallthru
    _
  // Predicated region
  $region30: #{net_forward.1} parent=0 // pred_check
    _
  $region31: #{net_forward.1} parent=0 // pred_check_branch
    %91 = sbr.rel (0) target = $region33
  $region32: #{net_forward.1} parent=0 // pred_region
    _
  $region33: #{net_forward.1} parent=0 // pred_fallthru
    _
  // Predicated region
  $region34: #{net_forward.1} parent=0 // pred_check
    _
  $region35: #{net_forward.1} parent=0 // pred_check_branch
    %93 = sbr.rel (0) target = $region37
  $region36: #{net_forward.1} parent=0 // pred_region
    _
  $region37: #{net_forward.1} parent=0 // pred_fallthru
    _
  // Predicated region
  $region38: #{net_forward.1} parent=0 // pred_check
    _
  $region39: #{net_forward.1} parent=0 // pred_check_branch
    %95 = sbr.rel (0) target = $region41
  $region40: #{net_forward.1} parent=0 // pred_region
    _
  $region41: #{net_forward.1} parent=0 // pred_fallthru
    _
  // Predicated region
  $region42: #{net_forward.1} parent=0 // pred_check
    _
  $region43: #{net_forward.1} parent=0 // pred_check_branch
    %97 = sbr.rel (0) target = $region45
  $region44: #{net_forward.1} parent=0 // pred_region
    _
  $region45: #{net_forward.1} parent=0 // pred_fallthru
    _
  // Predicated region
  $region46: #{net_forward.1} parent=0 // pred_check
    _
  $region47: #{net_forward.1} parent=0 // pred_check_branch
    %99 = sbr.rel (0) target = $region49
  $region48: #{net_forward.1} parent=0 // pred_region
    _
  $region49: #{net_forward.1} parent=0 // pred_fallthru
    _
  // Predicated region
  $region50: #{net_forward.1} parent=0 // pred_check
    _
  $region51: #{net_forward.1} parent=0 // pred_check_branch
    %101 = sbr.rel (0) target = $region53
  $region52: #{net_forward.1} parent=0 // pred_region
    _
  $region53: #{net_forward.1} parent=0 // pred_fallthru
    _
  // Predicated region
  $region54: #{net_forward.1} parent=0 // pred_check
    _
  $region55: #{net_forward.1} parent=0 // pred_check_branch
    %103 = sbr.rel (0) target = $region57
  $region56: #{net_forward.1} parent=0 // pred_region
    _
  $region57: #{net_forward.1} parent=0 // pred_fallthru
    _
  // Predicated region
  $region58: #{net_forward.1} parent=0 // pred_check
    _
  $region59: #{net_forward.1} parent=0 // pred_check_branch
    %105 = sbr.rel (0) target = $region61
  $region60: #{net_forward.1} parent=0 // pred_region
    _
  $region61: #{net_forward.1} parent=0 // pred_fallthru
    _
  // Predicated region
  $region62: #{net_forward.1} parent=0 // pred_check
    _
  $region63: #{net_forward.1} parent=0 // pred_check_branch
    %107 = sbr.rel (0) target = $region65
  $region64: #{net_forward.1} parent=0 // pred_region
    _
  $region65: #{net_forward.1} parent=0 // pred_fallthru
    _
  // Predicated region
  $region66: #{net_forward.1} parent=0 // pred_check
    _
  $region67: #{net_forward.1} parent=0 // pred_check_branch
    %109 = sbr.rel (0) target = $region69
  $region68: #{net_forward.1} parent=0 // pred_region
    _
  $region69: #{net_forward.1} parent=0 // pred_fallthru
    _
  // Predicated region
  $region70: #{net_forward.1} parent=0 // pred_check
    _
  $region71: #{net_forward.1} parent=0 // pred_check_branch
    %111 = sbr.rel (0) target = $region73
  $region72: #{net_forward.1} parent=0 // pred_region
    _
  $region73: #{net_forward.1} parent=0 // pred_fallthru
    _
  // Predicated region
  $region74: #{net_forward.1} parent=0 // pred_check
    _
  $region75: #{net_forward.1} parent=0 // pred_check_branch
    %113 = sbr.rel (0) target = $region77
  $region76: #{net_forward.1} parent=0 // pred_region
    _
  $region77: #{net_forward.1} parent=0 // pred_fallthru
    _
  // Predicated region
  $region78: #{net_forward.1} parent=0 // pred_check
    _
  $region79: #{net_forward.1} parent=0 // pred_check_branch
    %115 = sbr.rel (0) target = $region81
  $region80: #{net_forward.1} parent=0 // pred_region
    _
  $region81: #{net_forward.1} parent=0 // pred_fallthru
    _
  // Predicated region
  $region82: #{net_forward.1} parent=0 // pred_check
    _
  $region83: #{net_forward.1} parent=0 // pred_check_branch
    %117 = sbr.rel (0) target = $region85
  $region84: #{net_forward.1} parent=0 // pred_region
    _
  $region85: #{net_forward.1} parent=0 // pred_fallthru
    _
  // Predicated region
  $region86: #{net_forward.1} parent=0 // pred_check
    _
  $region87: #{net_forward.1} parent=0 // pred_check_branch
    %119 = sbr.rel (0) target = $region89
  $region88: #{net_forward.1} parent=0 // pred_region
    _
  $region89: #{net_forward.1} parent=0 // pred_fallthru
    _
  // Predicated region
  $region90: #{net_forward.1} parent=0 // pred_check
    _
  $region91: #{net_forward.1} parent=0 // pred_check_branch
    %121 = sbr.rel (0) target = $region93
  $region92: #{net_forward.1} parent=0 // pred_region
    _
  $region93: #{net_forward.1} parent=0 // pred_fallthru
    _
  // Predicated region
  $region94: #{net_forward.1} parent=0 // pred_check
    _
  $region95: #{net_forward.1} parent=0 // pred_check_branch
    %123 = sbr.rel (0) target = $region97
  $region96: #{net_forward.1} parent=0 // pred_region
    _
  $region97: #{net_forward.1} parent=0 // pred_fallthru
    _
  // Predicated region
  $region98: #{net_forward.1} parent=0 // pred_check
    _
  $region99: #{net_forward.1} parent=0 // pred_check_branch
    %125 = sbr.rel (0) target = $region101
  $region100: #{net_forward.1} parent=0 // pred_region
    _
  $region101: #{net_forward.1} parent=0 // pred_fallthru
    _
  // Predicated region
  $region102: #{net_forward.1} parent=0 // pred_check
    _
  $region103: #{net_forward.1} parent=0 // pred_check_branch
    %127 = sbr.rel (0) target = $region105
  $region104: #{net_forward.1} parent=0 // pred_region
    _
  $region105: #{net_forward.1} parent=0 // pred_fallthru
    _
  // Predicated region
  $region106: #{net_forward.1} parent=0 // pred_check
    _
  $region107: #{net_forward.1} parent=0 // pred_check_branch
    %129 = sbr.rel (0) target = $region109
  $region108: #{net_forward.1} parent=0 // pred_region
    _
  $region109: #{net_forward.1} parent=0 // pred_fallthru
    _
  // Predicated region
  $region110: #{net_forward.1} parent=0 // pred_check
    _
  $region111: #{net_forward.1} parent=0 // pred_check_branch
    %131 = sbr.rel (0) target = $region113
  $region112: #{net_forward.1} parent=0 // pred_region
    _
  $region113: #{net_forward.1} parent=0 // pred_fallthru
    _
  // Predicated region
  $region114: #{net_forward.1} parent=0 // pred_check
    _
  $region115: #{net_forward.1} parent=0 // pred_check_branch
    %133 = sbr.rel (0) target = $region117
  $region116: #{net_forward.1} parent=0 // pred_region
    _
  $region117: #{net_forward.1} parent=0 // pred_fallthru
    _
  // Predicated region
  $region118: #{net_forward.1} parent=0 // pred_check
    _
  $region119: #{net_forward.1} parent=0 // pred_check_branch
    %135 = sbr.rel (0) target = $region121
  $region120: #{net_forward.1} parent=0 // pred_region
    _
  $region121: #{net_forward.1} parent=0 // pred_fallthru
    _
  // Predicated region
  $region122: #{net_forward.1} parent=0 // pred_check
    _
  $region123: #{net_forward.1} parent=0 // pred_check_branch
    %137 = sbr.rel (0) target = $region125
  $region124: #{net_forward.1} parent=0 // pred_region
    _
  $region125: #{net_forward.1} parent=0 // pred_fallthru
    _
  // Predicated region
  $region126: #{net_forward.1} parent=0 // pred_check
    _
  $region127: #{net_forward.1} parent=0 // pred_check_branch
    %139 = sbr.rel (0) target = $region129
  $region128: #{net_forward.1} parent=0 // pred_region
    _
  $region129: #{net_forward.1} parent=0 // pred_fallthru
    _
  // Predicated region
  $region130: #{net_forward.1} parent=0 // pred_check
    _
  $region131: #{net_forward.1} parent=0 // pred_check_branch
    %141 = sbr.rel (0) target = $region133
  $region132: #{net_forward.1} parent=0 // pred_region
    _
  $region133: #{net_forward.1} parent=0 // pred_fallthru
    _
  // Predicated region
  $region134: #{net_forward.1} parent=0 // pred_check
    _
  $region135: #{net_forward.1} parent=0 // pred_check_branch
    %143 = sbr.rel (0) target = $region137
  $region136: #{net_forward.1} parent=0 // pred_region
    _
  $region137: #{net_forward.1} parent=0 // pred_fallthru
    _
  // Predicated region
  $region138: #{net_forward.1} parent=0 // pred_check
    _
  $region139: #{net_forward.1} parent=0 // pred_check_branch
    %145 = sbr.rel (0) target = $region141
  $region140: #{net_forward.1} parent=0 // pred_region
    _
  $region141: #{net_forward.1} parent=0 // pred_fallthru
    _
  %v147 = vld [vmem:[%s3] sm:$0x3]
  %v148 = vld [vmem:[%s1] sm:$0x3]
  %v149 = vld [vmem:[%s7] sm:$0xff]
  %v150 = vld [vmem:[%s7 + $0x8] sm:$0xff]
  %v151 = vld [vmem:[%s7 + $0x10] sm:$0xff]
  %v152 = vld [vmem:[%s7 + $0x18] sm:$0xff]
  %v153 = vld [vmem:[%s9] sm:$0xff]
  %v154 = vld [vmem:[%s9 + $0x8] sm:$0xff]
  %v155 = vld [vmem:[%s9 + $0x10] sm:$0xff]
  %v156 = vld [vmem:[%s9 + $0x18] sm:$0xff]
  %v158 = vlaneseq
  %v159 = vshrl.u32 %v158, 7
  %v160 = vsub.s32 0, %v159
  %v161 = vrot.slane %v148, %v160
  %v162 = vlaneseq
  %v163 = vshrl.u32 %v162, 7
  %v164 = vsub.s32 1, %v163
  %v165 = vrot.slane %v148, %v164
  %166 = vrot.lane.b32.xlu0 %v161, 2
  %v167 = vpop.permute.xlu0 %166
  %168 = vrot.lane.b32.xlu0 %v165, 2
  %v169 = vpop.permute.xlu0 %168
  %vm170 = vcmask 15360
  %v171 = vsel %vm170, %v167, %v169
  %v174 = vsel %vm170, 0.0, %v167
  %176 = vset.pattern.permute.xlu0 0
  %177 = vperm.xlu0 %176, %v149
  %v178 = vpop.permute.xlu0 %177
  %181 = vset.pattern.permute.xlu0 0
  %182 = vperm.xlu0 %181, %v150
  %v183 = vpop.permute.xlu0 %182
  %186 = vset.pattern.permute.xlu0 0
  %187 = vperm.xlu0 %186, %v151
  %v188 = vpop.permute.xlu0 %187
  %191 = vset.pattern.permute.xlu0 0
  %192 = vperm.xlu0 %191, %v152
  %v193 = vpop.permute.xlu0 %192
  %v195 = vlaneseq
  %v196 = vshrl.u32 %v195, 7
  %v197 = vsub.s32 0, %v196
  %v198 = vrot.slane %v174, %v197
  %v199 = vlaneseq
  %v200 = vshrl.u32 %v199, 7
  %v201 = vsub.s32 0, %v200
  %v202 = vrot.slane %v171, %v201
  %v203 = vmul.f32 %v178, %v198
  %v204 = vmul.f32 %v178, %v202
  %v205 = vmul.f32 %v183, %v198
  %v206 = vmul.f32 %v183, %v202
  %v207 = vmul.f32 %v188, %v198
  %v208 = vmul.f32 %v188, %v202
  %v209 = vmul.f32 %v193, %v198
  %v210 = vmul.f32 %v193, %v202
  %211 = vrot.lane.b32.xlu0 %v161, 1
  %v212 = vpop.permute.xlu0 %211
  %213 = vrot.lane.b32.xlu0 %v165, 1
  %v214 = vpop.permute.xlu0 %213
  %vm215 = vcmask 7168
  %v216 = vsel %vm215, %v212, %v214
  %v219 = vsel %vm215, 0.0, %v212
  %220 = vset.pattern.permute.xlu0 1
  %221 = vperm.xlu0 %220, %v149
  %v222 = vpop.permute.xlu0 %221
  %224 = vset.pattern.permute.xlu0 1
  %225 = vperm.xlu0 %224, %v150
  %v226 = vpop.permute.xlu0 %225
  %228 = vset.pattern.permute.xlu0 1
  %229 = vperm.xlu0 %228, %v151
  %v230 = vpop.permute.xlu0 %229
  %232 = vset.pattern.permute.xlu0 1
  %233 = vperm.xlu0 %232, %v152
  %v234 = vpop.permute.xlu0 %233
  %v236 = vlaneseq
  %v237 = vshrl.u32 %v236, 7
  %v238 = vsub.s32 0, %v237
  %v239 = vrot.slane %v219, %v238
  %v240 = vlaneseq
  %v241 = vshrl.u32 %v240, 7
  %v242 = vsub.s32 0, %v241
  %v243 = vrot.slane %v216, %v242
  %v244 = vmul.f32 %v222, %v239
  %v245 = vmul.f32 %v222, %v243
  %v246 = vmul.f32 %v226, %v239
  %v247 = vmul.f32 %v226, %v243
  %v248 = vmul.f32 %v230, %v239
  %v249 = vmul.f32 %v230, %v243
  %v250 = vmul.f32 %v234, %v239
  %v251 = vmul.f32 %v234, %v243
  %v252 = vadd.f32 %v203, %v244
  %v253 = vadd.f32 %v204, %v245
  %v254 = vadd.f32 %v205, %v246
  %v255 = vadd.f32 %v206, %v247
  %v256 = vadd.f32 %v207, %v248
  %v257 = vadd.f32 %v208, %v249
  %v258 = vadd.f32 %v209, %v250
  %v259 = vadd.f32 %v210, %v251
  %260 = vset.pattern.permute.xlu0 2
  %261 = vperm.xlu0 %260, %v149
  %v262 = vpop.permute.xlu0 %261
  %264 = vset.pattern.permute.xlu0 2
  %265 = vperm.xlu0 %264, %v150
  %v266 = vpop.permute.xlu0 %265
  %268 = vset.pattern.permute.xlu0 2
  %269 = vperm.xlu0 %268, %v151
  %v270 = vpop.permute.xlu0 %269
  %272 = vset.pattern.permute.xlu0 2
  %273 = vperm.xlu0 %272, %v152
  %v274 = vpop.permute.xlu0 %273
  %v278 = vmul.f32 %v262, %v161
  %v279 = vmul.f32 %v262, %v165
  %v280 = vmul.f32 %v266, %v161
  %v281 = vmul.f32 %v266, %v165
  %v282 = vmul.f32 %v270, %v161
  %v283 = vmul.f32 %v270, %v165
  %v284 = vmul.f32 %v274, %v161
  %v285 = vmul.f32 %v274, %v165
  %v286 = vadd.f32 %v252, %v278
  %v287 = vadd.f32 %v253, %v279
  %v288 = vadd.f32 %v254, %v280
  %v289 = vadd.f32 %v255, %v281
  %v290 = vadd.f32 %v256, %v282
  %v291 = vadd.f32 %v257, %v283
  %v292 = vadd.f32 %v258, %v284
  %v293 = vadd.f32 %v259, %v285
  %294 = vrot.lane.b32.xlu0 %v161, 127
  %v295 = vpop.permute.xlu0 %294
  %296 = vrot.lane.b32.xlu0 %v165, 127
  %v297 = vpop.permute.xlu0 %296
  %vm298 = vcmask 1039360
  %v299 = vsel %vm298, %v295, %v297
  %v302 = vsel %vm298, %v297, 0.0
  %303 = vset.pattern.permute.xlu0 3
  %304 = vperm.xlu0 %303, %v149
  %v305 = vpop.permute.xlu0 %304
  %307 = vset.pattern.permute.xlu0 3
  %308 = vperm.xlu0 %307, %v150
  %v309 = vpop.permute.xlu0 %308
  %311 = vset.pattern.permute.xlu0 3
  %312 = vperm.xlu0 %311, %v151
  %v313 = vpop.permute.xlu0 %312
  %315 = vset.pattern.permute.xlu0 3
  %316 = vperm.xlu0 %315, %v152
  %v317 = vpop.permute.xlu0 %316
  %v319 = vlaneseq
  %v320 = vshrl.u32 %v319, 7
  %v321 = vsub.s32 0, %v320
  %v322 = vrot.slane %v299, %v321
  %v323 = vlaneseq
  %v324 = vshrl.u32 %v323, 7
  %v325 = vsub.s32 0, %v324
  %v326 = vrot.slane %v302, %v325
  %v327 = vmul.f32 %v305, %v322
  %v328 = vmul.f32 %v305, %v326
  %v329 = vmul.f32 %v309, %v322
  %v330 = vmul.f32 %v309, %v326
  %v331 = vmul.f32 %v313, %v322
  %v332 = vmul.f32 %v313, %v326
  %v333 = vmul.f32 %v317, %v322
  %v334 = vmul.f32 %v317, %v326
  %v335 = vadd.f32 %v286, %v327
  %v336 = vadd.f32 %v287, %v328
  %v337 = vadd.f32 %v288, %v329
  %v338 = vadd.f32 %v289, %v330
  %v339 = vadd.f32 %v290, %v331
  %v340 = vadd.f32 %v291, %v332
  %v341 = vadd.f32 %v292, %v333
  %v342 = vadd.f32 %v293, %v334
  %343 = vrot.lane.b32.xlu0 %v161, 126
  %v344 = vpop.permute.xlu0 %343
  %345 = vrot.lane.b32.xlu0 %v165, 126
  %v346 = vpop.permute.xlu0 %345
  %vm347 = vcmask 1031168
  %v348 = vsel %vm347, %v344, %v346
  %v351 = vsel %vm347, %v346, 0.0
  %352 = vset.pattern.permute.xlu0 4
  %353 = vperm.xlu0 %352, %v149
  %v354 = vpop.permute.xlu0 %353
  %356 = vset.pattern.permute.xlu0 4
  %357 = vperm.xlu0 %356, %v150
  %v358 = vpop.permute.xlu0 %357
  %360 = vset.pattern.permute.xlu0 4
  %361 = vperm.xlu0 %360, %v151
  %v362 = vpop.permute.xlu0 %361
  %364 = vset.pattern.permute.xlu0 4
  %365 = vperm.xlu0 %364, %v152
  %v366 = vpop.permute.xlu0 %365
  %v368 = vlaneseq
  %v369 = vshrl.u32 %v368, 7
  %v370 = vsub.s32 0, %v369
  %v371 = vrot.slane %v348, %v370
  %v372 = vlaneseq
  %v373 = vshrl.u32 %v372, 7
  %v374 = vsub.s32 0, %v373
  %v375 = vrot.slane %v351, %v374
  %v376 = vmul.f32 %v354, %v371
  %v377 = vmul.f32 %v354, %v375
  %v378 = vmul.f32 %v358, %v371
  %v379 = vmul.f32 %v358, %v375
  %v380 = vmul.f32 %v362, %v371
  %v381 = vmul.f32 %v362, %v375
  %v382 = vmul.f32 %v366, %v371
  %v383 = vmul.f32 %v366, %v375
  %v384 = vadd.f32 %v335, %v376
  %v385 = vadd.f32 %v336, %v377
  %v386 = vadd.f32 %v337, %v378
  %v387 = vadd.f32 %v338, %v379
  %v388 = vadd.f32 %v339, %v380
  %v389 = vadd.f32 %v340, %v381
  %v390 = vadd.f32 %v341, %v382
  %v391 = vadd.f32 %v342, %v383
  %393 = vset.pattern.permute.xlu0 0
  %394 = vperm.xlu0 %393, %v153
  %v395 = vpop.permute.xlu0 %394
  %398 = vset.pattern.permute.xlu0 0
  %399 = vperm.xlu0 %398, %v154
  %v400 = vpop.permute.xlu0 %399
  %403 = vset.pattern.permute.xlu0 0
  %404 = vperm.xlu0 %403, %v155
  %v405 = vpop.permute.xlu0 %404
  %408 = vset.pattern.permute.xlu0 0
  %409 = vperm.xlu0 %408, %v156
  %v410 = vpop.permute.xlu0 %409
  %v412 = vadd.f32 %v384, %v395
  %v413 = vadd.f32 %v385, %v395
  %v414 = vadd.f32 %v386, %v400
  %v415 = vadd.f32 %v387, %v400
  %v416 = vadd.f32 %v388, %v405
  %v417 = vadd.f32 %v389, %v405
  %v418 = vadd.f32 %v390, %v410
  %v419 = vadd.f32 %v391, %v410
  %v421 = vlaneseq
  %v422 = vshrl.u32 %v421, 7
  %v423 = vsub.s32 0, %v422
  %v424 = vrot.slane %v147, %v423
  %v425 = vlaneseq
  %v426 = vshrl.u32 %v425, 7
  %v427 = vsub.s32 1, %v426
  %v428 = vrot.slane %v147, %v427
  %v431 = vmul.f32 %v412, %v424
  %v432 = vmul.f32 %v413, %v428
  %v433 = vmul.f32 %v414, %v424
  %v434 = vmul.f32 %v415, %v428
  %v435 = vmul.f32 %v416, %v424
  %v436 = vmul.f32 %v417, %v428
  %v437 = vmul.f32 %v418, %v424
  %v438 = vmul.f32 %v419, %v428
  %v439 = vld [vmem:[%s11] sm:$0xff]
  %v440 = vld [vmem:[%s11 + $0x8] sm:$0xff]
  %v441 = vld [vmem:[%s11 + $0x10] sm:$0xff]
  %v442 = vld [vmem:[%s11 + $0x18] sm:$0xff]
  %v443 = vld [vmem:[%s11 + $0x20] sm:$0xff]
  %v444 = vld [vmem:[%s11 + $0x28] sm:$0xff]
  %v445 = vld [vmem:[%s11 + $0x30] sm:$0xff]
  %v446 = vld [vmem:[%s11 + $0x38] sm:$0xff]
  %455 = vrot.lane.b32.xlu0 %v431, 2
  %v456 = vpop.permute.xlu0 %455
  %457 = vrot.lane.b32.xlu0 %v432, 2
  %v458 = vpop.permute.xlu0 %457
  %459 = vrot.lane.b32.xlu0 %v433, 2
  %v460 = vpop.permute.xlu0 %459
  %461 = vrot.lane.b32.xlu0 %v434, 2
  %v462 = vpop.permute.xlu0 %461
  %463 = vrot.lane.b32.xlu0 %v435, 2
  %v464 = vpop.permute.xlu0 %463
  %465 = vrot.lane.b32.xlu0 %v436, 2
  %v466 = vpop.permute.xlu0 %465
  %467 = vrot.lane.b32.xlu0 %v437, 2
  %v468 = vpop.permute.xlu0 %467
  %469 = vrot.lane.b32.xlu0 %v438, 2
  %v470 = vpop.permute.xlu0 %469
  %v471 = vsel %vm170, %v456, %v458
  %v472 = vsel %vm170, %v460, %v462
  %v473 = vsel %vm170, %v464, %v466
  %v474 = vsel %vm170, %v468, %v470
  %v483 = vsel %vm170, 0.0, %v456
  %v484 = vsel %vm170, 0.0, %v460
  %v485 = vsel %vm170, 0.0, %v464
  %v486 = vsel %vm170, 0.0, %v468
  %487 = vrot.lane.b32.xlu0 %v431, 1
  %v488 = vpop.permute.xlu0 %487
  %489 = vrot.lane.b32.xlu0 %v432, 1
  %v490 = vpop.permute.xlu0 %489
  %491 = vrot.lane.b32.xlu0 %v433, 1
  %v492 = vpop.permute.xlu0 %491
  %493 = vrot.lane.b32.xlu0 %v434, 1
  %v494 = vpop.permute.xlu0 %493
  %495 = vrot.lane.b32.xlu0 %v435, 1
  %v496 = vpop.permute.xlu0 %495
  %497 = vrot.lane.b32.xlu0 %v436, 1
  %v498 = vpop.permute.xlu0 %497
  %499 = vrot.lane.b32.xlu0 %v437, 1
  %v500 = vpop.permute.xlu0 %499
  %501 = vrot.lane.b32.xlu0 %v438, 1
  %v502 = vpop.permute.xlu0 %501
  %v503 = vsel %vm215, %v488, %v490
  %v504 = vsel %vm215, %v492, %v494
  %v505 = vsel %vm215, %v496, %v498
  %v506 = vsel %vm215, %v500, %v502
  %v515 = vsel %vm215, 0.0, %v488
  %v516 = vsel %vm215, 0.0, %v492
  %v517 = vsel %vm215, 0.0, %v496
  %v518 = vsel %vm215, 0.0, %v500
  %519 = vrot.lane.b32.xlu0 %v431, 127
  %v520 = vpop.permute.xlu0 %519
  %521 = vrot.lane.b32.xlu0 %v432, 127
  %v522 = vpop.permute.xlu0 %521
  %523 = vrot.lane.b32.xlu0 %v433, 127
  %v524 = vpop.permute.xlu0 %523
  %525 = vrot.lane.b32.xlu0 %v434, 127
  %v526 = vpop.permute.xlu0 %525
  %527 = vrot.lane.b32.xlu0 %v435, 127
  %v528 = vpop.permute.xlu0 %527
  %529 = vrot.lane.b32.xlu0 %v436, 127
  %v530 = vpop.permute.xlu0 %529
  %531 = vrot.lane.b32.xlu0 %v437, 127
  %v532 = vpop.permute.xlu0 %531
  %533 = vrot.lane.b32.xlu0 %v438, 127
  %v534 = vpop.permute.xlu0 %533
  %v535 = vsel %vm298, %v520, %v522
  %v536 = vsel %vm298, %v524, %v526
  %v537 = vsel %vm298, %v528, %v530
  %v538 = vsel %vm298, %v532, %v534
  %v547 = vsel %vm298, %v522, 0.0
  %v548 = vsel %vm298, %v526, 0.0
  %v549 = vsel %vm298, %v530, 0.0
  %v550 = vsel %vm298, %v534, 0.0
  %551 = vrot.lane.b32.xlu0 %v431, 126
  %v552 = vpop.permute.xlu0 %551
  %553 = vrot.lane.b32.xlu0 %v432, 126
  %v554 = vpop.permute.xlu0 %553
  %555 = vrot.lane.b32.xlu0 %v433, 126
  %v556 = vpop.permute.xlu0 %555
  %557 = vrot.lane.b32.xlu0 %v434, 126
  %v558 = vpop.permute.xlu0 %557
  %559 = vrot.lane.b32.xlu0 %v435, 126
  %v560 = vpop.permute.xlu0 %559
  %561 = vrot.lane.b32.xlu0 %v436, 126
  %v562 = vpop.permute.xlu0 %561
  %563 = vrot.lane.b32.xlu0 %v437, 126
  %v564 = vpop.permute.xlu0 %563
  %565 = vrot.lane.b32.xlu0 %v438, 126
  %v566 = vpop.permute.xlu0 %565
  %v567 = vsel %vm347, %v552, %v554
  %v568 = vsel %vm347, %v556, %v558
  %v569 = vsel %vm347, %v560, %v562
  %v570 = vsel %vm347, %v564, %v566
  %v579 = vsel %vm347, %v554, 0.0
  %v580 = vsel %vm347, %v558, 0.0
  %v581 = vsel %vm347, %v562, 0.0
  %v582 = vsel %vm347, %v566, 0.0
  %v583 = vpack.c.bf16 %v484, %v483
  %v584 = vpack.c.bf16 %v472, %v471
  %v585 = vpack.c.bf16 %v486, %v485
  %v586 = vpack.c.bf16 %v474, %v473
  %v587 = vpack.c.bf16 %v516, %v515
  %v588 = vpack.c.bf16 %v504, %v503
  %v589 = vpack.c.bf16 %v518, %v517
  %v590 = vpack.c.bf16 %v506, %v505
  %v591 = vpack.c.bf16 %v433, %v431
  %v592 = vpack.c.bf16 %v434, %v432
  %v593 = vpack.c.bf16 %v437, %v435
  %v594 = vpack.c.bf16 %v438, %v436
  %v595 = vpack.c.bf16 %v536, %v535
  %v596 = vpack.c.bf16 %v548, %v547
  %v597 = vpack.c.bf16 %v538, %v537
  %v598 = vpack.c.bf16 %v550, %v549
  %v599 = vpack.c.bf16 %v568, %v567
  %v600 = vpack.c.bf16 %v580, %v579
  %v601 = vpack.c.bf16 %v570, %v569
  %v602 = vpack.c.bf16 %v582, %v581
  %v603 = vld [vmem:[%s13] sm:$0xff]
  %v604 = vld [vmem:[%s13 + $0x8] sm:$0xff]
  %v605 = vld [vmem:[%s13 + $0x10] sm:$0xff]
  %v606 = vld [vmem:[%s13 + $0x18] sm:$0xff]
  %v607 = vld [vmem:[%s13 + $0x20] sm:$0xff]
  %v608 = vld [vmem:[%s13 + $0x28] sm:$0xff]
  %v609 = vld [vmem:[%s13 + $0x30] sm:$0xff]
  %v610 = vld [vmem:[%s13 + $0x38] sm:$0xff]
  %612 = vset.pattern.permute.xlu0 0
  %613 = vperm.xlu0 %612, %v603
  %v614 = vpop.permute.xlu0 %613
  %617 = vset.pattern.permute.xlu0 0
  %618 = vperm.xlu0 %617, %v604
  %v619 = vpop.permute.xlu0 %618
  %622 = vset.pattern.permute.xlu0 0
  %623 = vperm.xlu0 %622, %v605
  %v624 = vpop.permute.xlu0 %623
  %627 = vset.pattern.permute.xlu0 0
  %628 = vperm.xlu0 %627, %v606
  %v629 = vpop.permute.xlu0 %628
  %632 = vset.pattern.permute.xlu0 0
  %633 = vperm.xlu0 %632, %v607
  %v634 = vpop.permute.xlu0 %633
  %637 = vset.pattern.permute.xlu0 0
  %638 = vperm.xlu0 %637, %v608
  %v639 = vpop.permute.xlu0 %638
  %642 = vset.pattern.permute.xlu0 0
  %643 = vperm.xlu0 %642, %v609
  %v644 = vpop.permute.xlu0 %643
  %647 = vset.pattern.permute.xlu0 0
  %648 = vperm.xlu0 %647, %v610
  %v649 = vpop.permute.xlu0 %648
  %v659 = vunpack.c.l.b16 %v439
  %v660 = vunpack.c.h.b16 %v439
  %v661 = vunpack.c.l.b16 %v440
  %v662 = vunpack.c.h.b16 %v440
  %v663 = vunpack.c.l.b16 %v441
  %v664 = vunpack.c.h.b16 %v441
  %v665 = vunpack.c.l.b16 %v442
  %v666 = vunpack.c.h.b16 %v442
  %v667 = vunpack.c.l.b16 %v443
  %v668 = vunpack.c.h.b16 %v443
  %v669 = vunpack.c.l.b16 %v444
  %v670 = vunpack.c.h.b16 %v444
  %v671 = vunpack.c.l.b16 %v445
  %v672 = vunpack.c.h.b16 %v445
  %v673 = vunpack.c.l.b16 %v446
  %v674 = vunpack.c.h.b16 %v446
  %v675 = vpack.c.b16 %v661, %v659
  %v676 = vpack.c.b16 %v662, %v660
  %v677 = vpack.c.b16 %v665, %v663
  %v678 = vpack.c.b16 %v666, %v664
  %v679 = vpack.c.b16 %v669, %v667
  %v680 = vpack.c.b16 %v670, %v668
  %v681 = vpack.c.b16 %v673, %v671
  %v682 = vpack.c.b16 %v674, %v672
  %vm687 = vcmask 261120
  %v689 = vsel %vm687, %v676, 0
  %v692 = vsel %vm687, %v678, 0
  %v695 = vsel %vm687, %v680, 0
  %v698 = vsel %vm687, %v682, 0
  %700 = vmatprep.subr.bf16.mxu0 %v584
  %701 = vmatpush1.bf16.msra.mxu0 %v583
  %702 = vmatprep.subr.bf16.mxu0 %v586
  %703 = vmatpush1.bf16.msra.mxu0 %v585
  %704 = vmatprep.subr.bf16.mxu0 %v588
  %705 = vmatpush1.bf16.msra.mxu0 %v587
  %706 = vmatprep.subr.bf16.mxu0 %v590
  %707 = vmatpush1.bf16.msra.mxu0 %v589
  %708 = vmatprep.subr.bf16.mxu0 %v592
  %709 = vmatpush1.bf16.msra.mxu0 %v591
  %710 = vmatprep.subr.bf16.mxu0 %v594
  %711 = vmatpush1.bf16.msra.mxu0 %v593
  %712 = vmatprep.subr.bf16.mxu0 %v596
  %713 = vmatpush1.bf16.msra.mxu0 %v595
  %714 = vmatprep.subr.bf16.mxu0 %v598
  %715 = vmatpush1.bf16.msra.mxu0 %v597
  %716 = vmatprep.subr.bf16.mxu0 %v600
  %717 = vmatpush1.bf16.msra.mxu0 %v599
  %718 = vmatprep.subr.bf16.mxu0 %v602
  %719 = vmatpush1.bf16.msra.mxu0 %v601
  %720 = vmatprep.subr.bf16.mxu0 0
  %721 = vmatpush1.bf16.msra.mxu0 0
  %722 = vmatprep.subr.bf16.mxu0 0
  %723 = vmatpush1.bf16.msra.mxu0 0
  %724 = vmatprep.subr.bf16.mxu0 0
  %725 = vmatpush1.bf16.msra.mxu0 0
  %726 = vmatprep.subr.bf16.mxu0 0
  %727 = vmatpush1.bf16.msra.mxu0 0
  %728 = vmatprep.subr.bf16.mxu0 0
  %729 = vmatpush1.bf16.msra.mxu0 0
  %730 = vmatprep.subr.bf16.mxu0 0
  %731 = vmatpush1.bf16.msra.mxu0 0
  %732 = vmatprep.mubr.bf16.mxu0 %v689
  %733 = vmatmul.mubr.bf16.gmra.mrb[0].mxu0 %v675
  %v734 = vpop.f32.mrb[0].mxu0
  %v735 = vadd.f32 %v614, %v734
  %v736 = vpop.f32.mrb[0].mxu0
  %v737 = vadd.f32 %v614, %v736
  %v738 = vpop.f32.mrb[0].mxu0
  %v739 = vadd.f32 %v619, %v738
  %v740 = vpop.f32.mrb[0].mxu0
  %v741 = vadd.f32 %v619, %v740
  %742 = vmatprep.mubr.bf16.mxu0 %v692
  %743 = vmatmul.mubr.bf16.gmra.mrb[0].mxu0 %v677
  %v744 = vpop.f32.mrb[0].mxu0
  %v745 = vadd.f32 %v624, %v744
  %v746 = vpop.f32.mrb[0].mxu0
  %v747 = vadd.f32 %v624, %v746
  %v748 = vpop.f32.mrb[0].mxu0
  %v749 = vadd.f32 %v629, %v748
  %v750 = vpop.f32.mrb[0].mxu0
  %v751 = vadd.f32 %v629, %v750
  %752 = vmatprep.mubr.bf16.mxu0 %v695
  %753 = vmatmul.mubr.bf16.gmra.mrb[0].mxu0 %v679
  %v754 = vpop.f32.mrb[0].mxu0
  %v755 = vadd.f32 %v634, %v754
  %v756 = vpop.f32.mrb[0].mxu0
  %v757 = vadd.f32 %v634, %v756
  %v758 = vpop.f32.mrb[0].mxu0
  %v759 = vadd.f32 %v639, %v758
  %v760 = vpop.f32.mrb[0].mxu0
  %v761 = vadd.f32 %v639, %v760
  %762 = vmatprep.mubr.bf16.mxu0 %v698
  %763 = vmatmul.mubr.bf16.gmra.mrb[0].mxu0 %v681
  %v764 = vpop.f32.mrb[0].mxu0
  %v765 = vadd.f32 %v644, %v764
  %v766 = vpop.f32.mrb[0].mxu0
  %v767 = vadd.f32 %v644, %v766
  %v768 = vpop.f32.mrb[0].mxu0
  %v769 = vadd.f32 %v649, %v768
  %v770 = vpop.f32.mrb[0].mxu0
  %v771 = vadd.f32 %v649, %v770
  %772 = vdwg.mxu0
  %v773 = vmul.f32 %v735, %v424
  %v774 = vmul.f32 %v737, %v428
  %v775 = vmul.f32 %v739, %v424
  %v776 = vmul.f32 %v741, %v428
  %v777 = vmul.f32 %v745, %v424
  %v778 = vmul.f32 %v747, %v428
  %v779 = vmul.f32 %v749, %v424
  %v780 = vmul.f32 %v751, %v428
  %v781 = vmul.f32 %v755, %v424
  %v782 = vmul.f32 %v757, %v428
  %v783 = vmul.f32 %v759, %v424
  %v784 = vmul.f32 %v761, %v428
  %v785 = vmul.f32 %v765, %v424
  %v786 = vmul.f32 %v767, %v428
  %v787 = vmul.f32 %v769, %v424
  %v788 = vmul.f32 %v771, %v428
  %v789 = vld [vmem:[%s27] sm:$0xf]
  %v790 = vld [vmem:[%s27 + $0x4] sm:$0xf]
  %v791 = vld [vmem:[%s27 + $0x8] sm:$0xf]
  %v792 = vld [vmem:[%s27 + $0xc] sm:$0xf]
  %v793 = vld [vmem:[%s27 + $0x10] sm:$0xf]
  %v794 = vld [vmem:[%s27 + $0x14] sm:$0xf]
  %v795 = vld [vmem:[%s27 + $0x18] sm:$0xf]
  %v796 = vld [vmem:[%s27 + $0x1c] sm:$0xf]
  %v797 = vpack.c.bf16 %v775, %v773
  %v798 = vpack.c.bf16 %v776, %v774
  %v799 = vpack.c.bf16 %v779, %v777
  %v800 = vpack.c.bf16 %v780, %v778
  %v801 = vpack.c.bf16 %v783, %v781
  %v802 = vpack.c.bf16 %v784, %v782
  %v803 = vpack.c.bf16 %v787, %v785
  %v804 = vpack.c.bf16 %v788, %v786
  %v805 = vld [vmem:[%s29] sm:$0xff]
  %v806 = vld [vmem:[%s29 + $0x8] sm:$0xff]
  %v807 = vld [vmem:[%s29 + $0x10] sm:$0xff]
  %v808 = vld [vmem:[%s29 + $0x18] sm:$0xff]
  %v809 = vld [vmem:[%s29 + $0x20] sm:$0xff]
  %v810 = vld [vmem:[%s29 + $0x28] sm:$0xff]
  %v811 = vld [vmem:[%s29 + $0x30] sm:$0xff]
  %v812 = vld [vmem:[%s29 + $0x38] sm:$0xff]
  %814 = vset.pattern.permute.xlu0 0
  %815 = vperm.xlu0 %814, %v805
  %v816 = vpop.permute.xlu0 %815
  %819 = vset.pattern.permute.xlu0 0
  %820 = vperm.xlu0 %819, %v806
  %v821 = vpop.permute.xlu0 %820
  %824 = vset.pattern.permute.xlu0 0
  %825 = vperm.xlu0 %824, %v807
  %v826 = vpop.permute.xlu0 %825
  %829 = vset.pattern.permute.xlu0 0
  %830 = vperm.xlu0 %829, %v808
  %v831 = vpop.permute.xlu0 %830
  %834 = vset.pattern.permute.xlu0 0
  %835 = vperm.xlu0 %834, %v809
  %v836 = vpop.permute.xlu0 %835
  %839 = vset.pattern.permute.xlu0 0
  %840 = vperm.xlu0 %839, %v810
  %v841 = vpop.permute.xlu0 %840
  %844 = vset.pattern.permute.xlu0 0
  %845 = vperm.xlu0 %844, %v811
  %v846 = vpop.permute.xlu0 %845
  %849 = vset.pattern.permute.xlu0 0
  %850 = vperm.xlu0 %849, %v812
  %v851 = vpop.permute.xlu0 %850
  %v861 = vunpack.c.l.b16 %v789
  %v862 = vunpack.c.l.b16 %v790
  %v863 = vunpack.c.l.b16 %v791
  %v864 = vunpack.c.l.b16 %v792
  %v865 = vunpack.c.l.b16 %v793
  %v866 = vunpack.c.l.b16 %v794
  %v867 = vunpack.c.l.b16 %v795
  %v868 = vunpack.c.l.b16 %v796
  %v869 = vpack.c.b16 %v862, %v861
  %v870 = vpack.c.b16 %v864, %v863
  %v871 = vpack.c.b16 %v866, %v865
  %v872 = vpack.c.b16 %v868, %v867
  %vm873 = vcmask 523264
  %v875 = vsel %vm873, %v869, 0
  %v878 = vsel %vm873, %v870, 0
  %v881 = vsel %vm873, %v871, 0
  %v884 = vsel %vm873, %v872, 0
  %886 = vmatprep.subr.bf16.mxu0 %v798
  %887 = vmatpush1.bf16.msra.mxu0 %v797
  %888 = vmatprep.subr.bf16.mxu0 %v800
  %889 = vmatpush1.bf16.msra.mxu0 %v799
  %890 = vmatprep.subr.bf16.mxu0 %v802
  %891 = vmatpush1.bf16.msra.mxu0 %v801
  %892 = vmatprep.subr.bf16.mxu0 %v804
  %893 = vmatpush1.bf16.msra.mxu0 %v803
  %894 = vmatprep.subr.bf16.mxu0 0
  %895 = vmatpush1.bf16.msra.mxu0 0
  %896 = vmatprep.subr.bf16.mxu0 0
  %897 = vmatpush1.bf16.msra.mxu0 0
  %898 = vmatprep.subr.bf16.mxu0 0
  %899 = vmatpush1.bf16.msra.mxu0 0
  %900 = vmatprep.subr.bf16.mxu0 0
  %901 = vmatpush1.bf16.msra.mxu0 0
  %902 = vmatprep.subr.bf16.mxu0 0
  %903 = vmatpush1.bf16.msra.mxu0 0
  %904 = vmatprep.subr.bf16.mxu0 0
  %905 = vmatpush1.bf16.msra.mxu0 0
  %906 = vmatprep.subr.bf16.mxu0 0
  %907 = vmatpush1.bf16.msra.mxu0 0
  %908 = vmatprep.subr.bf16.mxu0 0
  %909 = vmatpush1.bf16.msra.mxu0 0
  %910 = vmatprep.subr.bf16.mxu0 0
  %911 = vmatpush1.bf16.msra.mxu0 0
  %912 = vmatprep.subr.bf16.mxu0 0
  %913 = vmatpush1.bf16.msra.mxu0 0
  %914 = vmatprep.subr.bf16.mxu0 0
  %915 = vmatpush1.bf16.msra.mxu0 0
  %916 = vmatprep.subr.bf16.mxu0 0
  %917 = vmatpush1.bf16.msra.mxu0 0
  %918 = vmatprep.mubr.bf16.mxu0 0
  %919 = vmatmul.mubr.bf16.gmra.mrb[0].mxu0 %v875
  %v920 = vpop.f32.mrb[0].mxu0
  %v921 = vadd.f32 %v816, %v920
  %v922 = vpop.f32.mrb[0].mxu0
  %v923 = vadd.f32 %v816, %v922
  %v924 = vpop.f32.mrb[0].mxu0
  %v925 = vadd.f32 %v821, %v924
  %v926 = vpop.f32.mrb[0].mxu0
  %v927 = vadd.f32 %v821, %v926
  %928 = vmatprep.mubr.bf16.mxu0 0
  %929 = vmatmul.mubr.bf16.gmra.mrb[0].mxu0 %v878
  %v930 = vpop.f32.mrb[0].mxu0
  %v931 = vadd.f32 %v826, %v930
  %v932 = vpop.f32.mrb[0].mxu0
  %v933 = vadd.f32 %v826, %v932
  %v934 = vpop.f32.mrb[0].mxu0
  %v935 = vadd.f32 %v831, %v934
  %v936 = vpop.f32.mrb[0].mxu0
  %v937 = vadd.f32 %v831, %v936
  %938 = vmatprep.mubr.bf16.mxu0 0
  %939 = vmatmul.mubr.bf16.gmra.mrb[0].mxu0 %v881
  %v940 = vpop.f32.mrb[0].mxu0
  %v941 = vadd.f32 %v836, %v940
  %v942 = vpop.f32.mrb[0].mxu0
  %v943 = vadd.f32 %v836, %v942
  %v944 = vpop.f32.mrb[0].mxu0
  %v945 = vadd.f32 %v841, %v944
  %v946 = vpop.f32.mrb[0].mxu0
  %v947 = vadd.f32 %v841, %v946
  %948 = vmatprep.mubr.bf16.mxu0 0
  %949 = vmatmul.mubr.bf16.gmra.mrb[0].mxu0 %v884
  %v950 = vpop.f32.mrb[0].mxu0
  %v951 = vadd.f32 %v846, %v950
  %v952 = vpop.f32.mrb[0].mxu0
  %v953 = vadd.f32 %v846, %v952
  %v954 = vpop.f32.mrb[0].mxu0
  %v955 = vadd.f32 %v851, %v954
  %v956 = vpop.f32.mrb[0].mxu0
  %v957 = vadd.f32 %v851, %v956
  %958 = vdwg.mxu0
  %v959 = vmul.f32 %v921, %v424
  %v960 = vmul.f32 %v923, %v428
  %v961 = vmul.f32 %v925, %v424
  %v962 = vmul.f32 %v927, %v428
  %v963 = vmul.f32 %v931, %v424
  %v964 = vmul.f32 %v933, %v428
  %v965 = vmul.f32 %v935, %v424
  %v966 = vmul.f32 %v937, %v428
  %v967 = vmul.f32 %v941, %v424
  %v968 = vmul.f32 %v943, %v428
  %v969 = vmul.f32 %v945, %v424
  %v970 = vmul.f32 %v947, %v428
  %v971 = vmul.f32 %v951, %v424
  %v972 = vmul.f32 %v953, %v428
  %v973 = vmul.f32 %v955, %v424
  %v974 = vmul.f32 %v957, %v428
  %v975 = vld [vmem:[%s15] sm:$0xff]
  %v976 = vld [vmem:[%s15 + $0x8] sm:$0xff]
  %v977 = vld [vmem:[%s15 + $0x10] sm:$0xff]
  %v978 = vld [vmem:[%s15 + $0x18] sm:$0xff]
  %v979 = vld [vmem:[%s15 + $0x20] sm:$0xff]
  %v980 = vld [vmem:[%s15 + $0x28] sm:$0xff]
  %v981 = vld [vmem:[%s15 + $0x30] sm:$0xff]
  %v982 = vld [vmem:[%s15 + $0x38] sm:$0xff]
  %v983 = vld [vmem:[%s15 + $0x40] sm:$0xff]
  %v984 = vld [vmem:[%s15 + $0x48] sm:$0xff]
  %v985 = vld [vmem:[%s15 + $0x50] sm:$0xff]
  %v986 = vld [vmem:[%s15 + $0x58] sm:$0xff]
  %v987 = vld [vmem:[%s15 + $0x60] sm:$0xff]
  %v988 = vld [vmem:[%s15 + $0x68] sm:$0xff]
  %v989 = vld [vmem:[%s15 + $0x70] sm:$0xff]
  %v990 = vld [vmem:[%s15 + $0x78] sm:$0xff]
  %1007 = vrot.lane.b32.xlu0 %v773, 3
  %v1008 = vpop.permute.xlu0 %1007
  %1009 = vrot.lane.b32.xlu0 %v774, 3
  %v1010 = vpop.permute.xlu0 %1009
  %1011 = vrot.lane.b32.xlu0 %v775, 3
  %v1012 = vpop.permute.xlu0 %1011
  %1013 = vrot.lane.b32.xlu0 %v776, 3
  %v1014 = vpop.permute.xlu0 %1013
  %1015 = vrot.lane.b32.xlu0 %v777, 3
  %v1016 = vpop.permute.xlu0 %1015
  %1017 = vrot.lane.b32.xlu0 %v778, 3
  %v1018 = vpop.permute.xlu0 %1017
  %1019 = vrot.lane.b32.xlu0 %v779, 3
  %v1020 = vpop.permute.xlu0 %1019
  %1021 = vrot.lane.b32.xlu0 %v780, 3
  %v1022 = vpop.permute.xlu0 %1021
  %1023 = vrot.lane.b32.xlu0 %v781, 3
  %v1024 = vpop.permute.xlu0 %1023
  %1025 = vrot.lane.b32.xlu0 %v782, 3
  %v1026 = vpop.permute.xlu0 %1025
  %1027 = vrot.lane.b32.xlu0 %v783, 3
  %v1028 = vpop.permute.xlu0 %1027
  %1029 = vrot.lane.b32.xlu0 %v784, 3
  %v1030 = vpop.permute.xlu0 %1029
  %1031 = vrot.lane.b32.xlu0 %v785, 3
  %v1032 = vpop.permute.xlu0 %1031
  %1033 = vrot.lane.b32.xlu0 %v786, 3
  %v1034 = vpop.permute.xlu0 %1033
  %1035 = vrot.lane.b32.xlu0 %v787, 3
  %v1036 = vpop.permute.xlu0 %1035
  %1037 = vrot.lane.b32.xlu0 %v788, 3
  %v1038 = vpop.permute.xlu0 %1037
  %vm1039 = vcmask 23552
  %v1040 = vsel %vm1039, %v1008, %v1010
  %v1041 = vsel %vm1039, %v1012, %v1014
  %v1042 = vsel %vm1039, %v1016, %v1018
  %v1043 = vsel %vm1039, %v1020, %v1022
  %v1044 = vsel %vm1039, %v1024, %v1026
  %v1045 = vsel %vm1039, %v1028, %v1030
  %v1046 = vsel %vm1039, %v1032, %v1034
  %v1047 = vsel %vm1039, %v1036, %v1038
  %v1064 = vsel %vm1039, 0.0, %v1008
  %v1065 = vsel %vm1039, 0.0, %v1012
  %v1066 = vsel %vm1039, 0.0, %v1016
  %v1067 = vsel %vm1039, 0.0, %v1020
  %v1068 = vsel %vm1039, 0.0, %v1024
  %v1069 = vsel %vm1039, 0.0, %v1028
  %v1070 = vsel %vm1039, 0.0, %v1032
  %v1071 = vsel %vm1039, 0.0, %v1036
  %1072 = vrot.lane.b32.xlu0 %v773, 2
  %v1073 = vpop.permute.xlu0 %1072
  %1074 = vrot.lane.b32.xlu0 %v774, 2
  %v1075 = vpop.permute.xlu0 %1074
  %1076 = vrot.lane.b32.xlu0 %v775, 2
  %v1077 = vpop.permute.xlu0 %1076
  %1078 = vrot.lane.b32.xlu0 %v776, 2
  %v1079 = vpop.permute.xlu0 %1078
  %1080 = vrot.lane.b32.xlu0 %v777, 2
  %v1081 = vpop.permute.xlu0 %1080
  %1082 = vrot.lane.b32.xlu0 %v778, 2
  %v1083 = vpop.permute.xlu0 %1082
  %1084 = vrot.lane.b32.xlu0 %v779, 2
  %v1085 = vpop.permute.xlu0 %1084
  %1086 = vrot.lane.b32.xlu0 %v780, 2
  %v1087 = vpop.permute.xlu0 %1086
  %1088 = vrot.lane.b32.xlu0 %v781, 2
  %v1089 = vpop.permute.xlu0 %1088
  %1090 = vrot.lane.b32.xlu0 %v782, 2
  %v1091 = vpop.permute.xlu0 %1090
  %1092 = vrot.lane.b32.xlu0 %v783, 2
  %v1093 = vpop.permute.xlu0 %1092
  %1094 = vrot.lane.b32.xlu0 %v784, 2
  %v1095 = vpop.permute.xlu0 %1094
  %1096 = vrot.lane.b32.xlu0 %v785, 2
  %v1097 = vpop.permute.xlu0 %1096
  %1098 = vrot.lane.b32.xlu0 %v786, 2
  %v1099 = vpop.permute.xlu0 %1098
  %1100 = vrot.lane.b32.xlu0 %v787, 2
  %v1101 = vpop.permute.xlu0 %1100
  %1102 = vrot.lane.b32.xlu0 %v788, 2
  %v1103 = vpop.permute.xlu0 %1102
  %v1104 = vsel %vm170, %v1073, %v1075
  %v1105 = vsel %vm170, %v1077, %v1079
  %v1106 = vsel %vm170, %v1081, %v1083
  %v1107 = vsel %vm170, %v1085, %v1087
  %v1108 = vsel %vm170, %v1089, %v1091
  %v1109 = vsel %vm170, %v1093, %v1095
  %v1110 = vsel %vm170, %v1097, %v1099
  %v1111 = vsel %vm170, %v1101, %v1103
  %v1128 = vsel %vm170, 0.0, %v1073
  %v1129 = vsel %vm170, 0.0, %v1077
  %v1130 = vsel %vm170, 0.0, %v1081
  %v1131 = vsel %vm170, 0.0, %v1085
  %v1132 = vsel %vm170, 0.0, %v1089
  %v1133 = vsel %vm170, 0.0, %v1093
  %v1134 = vsel %vm170, 0.0, %v1097
  %v1135 = vsel %vm170, 0.0, %v1101
  %1136 = vrot.lane.b32.xlu0 %v773, 1
  %v1137 = vpop.permute.xlu0 %1136
  %1138 = vrot.lane.b32.xlu0 %v774, 1
  %v1139 = vpop.permute.xlu0 %1138
  %1140 = vrot.lane.b32.xlu0 %v775, 1
  %v1141 = vpop.permute.xlu0 %1140
  %1142 = vrot.lane.b32.xlu0 %v776, 1
  %v1143 = vpop.permute.xlu0 %1142
  %1144 = vrot.lane.b32.xlu0 %v777, 1
  %v1145 = vpop.permute.xlu0 %1144
  %1146 = vrot.lane.b32.xlu0 %v778, 1
  %v1147 = vpop.permute.xlu0 %1146
  %1148 = vrot.lane.b32.xlu0 %v779, 1
  %v1149 = vpop.permute.xlu0 %1148
  %1150 = vrot.lane.b32.xlu0 %v780, 1
  %v1151 = vpop.permute.xlu0 %1150
  %1152 = vrot.lane.b32.xlu0 %v781, 1
  %v1153 = vpop.permute.xlu0 %1152
  %1154 = vrot.lane.b32.xlu0 %v782, 1
  %v1155 = vpop.permute.xlu0 %1154
  %1156 = vrot.lane.b32.xlu0 %v783, 1
  %v1157 = vpop.permute.xlu0 %1156
  %1158 = vrot.lane.b32.xlu0 %v784, 1
  %v1159 = vpop.permute.xlu0 %1158
  %1160 = vrot.lane.b32.xlu0 %v785, 1
  %v1161 = vpop.permute.xlu0 %1160
  %1162 = vrot.lane.b32.xlu0 %v786, 1
  %v1163 = vpop.permute.xlu0 %1162
  %1164 = vrot.lane.b32.xlu0 %v787, 1
  %v1165 = vpop.permute.xlu0 %1164
  %1166 = vrot.lane.b32.xlu0 %v788, 1
  %v1167 = vpop.permute.xlu0 %1166
  %v1168 = vsel %vm215, %v1137, %v1139
  %v1169 = vsel %vm215, %v1141, %v1143
  %v1170 = vsel %vm215, %v1145, %v1147
  %v1171 = vsel %vm215, %v1149, %v1151
  %v1172 = vsel %vm215, %v1153, %v1155
  %v1173 = vsel %vm215, %v1157, %v1159
  %v1174 = vsel %vm215, %v1161, %v1163
  %v1175 = vsel %vm215, %v1165, %v1167
  %v1192 = vsel %vm215, 0.0, %v1137
  %v1193 = vsel %vm215, 0.0, %v1141
  %v1194 = vsel %vm215, 0.0, %v1145
  %v1195 = vsel %vm215, 0.0, %v1149
  %v1196 = vsel %vm215, 0.0, %v1153
  %v1197 = vsel %vm215, 0.0, %v1157
  %v1198 = vsel %vm215, 0.0, %v1161
  %v1199 = vsel %vm215, 0.0, %v1165
  %1200 = vrot.lane.b32.xlu0 %v773, 127
  %v1201 = vpop.permute.xlu0 %1200
  %1202 = vrot.lane.b32.xlu0 %v774, 127
  %v1203 = vpop.permute.xlu0 %1202
  %1204 = vrot.lane.b32.xlu0 %v775, 127
  %v1205 = vpop.permute.xlu0 %1204
  %1206 = vrot.lane.b32.xlu0 %v776, 127
  %v1207 = vpop.permute.xlu0 %1206
  %1208 = vrot.lane.b32.xlu0 %v777, 127
  %v1209 = vpop.permute.xlu0 %1208
  %1210 = vrot.lane.b32.xlu0 %v778, 127
  %v1211 = vpop.permute.xlu0 %1210
  %1212 = vrot.lane.b32.xlu0 %v779, 127
  %v1213 = vpop.permute.xlu0 %1212
  %1214 = vrot.lane.b32.xlu0 %v780, 127
  %v1215 = vpop.permute.xlu0 %1214
  %1216 = vrot.lane.b32.xlu0 %v781, 127
  %v1217 = vpop.permute.xlu0 %1216
  %1218 = vrot.lane.b32.xlu0 %v782, 127
  %v1219 = vpop.permute.xlu0 %1218
  %1220 = vrot.lane.b32.xlu0 %v783, 127
  %v1221 = vpop.permute.xlu0 %1220
  %1222 = vrot.lane.b32.xlu0 %v784, 127
  %v1223 = vpop.permute.xlu0 %1222
  %1224 = vrot.lane.b32.xlu0 %v785, 127
  %v1225 = vpop.permute.xlu0 %1224
  %1226 = vrot.lane.b32.xlu0 %v786, 127
  %v1227 = vpop.permute.xlu0 %1226
  %1228 = vrot.lane.b32.xlu0 %v787, 127
  %v1229 = vpop.permute.xlu0 %1228
  %1230 = vrot.lane.b32.xlu0 %v788, 127
  %v1231 = vpop.permute.xlu0 %1230
  %v1232 = vsel %vm298, %v1201, %v1203
  %v1233 = vsel %vm298, %v1205, %v1207
  %v1234 = vsel %vm298, %v1209, %v1211
  %v1235 = vsel %vm298, %v1213, %v1215
  %v1236 = vsel %vm298, %v1217, %v1219
  %v1237 = vsel %vm298, %v1221, %v1223
  %v1238 = vsel %vm298, %v1225, %v1227
  %v1239 = vsel %vm298, %v1229, %v1231
  %v1256 = vsel %vm298, %v1203, 0.0
  %v1257 = vsel %vm298, %v1207, 0.0
  %v1258 = vsel %vm298, %v1211, 0.0
  %v1259 = vsel %vm298, %v1215, 0.0
  %v1260 = vsel %vm298, %v1219, 0.0
  %v1261 = vsel %vm298, %v1223, 0.0
  %v1262 = vsel %vm298, %v1227, 0.0
  %v1263 = vsel %vm298, %v1231, 0.0
  %1264 = vrot.lane.b32.xlu0 %v773, 126
  %v1265 = vpop.permute.xlu0 %1264
  %1266 = vrot.lane.b32.xlu0 %v774, 126
  %v1267 = vpop.permute.xlu0 %1266
  %1268 = vrot.lane.b32.xlu0 %v775, 126
  %v1269 = vpop.permute.xlu0 %1268
  %1270 = vrot.lane.b32.xlu0 %v776, 126
  %v1271 = vpop.permute.xlu0 %1270
  %1272 = vrot.lane.b32.xlu0 %v777, 126
  %v1273 = vpop.permute.xlu0 %1272
  %1274 = vrot.lane.b32.xlu0 %v778, 126
  %v1275 = vpop.permute.xlu0 %1274
  %1276 = vrot.lane.b32.xlu0 %v779, 126
  %v1277 = vpop.permute.xlu0 %1276
  %1278 = vrot.lane.b32.xlu0 %v780, 126
  %v1279 = vpop.permute.xlu0 %1278
  %1280 = vrot.lane.b32.xlu0 %v781, 126
  %v1281 = vpop.permute.xlu0 %1280
  %1282 = vrot.lane.b32.xlu0 %v782, 126
  %v1283 = vpop.permute.xlu0 %1282
  %1284 = vrot.lane.b32.xlu0 %v783, 126
  %v1285 = vpop.permute.xlu0 %1284
  %1286 = vrot.lane.b32.xlu0 %v784, 126
  %v1287 = vpop.permute.xlu0 %1286
  %1288 = vrot.lane.b32.xlu0 %v785, 126
  %v1289 = vpop.permute.xlu0 %1288
  %1290 = vrot.lane.b32.xlu0 %v786, 126
  %v1291 = vpop.permute.xlu0 %1290
  %1292 = vrot.lane.b32.xlu0 %v787, 126
  %v1293 = vpop.permute.xlu0 %1292
  %1294 = vrot.lane.b32.xlu0 %v788, 126
  %v1295 = vpop.permute.xlu0 %1294
  %v1296 = vsel %vm347, %v1265, %v1267
  %v1297 = vsel %vm347, %v1269, %v1271
  %v1298 = vsel %vm347, %v1273, %v1275
  %v1299 = vsel %vm347, %v1277, %v1279
  %v1300 = vsel %vm347, %v1281, %v1283
  %v1301 = vsel %vm347, %v1285, %v1287
  %v1302 = vsel %vm347, %v1289, %v1291
  %v1303 = vsel %vm347, %v1293, %v1295
  %v1320 = vsel %vm347, %v1267, 0.0
  %v1321 = vsel %vm347, %v1271, 0.0
  %v1322 = vsel %vm347, %v1275, 0.0
  %v1323 = vsel %vm347, %v1279, 0.0
  %v1324 = vsel %vm347, %v1283, 0.0
  %v1325 = vsel %vm347, %v1287, 0.0
  %v1326 = vsel %vm347, %v1291, 0.0
  %v1327 = vsel %vm347, %v1295, 0.0
  %1328 = vrot.lane.b32.xlu0 %v773, 125
  %v1329 = vpop.permute.xlu0 %1328
  %1330 = vrot.lane.b32.xlu0 %v774, 125
  %v1331 = vpop.permute.xlu0 %1330
  %1332 = vrot.lane.b32.xlu0 %v775, 125
  %v1333 = vpop.permute.xlu0 %1332
  %1334 = vrot.lane.b32.xlu0 %v776, 125
  %v1335 = vpop.permute.xlu0 %1334
  %1336 = vrot.lane.b32.xlu0 %v777, 125
  %v1337 = vpop.permute.xlu0 %1336
  %1338 = vrot.lane.b32.xlu0 %v778, 125
  %v1339 = vpop.permute.xlu0 %1338
  %1340 = vrot.lane.b32.xlu0 %v779, 125
  %v1341 = vpop.permute.xlu0 %1340
  %1342 = vrot.lane.b32.xlu0 %v780, 125
  %v1343 = vpop.permute.xlu0 %1342
  %1344 = vrot.lane.b32.xlu0 %v781, 125
  %v1345 = vpop.permute.xlu0 %1344
  %1346 = vrot.lane.b32.xlu0 %v782, 125
  %v1347 = vpop.permute.xlu0 %1346
  %1348 = vrot.lane.b32.xlu0 %v783, 125
  %v1349 = vpop.permute.xlu0 %1348
  %1350 = vrot.lane.b32.xlu0 %v784, 125
  %v1351 = vpop.permute.xlu0 %1350
  %1352 = vrot.lane.b32.xlu0 %v785, 125
  %v1353 = vpop.permute.xlu0 %1352
  %1354 = vrot.lane.b32.xlu0 %v786, 125
  %v1355 = vpop.permute.xlu0 %1354
  %1356 = vrot.lane.b32.xlu0 %v787, 125
  %v1357 = vpop.permute.xlu0 %1356
  %1358 = vrot.lane.b32.xlu0 %v788, 125
  %v1359 = vpop.permute.xlu0 %1358
  %vm1360 = vcmask 1022976
  %v1361 = vsel %vm1360, %v1329, %v1331
  %v1362 = vsel %vm1360, %v1333, %v1335
  %v1363 = vsel %vm1360, %v1337, %v1339
  %v1364 = vsel %vm1360, %v1341, %v1343
  %v1365 = vsel %vm1360, %v1345, %v1347
  %v1366 = vsel %vm1360, %v1349, %v1351
  %v1367 = vsel %vm1360, %v1353, %v1355
  %v1368 = vsel %vm1360, %v1357, %v1359
  %v1385 = vsel %vm1360, %v1331, 0.0
  %v1386 = vsel %vm1360, %v1335, 0.0
  %v1387 = vsel %vm1360, %v1339, 0.0
  %v1388 = vsel %vm1360, %v1343, 0.0
  %v1389 = vsel %vm1360, %v1347, 0.0
  %v1390 = vsel %vm1360, %v1351, 0.0
  %v1391 = vsel %vm1360, %v1355, 0.0
  %v1392 = vsel %vm1360, %v1359, 0.0
  %v1393 = vpack.c.bf16 %v1065, %v1064
  %v1394 = vpack.c.bf16 %v1041, %v1040
  %v1395 = vpack.c.bf16 %v1067, %v1066
  %v1396 = vpack.c.bf16 %v1043, %v1042
  %v1397 = vpack.c.bf16 %v1069, %v1068
  %v1398 = vpack.c.bf16 %v1045, %v1044
  %v1399 = vpack.c.bf16 %v1071, %v1070
  %v1400 = vpack.c.bf16 %v1047, %v1046
  %v1401 = vpack.c.bf16 %v1129, %v1128
  %v1402 = vpack.c.bf16 %v1105, %v1104
  %v1403 = vpack.c.bf16 %v1131, %v1130
  %v1404 = vpack.c.bf16 %v1107, %v1106
  %v1405 = vpack.c.bf16 %v1133, %v1132
  %v1406 = vpack.c.bf16 %v1109, %v1108
  %v1407 = vpack.c.bf16 %v1135, %v1134
  %v1408 = vpack.c.bf16 %v1111, %v1110
  %v1409 = vpack.c.bf16 %v1193, %v1192
  %v1410 = vpack.c.bf16 %v1169, %v1168
  %v1411 = vpack.c.bf16 %v1195, %v1194
  %v1412 = vpack.c.bf16 %v1171, %v1170
  %v1413 = vpack.c.bf16 %v1197, %v1196
  %v1414 = vpack.c.bf16 %v1173, %v1172
  %v1415 = vpack.c.bf16 %v1199, %v1198
  %v1416 = vpack.c.bf16 %v1175, %v1174
  %v1417 = vpack.c.bf16 %v1233, %v1232
  %v1418 = vpack.c.bf16 %v1257, %v1256
  %v1419 = vpack.c.bf16 %v1235, %v1234
  %v1420 = vpack.c.bf16 %v1259, %v1258
  %v1421 = vpack.c.bf16 %v1237, %v1236
  %v1422 = vpack.c.bf16 %v1261, %v1260
  %v1423 = vpack.c.bf16 %v1239, %v1238
  %v1424 = vpack.c.bf16 %v1263, %v1262
  %v1425 = vpack.c.bf16 %v1297, %v1296
  %v1426 = vpack.c.bf16 %v1321, %v1320
  %v1427 = vpack.c.bf16 %v1299, %v1298
  %v1428 = vpack.c.bf16 %v1323, %v1322
  %v1429 = vpack.c.bf16 %v1301, %v1300
  %v1430 = vpack.c.bf16 %v1325, %v1324
  %v1431 = vpack.c.bf16 %v1303, %v1302
  %v1432 = vpack.c.bf16 %v1327, %v1326
  %v1433 = vpack.c.bf16 %v1362, %v1361
  %v1434 = vpack.c.bf16 %v1386, %v1385
  %v1435 = vpack.c.bf16 %v1364, %v1363
  %v1436 = vpack.c.bf16 %v1388, %v1387
  %v1437 = vpack.c.bf16 %v1366, %v1365
  %v1438 = vpack.c.bf16 %v1390, %v1389
  %v1439 = vpack.c.bf16 %v1368, %v1367
  %v1440 = vpack.c.bf16 %v1392, %v1391
  %v1441 = vld [vmem:[%s17] sm:$0xff]
  %v1442 = vld [vmem:[%s17 + $0x8] sm:$0xff]
  %v1443 = vld [vmem:[%s17 + $0x10] sm:$0xff]
  %v1444 = vld [vmem:[%s17 + $0x18] sm:$0xff]
  %v1445 = vld [vmem:[%s17 + $0x20] sm:$0xff]
  %v1446 = vld [vmem:[%s17 + $0x28] sm:$0xff]
  %v1447 = vld [vmem:[%s17 + $0x30] sm:$0xff]
  %v1448 = vld [vmem:[%s17 + $0x38] sm:$0xff]
  %1450 = vset.pattern.permute.xlu0 0
  %1451 = vperm.xlu0 %1450, %v1441
  %v1452 = vpop.permute.xlu0 %1451
  %1455 = vset.pattern.permute.xlu0 0
  %1456 = vperm.xlu0 %1455, %v1442
  %v1457 = vpop.permute.xlu0 %1456
  %1460 = vset.pattern.permute.xlu0 0
  %1461 = vperm.xlu0 %1460, %v1443
  %v1462 = vpop.permute.xlu0 %1461
  %1465 = vset.pattern.permute.xlu0 0
  %1466 = vperm.xlu0 %1465, %v1444
  %v1467 = vpop.permute.xlu0 %1466
  %1470 = vset.pattern.permute.xlu0 0
  %1471 = vperm.xlu0 %1470, %v1445
  %v1472 = vpop.permute.xlu0 %1471
  %1475 = vset.pattern.permute.xlu0 0
  %1476 = vperm.xlu0 %1475, %v1446
  %v1477 = vpop.permute.xlu0 %1476
  %1480 = vset.pattern.permute.xlu0 0
  %1481 = vperm.xlu0 %1480, %v1447
  %v1482 = vpop.permute.xlu0 %1481
  %1485 = vset.pattern.permute.xlu0 0
  %1486 = vperm.xlu0 %1485, %v1448
  %v1487 = vpop.permute.xlu0 %1486
  %v1505 = vunpack.c.l.b16 %v975
  %v1506 = vunpack.c.h.b16 %v975
  %v1507 = vunpack.c.l.b16 %v976
  %v1508 = vunpack.c.h.b16 %v976
  %v1509 = vunpack.c.l.b16 %v977
  %v1510 = vunpack.c.h.b16 %v977
  %v1511 = vunpack.c.l.b16 %v978
  %v1512 = vunpack.c.h.b16 %v978
  %v1513 = vunpack.c.l.b16 %v979
  %v1514 = vunpack.c.h.b16 %v979
  %v1515 = vunpack.c.l.b16 %v980
  %v1516 = vunpack.c.h.b16 %v980
  %v1517 = vunpack.c.l.b16 %v981
  %v1518 = vunpack.c.h.b16 %v981
  %v1519 = vunpack.c.l.b16 %v982
  %v1520 = vunpack.c.h.b16 %v982
  %v1521 = vunpack.c.l.b16 %v983
  %v1522 = vunpack.c.h.b16 %v983
  %v1523 = vunpack.c.l.b16 %v984
  %v1524 = vunpack.c.h.b16 %v984
  %v1525 = vunpack.c.l.b16 %v985
  %v1526 = vunpack.c.h.b16 %v985
  %v1527 = vunpack.c.l.b16 %v986
  %v1528 = vunpack.c.h.b16 %v986
  %v1529 = vunpack.c.l.b16 %v987
  %v1530 = vunpack.c.h.b16 %v987
  %v1531 = vunpack.c.l.b16 %v988
  %v1532 = vunpack.c.h.b16 %v988
  %v1533 = vunpack.c.l.b16 %v989
  %v1534 = vunpack.c.h.b16 %v989
  %v1535 = vunpack.c.l.b16 %v990
  %v1536 = vunpack.c.h.b16 %v990
  %v1537 = vpack.c.b16 %v1509, %v1505
  %v1538 = vpack.c.b16 %v1510, %v1506
  %v1539 = vpack.c.b16 %v1511, %v1507
  %v1540 = vpack.c.b16 %v1512, %v1508
  %v1541 = vpack.c.b16 %v1517, %v1513
  %v1542 = vpack.c.b16 %v1518, %v1514
  %v1543 = vpack.c.b16 %v1519, %v1515
  %v1544 = vpack.c.b16 %v1520, %v1516
  %v1545 = vpack.c.b16 %v1525, %v1521
  %v1546 = vpack.c.b16 %v1526, %v1522
  %v1547 = vpack.c.b16 %v1527, %v1523
  %v1548 = vpack.c.b16 %v1528, %v1524
  %v1549 = vpack.c.b16 %v1533, %v1529
  %v1550 = vpack.c.b16 %v1534, %v1530
  %v1551 = vpack.c.b16 %v1535, %v1531
  %v1552 = vpack.c.b16 %v1536, %v1532
  %v1566 = vsel %vm873, %v1540, 0
  %v1569 = vsel %vm873, %v1544, 0
  %v1572 = vsel %vm873, %v1548, 0
  %v1575 = vsel %vm873, %v1552, 0
  %1577 = vmatprep.subr.bf16.mxu0 %v1394
  %1578 = vmatpush1.bf16.msra.mxu0 %v1393
  %1579 = vmatprep.subr.bf16.mxu0 %v1396
  %1580 = vmatpush1.bf16.msra.mxu0 %v1395
  %1581 = vmatprep.subr.bf16.mxu0 %v1398
  %1582 = vmatpush1.bf16.msra.mxu0 %v1397
  %1583 = vmatprep.subr.bf16.mxu0 %v1400
  %1584 = vmatpush1.bf16.msra.mxu0 %v1399
  %1585 = vmatprep.subr.bf16.mxu0 %v1402
  %1586 = vmatpush1.bf16.msra.mxu0 %v1401
  %1587 = vmatprep.subr.bf16.mxu0 %v1404
  %1588 = vmatpush1.bf16.msra.mxu0 %v1403
  %1589 = vmatprep.subr.bf16.mxu0 %v1406
  %1590 = vmatpush1.bf16.msra.mxu0 %v1405
  %1591 = vmatprep.subr.bf16.mxu0 %v1408
  %1592 = vmatpush1.bf16.msra.mxu0 %v1407
  %1593 = vmatprep.subr.bf16.mxu0 %v1410
  %1594 = vmatpush1.bf16.msra.mxu0 %v1409
  %1595 = vmatprep.subr.bf16.mxu0 %v1412
  %1596 = vmatpush1.bf16.msra.mxu0 %v1411
  %1597 = vmatprep.subr.bf16.mxu0 %v1414
  %1598 = vmatpush1.bf16.msra.mxu0 %v1413
  %1599 = vmatprep.subr.bf16.mxu0 %v1416
  %1600 = vmatpush1.bf16.msra.mxu0 %v1415
  %1601 = vmatprep.subr.bf16.mxu0 %v798
  %1602 = vmatpush1.bf16.msra.mxu0 %v797
  %1603 = vmatprep.subr.bf16.mxu0 %v800
  %1604 = vmatpush1.bf16.msra.mxu0 %v799
  %1605 = vmatprep.subr.bf16.mxu0 %v802
  %1606 = vmatpush1.bf16.msra.mxu0 %v801
  %1607 = vmatprep.subr.bf16.mxu0 %v804
  %1608 = vmatpush1.bf16.msra.mxu0 %v803
  %1609 = vmatprep.mubr.bf16.mxu0 %v1538
  %1610 = vmatmul.mubr.bf16.gmra.mrb[0].mxu0 %v1537
  %v1611 = vpop.f32.mrb[0].mxu0
  %v1612 = vadd.f32 %v1452, %v1611
  %v1613 = vpop.f32.mrb[0].mxu0
  %v1614 = vadd.f32 %v1452, %v1613
  %v1615 = vpop.f32.mrb[0].mxu0
  %v1616 = vadd.f32 %v1457, %v1615
  %v1617 = vpop.f32.mrb[0].mxu0
  %v1618 = vadd.f32 %v1457, %v1617
  %1619 = vmatprep.mubr.bf16.mxu0 %v1542
  %1620 = vmatmul.mubr.bf16.gmra.mrb[0].mxu0 %v1541
  %v1621 = vpop.f32.mrb[0].mxu0
  %v1622 = vadd.f32 %v1462, %v1621
  %v1623 = vpop.f32.mrb[0].mxu0
  %v1624 = vadd.f32 %v1462, %v1623
  %v1625 = vpop.f32.mrb[0].mxu0
  %v1626 = vadd.f32 %v1467, %v1625
  %v1627 = vpop.f32.mrb[0].mxu0
  %v1628 = vadd.f32 %v1467, %v1627
  %1629 = vmatprep.mubr.bf16.mxu0 %v1546
  %1630 = vmatmul.mubr.bf16.gmra.mrb[0].mxu0 %v1545
  %v1631 = vpop.f32.mrb[0].mxu0
  %v1632 = vadd.f32 %v1472, %v1631
  %v1633 = vpop.f32.mrb[0].mxu0
  %v1634 = vadd.f32 %v1472, %v1633
  %v1635 = vpop.f32.mrb[0].mxu0
  %v1636 = vadd.f32 %v1477, %v1635
  %v1637 = vpop.f32.mrb[0].mxu0
  %v1638 = vadd.f32 %v1477, %v1637
  %1639 = vmatprep.mubr.bf16.mxu0 %v1550
  %1640 = vmatmul.mubr.bf16.gmra.mrb[0].mxu0 %v1549
  %v1641 = vpop.f32.mrb[0].mxu0
  %v1642 = vadd.f32 %v1482, %v1641
  %v1643 = vpop.f32.mrb[0].mxu0
  %v1644 = vadd.f32 %v1482, %v1643
  %v1645 = vpop.f32.mrb[0].mxu0
  %v1646 = vadd.f32 %v1487, %v1645
  %v1647 = vpop.f32.mrb[0].mxu0
  %v1648 = vadd.f32 %v1487, %v1647
  %1649 = vdwg.mxu0
  %1650 = vmatprep.subr.bf16.mxu0 %v1418
  %1651 = vmatpush1.bf16.msra.mxu0 %v1417
  %1652 = vmatprep.subr.bf16.mxu0 %v1420
  %1653 = vmatpush1.bf16.msra.mxu0 %v1419
  %1654 = vmatprep.subr.bf16.mxu0 %v1422
  %1655 = vmatpush1.bf16.msra.mxu0 %v1421
  %1656 = vmatprep.subr.bf16.mxu0 %v1424
  %1657 = vmatpush1.bf16.msra.mxu0 %v1423
  %1658 = vmatprep.subr.bf16.mxu0 %v1426
  %1659 = vmatpush1.bf16.msra.mxu0 %v1425
  %1660 = vmatprep.subr.bf16.mxu0 %v1428
  %1661 = vmatpush1.bf16.msra.mxu0 %v1427
  %1662 = vmatprep.subr.bf16.mxu0 %v1430
  %1663 = vmatpush1.bf16.msra.mxu0 %v1429
  %1664 = vmatprep.subr.bf16.mxu0 %v1432
  %1665 = vmatpush1.bf16.msra.mxu0 %v1431
  %1666 = vmatprep.subr.bf16.mxu0 %v1434
  %1667 = vmatpush1.bf16.msra.mxu0 %v1433
  %1668 = vmatprep.subr.bf16.mxu0 %v1436
  %1669 = vmatpush1.bf16.msra.mxu0 %v1435
  %1670 = vmatprep.subr.bf16.mxu0 %v1438
  %1671 = vmatpush1.bf16.msra.mxu0 %v1437
  %1672 = vmatprep.subr.bf16.mxu0 %v1440
  %1673 = vmatpush1.bf16.msra.mxu0 %v1439
  %1674 = vmatprep.subr.bf16.mxu0 0
  %1675 = vmatpush1.bf16.msra.mxu0 0
  %1676 = vmatprep.subr.bf16.mxu0 0
  %1677 = vmatpush1.bf16.msra.mxu0 0
  %1678 = vmatprep.subr.bf16.mxu0 0
  %1679 = vmatpush1.bf16.msra.mxu0 0
  %1680 = vmatprep.subr.bf16.mxu0 0
  %1681 = vmatpush1.bf16.msra.mxu0 0
  %1682 = vmatprep.mubr.bf16.mxu0 %v1566
  %1683 = vmatmul.mubr.bf16.gmra.mrb[0].mxu0 %v1539
  %v1684 = vpop.f32.mrb[0].mxu0
  %v1685 = vadd.f32 %v1612, %v1684
  %v1686 = vpop.f32.mrb[0].mxu0
  %v1687 = vadd.f32 %v1614, %v1686
  %v1688 = vpop.f32.mrb[0].mxu0
  %v1689 = vadd.f32 %v1616, %v1688
  %v1690 = vpop.f32.mrb[0].mxu0
  %v1691 = vadd.f32 %v1618, %v1690
  %1692 = vmatprep.mubr.bf16.mxu0 %v1569
  %1693 = vmatmul.mubr.bf16.gmra.mrb[0].mxu0 %v1543
  %v1694 = vpop.f32.mrb[0].mxu0
  %v1695 = vadd.f32 %v1622, %v1694
  %v1696 = vpop.f32.mrb[0].mxu0
  %v1697 = vadd.f32 %v1624, %v1696
  %v1698 = vpop.f32.mrb[0].mxu0
  %v1699 = vadd.f32 %v1626, %v1698
  %v1700 = vpop.f32.mrb[0].mxu0
  %v1701 = vadd.f32 %v1628, %v1700
  %1702 = vmatprep.mubr.bf16.mxu0 %v1572
  %1703 = vmatmul.mubr.bf16.gmra.mrb[0].mxu0 %v1547
  %v1704 = vpop.f32.mrb[0].mxu0
  %v1705 = vadd.f32 %v1632, %v1704
  %v1706 = vpop.f32.mrb[0].mxu0
  %v1707 = vadd.f32 %v1634, %v1706
  %v1708 = vpop.f32.mrb[0].mxu0
  %v1709 = vadd.f32 %v1636, %v1708
  %v1710 = vpop.f32.mrb[0].mxu0
  %v1711 = vadd.f32 %v1638, %v1710
  %1712 = vmatprep.mubr.bf16.mxu0 %v1575
  %1713 = vmatmul.mubr.bf16.gmra.mrb[0].mxu0 %v1551
  %v1714 = vpop.f32.mrb[0].mxu0
  %v1715 = vadd.f32 %v1642, %v1714
  %v1716 = vpop.f32.mrb[0].mxu0
  %v1717 = vadd.f32 %v1644, %v1716
  %v1718 = vpop.f32.mrb[0].mxu0
  %v1719 = vadd.f32 %v1646, %v1718
  %v1720 = vpop.f32.mrb[0].mxu0
  %v1721 = vadd.f32 %v1648, %v1720
  %1722 = vdwg.mxu0
  %v1723 = vmul.f32 %v1685, %v424
  %v1724 = vmul.f32 %v1687, %v428
  %v1725 = vmul.f32 %v1689, %v424
  %v1726 = vmul.f32 %v1691, %v428
  %v1727 = vmul.f32 %v1695, %v424
  %v1728 = vmul.f32 %v1697, %v428
  %v1729 = vmul.f32 %v1699, %v424
  %v1730 = vmul.f32 %v1701, %v428
  %v1731 = vmul.f32 %v1705, %v424
  %v1732 = vmul.f32 %v1707, %v428
  %v1733 = vmul.f32 %v1709, %v424
  %v1734 = vmul.f32 %v1711, %v428
  %v1735 = vmul.f32 %v1715, %v424
  %v1736 = vmul.f32 %v1717, %v428
  %v1737 = vmul.f32 %v1719, %v424
  %v1738 = vmul.f32 %v1721, %v428
  %v1739 = vmax.f32 %v1723, 0.0
  %v1740 = vmax.f32 %v1724, 0.0
  %v1741 = vmax.f32 %v1725, 0.0
  %v1742 = vmax.f32 %v1726, 0.0
  %v1743 = vmax.f32 %v1727, 0.0
  %v1744 = vmax.f32 %v1728, 0.0
  %v1745 = vmax.f32 %v1729, 0.0
  %v1746 = vmax.f32 %v1730, 0.0
  %v1747 = vmax.f32 %v1731, 0.0
  %v1748 = vmax.f32 %v1732, 0.0
  %v1749 = vmax.f32 %v1733, 0.0
  %v1750 = vmax.f32 %v1734, 0.0
  %v1751 = vmax.f32 %v1735, 0.0
  %v1752 = vmax.f32 %v1736, 0.0
  %v1753 = vmax.f32 %v1737, 0.0
  %v1754 = vmax.f32 %v1738, 0.0
  %v1755 = vld [vmem:[%s19] sm:$0xff]
  %v1756 = vld [vmem:[%s19 + $0x8] sm:$0xf]
  %v1757 = vld [vmem:[%s19 + $0xc] sm:$0xff]
  %v1758 = vld [vmem:[%s19 + $0x14] sm:$0xf]
  %v1759 = vld [vmem:[%s19 + $0x18] sm:$0xff]
  %v1760 = vld [vmem:[%s19 + $0x20] sm:$0xf]
  %v1761 = vld [vmem:[%s19 + $0x24] sm:$0xff]
  %v1762 = vld [vmem:[%s19 + $0x2c] sm:$0xf]
  %v1763 = vld [vmem:[%s19 + $0x30] sm:$0xff]
  %v1764 = vld [vmem:[%s19 + $0x38] sm:$0xf]
  %v1765 = vld [vmem:[%s19 + $0x3c] sm:$0xff]
  %v1766 = vld [vmem:[%s19 + $0x44] sm:$0xf]
  %v1767 = vld [vmem:[%s19 + $0x48] sm:$0xff]
  %v1768 = vld [vmem:[%s19 + $0x50] sm:$0xf]
  %v1769 = vld [vmem:[%s19 + $0x54] sm:$0xff]
  %v1770 = vld [vmem:[%s19 + $0x5c] sm:$0xf]
  %1787 = vrot.lane.b32.xlu0 %v1739, 2
  %v1788 = vpop.permute.xlu0 %1787
  %1789 = vrot.lane.b32.xlu0 %v1740, 2
  %v1790 = vpop.permute.xlu0 %1789
  %1791 = vrot.lane.b32.xlu0 %v1741, 2
  %v1792 = vpop.permute.xlu0 %1791
  %1793 = vrot.lane.b32.xlu0 %v1742, 2
  %v1794 = vpop.permute.xlu0 %1793
  %1795 = vrot.lane.b32.xlu0 %v1743, 2
  %v1796 = vpop.permute.xlu0 %1795
  %1797 = vrot.lane.b32.xlu0 %v1744, 2
  %v1798 = vpop.permute.xlu0 %1797
  %1799 = vrot.lane.b32.xlu0 %v1745, 2
  %v1800 = vpop.permute.xlu0 %1799
  %1801 = vrot.lane.b32.xlu0 %v1746, 2
  %v1802 = vpop.permute.xlu0 %1801
  %1803 = vrot.lane.b32.xlu0 %v1747, 2
  %v1804 = vpop.permute.xlu0 %1803
  %1805 = vrot.lane.b32.xlu0 %v1748, 2
  %v1806 = vpop.permute.xlu0 %1805
  %1807 = vrot.lane.b32.xlu0 %v1749, 2
  %v1808 = vpop.permute.xlu0 %1807
  %1809 = vrot.lane.b32.xlu0 %v1750, 2
  %v1810 = vpop.permute.xlu0 %1809
  %1811 = vrot.lane.b32.xlu0 %v1751, 2
  %v1812 = vpop.permute.xlu0 %1811
  %1813 = vrot.lane.b32.xlu0 %v1752, 2
  %v1814 = vpop.permute.xlu0 %1813
  %1815 = vrot.lane.b32.xlu0 %v1753, 2
  %v1816 = vpop.permute.xlu0 %1815
  %1817 = vrot.lane.b32.xlu0 %v1754, 2
  %v1818 = vpop.permute.xlu0 %1817
  %v1819 = vsel %vm170, %v1788, %v1790
  %v1820 = vsel %vm170, %v1792, %v1794
  %v1821 = vsel %vm170, %v1796, %v1798
  %v1822 = vsel %vm170, %v1800, %v1802
  %v1823 = vsel %vm170, %v1804, %v1806
  %v1824 = vsel %vm170, %v1808, %v1810
  %v1825 = vsel %vm170, %v1812, %v1814
  %v1826 = vsel %vm170, %v1816, %v1818
  %v1843 = vsel %vm170, 0.0, %v1788
  %v1844 = vsel %vm170, 0.0, %v1792
  %v1845 = vsel %vm170, 0.0, %v1796
  %v1846 = vsel %vm170, 0.0, %v1800
  %v1847 = vsel %vm170, 0.0, %v1804
  %v1848 = vsel %vm170, 0.0, %v1808
  %v1849 = vsel %vm170, 0.0, %v1812
  %v1850 = vsel %vm170, 0.0, %v1816
  %1851 = vrot.lane.b32.xlu0 %v1739, 1
  %v1852 = vpop.permute.xlu0 %1851
  %1853 = vrot.lane.b32.xlu0 %v1740, 1
  %v1854 = vpop.permute.xlu0 %1853
  %1855 = vrot.lane.b32.xlu0 %v1741, 1
  %v1856 = vpop.permute.xlu0 %1855
  %1857 = vrot.lane.b32.xlu0 %v1742, 1
  %v1858 = vpop.permute.xlu0 %1857
  %1859 = vrot.lane.b32.xlu0 %v1743, 1
  %v1860 = vpop.permute.xlu0 %1859
  %1861 = vrot.lane.b32.xlu0 %v1744, 1
  %v1862 = vpop.permute.xlu0 %1861
  %1863 = vrot.lane.b32.xlu0 %v1745, 1
  %v1864 = vpop.permute.xlu0 %1863
  %1865 = vrot.lane.b32.xlu0 %v1746, 1
  %v1866 = vpop.permute.xlu0 %1865
  %1867 = vrot.lane.b32.xlu0 %v1747, 1
  %v1868 = vpop.permute.xlu0 %1867
  %1869 = vrot.lane.b32.xlu0 %v1748, 1
  %v1870 = vpop.permute.xlu0 %1869
  %1871 = vrot.lane.b32.xlu0 %v1749, 1
  %v1872 = vpop.permute.xlu0 %1871
  %1873 = vrot.lane.b32.xlu0 %v1750, 1
  %v1874 = vpop.permute.xlu0 %1873
  %1875 = vrot.lane.b32.xlu0 %v1751, 1
  %v1876 = vpop.permute.xlu0 %1875
  %1877 = vrot.lane.b32.xlu0 %v1752, 1
  %v1878 = vpop.permute.xlu0 %1877
  %1879 = vrot.lane.b32.xlu0 %v1753, 1
  %v1880 = vpop.permute.xlu0 %1879
  %1881 = vrot.lane.b32.xlu0 %v1754, 1
  %v1882 = vpop.permute.xlu0 %1881
  %v1883 = vsel %vm215, %v1852, %v1854
  %v1884 = vsel %vm215, %v1856, %v1858
  %v1885 = vsel %vm215, %v1860, %v1862
  %v1886 = vsel %vm215, %v1864, %v1866
  %v1887 = vsel %vm215, %v1868, %v1870
  %v1888 = vsel %vm215, %v1872, %v1874
  %v1889 = vsel %vm215, %v1876, %v1878
  %v1890 = vsel %vm215, %v1880, %v1882
  %v1907 = vsel %vm215, 0.0, %v1852
  %v1908 = vsel %vm215, 0.0, %v1856
  %v1909 = vsel %vm215, 0.0, %v1860
  %v1910 = vsel %vm215, 0.0, %v1864
  %v1911 = vsel %vm215, 0.0, %v1868
  %v1912 = vsel %vm215, 0.0, %v1872
  %v1913 = vsel %vm215, 0.0, %v1876
  %v1914 = vsel %vm215, 0.0, %v1880
  %1915 = vrot.lane.b32.xlu0 %v1739, 127
  %v1916 = vpop.permute.xlu0 %1915
  %1917 = vrot.lane.b32.xlu0 %v1740, 127
  %v1918 = vpop.permute.xlu0 %1917
  %1919 = vrot.lane.b32.xlu0 %v1741, 127
  %v1920 = vpop.permute.xlu0 %1919
  %1921 = vrot.lane.b32.xlu0 %v1742, 127
  %v1922 = vpop.permute.xlu0 %1921
  %1923 = vrot.lane.b32.xlu0 %v1743, 127
  %v1924 = vpop.permute.xlu0 %1923
  %1925 = vrot.lane.b32.xlu0 %v1744, 127
  %v1926 = vpop.permute.xlu0 %1925
  %1927 = vrot.lane.b32.xlu0 %v1745, 127
  %v1928 = vpop.permute.xlu0 %1927
  %1929 = vrot.lane.b32.xlu0 %v1746, 127
  %v1930 = vpop.permute.xlu0 %1929
  %1931 = vrot.lane.b32.xlu0 %v1747, 127
  %v1932 = vpop.permute.xlu0 %1931
  %1933 = vrot.lane.b32.xlu0 %v1748, 127
  %v1934 = vpop.permute.xlu0 %1933
  %1935 = vrot.lane.b32.xlu0 %v1749, 127
  %v1936 = vpop.permute.xlu0 %1935
  %1937 = vrot.lane.b32.xlu0 %v1750, 127
  %v1938 = vpop.permute.xlu0 %1937
  %1939 = vrot.lane.b32.xlu0 %v1751, 127
  %v1940 = vpop.permute.xlu0 %1939
  %1941 = vrot.lane.b32.xlu0 %v1752, 127
  %v1942 = vpop.permute.xlu0 %1941
  %1943 = vrot.lane.b32.xlu0 %v1753, 127
  %v1944 = vpop.permute.xlu0 %1943
  %1945 = vrot.lane.b32.xlu0 %v1754, 127
  %v1946 = vpop.permute.xlu0 %1945
  %v1947 = vsel %vm298, %v1916, %v1918
  %v1948 = vsel %vm298, %v1920, %v1922
  %v1949 = vsel %vm298, %v1924, %v1926
  %v1950 = vsel %vm298, %v1928, %v1930
  %v1951 = vsel %vm298, %v1932, %v1934
  %v1952 = vsel %vm298, %v1936, %v1938
  %v1953 = vsel %vm298, %v1940, %v1942
  %v1954 = vsel %vm298, %v1944, %v1946
  %v1971 = vsel %vm298, %v1918, 0.0
  %v1972 = vsel %vm298, %v1922, 0.0
  %v1973 = vsel %vm298, %v1926, 0.0
  %v1974 = vsel %vm298, %v1930, 0.0
  %v1975 = vsel %vm298, %v1934, 0.0
  %v1976 = vsel %vm298, %v1938, 0.0
  %v1977 = vsel %vm298, %v1942, 0.0
  %v1978 = vsel %vm298, %v1946, 0.0
  %1979 = vrot.lane.b32.xlu0 %v1739, 126
  %v1980 = vpop.permute.xlu0 %1979
  %1981 = vrot.lane.b32.xlu0 %v1740, 126
  %v1982 = vpop.permute.xlu0 %1981
  %1983 = vrot.lane.b32.xlu0 %v1741, 126
  %v1984 = vpop.permute.xlu0 %1983
  %1985 = vrot.lane.b32.xlu0 %v1742, 126
  %v1986 = vpop.permute.xlu0 %1985
  %1987 = vrot.lane.b32.xlu0 %v1743, 126
  %v1988 = vpop.permute.xlu0 %1987
  %1989 = vrot.lane.b32.xlu0 %v1744, 126
  %v1990 = vpop.permute.xlu0 %1989
  %1991 = vrot.lane.b32.xlu0 %v1745, 126
  %v1992 = vpop.permute.xlu0 %1991
  %1993 = vrot.lane.b32.xlu0 %v1746, 126
  %v1994 = vpop.permute.xlu0 %1993
  %1995 = vrot.lane.b32.xlu0 %v1747, 126
  %v1996 = vpop.permute.xlu0 %1995
  %1997 = vrot.lane.b32.xlu0 %v1748, 126
  %v1998 = vpop.permute.xlu0 %1997
  %1999 = vrot.lane.b32.xlu0 %v1749, 126
  %v2000 = vpop.permute.xlu0 %1999
  %2001 = vrot.lane.b32.xlu0 %v1750, 126
  %v2002 = vpop.permute.xlu0 %2001
  %2003 = vrot.lane.b32.xlu0 %v1751, 126
  %v2004 = vpop.permute.xlu0 %2003
  %2005 = vrot.lane.b32.xlu0 %v1752, 126
  %v2006 = vpop.permute.xlu0 %2005
  %2007 = vrot.lane.b32.xlu0 %v1753, 126
  %v2008 = vpop.permute.xlu0 %2007
  %2009 = vrot.lane.b32.xlu0 %v1754, 126
  %v2010 = vpop.permute.xlu0 %2009
  %v2011 = vsel %vm347, %v1980, %v1982
  %v2012 = vsel %vm347, %v1984, %v1986
  %v2013 = vsel %vm347, %v1988, %v1990
  %v2014 = vsel %vm347, %v1992, %v1994
  %v2015 = vsel %vm347, %v1996, %v1998
  %v2016 = vsel %vm347, %v2000, %v2002
  %v2017 = vsel %vm347, %v2004, %v2006
  %v2018 = vsel %vm347, %v2008, %v2010
  %v2035 = vsel %vm347, %v1982, 0.0
  %v2036 = vsel %vm347, %v1986, 0.0
  %v2037 = vsel %vm347, %v1990, 0.0
  %v2038 = vsel %vm347, %v1994, 0.0
  %v2039 = vsel %vm347, %v1998, 0.0
  %v2040 = vsel %vm347, %v2002, 0.0
  %v2041 = vsel %vm347, %v2006, 0.0
  %v2042 = vsel %vm347, %v2010, 0.0
  %v2043 = vpack.c.bf16 %v1844, %v1843
  %v2044 = vpack.c.bf16 %v1820, %v1819
  %v2045 = vpack.c.bf16 %v1846, %v1845
  %v2046 = vpack.c.bf16 %v1822, %v1821
  %v2047 = vpack.c.bf16 %v1848, %v1847
  %v2048 = vpack.c.bf16 %v1824, %v1823
  %v2049 = vpack.c.bf16 %v1850, %v1849
  %v2050 = vpack.c.bf16 %v1826, %v1825
  %v2051 = vpack.c.bf16 %v1908, %v1907
  %v2052 = vpack.c.bf16 %v1884, %v1883
  %v2053 = vpack.c.bf16 %v1910, %v1909
  %v2054 = vpack.c.bf16 %v1886, %v1885
  %v2055 = vpack.c.bf16 %v1912, %v1911
  %v2056 = vpack.c.bf16 %v1888, %v1887
  %v2057 = vpack.c.bf16 %v1914, %v1913
  %v2058 = vpack.c.bf16 %v1890, %v1889
  %v2059 = vpack.c.bf16 %v1741, %v1739
  %v2060 = vpack.c.bf16 %v1742, %v1740
  %v2061 = vpack.c.bf16 %v1745, %v1743
  %v2062 = vpack.c.bf16 %v1746, %v1744
  %v2063 = vpack.c.bf16 %v1749, %v1747
  %v2064 = vpack.c.bf16 %v1750, %v1748
  %v2065 = vpack.c.bf16 %v1753, %v1751
  %v2066 = vpack.c.bf16 %v1754, %v1752
  %v2067 = vpack.c.bf16 %v1948, %v1947
  %v2068 = vpack.c.bf16 %v1972, %v1971
  %v2069 = vpack.c.bf16 %v1950, %v1949
  %v2070 = vpack.c.bf16 %v1974, %v1973
  %v2071 = vpack.c.bf16 %v1952, %v1951
  %v2072 = vpack.c.bf16 %v1976, %v1975
  %v2073 = vpack.c.bf16 %v1954, %v1953
  %v2074 = vpack.c.bf16 %v1978, %v1977
  %v2075 = vpack.c.bf16 %v2012, %v2011
  %v2076 = vpack.c.bf16 %v2036, %v2035
  %v2077 = vpack.c.bf16 %v2014, %v2013
  %v2078 = vpack.c.bf16 %v2038, %v2037
  %v2079 = vpack.c.bf16 %v2016, %v2015
  %v2080 = vpack.c.bf16 %v2040, %v2039
  %v2081 = vpack.c.bf16 %v2018, %v2017
  %v2082 = vpack.c.bf16 %v2042, %v2041
  %v2083 = vld [vmem:[%s21] sm:$0xff]
  %v2084 = vld [vmem:[%s21 + $0x8] sm:$0xff]
  %v2085 = vld [vmem:[%s21 + $0x10] sm:$0xff]
  %v2086 = vld [vmem:[%s21 + $0x18] sm:$0xff]
  %v2087 = vld [vmem:[%s21 + $0x20] sm:$0xff]
  %v2088 = vld [vmem:[%s21 + $0x28] sm:$0xff]
  %v2089 = vld [vmem:[%s21 + $0x30] sm:$0xff]
  %v2090 = vld [vmem:[%s21 + $0x38] sm:$0xff]
  %2092 = vset.pattern.permute.xlu0 0
  %2093 = vperm.xlu0 %2092, %v2083
  %v2094 = vpop.permute.xlu0 %2093
  %2097 = vset.pattern.permute.xlu0 0
  %2098 = vperm.xlu0 %2097, %v2084
  %v2099 = vpop.permute.xlu0 %2098
  %2102 = vset.pattern.permute.xlu0 0
  %2103 = vperm.xlu0 %2102, %v2085
  %v2104 = vpop.permute.xlu0 %2103
  %2107 = vset.pattern.permute.xlu0 0
  %2108 = vperm.xlu0 %2107, %v2086
  %v2109 = vpop.permute.xlu0 %2108
  %2112 = vset.pattern.permute.xlu0 0
  %2113 = vperm.xlu0 %2112, %v2087
  %v2114 = vpop.permute.xlu0 %2113
  %2117 = vset.pattern.permute.xlu0 0
  %2118 = vperm.xlu0 %2117, %v2088
  %v2119 = vpop.permute.xlu0 %2118
  %2122 = vset.pattern.permute.xlu0 0
  %2123 = vperm.xlu0 %2122, %v2089
  %v2124 = vpop.permute.xlu0 %2123
  %2127 = vset.pattern.permute.xlu0 0
  %2128 = vperm.xlu0 %2127, %v2090
  %v2129 = vpop.permute.xlu0 %2128
  %v2147 = vunpack.c.l.b16 %v1755
  %v2148 = vunpack.c.h.b16 %v1755
  %v2149 = vunpack.c.l.b16 %v1756
  %v2150 = vunpack.c.l.b16 %v1757
  %v2151 = vunpack.c.h.b16 %v1757
  %v2152 = vunpack.c.l.b16 %v1758
  %v2153 = vunpack.c.l.b16 %v1759
  %v2154 = vunpack.c.h.b16 %v1759
  %v2155 = vunpack.c.l.b16 %v1760
  %v2156 = vunpack.c.l.b16 %v1761
  %v2157 = vunpack.c.h.b16 %v1761
  %v2158 = vunpack.c.l.b16 %v1762
  %v2159 = vunpack.c.l.b16 %v1763
  %v2160 = vunpack.c.h.b16 %v1763
  %v2161 = vunpack.c.l.b16 %v1764
  %v2162 = vunpack.c.l.b16 %v1765
  %v2163 = vunpack.c.h.b16 %v1765
  %v2164 = vunpack.c.l.b16 %v1766
  %v2165 = vunpack.c.l.b16 %v1767
  %v2166 = vunpack.c.h.b16 %v1767
  %v2167 = vunpack.c.l.b16 %v1768
  %v2168 = vunpack.c.l.b16 %v1769
  %v2169 = vunpack.c.h.b16 %v1769
  %v2170 = vunpack.c.l.b16 %v1770
  %v2171 = vpack.c.b16 %v2150, %v2147
  %v2172 = vpack.c.b16 %v2151, %v2148
  %v2173 = vpack.c.b16 %v2152, %v2149
  %v2174 = vpack.c.b16 %v2156, %v2153
  %v2175 = vpack.c.b16 %v2157, %v2154
  %v2176 = vpack.c.b16 %v2158, %v2155
  %v2177 = vpack.c.b16 %v2162, %v2159
  %v2178 = vpack.c.b16 %v2163, %v2160
  %v2179 = vpack.c.b16 %v2164, %v2161
  %v2180 = vpack.c.b16 %v2168, %v2165
  %v2181 = vpack.c.b16 %v2169, %v2166
  %v2182 = vpack.c.b16 %v2170, %v2167
  %v2192 = vsel %vm873, %v2173, 0
  %v2195 = vsel %vm873, %v2176, 0
  %v2198 = vsel %vm873, %v2179, 0
  %v2201 = vsel %vm873, %v2182, 0
  %2203 = vmatprep.subr.bf16.mxu0 %v2044
  %2204 = vmatpush1.bf16.msra.mxu0 %v2043
  %2205 = vmatprep.subr.bf16.mxu0 %v2046
  %2206 = vmatpush1.bf16.msra.mxu0 %v2045
  %2207 = vmatprep.subr.bf16.mxu0 %v2048
  %2208 = vmatpush1.bf16.msra.mxu0 %v2047
  %2209 = vmatprep.subr.bf16.mxu0 %v2050
  %2210 = vmatpush1.bf16.msra.mxu0 %v2049
  %2211 = vmatprep.subr.bf16.mxu0 %v2052
  %2212 = vmatpush1.bf16.msra.mxu0 %v2051
  %2213 = vmatprep.subr.bf16.mxu0 %v2054
  %2214 = vmatpush1.bf16.msra.mxu0 %v2053
  %2215 = vmatprep.subr.bf16.mxu0 %v2056
  %2216 = vmatpush1.bf16.msra.mxu0 %v2055
  %2217 = vmatprep.subr.bf16.mxu0 %v2058
  %2218 = vmatpush1.bf16.msra.mxu0 %v2057
  %2219 = vmatprep.subr.bf16.mxu0 %v2060
  %2220 = vmatpush1.bf16.msra.mxu0 %v2059
  %2221 = vmatprep.subr.bf16.mxu0 %v2062
  %2222 = vmatpush1.bf16.msra.mxu0 %v2061
  %2223 = vmatprep.subr.bf16.mxu0 %v2064
  %2224 = vmatpush1.bf16.msra.mxu0 %v2063
  %2225 = vmatprep.subr.bf16.mxu0 %v2066
  %2226 = vmatpush1.bf16.msra.mxu0 %v2065
  %2227 = vmatprep.subr.bf16.mxu0 %v2068
  %2228 = vmatpush1.bf16.msra.mxu0 %v2067
  %2229 = vmatprep.subr.bf16.mxu0 %v2070
  %2230 = vmatpush1.bf16.msra.mxu0 %v2069
  %2231 = vmatprep.subr.bf16.mxu0 %v2072
  %2232 = vmatpush1.bf16.msra.mxu0 %v2071
  %2233 = vmatprep.subr.bf16.mxu0 %v2074
  %2234 = vmatpush1.bf16.msra.mxu0 %v2073
  %2235 = vmatprep.mubr.bf16.mxu0 %v2172
  %2236 = vmatmul.mubr.bf16.gmra.mrb[0].mxu0 %v2171
  %v2237 = vpop.f32.mrb[0].mxu0
  %v2238 = vadd.f32 %v2094, %v2237
  %v2239 = vpop.f32.mrb[0].mxu0
  %v2240 = vadd.f32 %v2094, %v2239
  %v2241 = vpop.f32.mrb[0].mxu0
  %v2242 = vadd.f32 %v2099, %v2241
  %v2243 = vpop.f32.mrb[0].mxu0
  %v2244 = vadd.f32 %v2099, %v2243
  %2245 = vmatprep.mubr.bf16.mxu0 %v2175
  %2246 = vmatmul.mubr.bf16.gmra.mrb[0].mxu0 %v2174
  %v2247 = vpop.f32.mrb[0].mxu0
  %v2248 = vadd.f32 %v2104, %v2247
  %v2249 = vpop.f32.mrb[0].mxu0
  %v2250 = vadd.f32 %v2104, %v2249
  %v2251 = vpop.f32.mrb[0].mxu0
  %v2252 = vadd.f32 %v2109, %v2251
  %v2253 = vpop.f32.mrb[0].mxu0
  %v2254 = vadd.f32 %v2109, %v2253
  %2255 = vmatprep.mubr.bf16.mxu0 %v2178
  %2256 = vmatmul.mubr.bf16.gmra.mrb[0].mxu0 %v2177
  %v2257 = vpop.f32.mrb[0].mxu0
  %v2258 = vadd.f32 %v2114, %v2257
  %v2259 = vpop.f32.mrb[0].mxu0
  %v2260 = vadd.f32 %v2114, %v2259
  %v2261 = vpop.f32.mrb[0].mxu0
  %v2262 = vadd.f32 %v2119, %v2261
  %v2263 = vpop.f32.mrb[0].mxu0
  %v2264 = vadd.f32 %v2119, %v2263
  %2265 = vmatprep.mubr.bf16.mxu0 %v2181
  %2266 = vmatmul.mubr.bf16.gmra.mrb[0].mxu0 %v2180
  %v2267 = vpop.f32.mrb[0].mxu0
  %v2268 = vadd.f32 %v2124, %v2267
  %v2269 = vpop.f32.mrb[0].mxu0
  %v2270 = vadd.f32 %v2124, %v2269
  %v2271 = vpop.f32.mrb[0].mxu0
  %v2272 = vadd.f32 %v2129, %v2271
  %v2273 = vpop.f32.mrb[0].mxu0
  %v2274 = vadd.f32 %v2129, %v2273
  %2275 = vdwg.mxu0
  %2276 = vmatprep.subr.bf16.mxu0 %v2076
  %2277 = vmatpush1.bf16.msra.mxu0 %v2075
  %2278 = vmatprep.subr.bf16.mxu0 %v2078
  %2279 = vmatpush1.bf16.msra.mxu0 %v2077
  %2280 = vmatprep.subr.bf16.mxu0 %v2080
  %2281 = vmatpush1.bf16.msra.mxu0 %v2079
  %2282 = vmatprep.subr.bf16.mxu0 %v2082
  %2283 = vmatpush1.bf16.msra.mxu0 %v2081
  %2284 = vmatprep.subr.bf16.mxu0 0
  %2285 = vmatpush1.bf16.msra.mxu0 0
  %2286 = vmatprep.subr.bf16.mxu0 0
  %2287 = vmatpush1.bf16.msra.mxu0 0
  %2288 = vmatprep.subr.bf16.mxu0 0
  %2289 = vmatpush1.bf16.msra.mxu0 0
  %2290 = vmatprep.subr.bf16.mxu0 0
  %2291 = vmatpush1.bf16.msra.mxu0 0
  %2292 = vmatprep.subr.bf16.mxu0 0
  %2293 = vmatpush1.bf16.msra.mxu0 0
  %2294 = vmatprep.subr.bf16.mxu0 0
  %2295 = vmatpush1.bf16.msra.mxu0 0
  %2296 = vmatprep.subr.bf16.mxu0 0
  %2297 = vmatpush1.bf16.msra.mxu0 0
  %2298 = vmatprep.subr.bf16.mxu0 0
  %2299 = vmatpush1.bf16.msra.mxu0 0
  %2300 = vmatprep.subr.bf16.mxu0 0
  %2301 = vmatpush1.bf16.msra.mxu0 0
  %2302 = vmatprep.subr.bf16.mxu0 0
  %2303 = vmatpush1.bf16.msra.mxu0 0
  %2304 = vmatprep.subr.bf16.mxu0 0
  %2305 = vmatpush1.bf16.msra.mxu0 0
  %2306 = vmatprep.subr.bf16.mxu0 0
  %2307 = vmatpush1.bf16.msra.mxu0 0
  %2308 = vmatprep.mubr.bf16.mxu0 0
  %2309 = vmatmul.mubr.bf16.gmra.mrb[0].mxu0 %v2192
  %v2310 = vpop.f32.mrb[0].mxu0
  %v2311 = vadd.f32 %v2238, %v2310
  %v2312 = vpop.f32.mrb[0].mxu0
  %v2313 = vadd.f32 %v2240, %v2312
  %v2314 = vpop.f32.mrb[0].mxu0
  %v2315 = vadd.f32 %v2242, %v2314
  %v2316 = vpop.f32.mrb[0].mxu0
  %v2317 = vadd.f32 %v2244, %v2316
  %2318 = vmatprep.mubr.bf16.mxu0 0
  %2319 = vmatmul.mubr.bf16.gmra.mrb[0].mxu0 %v2195
  %v2320 = vpop.f32.mrb[0].mxu0
  %v2321 = vadd.f32 %v2248, %v2320
  %v2322 = vpop.f32.mrb[0].mxu0
  %v2323 = vadd.f32 %v2250, %v2322
  %v2324 = vpop.f32.mrb[0].mxu0
  %v2325 = vadd.f32 %v2252, %v2324
  %v2326 = vpop.f32.mrb[0].mxu0
  %v2327 = vadd.f32 %v2254, %v2326
  %2328 = vmatprep.mubr.bf16.mxu0 0
  %2329 = vmatmul.mubr.bf16.gmra.mrb[0].mxu0 %v2198
  %v2330 = vpop.f32.mrb[0].mxu0
  %v2331 = vadd.f32 %v2258, %v2330
  %v2332 = vpop.f32.mrb[0].mxu0
  %v2333 = vadd.f32 %v2260, %v2332
  %v2334 = vpop.f32.mrb[0].mxu0
  %v2335 = vadd.f32 %v2262, %v2334
  %v2336 = vpop.f32.mrb[0].mxu0
  %v2337 = vadd.f32 %v2264, %v2336
  %2338 = vmatprep.mubr.bf16.mxu0 0
  %2339 = vmatmul.mubr.bf16.gmra.mrb[0].mxu0 %v2201
  %v2340 = vpop.f32.mrb[0].mxu0
  %v2341 = vadd.f32 %v2268, %v2340
  %v2342 = vpop.f32.mrb[0].mxu0
  %v2343 = vadd.f32 %v2270, %v2342
  %v2344 = vpop.f32.mrb[0].mxu0
  %v2345 = vadd.f32 %v2272, %v2344
  %v2346 = vpop.f32.mrb[0].mxu0
  %v2347 = vadd.f32 %v2274, %v2346
  %2348 = vdwg.mxu0
  %v2349 = vmul.f32 %v2311, %v424
  %v2350 = vmul.f32 %v2313, %v428
  %v2351 = vmul.f32 %v2315, %v424
  %v2352 = vmul.f32 %v2317, %v428
  %v2353 = vmul.f32 %v2321, %v424
  %v2354 = vmul.f32 %v2323, %v428
  %v2355 = vmul.f32 %v2325, %v424
  %v2356 = vmul.f32 %v2327, %v428
  %v2357 = vmul.f32 %v2331, %v424
  %v2358 = vmul.f32 %v2333, %v428
  %v2359 = vmul.f32 %v2335, %v424
  %v2360 = vmul.f32 %v2337, %v428
  %v2361 = vmul.f32 %v2341, %v424
  %v2362 = vmul.f32 %v2343, %v428
  %v2363 = vmul.f32 %v2345, %v424
  %v2364 = vmul.f32 %v2347, %v428
  %v2365 = vmax.f32 %v2349, 0.0
  %v2366 = vmax.f32 %v2350, 0.0
  %v2367 = vmax.f32 %v2351, 0.0
  %v2368 = vmax.f32 %v2352, 0.0
  %v2369 = vmax.f32 %v2353, 0.0
  %v2370 = vmax.f32 %v2354, 0.0
  %v2371 = vmax.f32 %v2355, 0.0
  %v2372 = vmax.f32 %v2356, 0.0
  %v2373 = vmax.f32 %v2357, 0.0
  %v2374 = vmax.f32 %v2358, 0.0
  %v2375 = vmax.f32 %v2359, 0.0
  %v2376 = vmax.f32 %v2360, 0.0
  %v2377 = vmax.f32 %v2361, 0.0
  %v2378 = vmax.f32 %v2362, 0.0
  %v2379 = vmax.f32 %v2363, 0.0
  %v2380 = vmax.f32 %v2364, 0.0
  %v2381 = vld [vmem:[%s23] sm:$0xff]
  %v2382 = vld [vmem:[%s23 + $0x8] sm:$0xff]
  %v2383 = vld [vmem:[%s23 + $0x10] sm:$0xff]
  %v2384 = vld [vmem:[%s23 + $0x18] sm:$0xff]
  %v2385 = vld [vmem:[%s23 + $0x20] sm:$0xff]
  %v2386 = vld [vmem:[%s23 + $0x28] sm:$0xff]
  %v2387 = vld [vmem:[%s23 + $0x30] sm:$0xff]
  %v2388 = vld [vmem:[%s23 + $0x38] sm:$0xff]
  %2405 = vrot.lane.b32.xlu0 %v2365, 1
  %v2406 = vpop.permute.xlu0 %2405
  %2407 = vrot.lane.b32.xlu0 %v2366, 1
  %v2408 = vpop.permute.xlu0 %2407
  %2409 = vrot.lane.b32.xlu0 %v2367, 1
  %v2410 = vpop.permute.xlu0 %2409
  %2411 = vrot.lane.b32.xlu0 %v2368, 1
  %v2412 = vpop.permute.xlu0 %2411
  %2413 = vrot.lane.b32.xlu0 %v2369, 1
  %v2414 = vpop.permute.xlu0 %2413
  %2415 = vrot.lane.b32.xlu0 %v2370, 1
  %v2416 = vpop.permute.xlu0 %2415
  %2417 = vrot.lane.b32.xlu0 %v2371, 1
  %v2418 = vpop.permute.xlu0 %2417
  %2419 = vrot.lane.b32.xlu0 %v2372, 1
  %v2420 = vpop.permute.xlu0 %2419
  %2421 = vrot.lane.b32.xlu0 %v2373, 1
  %v2422 = vpop.permute.xlu0 %2421
  %2423 = vrot.lane.b32.xlu0 %v2374, 1
  %v2424 = vpop.permute.xlu0 %2423
  %2425 = vrot.lane.b32.xlu0 %v2375, 1
  %v2426 = vpop.permute.xlu0 %2425
  %2427 = vrot.lane.b32.xlu0 %v2376, 1
  %v2428 = vpop.permute.xlu0 %2427
  %2429 = vrot.lane.b32.xlu0 %v2377, 1
  %v2430 = vpop.permute.xlu0 %2429
  %2431 = vrot.lane.b32.xlu0 %v2378, 1
  %v2432 = vpop.permute.xlu0 %2431
  %2433 = vrot.lane.b32.xlu0 %v2379, 1
  %v2434 = vpop.permute.xlu0 %2433
  %2435 = vrot.lane.b32.xlu0 %v2380, 1
  %v2436 = vpop.permute.xlu0 %2435
  %v2437 = vsel %vm215, %v2406, %v2408
  %v2438 = vsel %vm215, %v2410, %v2412
  %v2439 = vsel %vm215, %v2414, %v2416
  %v2440 = vsel %vm215, %v2418, %v2420
  %v2441 = vsel %vm215, %v2422, %v2424
  %v2442 = vsel %vm215, %v2426, %v2428
  %v2443 = vsel %vm215, %v2430, %v2432
  %v2444 = vsel %vm215, %v2434, %v2436
  %v2461 = vsel %vm215, 0.0, %v2406
  %v2462 = vsel %vm215, 0.0, %v2410
  %v2463 = vsel %vm215, 0.0, %v2414
  %v2464 = vsel %vm215, 0.0, %v2418
  %v2465 = vsel %vm215, 0.0, %v2422
  %v2466 = vsel %vm215, 0.0, %v2426
  %v2467 = vsel %vm215, 0.0, %v2430
  %v2468 = vsel %vm215, 0.0, %v2434
  %2469 = vrot.lane.b32.xlu0 %v2365, 127
  %v2470 = vpop.permute.xlu0 %2469
  %2471 = vrot.lane.b32.xlu0 %v2366, 127
  %v2472 = vpop.permute.xlu0 %2471
  %2473 = vrot.lane.b32.xlu0 %v2367, 127
  %v2474 = vpop.permute.xlu0 %2473
  %2475 = vrot.lane.b32.xlu0 %v2368, 127
  %v2476 = vpop.permute.xlu0 %2475
  %2477 = vrot.lane.b32.xlu0 %v2369, 127
  %v2478 = vpop.permute.xlu0 %2477
  %2479 = vrot.lane.b32.xlu0 %v2370, 127
  %v2480 = vpop.permute.xlu0 %2479
  %2481 = vrot.lane.b32.xlu0 %v2371, 127
  %v2482 = vpop.permute.xlu0 %2481
  %2483 = vrot.lane.b32.xlu0 %v2372, 127
  %v2484 = vpop.permute.xlu0 %2483
  %2485 = vrot.lane.b32.xlu0 %v2373, 127
  %v2486 = vpop.permute.xlu0 %2485
  %2487 = vrot.lane.b32.xlu0 %v2374, 127
  %v2488 = vpop.permute.xlu0 %2487
  %2489 = vrot.lane.b32.xlu0 %v2375, 127
  %v2490 = vpop.permute.xlu0 %2489
  %2491 = vrot.lane.b32.xlu0 %v2376, 127
  %v2492 = vpop.permute.xlu0 %2491
  %2493 = vrot.lane.b32.xlu0 %v2377, 127
  %v2494 = vpop.permute.xlu0 %2493
  %2495 = vrot.lane.b32.xlu0 %v2378, 127
  %v2496 = vpop.permute.xlu0 %2495
  %2497 = vrot.lane.b32.xlu0 %v2379, 127
  %v2498 = vpop.permute.xlu0 %2497
  %2499 = vrot.lane.b32.xlu0 %v2380, 127
  %v2500 = vpop.permute.xlu0 %2499
  %v2501 = vsel %vm298, %v2470, %v2472
  %v2502 = vsel %vm298, %v2474, %v2476
  %v2503 = vsel %vm298, %v2478, %v2480
  %v2504 = vsel %vm298, %v2482, %v2484
  %v2505 = vsel %vm298, %v2486, %v2488
  %v2506 = vsel %vm298, %v2490, %v2492
  %v2507 = vsel %vm298, %v2494, %v2496
  %v2508 = vsel %vm298, %v2498, %v2500
  %v2525 = vsel %vm298, %v2472, 0.0
  %v2526 = vsel %vm298, %v2476, 0.0
  %v2527 = vsel %vm298, %v2480, 0.0
  %v2528 = vsel %vm298, %v2484, 0.0
  %v2529 = vsel %vm298, %v2488, 0.0
  %v2530 = vsel %vm298, %v2492, 0.0
  %v2531 = vsel %vm298, %v2496, 0.0
  %v2532 = vsel %vm298, %v2500, 0.0
  %v2533 = vpack.c.bf16 %v2462, %v2461
  %v2534 = vpack.c.bf16 %v2438, %v2437
  %v2535 = vpack.c.bf16 %v2464, %v2463
  %v2536 = vpack.c.bf16 %v2440, %v2439
  %v2537 = vpack.c.bf16 %v2466, %v2465
  %v2538 = vpack.c.bf16 %v2442, %v2441
  %v2539 = vpack.c.bf16 %v2468, %v2467
  %v2540 = vpack.c.bf16 %v2444, %v2443
  %v2541 = vpack.c.bf16 %v2367, %v2365
  %v2542 = vpack.c.bf16 %v2368, %v2366
  %v2543 = vpack.c.bf16 %v2371, %v2369
  %v2544 = vpack.c.bf16 %v2372, %v2370
  %v2545 = vpack.c.bf16 %v2375, %v2373
  %v2546 = vpack.c.bf16 %v2376, %v2374
  %v2547 = vpack.c.bf16 %v2379, %v2377
  %v2548 = vpack.c.bf16 %v2380, %v2378
  %v2549 = vpack.c.bf16 %v2502, %v2501
  %v2550 = vpack.c.bf16 %v2526, %v2525
  %v2551 = vpack.c.bf16 %v2504, %v2503
  %v2552 = vpack.c.bf16 %v2528, %v2527
  %v2553 = vpack.c.bf16 %v2506, %v2505
  %v2554 = vpack.c.bf16 %v2530, %v2529
  %v2555 = vpack.c.bf16 %v2508, %v2507
  %v2556 = vpack.c.bf16 %v2532, %v2531
  %v2557 = vld [vmem:[%s25] sm:$0xff]
  %v2558 = vld [vmem:[%s25 + $0x8] sm:$0xff]
  %v2559 = vld [vmem:[%s25 + $0x10] sm:$0xff]
  %v2560 = vld [vmem:[%s25 + $0x18] sm:$0xff]
  %v2561 = vld [vmem:[%s25 + $0x20] sm:$0xff]
  %v2562 = vld [vmem:[%s25 + $0x28] sm:$0xff]
  %v2563 = vld [vmem:[%s25 + $0x30] sm:$0xff]
  %v2564 = vld [vmem:[%s25 + $0x38] sm:$0xff]
  %2566 = vset.pattern.permute.xlu0 0
  %2567 = vperm.xlu0 %2566, %v2557
  %v2568 = vpop.permute.xlu0 %2567
  %2571 = vset.pattern.permute.xlu0 0
  %2572 = vperm.xlu0 %2571, %v2558
  %v2573 = vpop.permute.xlu0 %2572
  %2576 = vset.pattern.permute.xlu0 0
  %2577 = vperm.xlu0 %2576, %v2559
  %v2578 = vpop.permute.xlu0 %2577
  %2581 = vset.pattern.permute.xlu0 0
  %2582 = vperm.xlu0 %2581, %v2560
  %v2583 = vpop.permute.xlu0 %2582
  %2586 = vset.pattern.permute.xlu0 0
  %2587 = vperm.xlu0 %2586, %v2561
  %v2588 = vpop.permute.xlu0 %2587
  %2591 = vset.pattern.permute.xlu0 0
  %2592 = vperm.xlu0 %2591, %v2562
  %v2593 = vpop.permute.xlu0 %2592
  %2596 = vset.pattern.permute.xlu0 0
  %2597 = vperm.xlu0 %2596, %v2563
  %v2598 = vpop.permute.xlu0 %2597
  %2601 = vset.pattern.permute.xlu0 0
  %2602 = vperm.xlu0 %2601, %v2564
  %v2603 = vpop.permute.xlu0 %2602
  %v2613 = vunpack.c.l.b16 %v2381
  %v2614 = vunpack.c.h.b16 %v2381
  %v2615 = vunpack.c.l.b16 %v2382
  %v2616 = vunpack.c.h.b16 %v2382
  %v2617 = vunpack.c.l.b16 %v2383
  %v2618 = vunpack.c.h.b16 %v2383
  %v2619 = vunpack.c.l.b16 %v2384
  %v2620 = vunpack.c.h.b16 %v2384
  %v2621 = vunpack.c.l.b16 %v2385
  %v2622 = vunpack.c.h.b16 %v2385
  %v2623 = vunpack.c.l.b16 %v2386
  %v2624 = vunpack.c.h.b16 %v2386
  %v2625 = vunpack.c.l.b16 %v2387
  %v2626 = vunpack.c.h.b16 %v2387
  %v2627 = vunpack.c.l.b16 %v2388
  %v2628 = vunpack.c.h.b16 %v2388
  %v2629 = vpack.c.b16 %v2615, %v2613
  %v2630 = vpack.c.b16 %v2616, %v2614
  %v2631 = vpack.c.b16 %v2619, %v2617
  %v2632 = vpack.c.b16 %v2620, %v2618
  %v2633 = vpack.c.b16 %v2623, %v2621
  %v2634 = vpack.c.b16 %v2624, %v2622
  %v2635 = vpack.c.b16 %v2627, %v2625
  %v2636 = vpack.c.b16 %v2628, %v2626
  %v2642 = vsel %vm873, %v2630, 0
  %v2645 = vsel %vm873, %v2632, 0
  %v2648 = vsel %vm873, %v2634, 0
  %v2651 = vsel %vm873, %v2636, 0
  %2653 = vmatprep.subr.bf16.mxu0 %v2534
  %2654 = vmatpush1.bf16.msra.mxu0 %v2533
  %2655 = vmatprep.subr.bf16.mxu0 %v2536
  %2656 = vmatpush1.bf16.msra.mxu0 %v2535
  %2657 = vmatprep.subr.bf16.mxu0 %v2538
  %2658 = vmatpush1.bf16.msra.mxu0 %v2537
  %2659 = vmatprep.subr.bf16.mxu0 %v2540
  %2660 = vmatpush1.bf16.msra.mxu0 %v2539
  %2661 = vmatprep.subr.bf16.mxu0 %v2542
  %2662 = vmatpush1.bf16.msra.mxu0 %v2541
  %2663 = vmatprep.subr.bf16.mxu0 %v2544
  %2664 = vmatpush1.bf16.msra.mxu0 %v2543
  %2665 = vmatprep.subr.bf16.mxu0 %v2546
  %2666 = vmatpush1.bf16.msra.mxu0 %v2545
  %2667 = vmatprep.subr.bf16.mxu0 %v2548
  %2668 = vmatpush1.bf16.msra.mxu0 %v2547
  %2669 = vmatprep.subr.bf16.mxu0 %v2550
  %2670 = vmatpush1.bf16.msra.mxu0 %v2549
  %2671 = vmatprep.subr.bf16.mxu0 %v2552
  %2672 = vmatpush1.bf16.msra.mxu0 %v2551
  %2673 = vmatprep.subr.bf16.mxu0 %v2554
  %2674 = vmatpush1.bf16.msra.mxu0 %v2553
  %2675 = vmatprep.subr.bf16.mxu0 %v2556
  %2676 = vmatpush1.bf16.msra.mxu0 %v2555
  %2677 = vmatprep.subr.bf16.mxu0 0
  %2678 = vmatpush1.bf16.msra.mxu0 0
  %2679 = vmatprep.subr.bf16.mxu0 0
  %2680 = vmatpush1.bf16.msra.mxu0 0
  %2681 = vmatprep.subr.bf16.mxu0 0
  %2682 = vmatpush1.bf16.msra.mxu0 0
  %2683 = vmatprep.subr.bf16.mxu0 0
  %2684 = vmatpush1.bf16.msra.mxu0 0
  %2685 = vmatprep.mubr.bf16.mxu0 %v2642
  %2686 = vmatmul.mubr.bf16.gmra.mrb[0].mxu0 %v2629
  %v2687 = vpop.f32.mrb[0].mxu0
  %v2688 = vadd.f32 %v2568, %v2687
  %v2689 = vpop.f32.mrb[0].mxu0
  %v2690 = vadd.f32 %v2568, %v2689
  %v2691 = vpop.f32.mrb[0].mxu0
  %v2692 = vadd.f32 %v2573, %v2691
  %v2693 = vpop.f32.mrb[0].mxu0
  %v2694 = vadd.f32 %v2573, %v2693
  %2695 = vmatprep.mubr.bf16.mxu0 %v2645
  %2696 = vmatmul.mubr.bf16.gmra.mrb[0].mxu0 %v2631
  %v2697 = vpop.f32.mrb[0].mxu0
  %v2698 = vadd.f32 %v2578, %v2697
  %v2699 = vpop.f32.mrb[0].mxu0
  %v2700 = vadd.f32 %v2578, %v2699
  %v2701 = vpop.f32.mrb[0].mxu0
  %v2702 = vadd.f32 %v2583, %v2701
  %v2703 = vpop.f32.mrb[0].mxu0
  %v2704 = vadd.f32 %v2583, %v2703
  %2705 = vmatprep.mubr.bf16.mxu0 %v2648
  %2706 = vmatmul.mubr.bf16.gmra.mrb[0].mxu0 %v2633
  %v2707 = vpop.f32.mrb[0].mxu0
  %v2708 = vadd.f32 %v2588, %v2707
  %v2709 = vpop.f32.mrb[0].mxu0
  %v2710 = vadd.f32 %v2588, %v2709
  %v2711 = vpop.f32.mrb[0].mxu0
  %v2712 = vadd.f32 %v2593, %v2711
  %v2713 = vpop.f32.mrb[0].mxu0
  %v2714 = vadd.f32 %v2593, %v2713
  %2715 = vmatprep.mubr.bf16.mxu0 %v2651
  %2716 = vmatmul.mubr.bf16.gmra.mrb[0].mxu0 %v2635
  %v2717 = vpop.f32.mrb[0].mxu0
  %v2718 = vadd.f32 %v2598, %v2717
  %v2719 = vpop.f32.mrb[0].mxu0
  %v2720 = vadd.f32 %v2598, %v2719
  %v2721 = vpop.f32.mrb[0].mxu0
  %v2722 = vadd.f32 %v2603, %v2721
  %v2723 = vpop.f32.mrb[0].mxu0
  %v2724 = vadd.f32 %v2603, %v2723
  %2725 = vdwg.mxu0
  %v2726 = vmul.f32 %v2688, %v424
  %v2727 = vmul.f32 %v2690, %v428
  %v2728 = vmul.f32 %v2692, %v424
  %v2729 = vmul.f32 %v2694, %v428
  %v2730 = vmul.f32 %v2698, %v424
  %v2731 = vmul.f32 %v2700, %v428
  %v2732 = vmul.f32 %v2702, %v424
  %v2733 = vmul.f32 %v2704, %v428
  %v2734 = vmul.f32 %v2708, %v424
  %v2735 = vmul.f32 %v2710, %v428
  %v2736 = vmul.f32 %v2712, %v424
  %v2737 = vmul.f32 %v2714, %v428
  %v2738 = vmul.f32 %v2718, %v424
  %v2739 = vmul.f32 %v2720, %v428
  %v2740 = vmul.f32 %v2722, %v424
  %v2741 = vmul.f32 %v2724, %v428
  %v2742 = vmax.f32 %v2726, 0.0
  %v2743 = vmax.f32 %v2727, 0.0
  %v2744 = vmax.f32 %v2728, 0.0
  %v2745 = vmax.f32 %v2729, 0.0
  %v2746 = vmax.f32 %v2730, 0.0
  %v2747 = vmax.f32 %v2731, 0.0
  %v2748 = vmax.f32 %v2732, 0.0
  %v2749 = vmax.f32 %v2733, 0.0
  %v2750 = vmax.f32 %v2734, 0.0
  %v2751 = vmax.f32 %v2735, 0.0
  %v2752 = vmax.f32 %v2736, 0.0
  %v2753 = vmax.f32 %v2737, 0.0
  %v2754 = vmax.f32 %v2738, 0.0
  %v2755 = vmax.f32 %v2739, 0.0
  %v2756 = vmax.f32 %v2740, 0.0
  %v2757 = vmax.f32 %v2741, 0.0
  %v2758 = vadd.f32 %v2742, %v959
  %v2759 = vadd.f32 %v2743, %v960
  %v2760 = vadd.f32 %v2744, %v961
  %v2761 = vadd.f32 %v2745, %v962
  %v2762 = vadd.f32 %v2746, %v963
  %v2763 = vadd.f32 %v2747, %v964
  %v2764 = vadd.f32 %v2748, %v965
  %v2765 = vadd.f32 %v2749, %v966
  %v2766 = vadd.f32 %v2750, %v967
  %v2767 = vadd.f32 %v2751, %v968
  %v2768 = vadd.f32 %v2752, %v969
  %v2769 = vadd.f32 %v2753, %v970
  %v2770 = vadd.f32 %v2754, %v971
  %v2771 = vadd.f32 %v2755, %v972
  %v2772 = vadd.f32 %v2756, %v973
  %v2773 = vadd.f32 %v2757, %v974
  %v2774 = vmax.f32 %v2758, 0.0
  %v2775 = vmax.f32 %v2759, 0.0
  %v2776 = vmax.f32 %v2760, 0.0
  %v2777 = vmax.f32 %v2761, 0.0
  %v2778 = vmax.f32 %v2762, 0.0
  %v2779 = vmax.f32 %v2763, 0.0
  %v2780 = vmax.f32 %v2764, 0.0
  %v2781 = vmax.f32 %v2765, 0.0
  %v2782 = vmax.f32 %v2766, 0.0
  %v2783 = vmax.f32 %v2767, 0.0
  %v2784 = vmax.f32 %v2768, 0.0
  %v2785 = vmax.f32 %v2769, 0.0
  %v2786 = vmax.f32 %v2770, 0.0
  %v2787 = vmax.f32 %v2771, 0.0
  %v2788 = vmax.f32 %v2772, 0.0
  %v2789 = vmax.f32 %v2773, 0.0
  %v2790 = vld [vmem:[%s43] sm:$0xf]
  %v2791 = vld [vmem:[%s43 + $0x4] sm:$0xf]
  %v2792 = vld [vmem:[%s43 + $0x8] sm:$0xf]
  %v2793 = vld [vmem:[%s43 + $0xc] sm:$0xf]
  %v2794 = vld [vmem:[%s43 + $0x10] sm:$0xf]
  %v2795 = vld [vmem:[%s43 + $0x14] sm:$0xf]
  %v2796 = vld [vmem:[%s43 + $0x18] sm:$0xf]
  %v2797 = vld [vmem:[%s43 + $0x1c] sm:$0xf]
  %v2798 = vpack.c.bf16 %v2776, %v2774
  %v2799 = vpack.c.bf16 %v2777, %v2775
  %v2800 = vpack.c.bf16 %v2780, %v2778
  %v2801 = vpack.c.bf16 %v2781, %v2779
  %v2802 = vpack.c.bf16 %v2784, %v2782
  %v2803 = vpack.c.bf16 %v2785, %v2783
  %v2804 = vpack.c.bf16 %v2788, %v2786
  %v2805 = vpack.c.bf16 %v2789, %v2787
  %v2806 = vld [vmem:[%s45] sm:$0xff]
  %v2807 = vld [vmem:[%s45 + $0x8] sm:$0xff]
  %v2808 = vld [vmem:[%s45 + $0x10] sm:$0xff]
  %v2809 = vld [vmem:[%s45 + $0x18] sm:$0xff]
  %v2810 = vld [vmem:[%s45 + $0x20] sm:$0xff]
  %v2811 = vld [vmem:[%s45 + $0x28] sm:$0xff]
  %v2812 = vld [vmem:[%s45 + $0x30] sm:$0xff]
  %v2813 = vld [vmem:[%s45 + $0x38] sm:$0xff]
  %2815 = vset.pattern.permute.xlu0 0
  %2816 = vperm.xlu0 %2815, %v2806
  %v2817 = vpop.permute.xlu0 %2816
  %2820 = vset.pattern.permute.xlu0 0
  %2821 = vperm.xlu0 %2820, %v2807
  %v2822 = vpop.permute.xlu0 %2821
  %2825 = vset.pattern.permute.xlu0 0
  %2826 = vperm.xlu0 %2825, %v2808
  %v2827 = vpop.permute.xlu0 %2826
  %2830 = vset.pattern.permute.xlu0 0
  %2831 = vperm.xlu0 %2830, %v2809
  %v2832 = vpop.permute.xlu0 %2831
  %2835 = vset.pattern.permute.xlu0 0
  %2836 = vperm.xlu0 %2835, %v2810
  %v2837 = vpop.permute.xlu0 %2836
  %2840 = vset.pattern.permute.xlu0 0
  %2841 = vperm.xlu0 %2840, %v2811
  %v2842 = vpop.permute.xlu0 %2841
  %2845 = vset.pattern.permute.xlu0 0
  %2846 = vperm.xlu0 %2845, %v2812
  %v2847 = vpop.permute.xlu0 %2846
  %2850 = vset.pattern.permute.xlu0 0
  %2851 = vperm.xlu0 %2850, %v2813
  %v2852 = vpop.permute.xlu0 %2851
  %v2862 = vunpack.c.l.b16 %v2790
  %v2863 = vunpack.c.l.b16 %v2791
  %v2864 = vunpack.c.l.b16 %v2792
  %v2865 = vunpack.c.l.b16 %v2793
  %v2866 = vunpack.c.l.b16 %v2794
  %v2867 = vunpack.c.l.b16 %v2795
  %v2868 = vunpack.c.l.b16 %v2796
  %v2869 = vunpack.c.l.b16 %v2797
  %v2870 = vpack.c.b16 %v2863, %v2862
  %v2871 = vpack.c.b16 %v2865, %v2864
  %v2872 = vpack.c.b16 %v2867, %v2866
  %v2873 = vpack.c.b16 %v2869, %v2868
  %v2875 = vsel %vm873, %v2870, 0
  %v2878 = vsel %vm873, %v2871, 0
  %v2881 = vsel %vm873, %v2872, 0
  %v2884 = vsel %vm873, %v2873, 0
  %2886 = vmatprep.subr.bf16.mxu0 %v2799
  %2887 = vmatpush1.bf16.msra.mxu0 %v2798
  %2888 = vmatprep.subr.bf16.mxu0 %v2801
  %2889 = vmatpush1.bf16.msra.mxu0 %v2800
  %2890 = vmatprep.subr.bf16.mxu0 %v2803
  %2891 = vmatpush1.bf16.msra.mxu0 %v2802
  %2892 = vmatprep.subr.bf16.mxu0 %v2805
  %2893 = vmatpush1.bf16.msra.mxu0 %v2804
  %2894 = vmatprep.subr.bf16.mxu0 0
  %2895 = vmatpush1.bf16.msra.mxu0 0
  %2896 = vmatprep.subr.bf16.mxu0 0
  %2897 = vmatpush1.bf16.msra.mxu0 0
  %2898 = vmatprep.subr.bf16.mxu0 0
  %2899 = vmatpush1.bf16.msra.mxu0 0
  %2900 = vmatprep.subr.bf16.mxu0 0
  %2901 = vmatpush1.bf16.msra.mxu0 0
  %2902 = vmatprep.subr.bf16.mxu0 0
  %2903 = vmatpush1.bf16.msra.mxu0 0
  %2904 = vmatprep.subr.bf16.mxu0 0
  %2905 = vmatpush1.bf16.msra.mxu0 0
  %2906 = vmatprep.subr.bf16.mxu0 0
  %2907 = vmatpush1.bf16.msra.mxu0 0
  %2908 = vmatprep.subr.bf16.mxu0 0
  %2909 = vmatpush1.bf16.msra.mxu0 0
  %2910 = vmatprep.subr.bf16.mxu0 0
  %2911 = vmatpush1.bf16.msra.mxu0 0
  %2912 = vmatprep.subr.bf16.mxu0 0
  %2913 = vmatpush1.bf16.msra.mxu0 0
  %2914 = vmatprep.subr.bf16.mxu0 0
  %2915 = vmatpush1.bf16.msra.mxu0 0
  %2916 = vmatprep.subr.bf16.mxu0 0
  %2917 = vmatpush1.bf16.msra.mxu0 0
  %2918 = vmatprep.mubr.bf16.mxu0 0
  %2919 = vmatmul.mubr.bf16.gmra.mrb[0].mxu0 %v2875
  %v2920 = vpop.f32.mrb[0].mxu0
  %v2921 = vadd.f32 %v2817, %v2920
  %v2922 = vpop.f32.mrb[0].mxu0
  %v2923 = vadd.f32 %v2817, %v2922
  %v2924 = vpop.f32.mrb[0].mxu0
  %v2925 = vadd.f32 %v2822, %v2924
  %v2926 = vpop.f32.mrb[0].mxu0
  %v2927 = vadd.f32 %v2822, %v2926
  %2928 = vmatprep.mubr.bf16.mxu0 0
  %2929 = vmatmul.mubr.bf16.gmra.mrb[0].mxu0 %v2878
  %v2930 = vpop.f32.mrb[0].mxu0
  %v2931 = vadd.f32 %v2827, %v2930
  %v2932 = vpop.f32.mrb[0].mxu0
  %v2933 = vadd.f32 %v2827, %v2932
  %v2934 = vpop.f32.mrb[0].mxu0
  %v2935 = vadd.f32 %v2832, %v2934
  %v2936 = vpop.f32.mrb[0].mxu0
  %v2937 = vadd.f32 %v2832, %v2936
  %2938 = vmatprep.mubr.bf16.mxu0 0
  %2939 = vmatmul.mubr.bf16.gmra.mrb[0].mxu0 %v2881
  %v2940 = vpop.f32.mrb[0].mxu0
  %v2941 = vadd.f32 %v2837, %v2940
  %v2942 = vpop.f32.mrb[0].mxu0
  %v2943 = vadd.f32 %v2837, %v2942
  %v2944 = vpop.f32.mrb[0].mxu0
  %v2945 = vadd.f32 %v2842, %v2944
  %v2946 = vpop.f32.mrb[0].mxu0
  %v2947 = vadd.f32 %v2842, %v2946
  %2948 = vmatprep.mubr.bf16.mxu0 0
  %2949 = vmatmul.mubr.bf16.gmra.mrb[0].mxu0 %v2884
  %v2950 = vpop.f32.mrb[0].mxu0
  %v2951 = vadd.f32 %v2847, %v2950
  %v2952 = vpop.f32.mrb[0].mxu0
  %v2953 = vadd.f32 %v2847, %v2952
  %v2954 = vpop.f32.mrb[0].mxu0
  %v2955 = vadd.f32 %v2852, %v2954
  %v2956 = vpop.f32.mrb[0].mxu0
  %v2957 = vadd.f32 %v2852, %v2956
  %2958 = vdwg.mxu0
  %v2959 = vmul.f32 %v2921, %v424
  %v2960 = vmul.f32 %v2923, %v428
  %v2961 = vmul.f32 %v2925, %v424
  %v2962 = vmul.f32 %v2927, %v428
  %v2963 = vmul.f32 %v2931, %v424
  %v2964 = vmul.f32 %v2933, %v428
  %v2965 = vmul.f32 %v2935, %v424
  %v2966 = vmul.f32 %v2937, %v428
  %v2967 = vmul.f32 %v2941, %v424
  %v2968 = vmul.f32 %v2943, %v428
  %v2969 = vmul.f32 %v2945, %v424
  %v2970 = vmul.f32 %v2947, %v428
  %v2971 = vmul.f32 %v2951, %v424
  %v2972 = vmul.f32 %v2953, %v428
  %v2973 = vmul.f32 %v2955, %v424
  %v2974 = vmul.f32 %v2957, %v428
  %v2975 = vld [vmem:[%s31] sm:$0xff]
  %v2976 = vld [vmem:[%s31 + $0x8] sm:$0xff]
  %v2977 = vld [vmem:[%s31 + $0x10] sm:$0xff]
  %v2978 = vld [vmem:[%s31 + $0x18] sm:$0xff]
  %v2979 = vld [vmem:[%s31 + $0x20] sm:$0xff]
  %v2980 = vld [vmem:[%s31 + $0x28] sm:$0xff]
  %v2981 = vld [vmem:[%s31 + $0x30] sm:$0xff]
  %v2982 = vld [vmem:[%s31 + $0x38] sm:$0xff]
  %v2983 = vld [vmem:[%s31 + $0x40] sm:$0xff]
  %v2984 = vld [vmem:[%s31 + $0x48] sm:$0xff]
  %v2985 = vld [vmem:[%s31 + $0x50] sm:$0xff]
  %v2986 = vld [vmem:[%s31 + $0x58] sm:$0xff]
  %v2987 = vld [vmem:[%s31 + $0x60] sm:$0xff]
  %v2988 = vld [vmem:[%s31 + $0x68] sm:$0xff]
  %v2989 = vld [vmem:[%s31 + $0x70] sm:$0xff]
  %v2990 = vld [vmem:[%s31 + $0x78] sm:$0xff]
  %3007 = vrot.lane.b32.xlu0 %v2774, 3
  %v3008 = vpop.permute.xlu0 %3007
  %3009 = vrot.lane.b32.xlu0 %v2775, 3
  %v3010 = vpop.permute.xlu0 %3009
  %3011 = vrot.lane.b32.xlu0 %v2776, 3
  %v3012 = vpop.permute.xlu0 %3011
  %3013 = vrot.lane.b32.xlu0 %v2777, 3
  %v3014 = vpop.permute.xlu0 %3013
  %3015 = vrot.lane.b32.xlu0 %v2778, 3
  %v3016 = vpop.permute.xlu0 %3015
  %3017 = vrot.lane.b32.xlu0 %v2779, 3
  %v3018 = vpop.permute.xlu0 %3017
  %3019 = vrot.lane.b32.xlu0 %v2780, 3
  %v3020 = vpop.permute.xlu0 %3019
  %3021 = vrot.lane.b32.xlu0 %v2781, 3
  %v3022 = vpop.permute.xlu0 %3021
  %3023 = vrot.lane.b32.xlu0 %v2782, 3
  %v3024 = vpop.permute.xlu0 %3023
  %3025 = vrot.lane.b32.xlu0 %v2783, 3
  %v3026 = vpop.permute.xlu0 %3025
  %3027 = vrot.lane.b32.xlu0 %v2784, 3
  %v3028 = vpop.permute.xlu0 %3027
  %3029 = vrot.lane.b32.xlu0 %v2785, 3
  %v3030 = vpop.permute.xlu0 %3029
  %3031 = vrot.lane.b32.xlu0 %v2786, 3
  %v3032 = vpop.permute.xlu0 %3031
  %3033 = vrot.lane.b32.xlu0 %v2787, 3
  %v3034 = vpop.permute.xlu0 %3033
  %3035 = vrot.lane.b32.xlu0 %v2788, 3
  %v3036 = vpop.permute.xlu0 %3035
  %3037 = vrot.lane.b32.xlu0 %v2789, 3
  %v3038 = vpop.permute.xlu0 %3037
  %v3039 = vsel %vm1039, %v3008, %v3010
  %v3040 = vsel %vm1039, %v3012, %v3014
  %v3041 = vsel %vm1039, %v3016, %v3018
  %v3042 = vsel %vm1039, %v3020, %v3022
  %v3043 = vsel %vm1039, %v3024, %v3026
  %v3044 = vsel %vm1039, %v3028, %v3030
  %v3045 = vsel %vm1039, %v3032, %v3034
  %v3046 = vsel %vm1039, %v3036, %v3038
  %v3063 = vsel %vm1039, 0.0, %v3008
  %v3064 = vsel %vm1039, 0.0, %v3012
  %v3065 = vsel %vm1039, 0.0, %v3016
  %v3066 = vsel %vm1039, 0.0, %v3020
  %v3067 = vsel %vm1039, 0.0, %v3024
  %v3068 = vsel %vm1039, 0.0, %v3028
  %v3069 = vsel %vm1039, 0.0, %v3032
  %v3070 = vsel %vm1039, 0.0, %v3036
  %3071 = vrot.lane.b32.xlu0 %v2774, 2
  %v3072 = vpop.permute.xlu0 %3071
  %3073 = vrot.lane.b32.xlu0 %v2775, 2
  %v3074 = vpop.permute.xlu0 %3073
  %3075 = vrot.lane.b32.xlu0 %v2776, 2
  %v3076 = vpop.permute.xlu0 %3075
  %3077 = vrot.lane.b32.xlu0 %v2777, 2
  %v3078 = vpop.permute.xlu0 %3077
  %3079 = vrot.lane.b32.xlu0 %v2778, 2
  %v3080 = vpop.permute.xlu0 %3079
  %3081 = vrot.lane.b32.xlu0 %v2779, 2
  %v3082 = vpop.permute.xlu0 %3081
  %3083 = vrot.lane.b32.xlu0 %v2780, 2
  %v3084 = vpop.permute.xlu0 %3083
  %3085 = vrot.lane.b32.xlu0 %v2781, 2
  %v3086 = vpop.permute.xlu0 %3085
  %3087 = vrot.lane.b32.xlu0 %v2782, 2
  %v3088 = vpop.permute.xlu0 %3087
  %3089 = vrot.lane.b32.xlu0 %v2783, 2
  %v3090 = vpop.permute.xlu0 %3089
  %3091 = vrot.lane.b32.xlu0 %v2784, 2
  %v3092 = vpop.permute.xlu0 %3091
  %3093 = vrot.lane.b32.xlu0 %v2785, 2
  %v3094 = vpop.permute.xlu0 %3093
  %3095 = vrot.lane.b32.xlu0 %v2786, 2
  %v3096 = vpop.permute.xlu0 %3095
  %3097 = vrot.lane.b32.xlu0 %v2787, 2
  %v3098 = vpop.permute.xlu0 %3097
  %3099 = vrot.lane.b32.xlu0 %v2788, 2
  %v3100 = vpop.permute.xlu0 %3099
  %3101 = vrot.lane.b32.xlu0 %v2789, 2
  %v3102 = vpop.permute.xlu0 %3101
  %v3103 = vsel %vm170, %v3072, %v3074
  %v3104 = vsel %vm170, %v3076, %v3078
  %v3105 = vsel %vm170, %v3080, %v3082
  %v3106 = vsel %vm170, %v3084, %v3086
  %v3107 = vsel %vm170, %v3088, %v3090
  %v3108 = vsel %vm170, %v3092, %v3094
  %v3109 = vsel %vm170, %v3096, %v3098
  %v3110 = vsel %vm170, %v3100, %v3102
  %v3127 = vsel %vm170, 0.0, %v3072
  %v3128 = vsel %vm170, 0.0, %v3076
  %v3129 = vsel %vm170, 0.0, %v3080
  %v3130 = vsel %vm170, 0.0, %v3084
  %v3131 = vsel %vm170, 0.0, %v3088
  %v3132 = vsel %vm170, 0.0, %v3092
  %v3133 = vsel %vm170, 0.0, %v3096
  %v3134 = vsel %vm170, 0.0, %v3100
  %3135 = vrot.lane.b32.xlu0 %v2774, 1
  %v3136 = vpop.permute.xlu0 %3135
  %3137 = vrot.lane.b32.xlu0 %v2775, 1
  %v3138 = vpop.permute.xlu0 %3137
  %3139 = vrot.lane.b32.xlu0 %v2776, 1
  %v3140 = vpop.permute.xlu0 %3139
  %3141 = vrot.lane.b32.xlu0 %v2777, 1
  %v3142 = vpop.permute.xlu0 %3141
  %3143 = vrot.lane.b32.xlu0 %v2778, 1
  %v3144 = vpop.permute.xlu0 %3143
  %3145 = vrot.lane.b32.xlu0 %v2779, 1
  %v3146 = vpop.permute.xlu0 %3145
  %3147 = vrot.lane.b32.xlu0 %v2780, 1
  %v3148 = vpop.permute.xlu0 %3147
  %3149 = vrot.lane.b32.xlu0 %v2781, 1
  %v3150 = vpop.permute.xlu0 %3149
  %3151 = vrot.lane.b32.xlu0 %v2782, 1
  %v3152 = vpop.permute.xlu0 %3151
  %3153 = vrot.lane.b32.xlu0 %v2783, 1
  %v3154 = vpop.permute.xlu0 %3153
  %3155 = vrot.lane.b32.xlu0 %v2784, 1
  %v3156 = vpop.permute.xlu0 %3155
  %3157 = vrot.lane.b32.xlu0 %v2785, 1
  %v3158 = vpop.permute.xlu0 %3157
  %3159 = vrot.lane.b32.xlu0 %v2786, 1
  %v3160 = vpop.permute.xlu0 %3159
  %3161 = vrot.lane.b32.xlu0 %v2787, 1
  %v3162 = vpop.permute.xlu0 %3161
  %3163 = vrot.lane.b32.xlu0 %v2788, 1
  %v3164 = vpop.permute.xlu0 %3163
  %3165 = vrot.lane.b32.xlu0 %v2789, 1
  %v3166 = vpop.permute.xlu0 %3165
  %v3167 = vsel %vm215, %v3136, %v3138
  %v3168 = vsel %vm215, %v3140, %v3142
  %v3169 = vsel %vm215, %v3144, %v3146
  %v3170 = vsel %vm215, %v3148, %v3150
  %v3171 = vsel %vm215, %v3152, %v3154
  %v3172 = vsel %vm215, %v3156, %v3158
  %v3173 = vsel %vm215, %v3160, %v3162
  %v3174 = vsel %vm215, %v3164, %v3166
  %v3191 = vsel %vm215, 0.0, %v3136
  %v3192 = vsel %vm215, 0.0, %v3140
  %v3193 = vsel %vm215, 0.0, %v3144
  %v3194 = vsel %vm215, 0.0, %v3148
  %v3195 = vsel %vm215, 0.0, %v3152
  %v3196 = vsel %vm215, 0.0, %v3156
  %v3197 = vsel %vm215, 0.0, %v3160
  %v3198 = vsel %vm215, 0.0, %v3164
  %3199 = vrot.lane.b32.xlu0 %v2774, 127
  %v3200 = vpop.permute.xlu0 %3199
  %3201 = vrot.lane.b32.xlu0 %v2775, 127
  %v3202 = vpop.permute.xlu0 %3201
  %3203 = vrot.lane.b32.xlu0 %v2776, 127
  %v3204 = vpop.permute.xlu0 %3203
  %3205 = vrot.lane.b32.xlu0 %v2777, 127
  %v3206 = vpop.permute.xlu0 %3205
  %3207 = vrot.lane.b32.xlu0 %v2778, 127
  %v3208 = vpop.permute.xlu0 %3207
  %3209 = vrot.lane.b32.xlu0 %v2779, 127
  %v3210 = vpop.permute.xlu0 %3209
  %3211 = vrot.lane.b32.xlu0 %v2780, 127
  %v3212 = vpop.permute.xlu0 %3211
  %3213 = vrot.lane.b32.xlu0 %v2781, 127
  %v3214 = vpop.permute.xlu0 %3213
  %3215 = vrot.lane.b32.xlu0 %v2782, 127
  %v3216 = vpop.permute.xlu0 %3215
  %3217 = vrot.lane.b32.xlu0 %v2783, 127
  %v3218 = vpop.permute.xlu0 %3217
  %3219 = vrot.lane.b32.xlu0 %v2784, 127
  %v3220 = vpop.permute.xlu0 %3219
  %3221 = vrot.lane.b32.xlu0 %v2785, 127
  %v3222 = vpop.permute.xlu0 %3221
  %3223 = vrot.lane.b32.xlu0 %v2786, 127
  %v3224 = vpop.permute.xlu0 %3223
  %3225 = vrot.lane.b32.xlu0 %v2787, 127
  %v3226 = vpop.permute.xlu0 %3225
  %3227 = vrot.lane.b32.xlu0 %v2788, 127
  %v3228 = vpop.permute.xlu0 %3227
  %3229 = vrot.lane.b32.xlu0 %v2789, 127
  %v3230 = vpop.permute.xlu0 %3229
  %v3231 = vsel %vm298, %v3200, %v3202
  %v3232 = vsel %vm298, %v3204, %v3206
  %v3233 = vsel %vm298, %v3208, %v3210
  %v3234 = vsel %vm298, %v3212, %v3214
  %v3235 = vsel %vm298, %v3216, %v3218
  %v3236 = vsel %vm298, %v3220, %v3222
  %v3237 = vsel %vm298, %v3224, %v3226
  %v3238 = vsel %vm298, %v3228, %v3230
  %v3255 = vsel %vm298, %v3202, 0.0
  %v3256 = vsel %vm298, %v3206, 0.0
  %v3257 = vsel %vm298, %v3210, 0.0
  %v3258 = vsel %vm298, %v3214, 0.0
  %v3259 = vsel %vm298, %v3218, 0.0
  %v3260 = vsel %vm298, %v3222, 0.0
  %v3261 = vsel %vm298, %v3226, 0.0
  %v3262 = vsel %vm298, %v3230, 0.0
  %3263 = vrot.lane.b32.xlu0 %v2774, 126
  %v3264 = vpop.permute.xlu0 %3263
  %3265 = vrot.lane.b32.xlu0 %v2775, 126
  %v3266 = vpop.permute.xlu0 %3265
  %3267 = vrot.lane.b32.xlu0 %v2776, 126
  %v3268 = vpop.permute.xlu0 %3267
  %3269 = vrot.lane.b32.xlu0 %v2777, 126
  %v3270 = vpop.permute.xlu0 %3269
  %3271 = vrot.lane.b32.xlu0 %v2778, 126
  %v3272 = vpop.permute.xlu0 %3271
  %3273 = vrot.lane.b32.xlu0 %v2779, 126
  %v3274 = vpop.permute.xlu0 %3273
  %3275 = vrot.lane.b32.xlu0 %v2780, 126
  %v3276 = vpop.permute.xlu0 %3275
  %3277 = vrot.lane.b32.xlu0 %v2781, 126
  %v3278 = vpop.permute.xlu0 %3277
  %3279 = vrot.lane.b32.xlu0 %v2782, 126
  %v3280 = vpop.permute.xlu0 %3279
  %3281 = vrot.lane.b32.xlu0 %v2783, 126
  %v3282 = vpop.permute.xlu0 %3281
  %3283 = vrot.lane.b32.xlu0 %v2784, 126
  %v3284 = vpop.permute.xlu0 %3283
  %3285 = vrot.lane.b32.xlu0 %v2785, 126
  %v3286 = vpop.permute.xlu0 %3285
  %3287 = vrot.lane.b32.xlu0 %v2786, 126
  %v3288 = vpop.permute.xlu0 %3287
  %3289 = vrot.lane.b32.xlu0 %v2787, 126
  %v3290 = vpop.permute.xlu0 %3289
  %3291 = vrot.lane.b32.xlu0 %v2788, 126
  %v3292 = vpop.permute.xlu0 %3291
  %3293 = vrot.lane.b32.xlu0 %v2789, 126
  %v3294 = vpop.permute.xlu0 %3293
  %v3295 = vsel %vm347, %v3264, %v3266
  %v3296 = vsel %vm347, %v3268, %v3270
  %v3297 = vsel %vm347, %v3272, %v3274
  %v3298 = vsel %vm347, %v3276, %v3278
  %v3299 = vsel %vm347, %v3280, %v3282
  %v3300 = vsel %vm347, %v3284, %v3286
  %v3301 = vsel %vm347, %v3288, %v3290
  %v3302 = vsel %vm347, %v3292, %v3294
  %v3319 = vsel %vm347, %v3266, 0.0
  %v3320 = vsel %vm347, %v3270, 0.0
  %v3321 = vsel %vm347, %v3274, 0.0
  %v3322 = vsel %vm347, %v3278, 0.0
  %v3323 = vsel %vm347, %v3282, 0.0
  %v3324 = vsel %vm347, %v3286, 0.0
  %v3325 = vsel %vm347, %v3290, 0.0
  %v3326 = vsel %vm347, %v3294, 0.0
  %3327 = vrot.lane.b32.xlu0 %v2774, 125
  %v3328 = vpop.permute.xlu0 %3327
  %3329 = vrot.lane.b32.xlu0 %v2775, 125
  %v3330 = vpop.permute.xlu0 %3329
  %3331 = vrot.lane.b32.xlu0 %v2776, 125
  %v3332 = vpop.permute.xlu0 %3331
  %3333 = vrot.lane.b32.xlu0 %v2777, 125
  %v3334 = vpop.permute.xlu0 %3333
  %3335 = vrot.lane.b32.xlu0 %v2778, 125
  %v3336 = vpop.permute.xlu0 %3335
  %3337 = vrot.lane.b32.xlu0 %v2779, 125
  %v3338 = vpop.permute.xlu0 %3337
  %3339 = vrot.lane.b32.xlu0 %v2780, 125
  %v3340 = vpop.permute.xlu0 %3339
  %3341 = vrot.lane.b32.xlu0 %v2781, 125
  %v3342 = vpop.permute.xlu0 %3341
  %3343 = vrot.lane.b32.xlu0 %v2782, 125
  %v3344 = vpop.permute.xlu0 %3343
  %3345 = vrot.lane.b32.xlu0 %v2783, 125
  %v3346 = vpop.permute.xlu0 %3345
  %3347 = vrot.lane.b32.xlu0 %v2784, 125
  %v3348 = vpop.permute.xlu0 %3347
  %3349 = vrot.lane.b32.xlu0 %v2785, 125
  %v3350 = vpop.permute.xlu0 %3349
  %3351 = vrot.lane.b32.xlu0 %v2786, 125
  %v3352 = vpop.permute.xlu0 %3351
  %3353 = vrot.lane.b32.xlu0 %v2787, 125
  %v3354 = vpop.permute.xlu0 %3353
  %3355 = vrot.lane.b32.xlu0 %v2788, 125
  %v3356 = vpop.permute.xlu0 %3355
  %3357 = vrot.lane.b32.xlu0 %v2789, 125
  %v3358 = vpop.permute.xlu0 %3357
  %v3359 = vsel %vm1360, %v3328, %v3330
  %v3360 = vsel %vm1360, %v3332, %v3334
  %v3361 = vsel %vm1360, %v3336, %v3338
  %v3362 = vsel %vm1360, %v3340, %v3342
  %v3363 = vsel %vm1360, %v3344, %v3346
  %v3364 = vsel %vm1360, %v3348, %v3350
  %v3365 = vsel %vm1360, %v3352, %v3354
  %v3366 = vsel %vm1360, %v3356, %v3358
  %v3383 = vsel %vm1360, %v3330, 0.0
  %v3384 = vsel %vm1360, %v3334, 0.0
  %v3385 = vsel %vm1360, %v3338, 0.0
  %v3386 = vsel %vm1360, %v3342, 0.0
  %v3387 = vsel %vm1360, %v3346, 0.0
  %v3388 = vsel %vm1360, %v3350, 0.0
  %v3389 = vsel %vm1360, %v3354, 0.0
  %v3390 = vsel %vm1360, %v3358, 0.0
  %v3391 = vpack.c.bf16 %v3064, %v3063
  %v3392 = vpack.c.bf16 %v3040, %v3039
  %v3393 = vpack.c.bf16 %v3066, %v3065
  %v3394 = vpack.c.bf16 %v3042, %v3041
  %v3395 = vpack.c.bf16 %v3068, %v3067
  %v3396 = vpack.c.bf16 %v3044, %v3043
  %v3397 = vpack.c.bf16 %v3070, %v3069
  %v3398 = vpack.c.bf16 %v3046, %v3045
  %v3399 = vpack.c.bf16 %v3128, %v3127
  %v3400 = vpack.c.bf16 %v3104, %v3103
  %v3401 = vpack.c.bf16 %v3130, %v3129
  %v3402 = vpack.c.bf16 %v3106, %v3105
  %v3403 = vpack.c.bf16 %v3132, %v3131
  %v3404 = vpack.c.bf16 %v3108, %v3107
  %v3405 = vpack.c.bf16 %v3134, %v3133
  %v3406 = vpack.c.bf16 %v3110, %v3109
  %v3407 = vpack.c.bf16 %v3192, %v3191
  %v3408 = vpack.c.bf16 %v3168, %v3167
  %v3409 = vpack.c.bf16 %v3194, %v3193
  %v3410 = vpack.c.bf16 %v3170, %v3169
  %v3411 = vpack.c.bf16 %v3196, %v3195
  %v3412 = vpack.c.bf16 %v3172, %v3171
  %v3413 = vpack.c.bf16 %v3198, %v3197
  %v3414 = vpack.c.bf16 %v3174, %v3173
  %v3415 = vpack.c.bf16 %v3232, %v3231
  %v3416 = vpack.c.bf16 %v3256, %v3255
  %v3417 = vpack.c.bf16 %v3234, %v3233
  %v3418 = vpack.c.bf16 %v3258, %v3257
  %v3419 = vpack.c.bf16 %v3236, %v3235
  %v3420 = vpack.c.bf16 %v3260, %v3259
  %v3421 = vpack.c.bf16 %v3238, %v3237
  %v3422 = vpack.c.bf16 %v3262, %v3261
  %v3423 = vpack.c.bf16 %v3296, %v3295
  %v3424 = vpack.c.bf16 %v3320, %v3319
  %v3425 = vpack.c.bf16 %v3298, %v3297
  %v3426 = vpack.c.bf16 %v3322, %v3321
  %v3427 = vpack.c.bf16 %v3300, %v3299
  %v3428 = vpack.c.bf16 %v3324, %v3323
  %v3429 = vpack.c.bf16 %v3302, %v3301
  %v3430 = vpack.c.bf16 %v3326, %v3325
  %v3431 = vpack.c.bf16 %v3360, %v3359
  %v3432 = vpack.c.bf16 %v3384, %v3383
  %v3433 = vpack.c.bf16 %v3362, %v3361
  %v3434 = vpack.c.bf16 %v3386, %v3385
  %v3435 = vpack.c.bf16 %v3364, %v3363
  %v3436 = vpack.c.bf16 %v3388, %v3387
  %v3437 = vpack.c.bf16 %v3366, %v3365
  %v3438 = vpack.c.bf16 %v3390, %v3389
  %v3439 = vld [vmem:[%s33] sm:$0xff]
  %v3440 = vld [vmem:[%s33 + $0x8] sm:$0xff]
  %v3441 = vld [vmem:[%s33 + $0x10] sm:$0xff]
  %v3442 = vld [vmem:[%s33 + $0x18] sm:$0xff]
  %v3443 = vld [vmem:[%s33 + $0x20] sm:$0xff]
  %v3444 = vld [vmem:[%s33 + $0x28] sm:$0xff]
  %v3445 = vld [vmem:[%s33 + $0x30] sm:$0xff]
  %v3446 = vld [vmem:[%s33 + $0x38] sm:$0xff]
  %3448 = vset.pattern.permute.xlu0 0
  %3449 = vperm.xlu0 %3448, %v3439
  %v3450 = vpop.permute.xlu0 %3449
  %3453 = vset.pattern.permute.xlu0 0
  %3454 = vperm.xlu0 %3453, %v3440
  %v3455 = vpop.permute.xlu0 %3454
  %3458 = vset.pattern.permute.xlu0 0
  %3459 = vperm.xlu0 %3458, %v3441
  %v3460 = vpop.permute.xlu0 %3459
  %3463 = vset.pattern.permute.xlu0 0
  %3464 = vperm.xlu0 %3463, %v3442
  %v3465 = vpop.permute.xlu0 %3464
  %3468 = vset.pattern.permute.xlu0 0
  %3469 = vperm.xlu0 %3468, %v3443
  %v3470 = vpop.permute.xlu0 %3469
  %3473 = vset.pattern.permute.xlu0 0
  %3474 = vperm.xlu0 %3473, %v3444
  %v3475 = vpop.permute.xlu0 %3474
  %3478 = vset.pattern.permute.xlu0 0
  %3479 = vperm.xlu0 %3478, %v3445
  %v3480 = vpop.permute.xlu0 %3479
  %3483 = vset.pattern.permute.xlu0 0
  %3484 = vperm.xlu0 %3483, %v3446
  %v3485 = vpop.permute.xlu0 %3484
  %v3503 = vunpack.c.l.b16 %v2975
  %v3504 = vunpack.c.h.b16 %v2975
  %v3505 = vunpack.c.l.b16 %v2976
  %v3506 = vunpack.c.h.b16 %v2976
  %v3507 = vunpack.c.l.b16 %v2977
  %v3508 = vunpack.c.h.b16 %v2977
  %v3509 = vunpack.c.l.b16 %v2978
  %v3510 = vunpack.c.h.b16 %v2978
  %v3511 = vunpack.c.l.b16 %v2979
  %v3512 = vunpack.c.h.b16 %v2979
  %v3513 = vunpack.c.l.b16 %v2980
  %v3514 = vunpack.c.h.b16 %v2980
  %v3515 = vunpack.c.l.b16 %v2981
  %v3516 = vunpack.c.h.b16 %v2981
  %v3517 = vunpack.c.l.b16 %v2982
  %v3518 = vunpack.c.h.b16 %v2982
  %v3519 = vunpack.c.l.b16 %v2983
  %v3520 = vunpack.c.h.b16 %v2983
  %v3521 = vunpack.c.l.b16 %v2984
  %v3522 = vunpack.c.h.b16 %v2984
  %v3523 = vunpack.c.l.b16 %v2985
  %v3524 = vunpack.c.h.b16 %v2985
  %v3525 = vunpack.c.l.b16 %v2986
  %v3526 = vunpack.c.h.b16 %v2986
  %v3527 = vunpack.c.l.b16 %v2987
  %v3528 = vunpack.c.h.b16 %v2987
  %v3529 = vunpack.c.l.b16 %v2988
  %v3530 = vunpack.c.h.b16 %v2988
  %v3531 = vunpack.c.l.b16 %v2989
  %v3532 = vunpack.c.h.b16 %v2989
  %v3533 = vunpack.c.l.b16 %v2990
  %v3534 = vunpack.c.h.b16 %v2990
  %v3535 = vpack.c.b16 %v3507, %v3503
  %v3536 = vpack.c.b16 %v3508, %v3504
  %v3537 = vpack.c.b16 %v3509, %v3505
  %v3538 = vpack.c.b16 %v3510, %v3506
  %v3539 = vpack.c.b16 %v3515, %v3511
  %v3540 = vpack.c.b16 %v3516, %v3512
  %v3541 = vpack.c.b16 %v3517, %v3513
  %v3542 = vpack.c.b16 %v3518, %v3514
  %v3543 = vpack.c.b16 %v3523, %v3519
  %v3544 = vpack.c.b16 %v3524, %v3520
  %v3545 = vpack.c.b16 %v3525, %v3521
  %v3546 = vpack.c.b16 %v3526, %v3522
  %v3547 = vpack.c.b16 %v3531, %v3527
  %v3548 = vpack.c.b16 %v3532, %v3528
  %v3549 = vpack.c.b16 %v3533, %v3529
  %v3550 = vpack.c.b16 %v3534, %v3530
  %v3564 = vsel %vm873, %v3538, 0
  %v3567 = vsel %vm873, %v3542, 0
  %v3570 = vsel %vm873, %v3546, 0
  %v3573 = vsel %vm873, %v3550, 0
  %3575 = vmatprep.subr.bf16.mxu0 %v3392
  %3576 = vmatpush1.bf16.msra.mxu0 %v3391
  %3577 = vmatprep.subr.bf16.mxu0 %v3394
  %3578 = vmatpush1.bf16.msra.mxu0 %v3393
  %3579 = vmatprep.subr.bf16.mxu0 %v3396
  %3580 = vmatpush1.bf16.msra.mxu0 %v3395
  %3581 = vmatprep.subr.bf16.mxu0 %v3398
  %3582 = vmatpush1.bf16.msra.mxu0 %v3397
  %3583 = vmatprep.subr.bf16.mxu0 %v3400
  %3584 = vmatpush1.bf16.msra.mxu0 %v3399
  %3585 = vmatprep.subr.bf16.mxu0 %v3402
  %3586 = vmatpush1.bf16.msra.mxu0 %v3401
  %3587 = vmatprep.subr.bf16.mxu0 %v3404
  %3588 = vmatpush1.bf16.msra.mxu0 %v3403
  %3589 = vmatprep.subr.bf16.mxu0 %v3406
  %3590 = vmatpush1.bf16.msra.mxu0 %v3405
  %3591 = vmatprep.subr.bf16.mxu0 %v3408
  %3592 = vmatpush1.bf16.msra.mxu0 %v3407
  %3593 = vmatprep.subr.bf16.mxu0 %v3410
  %3594 = vmatpush1.bf16.msra.mxu0 %v3409
  %3595 = vmatprep.subr.bf16.mxu0 %v3412
  %3596 = vmatpush1.bf16.msra.mxu0 %v3411
  %3597 = vmatprep.subr.bf16.mxu0 %v3414
  %3598 = vmatpush1.bf16.msra.mxu0 %v3413
  %3599 = vmatprep.subr.bf16.mxu0 %v2799
  %3600 = vmatpush1.bf16.msra.mxu0 %v2798
  %3601 = vmatprep.subr.bf16.mxu0 %v2801
  %3602 = vmatpush1.bf16.msra.mxu0 %v2800
  %3603 = vmatprep.subr.bf16.mxu0 %v2803
  %3604 = vmatpush1.bf16.msra.mxu0 %v2802
  %3605 = vmatprep.subr.bf16.mxu0 %v2805
  %3606 = vmatpush1.bf16.msra.mxu0 %v2804
  %3607 = vmatprep.mubr.bf16.mxu0 %v3536
  %3608 = vmatmul.mubr.bf16.gmra.mrb[0].mxu0 %v3535
  %v3609 = vpop.f32.mrb[0].mxu0
  %v3610 = vadd.f32 %v3450, %v3609
  %v3611 = vpop.f32.mrb[0].mxu0
  %v3612 = vadd.f32 %v3450, %v3611
  %v3613 = vpop.f32.mrb[0].mxu0
  %v3614 = vadd.f32 %v3455, %v3613
  %v3615 = vpop.f32.mrb[0].mxu0
  %v3616 = vadd.f32 %v3455, %v3615
  %3617 = vmatprep.mubr.bf16.mxu0 %v3540
  %3618 = vmatmul.mubr.bf16.gmra.mrb[0].mxu0 %v3539
  %v3619 = vpop.f32.mrb[0].mxu0
  %v3620 = vadd.f32 %v3460, %v3619
  %v3621 = vpop.f32.mrb[0].mxu0
  %v3622 = vadd.f32 %v3460, %v3621
  %v3623 = vpop.f32.mrb[0].mxu0
  %v3624 = vadd.f32 %v3465, %v3623
  %v3625 = vpop.f32.mrb[0].mxu0
  %v3626 = vadd.f32 %v3465, %v3625
  %3627 = vmatprep.mubr.bf16.mxu0 %v3544
  %3628 = vmatmul.mubr.bf16.gmra.mrb[0].mxu0 %v3543
  %v3629 = vpop.f32.mrb[0].mxu0
  %v3630 = vadd.f32 %v3470, %v3629
  %v3631 = vpop.f32.mrb[0].mxu0
  %v3632 = vadd.f32 %v3470, %v3631
  %v3633 = vpop.f32.mrb[0].mxu0
  %v3634 = vadd.f32 %v3475, %v3633
  %v3635 = vpop.f32.mrb[0].mxu0
  %v3636 = vadd.f32 %v3475, %v3635
  %3637 = vmatprep.mubr.bf16.mxu0 %v3548
  %3638 = vmatmul.mubr.bf16.gmra.mrb[0].mxu0 %v3547
  %v3639 = vpop.f32.mrb[0].mxu0
  %v3640 = vadd.f32 %v3480, %v3639
  %v3641 = vpop.f32.mrb[0].mxu0
  %v3642 = vadd.f32 %v3480, %v3641
  %v3643 = vpop.f32.mrb[0].mxu0
  %v3644 = vadd.f32 %v3485, %v3643
  %v3645 = vpop.f32.mrb[0].mxu0
  %v3646 = vadd.f32 %v3485, %v3645
  %3647 = vdwg.mxu0
  %3648 = vmatprep.subr.bf16.mxu0 %v3416
  %3649 = vmatpush1.bf16.msra.mxu0 %v3415
  %3650 = vmatprep.subr.bf16.mxu0 %v3418
  %3651 = vmatpush1.bf16.msra.mxu0 %v3417
  %3652 = vmatprep.subr.bf16.mxu0 %v3420
  %3653 = vmatpush1.bf16.msra.mxu0 %v3419
  %3654 = vmatprep.subr.bf16.mxu0 %v3422
  %3655 = vmatpush1.bf16.msra.mxu0 %v3421
  %3656 = vmatprep.subr.bf16.mxu0 %v3424
  %3657 = vmatpush1.bf16.msra.mxu0 %v3423
  %3658 = vmatprep.subr.bf16.mxu0 %v3426
  %3659 = vmatpush1.bf16.msra.mxu0 %v3425
  %3660 = vmatprep.subr.bf16.mxu0 %v3428
  %3661 = vmatpush1.bf16.msra.mxu0 %v3427
  %3662 = vmatprep.subr.bf16.mxu0 %v3430
  %3663 = vmatpush1.bf16.msra.mxu0 %v3429
  %3664 = vmatprep.subr.bf16.mxu0 %v3432
  %3665 = vmatpush1.bf16.msra.mxu0 %v3431
  %3666 = vmatprep.subr.bf16.mxu0 %v3434
  %3667 = vmatpush1.bf16.msra.mxu0 %v3433
  %3668 = vmatprep.subr.bf16.mxu0 %v3436
  %3669 = vmatpush1.bf16.msra.mxu0 %v3435
  %3670 = vmatprep.subr.bf16.mxu0 %v3438
  %3671 = vmatpush1.bf16.msra.mxu0 %v3437
  %3672 = vmatprep.subr.bf16.mxu0 0
  %3673 = vmatpush1.bf16.msra.mxu0 0
  %3674 = vmatprep.subr.bf16.mxu0 0
  %3675 = vmatpush1.bf16.msra.mxu0 0
  %3676 = vmatprep.subr.bf16.mxu0 0
  %3677 = vmatpush1.bf16.msra.mxu0 0
  %3678 = vmatprep.subr.bf16.mxu0 0
  %3679 = vmatpush1.bf16.msra.mxu0 0
  %3680 = vmatprep.mubr.bf16.mxu0 %v3564
  %3681 = vmatmul.mubr.bf16.gmra.mrb[0].mxu0 %v3537
  %v3682 = vpop.f32.mrb[0].mxu0
  %v3683 = vadd.f32 %v3610, %v3682
  %v3684 = vpop.f32.mrb[0].mxu0
  %v3685 = vadd.f32 %v3612, %v3684
  %v3686 = vpop.f32.mrb[0].mxu0
  %v3687 = vadd.f32 %v3614, %v3686
  %v3688 = vpop.f32.mrb[0].mxu0
  %v3689 = vadd.f32 %v3616, %v3688
  %3690 = vmatprep.mubr.bf16.mxu0 %v3567
  %3691 = vmatmul.mubr.bf16.gmra.mrb[0].mxu0 %v3541
  %v3692 = vpop.f32.mrb[0].mxu0
  %v3693 = vadd.f32 %v3620, %v3692
  %v3694 = vpop.f32.mrb[0].mxu0
  %v3695 = vadd.f32 %v3622, %v3694
  %v3696 = vpop.f32.mrb[0].mxu0
  %v3697 = vadd.f32 %v3624, %v3696
  %v3698 = vpop.f32.mrb[0].mxu0
  %v3699 = vadd.f32 %v3626, %v3698
  %3700 = vmatprep.mubr.bf16.mxu0 %v3570
  %3701 = vmatmul.mubr.bf16.gmra.mrb[0].mxu0 %v3545
  %v3702 = vpop.f32.mrb[0].mxu0
  %v3703 = vadd.f32 %v3630, %v3702
  %v3704 = vpop.f32.mrb[0].mxu0
  %v3705 = vadd.f32 %v3632, %v3704
  %v3706 = vpop.f32.mrb[0].mxu0
  %v3707 = vadd.f32 %v3634, %v3706
  %v3708 = vpop.f32.mrb[0].mxu0
  %v3709 = vadd.f32 %v3636, %v3708
  %3710 = vmatprep.mubr.bf16.mxu0 %v3573
  %3711 = vmatmul.mubr.bf16.gmra.mrb[0].mxu0 %v3549
  %v3712 = vpop.f32.mrb[0].mxu0
  %v3713 = vadd.f32 %v3640, %v3712
  %v3714 = vpop.f32.mrb[0].mxu0
  %v3715 = vadd.f32 %v3642, %v3714
  %v3716 = vpop.f32.mrb[0].mxu0
  %v3717 = vadd.f32 %v3644, %v3716
  %v3718 = vpop.f32.mrb[0].mxu0
  %v3719 = vadd.f32 %v3646, %v3718
  %3720 = vdwg.mxu0
  %v3721 = vmul.f32 %v3683, %v424
  %v3722 = vmul.f32 %v3685, %v428
  %v3723 = vmul.f32 %v3687, %v424
  %v3724 = vmul.f32 %v3689, %v428
  %v3725 = vmul.f32 %v3693, %v424
  %v3726 = vmul.f32 %v3695, %v428
  %v3727 = vmul.f32 %v3697, %v424
  %v3728 = vmul.f32 %v3699, %v428
  %v3729 = vmul.f32 %v3703, %v424
  %v3730 = vmul.f32 %v3705, %v428
  %v3731 = vmul.f32 %v3707, %v424
  %v3732 = vmul.f32 %v3709, %v428
  %v3733 = vmul.f32 %v3713, %v424
  %v3734 = vmul.f32 %v3715, %v428
  %v3735 = vmul.f32 %v3717, %v424
  %v3736 = vmul.f32 %v3719, %v428
  %v3737 = vmax.f32 %v3721, 0.0
  %v3738 = vmax.f32 %v3722, 0.0
  %v3739 = vmax.f32 %v3723, 0.0
  %v3740 = vmax.f32 %v3724, 0.0
  %v3741 = vmax.f32 %v3725, 0.0
  %v3742 = vmax.f32 %v3726, 0.0
  %v3743 = vmax.f32 %v3727, 0.0
  %v3744 = vmax.f32 %v3728, 0.0
  %v3745 = vmax.f32 %v3729, 0.0
  %v3746 = vmax.f32 %v3730, 0.0
  %v3747 = vmax.f32 %v3731, 0.0
  %v3748 = vmax.f32 %v3732, 0.0
  %v3749 = vmax.f32 %v3733, 0.0
  %v3750 = vmax.f32 %v3734, 0.0
  %v3751 = vmax.f32 %v3735, 0.0
  %v3752 = vmax.f32 %v3736, 0.0
  %v3753 = vld [vmem:[%s35] sm:$0xff]
  %v3754 = vld [vmem:[%s35 + $0x8] sm:$0xf]
  %v3755 = vld [vmem:[%s35 + $0xc] sm:$0xff]
  %v3756 = vld [vmem:[%s35 + $0x14] sm:$0xf]
  %v3757 = vld [vmem:[%s35 + $0x18] sm:$0xff]
  %v3758 = vld [vmem:[%s35 + $0x20] sm:$0xf]
  %v3759 = vld [vmem:[%s35 + $0x24] sm:$0xff]
  %v3760 = vld [vmem:[%s35 + $0x2c] sm:$0xf]
  %v3761 = vld [vmem:[%s35 + $0x30] sm:$0xff]
  %v3762 = vld [vmem:[%s35 + $0x38] sm:$0xf]
  %v3763 = vld [vmem:[%s35 + $0x3c] sm:$0xff]
  %v3764 = vld [vmem:[%s35 + $0x44] sm:$0xf]
  %v3765 = vld [vmem:[%s35 + $0x48] sm:$0xff]
  %v3766 = vld [vmem:[%s35 + $0x50] sm:$0xf]
  %v3767 = vld [vmem:[%s35 + $0x54] sm:$0xff]
  %v3768 = vld [vmem:[%s35 + $0x5c] sm:$0xf]
  %3785 = vrot.lane.b32.xlu0 %v3737, 2
  %v3786 = vpop.permute.xlu0 %3785
  %3787 = vrot.lane.b32.xlu0 %v3738, 2
  %v3788 = vpop.permute.xlu0 %3787
  %3789 = vrot.lane.b32.xlu0 %v3739, 2
  %v3790 = vpop.permute.xlu0 %3789
  %3791 = vrot.lane.b32.xlu0 %v3740, 2
  %v3792 = vpop.permute.xlu0 %3791
  %3793 = vrot.lane.b32.xlu0 %v3741, 2
  %v3794 = vpop.permute.xlu0 %3793
  %3795 = vrot.lane.b32.xlu0 %v3742, 2
  %v3796 = vpop.permute.xlu0 %3795
  %3797 = vrot.lane.b32.xlu0 %v3743, 2
  %v3798 = vpop.permute.xlu0 %3797
  %3799 = vrot.lane.b32.xlu0 %v3744, 2
  %v3800 = vpop.permute.xlu0 %3799
  %3801 = vrot.lane.b32.xlu0 %v3745, 2
  %v3802 = vpop.permute.xlu0 %3801
  %3803 = vrot.lane.b32.xlu0 %v3746, 2
  %v3804 = vpop.permute.xlu0 %3803
  %3805 = vrot.lane.b32.xlu0 %v3747, 2
  %v3806 = vpop.permute.xlu0 %3805
  %3807 = vrot.lane.b32.xlu0 %v3748, 2
  %v3808 = vpop.permute.xlu0 %3807
  %3809 = vrot.lane.b32.xlu0 %v3749, 2
  %v3810 = vpop.permute.xlu0 %3809
  %3811 = vrot.lane.b32.xlu0 %v3750, 2
  %v3812 = vpop.permute.xlu0 %3811
  %3813 = vrot.lane.b32.xlu0 %v3751, 2
  %v3814 = vpop.permute.xlu0 %3813
  %3815 = vrot.lane.b32.xlu0 %v3752, 2
  %v3816 = vpop.permute.xlu0 %3815
  %v3817 = vsel %vm170, %v3786, %v3788
  %v3818 = vsel %vm170, %v3790, %v3792
  %v3819 = vsel %vm170, %v3794, %v3796
  %v3820 = vsel %vm170, %v3798, %v3800
  %v3821 = vsel %vm170, %v3802, %v3804
  %v3822 = vsel %vm170, %v3806, %v3808
  %v3823 = vsel %vm170, %v3810, %v3812
  %v3824 = vsel %vm170, %v3814, %v3816
  %v3841 = vsel %vm170, 0.0, %v3786
  %v3842 = vsel %vm170, 0.0, %v3790
  %v3843 = vsel %vm170, 0.0, %v3794
  %v3844 = vsel %vm170, 0.0, %v3798
  %v3845 = vsel %vm170, 0.0, %v3802
  %v3846 = vsel %vm170, 0.0, %v3806
  %v3847 = vsel %vm170, 0.0, %v3810
  %v3848 = vsel %vm170, 0.0, %v3814
  %3849 = vrot.lane.b32.xlu0 %v3737, 1
  %v3850 = vpop.permute.xlu0 %3849
  %3851 = vrot.lane.b32.xlu0 %v3738, 1
  %v3852 = vpop.permute.xlu0 %3851
  %3853 = vrot.lane.b32.xlu0 %v3739, 1
  %v3854 = vpop.permute.xlu0 %3853
  %3855 = vrot.lane.b32.xlu0 %v3740, 1
  %v3856 = vpop.permute.xlu0 %3855
  %3857 = vrot.lane.b32.xlu0 %v3741, 1
  %v3858 = vpop.permute.xlu0 %3857
  %3859 = vrot.lane.b32.xlu0 %v3742, 1
  %v3860 = vpop.permute.xlu0 %3859
  %3861 = vrot.lane.b32.xlu0 %v3743, 1
  %v3862 = vpop.permute.xlu0 %3861
  %3863 = vrot.lane.b32.xlu0 %v3744, 1
  %v3864 = vpop.permute.xlu0 %3863
  %3865 = vrot.lane.b32.xlu0 %v3745, 1
  %v3866 = vpop.permute.xlu0 %3865
  %3867 = vrot.lane.b32.xlu0 %v3746, 1
  %v3868 = vpop.permute.xlu0 %3867
  %3869 = vrot.lane.b32.xlu0 %v3747, 1
  %v3870 = vpop.permute.xlu0 %3869
  %3871 = vrot.lane.b32.xlu0 %v3748, 1
  %v3872 = vpop.permute.xlu0 %3871
  %3873 = vrot.lane.b32.xlu0 %v3749, 1
  %v3874 = vpop.permute.xlu0 %3873
  %3875 = vrot.lane.b32.xlu0 %v3750, 1
  %v3876 = vpop.permute.xlu0 %3875
  %3877 = vrot.lane.b32.xlu0 %v3751, 1
  %v3878 = vpop.permute.xlu0 %3877
  %3879 = vrot.lane.b32.xlu0 %v3752, 1
  %v3880 = vpop.permute.xlu0 %3879
  %v3881 = vsel %vm215, %v3850, %v3852
  %v3882 = vsel %vm215, %v3854, %v3856
  %v3883 = vsel %vm215, %v3858, %v3860
  %v3884 = vsel %vm215, %v3862, %v3864
  %v3885 = vsel %vm215, %v3866, %v3868
  %v3886 = vsel %vm215, %v3870, %v3872
  %v3887 = vsel %vm215, %v3874, %v3876
  %v3888 = vsel %vm215, %v3878, %v3880
  %v3905 = vsel %vm215, 0.0, %v3850
  %v3906 = vsel %vm215, 0.0, %v3854
  %v3907 = vsel %vm215, 0.0, %v3858
  %v3908 = vsel %vm215, 0.0, %v3862
  %v3909 = vsel %vm215, 0.0, %v3866
  %v3910 = vsel %vm215, 0.0, %v3870
  %v3911 = vsel %vm215, 0.0, %v3874
  %v3912 = vsel %vm215, 0.0, %v3878
  %3913 = vrot.lane.b32.xlu0 %v3737, 127
  %v3914 = vpop.permute.xlu0 %3913
  %3915 = vrot.lane.b32.xlu0 %v3738, 127
  %v3916 = vpop.permute.xlu0 %3915
  %3917 = vrot.lane.b32.xlu0 %v3739, 127
  %v3918 = vpop.permute.xlu0 %3917
  %3919 = vrot.lane.b32.xlu0 %v3740, 127
  %v3920 = vpop.permute.xlu0 %3919
  %3921 = vrot.lane.b32.xlu0 %v3741, 127
  %v3922 = vpop.permute.xlu0 %3921
  %3923 = vrot.lane.b32.xlu0 %v3742, 127
  %v3924 = vpop.permute.xlu0 %3923
  %3925 = vrot.lane.b32.xlu0 %v3743, 127
  %v3926 = vpop.permute.xlu0 %3925
  %3927 = vrot.lane.b32.xlu0 %v3744, 127
  %v3928 = vpop.permute.xlu0 %3927
  %3929 = vrot.lane.b32.xlu0 %v3745, 127
  %v3930 = vpop.permute.xlu0 %3929
  %3931 = vrot.lane.b32.xlu0 %v3746, 127
  %v3932 = vpop.permute.xlu0 %3931
  %3933 = vrot.lane.b32.xlu0 %v3747, 127
  %v3934 = vpop.permute.xlu0 %3933
  %3935 = vrot.lane.b32.xlu0 %v3748, 127
  %v3936 = vpop.permute.xlu0 %3935
  %3937 = vrot.lane.b32.xlu0 %v3749, 127
  %v3938 = vpop.permute.xlu0 %3937
  %3939 = vrot.lane.b32.xlu0 %v3750, 127
  %v3940 = vpop.permute.xlu0 %3939
  %3941 = vrot.lane.b32.xlu0 %v3751, 127
  %v3942 = vpop.permute.xlu0 %3941
  %3943 = vrot.lane.b32.xlu0 %v3752, 127
  %v3944 = vpop.permute.xlu0 %3943
  %v3945 = vsel %vm298, %v3914, %v3916
  %v3946 = vsel %vm298, %v3918, %v3920
  %v3947 = vsel %vm298, %v3922, %v3924
  %v3948 = vsel %vm298, %v3926, %v3928
  %v3949 = vsel %vm298, %v3930, %v3932
  %v3950 = vsel %vm298, %v3934, %v3936
  %v3951 = vsel %vm298, %v3938, %v3940
  %v3952 = vsel %vm298, %v3942, %v3944
  %v3969 = vsel %vm298, %v3916, 0.0
  %v3970 = vsel %vm298, %v3920, 0.0
  %v3971 = vsel %vm298, %v3924, 0.0
  %v3972 = vsel %vm298, %v3928, 0.0
  %v3973 = vsel %vm298, %v3932, 0.0
  %v3974 = vsel %vm298, %v3936, 0.0
  %v3975 = vsel %vm298, %v3940, 0.0
  %v3976 = vsel %vm298, %v3944, 0.0
  %3977 = vrot.lane.b32.xlu0 %v3737, 126
  %v3978 = vpop.permute.xlu0 %3977
  %3979 = vrot.lane.b32.xlu0 %v3738, 126
  %v3980 = vpop.permute.xlu0 %3979
  %3981 = vrot.lane.b32.xlu0 %v3739, 126
  %v3982 = vpop.permute.xlu0 %3981
  %3983 = vrot.lane.b32.xlu0 %v3740, 126
  %v3984 = vpop.permute.xlu0 %3983
  %3985 = vrot.lane.b32.xlu0 %v3741, 126
  %v3986 = vpop.permute.xlu0 %3985
  %3987 = vrot.lane.b32.xlu0 %v3742, 126
  %v3988 = vpop.permute.xlu0 %3987
  %3989 = vrot.lane.b32.xlu0 %v3743, 126
  %v3990 = vpop.permute.xlu0 %3989
  %3991 = vrot.lane.b32.xlu0 %v3744, 126
  %v3992 = vpop.permute.xlu0 %3991
  %3993 = vrot.lane.b32.xlu0 %v3745, 126
  %v3994 = vpop.permute.xlu0 %3993
  %3995 = vrot.lane.b32.xlu0 %v3746, 126
  %v3996 = vpop.permute.xlu0 %3995
  %3997 = vrot.lane.b32.xlu0 %v3747, 126
  %v3998 = vpop.permute.xlu0 %3997
  %3999 = vrot.lane.b32.xlu0 %v3748, 126
  %v4000 = vpop.permute.xlu0 %3999
  %4001 = vrot.lane.b32.xlu0 %v3749, 126
  %v4002 = vpop.permute.xlu0 %4001
  %4003 = vrot.lane.b32.xlu0 %v3750, 126
  %v4004 = vpop.permute.xlu0 %4003
  %4005 = vrot.lane.b32.xlu0 %v3751, 126
  %v4006 = vpop.permute.xlu0 %4005
  %4007 = vrot.lane.b32.xlu0 %v3752, 126
  %v4008 = vpop.permute.xlu0 %4007
  %v4009 = vsel %vm347, %v3978, %v3980
  %v4010 = vsel %vm347, %v3982, %v3984
  %v4011 = vsel %vm347, %v3986, %v3988
  %v4012 = vsel %vm347, %v3990, %v3992
  %v4013 = vsel %vm347, %v3994, %v3996
  %v4014 = vsel %vm347, %v3998, %v4000
  %v4015 = vsel %vm347, %v4002, %v4004
  %v4016 = vsel %vm347, %v4006, %v4008
  %v4033 = vsel %vm347, %v3980, 0.0
  %v4034 = vsel %vm347, %v3984, 0.0
  %v4035 = vsel %vm347, %v3988, 0.0
  %v4036 = vsel %vm347, %v3992, 0.0
  %v4037 = vsel %vm347, %v3996, 0.0
  %v4038 = vsel %vm347, %v4000, 0.0
  %v4039 = vsel %vm347, %v4004, 0.0
  %v4040 = vsel %vm347, %v4008, 0.0
  %v4041 = vpack.c.bf16 %v3842, %v3841
  %v4042 = vpack.c.bf16 %v3818, %v3817
  %v4043 = vpack.c.bf16 %v3844, %v3843
  %v4044 = vpack.c.bf16 %v3820, %v3819
  %v4045 = vpack.c.bf16 %v3846, %v3845
  %v4046 = vpack.c.bf16 %v3822, %v3821
  %v4047 = vpack.c.bf16 %v3848, %v3847
  %v4048 = vpack.c.bf16 %v3824, %v3823
  %v4049 = vpack.c.bf16 %v3906, %v3905
  %v4050 = vpack.c.bf16 %v3882, %v3881
  %v4051 = vpack.c.bf16 %v3908, %v3907
  %v4052 = vpack.c.bf16 %v3884, %v3883
  %v4053 = vpack.c.bf16 %v3910, %v3909
  %v4054 = vpack.c.bf16 %v3886, %v3885
  %v4055 = vpack.c.bf16 %v3912, %v3911
  %v4056 = vpack.c.bf16 %v3888, %v3887
  %v4057 = vpack.c.bf16 %v3739, %v3737
  %v4058 = vpack.c.bf16 %v3740, %v3738
  %v4059 = vpack.c.bf16 %v3743, %v3741
  %v4060 = vpack.c.bf16 %v3744, %v3742
  %v4061 = vpack.c.bf16 %v3747, %v3745
  %v4062 = vpack.c.bf16 %v3748, %v3746
  %v4063 = vpack.c.bf16 %v3751, %v3749
  %v4064 = vpack.c.bf16 %v3752, %v3750
  %v4065 = vpack.c.bf16 %v3946, %v3945
  %v4066 = vpack.c.bf16 %v3970, %v3969
  %v4067 = vpack.c.bf16 %v3948, %v3947
  %v4068 = vpack.c.bf16 %v3972, %v3971
  %v4069 = vpack.c.bf16 %v3950, %v3949
  %v4070 = vpack.c.bf16 %v3974, %v3973
  %v4071 = vpack.c.bf16 %v3952, %v3951
  %v4072 = vpack.c.bf16 %v3976, %v3975
  %v4073 = vpack.c.bf16 %v4010, %v4009
  %v4074 = vpack.c.bf16 %v4034, %v4033
  %v4075 = vpack.c.bf16 %v4012, %v4011
  %v4076 = vpack.c.bf16 %v4036, %v4035
  %v4077 = vpack.c.bf16 %v4014, %v4013
  %v4078 = vpack.c.bf16 %v4038, %v4037
  %v4079 = vpack.c.bf16 %v4016, %v4015
  %v4080 = vpack.c.bf16 %v4040, %v4039
  %v4081 = vld [vmem:[%s37] sm:$0xff]
  %v4082 = vld [vmem:[%s37 + $0x8] sm:$0xff]
  %v4083 = vld [vmem:[%s37 + $0x10] sm:$0xff]
  %v4084 = vld [vmem:[%s37 + $0x18] sm:$0xff]
  %v4085 = vld [vmem:[%s37 + $0x20] sm:$0xff]
  %v4086 = vld [vmem:[%s37 + $0x28] sm:$0xff]
  %v4087 = vld [vmem:[%s37 + $0x30] sm:$0xff]
  %v4088 = vld [vmem:[%s37 + $0x38] sm:$0xff]
  %4090 = vset.pattern.permute.xlu0 0
  %4091 = vperm.xlu0 %4090, %v4081
  %v4092 = vpop.permute.xlu0 %4091
  %4095 = vset.pattern.permute.xlu0 0
  %4096 = vperm.xlu0 %4095, %v4082
  %v4097 = vpop.permute.xlu0 %4096
  %4100 = vset.pattern.permute.xlu0 0
  %4101 = vperm.xlu0 %4100, %v4083
  %v4102 = vpop.permute.xlu0 %4101
  %4105 = vset.pattern.permute.xlu0 0
  %4106 = vperm.xlu0 %4105, %v4084
  %v4107 = vpop.permute.xlu0 %4106
  %4110 = vset.pattern.permute.xlu0 0
  %4111 = vperm.xlu0 %4110, %v4085
  %v4112 = vpop.permute.xlu0 %4111
  %4115 = vset.pattern.permute.xlu0 0
  %4116 = vperm.xlu0 %4115, %v4086
  %v4117 = vpop.permute.xlu0 %4116
  %4120 = vset.pattern.permute.xlu0 0
  %4121 = vperm.xlu0 %4120, %v4087
  %v4122 = vpop.permute.xlu0 %4121
  %4125 = vset.pattern.permute.xlu0 0
  %4126 = vperm.xlu0 %4125, %v4088
  %v4127 = vpop.permute.xlu0 %4126
  %v4145 = vunpack.c.l.b16 %v3753
  %v4146 = vunpack.c.h.b16 %v3753
  %v4147 = vunpack.c.l.b16 %v3754
  %v4148 = vunpack.c.l.b16 %v3755
  %v4149 = vunpack.c.h.b16 %v3755
  %v4150 = vunpack.c.l.b16 %v3756
  %v4151 = vunpack.c.l.b16 %v3757
  %v4152 = vunpack.c.h.b16 %v3757
  %v4153 = vunpack.c.l.b16 %v3758
  %v4154 = vunpack.c.l.b16 %v3759
  %v4155 = vunpack.c.h.b16 %v3759
  %v4156 = vunpack.c.l.b16 %v3760
  %v4157 = vunpack.c.l.b16 %v3761
  %v4158 = vunpack.c.h.b16 %v3761
  %v4159 = vunpack.c.l.b16 %v3762
  %v4160 = vunpack.c.l.b16 %v3763
  %v4161 = vunpack.c.h.b16 %v3763
  %v4162 = vunpack.c.l.b16 %v3764
  %v4163 = vunpack.c.l.b16 %v3765
  %v4164 = vunpack.c.h.b16 %v3765
  %v4165 = vunpack.c.l.b16 %v3766
  %v4166 = vunpack.c.l.b16 %v3767
  %v4167 = vunpack.c.h.b16 %v3767
  %v4168 = vunpack.c.l.b16 %v3768
  %v4169 = vpack.c.b16 %v4148, %v4145
  %v4170 = vpack.c.b16 %v4149, %v4146
  %v4171 = vpack.c.b16 %v4150, %v4147
  %v4172 = vpack.c.b16 %v4154, %v4151
  %v4173 = vpack.c.b16 %v4155, %v4152
  %v4174 = vpack.c.b16 %v4156, %v4153
  %v4175 = vpack.c.b16 %v4160, %v4157
  %v4176 = vpack.c.b16 %v4161, %v4158
  %v4177 = vpack.c.b16 %v4162, %v4159
  %v4178 = vpack.c.b16 %v4166, %v4163
  %v4179 = vpack.c.b16 %v4167, %v4164
  %v4180 = vpack.c.b16 %v4168, %v4165
  %v4190 = vsel %vm873, %v4171, 0
  %v4193 = vsel %vm873, %v4174, 0
  %v4196 = vsel %vm873, %v4177, 0
  %v4199 = vsel %vm873, %v4180, 0
  %4201 = vmatprep.subr.bf16.mxu0 %v4042
  %4202 = vmatpush1.bf16.msra.mxu0 %v4041
  %4203 = vmatprep.subr.bf16.mxu0 %v4044
  %4204 = vmatpush1.bf16.msra.mxu0 %v4043
  %4205 = vmatprep.subr.bf16.mxu0 %v4046
  %4206 = vmatpush1.bf16.msra.mxu0 %v4045
  %4207 = vmatprep.subr.bf16.mxu0 %v4048
  %4208 = vmatpush1.bf16.msra.mxu0 %v4047
  %4209 = vmatprep.subr.bf16.mxu0 %v4050
  %4210 = vmatpush1.bf16.msra.mxu0 %v4049
  %4211 = vmatprep.subr.bf16.mxu0 %v4052
  %4212 = vmatpush1.bf16.msra.mxu0 %v4051
  %4213 = vmatprep.subr.bf16.mxu0 %v4054
  %4214 = vmatpush1.bf16.msra.mxu0 %v4053
  %4215 = vmatprep.subr.bf16.mxu0 %v4056
  %4216 = vmatpush1.bf16.msra.mxu0 %v4055
  %4217 = vmatprep.subr.bf16.mxu0 %v4058
  %4218 = vmatpush1.bf16.msra.mxu0 %v4057
  %4219 = vmatprep.subr.bf16.mxu0 %v4060
  %4220 = vmatpush1.bf16.msra.mxu0 %v4059
  %4221 = vmatprep.subr.bf16.mxu0 %v4062
  %4222 = vmatpush1.bf16.msra.mxu0 %v4061
  %4223 = vmatprep.subr.bf16.mxu0 %v4064
  %4224 = vmatpush1.bf16.msra.mxu0 %v4063
  %4225 = vmatprep.subr.bf16.mxu0 %v4066
  %4226 = vmatpush1.bf16.msra.mxu0 %v4065
  %4227 = vmatprep.subr.bf16.mxu0 %v4068
  %4228 = vmatpush1.bf16.msra.mxu0 %v4067
  %4229 = vmatprep.subr.bf16.mxu0 %v4070
  %4230 = vmatpush1.bf16.msra.mxu0 %v4069
  %4231 = vmatprep.subr.bf16.mxu0 %v4072
  %4232 = vmatpush1.bf16.msra.mxu0 %v4071
  %4233 = vmatprep.mubr.bf16.mxu0 %v4170
  %4234 = vmatmul.mubr.bf16.gmra.mrb[0].mxu0 %v4169
  %v4235 = vpop.f32.mrb[0].mxu0
  %v4236 = vadd.f32 %v4092, %v4235
  %v4237 = vpop.f32.mrb[0].mxu0
  %v4238 = vadd.f32 %v4092, %v4237
  %v4239 = vpop.f32.mrb[0].mxu0
  %v4240 = vadd.f32 %v4097, %v4239
  %v4241 = vpop.f32.mrb[0].mxu0
  %v4242 = vadd.f32 %v4097, %v4241
  %4243 = vmatprep.mubr.bf16.mxu0 %v4173
  %4244 = vmatmul.mubr.bf16.gmra.mrb[0].mxu0 %v4172
  %v4245 = vpop.f32.mrb[0].mxu0
  %v4246 = vadd.f32 %v4102, %v4245
  %v4247 = vpop.f32.mrb[0].mxu0
  %v4248 = vadd.f32 %v4102, %v4247
  %v4249 = vpop.f32.mrb[0].mxu0
  %v4250 = vadd.f32 %v4107, %v4249
  %v4251 = vpop.f32.mrb[0].mxu0
  %v4252 = vadd.f32 %v4107, %v4251
  %4253 = vmatprep.mubr.bf16.mxu0 %v4176
  %4254 = vmatmul.mubr.bf16.gmra.mrb[0].mxu0 %v4175
  %v4255 = vpop.f32.mrb[0].mxu0
  %v4256 = vadd.f32 %v4112, %v4255
  %v4257 = vpop.f32.mrb[0].mxu0
  %v4258 = vadd.f32 %v4112, %v4257
  %v4259 = vpop.f32.mrb[0].mxu0
  %v4260 = vadd.f32 %v4117, %v4259
  %v4261 = vpop.f32.mrb[0].mxu0
  %v4262 = vadd.f32 %v4117, %v4261
  %4263 = vmatprep.mubr.bf16.mxu0 %v4179
  %4264 = vmatmul.mubr.bf16.gmra.mrb[0].mxu0 %v4178
  %v4265 = vpop.f32.mrb[0].mxu0
  %v4266 = vadd.f32 %v4122, %v4265
  %v4267 = vpop.f32.mrb[0].mxu0
  %v4268 = vadd.f32 %v4122, %v4267
  %v4269 = vpop.f32.mrb[0].mxu0
  %v4270 = vadd.f32 %v4127, %v4269
  %v4271 = vpop.f32.mrb[0].mxu0
  %v4272 = vadd.f32 %v4127, %v4271
  %4273 = vdwg.mxu0
  %4274 = vmatprep.subr.bf16.mxu0 %v4074
  %4275 = vmatpush1.bf16.msra.mxu0 %v4073
  %4276 = vmatprep.subr.bf16.mxu0 %v4076
  %4277 = vmatpush1.bf16.msra.mxu0 %v4075
  %4278 = vmatprep.subr.bf16.mxu0 %v4078
  %4279 = vmatpush1.bf16.msra.mxu0 %v4077
  %4280 = vmatprep.subr.bf16.mxu0 %v4080
  %4281 = vmatpush1.bf16.msra.mxu0 %v4079
  %4282 = vmatprep.subr.bf16.mxu0 0
  %4283 = vmatpush1.bf16.msra.mxu0 0
  %4284 = vmatprep.subr.bf16.mxu0 0
  %4285 = vmatpush1.bf16.msra.mxu0 0
  %4286 = vmatprep.subr.bf16.mxu0 0
  %4287 = vmatpush1.bf16.msra.mxu0 0
  %4288 = vmatprep.subr.bf16.mxu0 0
  %4289 = vmatpush1.bf16.msra.mxu0 0
  %4290 = vmatprep.subr.bf16.mxu0 0
  %4291 = vmatpush1.bf16.msra.mxu0 0
  %4292 = vmatprep.subr.bf16.mxu0 0
  %4293 = vmatpush1.bf16.msra.mxu0 0
  %4294 = vmatprep.subr.bf16.mxu0 0
  %4295 = vmatpush1.bf16.msra.mxu0 0
  %4296 = vmatprep.subr.bf16.mxu0 0
  %4297 = vmatpush1.bf16.msra.mxu0 0
  %4298 = vmatprep.subr.bf16.mxu0 0
  %4299 = vmatpush1.bf16.msra.mxu0 0
  %4300 = vmatprep.subr.bf16.mxu0 0
  %4301 = vmatpush1.bf16.msra.mxu0 0
  %4302 = vmatprep.subr.bf16.mxu0 0
  %4303 = vmatpush1.bf16.msra.mxu0 0
  %4304 = vmatprep.subr.bf16.mxu0 0
  %4305 = vmatpush1.bf16.msra.mxu0 0
  %4306 = vmatprep.mubr.bf16.mxu0 0
  %4307 = vmatmul.mubr.bf16.gmra.mrb[0].mxu0 %v4190
  %v4308 = vpop.f32.mrb[0].mxu0
  %v4309 = vadd.f32 %v4236, %v4308
  %v4310 = vpop.f32.mrb[0].mxu0
  %v4311 = vadd.f32 %v4238, %v4310
  %v4312 = vpop.f32.mrb[0].mxu0
  %v4313 = vadd.f32 %v4240, %v4312
  %v4314 = vpop.f32.mrb[0].mxu0
  %v4315 = vadd.f32 %v4242, %v4314
  %4316 = vmatprep.mubr.bf16.mxu0 0
  %4317 = vmatmul.mubr.bf16.gmra.mrb[0].mxu0 %v4193
  %v4318 = vpop.f32.mrb[0].mxu0
  %v4319 = vadd.f32 %v4246, %v4318
  %v4320 = vpop.f32.mrb[0].mxu0
  %v4321 = vadd.f32 %v4248, %v4320
  %v4322 = vpop.f32.mrb[0].mxu0
  %v4323 = vadd.f32 %v4250, %v4322
  %v4324 = vpop.f32.mrb[0].mxu0
  %v4325 = vadd.f32 %v4252, %v4324
  %4326 = vmatprep.mubr.bf16.mxu0 0
  %4327 = vmatmul.mubr.bf16.gmra.mrb[0].mxu0 %v4196
  %v4328 = vpop.f32.mrb[0].mxu0
  %v4329 = vadd.f32 %v4256, %v4328
  %v4330 = vpop.f32.mrb[0].mxu0
  %v4331 = vadd.f32 %v4258, %v4330
  %v4332 = vpop.f32.mrb[0].mxu0
  %v4333 = vadd.f32 %v4260, %v4332
  %v4334 = vpop.f32.mrb[0].mxu0
  %v4335 = vadd.f32 %v4262, %v4334
  %4336 = vmatprep.mubr.bf16.mxu0 0
  %4337 = vmatmul.mubr.bf16.gmra.mrb[0].mxu0 %v4199
  %v4338 = vpop.f32.mrb[0].mxu0
  %v4339 = vadd.f32 %v4266, %v4338
  %v4340 = vpop.f32.mrb[0].mxu0
  %v4341 = vadd.f32 %v4268, %v4340
  %v4342 = vpop.f32.mrb[0].mxu0
  %v4343 = vadd.f32 %v4270, %v4342
  %v4344 = vpop.f32.mrb[0].mxu0
  %v4345 = vadd.f32 %v4272, %v4344
  %4346 = vdwg.mxu0
  %v4347 = vmul.f32 %v4309, %v424
  %v4348 = vmul.f32 %v4311, %v428
  %v4349 = vmul.f32 %v4313, %v424
  %v4350 = vmul.f32 %v4315, %v428
  %v4351 = vmul.f32 %v4319, %v424
  %v4352 = vmul.f32 %v4321, %v428
  %v4353 = vmul.f32 %v4323, %v424
  %v4354 = vmul.f32 %v4325, %v428
  %v4355 = vmul.f32 %v4329, %v424
  %v4356 = vmul.f32 %v4331, %v428
  %v4357 = vmul.f32 %v4333, %v424
  %v4358 = vmul.f32 %v4335, %v428
  %v4359 = vmul.f32 %v4339, %v424
  %v4360 = vmul.f32 %v4341, %v428
  %v4361 = vmul.f32 %v4343, %v424
  %v4362 = vmul.f32 %v4345, %v428
  %v4363 = vmax.f32 %v4347, 0.0
  %v4364 = vmax.f32 %v4348, 0.0
  %v4365 = vmax.f32 %v4349, 0.0
  %v4366 = vmax.f32 %v4350, 0.0
  %v4367 = vmax.f32 %v4351, 0.0
  %v4368 = vmax.f32 %v4352, 0.0
  %v4369 = vmax.f32 %v4353, 0.0
  %v4370 = vmax.f32 %v4354, 0.0
  %v4371 = vmax.f32 %v4355, 0.0
  %v4372 = vmax.f32 %v4356, 0.0
  %v4373 = vmax.f32 %v4357, 0.0
  %v4374 = vmax.f32 %v4358, 0.0
  %v4375 = vmax.f32 %v4359, 0.0
  %v4376 = vmax.f32 %v4360, 0.0
  %v4377 = vmax.f32 %v4361, 0.0
  %v4378 = vmax.f32 %v4362, 0.0
  %v4379 = vld [vmem:[%s39] sm:$0xff]
  %v4380 = vld [vmem:[%s39 + $0x8] sm:$0xff]
  %v4381 = vld [vmem:[%s39 + $0x10] sm:$0xff]
  %v4382 = vld [vmem:[%s39 + $0x18] sm:$0xff]
  %v4383 = vld [vmem:[%s39 + $0x20] sm:$0xff]
  %v4384 = vld [vmem:[%s39 + $0x28] sm:$0xff]
  %v4385 = vld [vmem:[%s39 + $0x30] sm:$0xff]
  %v4386 = vld [vmem:[%s39 + $0x38] sm:$0xff]
  %4403 = vrot.lane.b32.xlu0 %v4363, 1
  %v4404 = vpop.permute.xlu0 %4403
  %4405 = vrot.lane.b32.xlu0 %v4364, 1
  %v4406 = vpop.permute.xlu0 %4405
  %4407 = vrot.lane.b32.xlu0 %v4365, 1
  %v4408 = vpop.permute.xlu0 %4407
  %4409 = vrot.lane.b32.xlu0 %v4366, 1
  %v4410 = vpop.permute.xlu0 %4409
  %4411 = vrot.lane.b32.xlu0 %v4367, 1
  %v4412 = vpop.permute.xlu0 %4411
  %4413 = vrot.lane.b32.xlu0 %v4368, 1
  %v4414 = vpop.permute.xlu0 %4413
  %4415 = vrot.lane.b32.xlu0 %v4369, 1
  %v4416 = vpop.permute.xlu0 %4415
  %4417 = vrot.lane.b32.xlu0 %v4370, 1
  %v4418 = vpop.permute.xlu0 %4417
  %4419 = vrot.lane.b32.xlu0 %v4371, 1
  %v4420 = vpop.permute.xlu0 %4419
  %4421 = vrot.lane.b32.xlu0 %v4372, 1
  %v4422 = vpop.permute.xlu0 %4421
  %4423 = vrot.lane.b32.xlu0 %v4373, 1
  %v4424 = vpop.permute.xlu0 %4423
  %4425 = vrot.lane.b32.xlu0 %v4374, 1
  %v4426 = vpop.permute.xlu0 %4425
  %4427 = vrot.lane.b32.xlu0 %v4375, 1
  %v4428 = vpop.permute.xlu0 %4427
  %4429 = vrot.lane.b32.xlu0 %v4376, 1
  %v4430 = vpop.permute.xlu0 %4429
  %4431 = vrot.lane.b32.xlu0 %v4377, 1
  %v4432 = vpop.permute.xlu0 %4431
  %4433 = vrot.lane.b32.xlu0 %v4378, 1
  %v4434 = vpop.permute.xlu0 %4433
  %v4435 = vsel %vm215, %v4404, %v4406
  %v4436 = vsel %vm215, %v4408, %v4410
  %v4437 = vsel %vm215, %v4412, %v4414
  %v4438 = vsel %vm215, %v4416, %v4418
  %v4439 = vsel %vm215, %v4420, %v4422
  %v4440 = vsel %vm215, %v4424, %v4426
  %v4441 = vsel %vm215, %v4428, %v4430
  %v4442 = vsel %vm215, %v4432, %v4434
  %v4459 = vsel %vm215, 0.0, %v4404
  %v4460 = vsel %vm215, 0.0, %v4408
  %v4461 = vsel %vm215, 0.0, %v4412
  %v4462 = vsel %vm215, 0.0, %v4416
  %v4463 = vsel %vm215, 0.0, %v4420
  %v4464 = vsel %vm215, 0.0, %v4424
  %v4465 = vsel %vm215, 0.0, %v4428
  %v4466 = vsel %vm215, 0.0, %v4432
  %4467 = vrot.lane.b32.xlu0 %v4363, 127
  %v4468 = vpop.permute.xlu0 %4467
  %4469 = vrot.lane.b32.xlu0 %v4364, 127
  %v4470 = vpop.permute.xlu0 %4469
  %4471 = vrot.lane.b32.xlu0 %v4365, 127
  %v4472 = vpop.permute.xlu0 %4471
  %4473 = vrot.lane.b32.xlu0 %v4366, 127
  %v4474 = vpop.permute.xlu0 %4473
  %4475 = vrot.lane.b32.xlu0 %v4367, 127
  %v4476 = vpop.permute.xlu0 %4475
  %4477 = vrot.lane.b32.xlu0 %v4368, 127
  %v4478 = vpop.permute.xlu0 %4477
  %4479 = vrot.lane.b32.xlu0 %v4369, 127
  %v4480 = vpop.permute.xlu0 %4479
  %4481 = vrot.lane.b32.xlu0 %v4370, 127
  %v4482 = vpop.permute.xlu0 %4481
  %4483 = vrot.lane.b32.xlu0 %v4371, 127
  %v4484 = vpop.permute.xlu0 %4483
  %4485 = vrot.lane.b32.xlu0 %v4372, 127
  %v4486 = vpop.permute.xlu0 %4485
  %4487 = vrot.lane.b32.xlu0 %v4373, 127
  %v4488 = vpop.permute.xlu0 %4487
  %4489 = vrot.lane.b32.xlu0 %v4374, 127
  %v4490 = vpop.permute.xlu0 %4489
  %4491 = vrot.lane.b32.xlu0 %v4375, 127
  %v4492 = vpop.permute.xlu0 %4491
  %4493 = vrot.lane.b32.xlu0 %v4376, 127
  %v4494 = vpop.permute.xlu0 %4493
  %4495 = vrot.lane.b32.xlu0 %v4377, 127
  %v4496 = vpop.permute.xlu0 %4495
  %4497 = vrot.lane.b32.xlu0 %v4378, 127
  %v4498 = vpop.permute.xlu0 %4497
  %v4499 = vsel %vm298, %v4468, %v4470
  %v4500 = vsel %vm298, %v4472, %v4474
  %v4501 = vsel %vm298, %v4476, %v4478
  %v4502 = vsel %vm298, %v4480, %v4482
  %v4503 = vsel %vm298, %v4484, %v4486
  %v4504 = vsel %vm298, %v4488, %v4490
  %v4505 = vsel %vm298, %v4492, %v4494
  %v4506 = vsel %vm298, %v4496, %v4498
  %v4523 = vsel %vm298, %v4470, 0.0
  %v4524 = vsel %vm298, %v4474, 0.0
  %v4525 = vsel %vm298, %v4478, 0.0
  %v4526 = vsel %vm298, %v4482, 0.0
  %v4527 = vsel %vm298, %v4486, 0.0
  %v4528 = vsel %vm298, %v4490, 0.0
  %v4529 = vsel %vm298, %v4494, 0.0
  %v4530 = vsel %vm298, %v4498, 0.0
  %v4531 = vpack.c.bf16 %v4460, %v4459
  %v4532 = vpack.c.bf16 %v4436, %v4435
  %v4533 = vpack.c.bf16 %v4462, %v4461
  %v4534 = vpack.c.bf16 %v4438, %v4437
  %v4535 = vpack.c.bf16 %v4464, %v4463
  %v4536 = vpack.c.bf16 %v4440, %v4439
  %v4537 = vpack.c.bf16 %v4466, %v4465
  %v4538 = vpack.c.bf16 %v4442, %v4441
  %v4539 = vpack.c.bf16 %v4365, %v4363
  %v4540 = vpack.c.bf16 %v4366, %v4364
  %v4541 = vpack.c.bf16 %v4369, %v4367
  %v4542 = vpack.c.bf16 %v4370, %v4368
  %v4543 = vpack.c.bf16 %v4373, %v4371
  %v4544 = vpack.c.bf16 %v4374, %v4372
  %v4545 = vpack.c.bf16 %v4377, %v4375
  %v4546 = vpack.c.bf16 %v4378, %v4376
  %v4547 = vpack.c.bf16 %v4500, %v4499
  %v4548 = vpack.c.bf16 %v4524, %v4523
  %v4549 = vpack.c.bf16 %v4502, %v4501
  %v4550 = vpack.c.bf16 %v4526, %v4525
  %v4551 = vpack.c.bf16 %v4504, %v4503
  %v4552 = vpack.c.bf16 %v4528, %v4527
  %v4553 = vpack.c.bf16 %v4506, %v4505
  %v4554 = vpack.c.bf16 %v4530, %v4529
  %v4555 = vld [vmem:[%s41] sm:$0xff]
  %v4556 = vld [vmem:[%s41 + $0x8] sm:$0xff]
  %v4557 = vld [vmem:[%s41 + $0x10] sm:$0xff]
  %v4558 = vld [vmem:[%s41 + $0x18] sm:$0xff]
  %v4559 = vld [vmem:[%s41 + $0x20] sm:$0xff]
  %v4560 = vld [vmem:[%s41 + $0x28] sm:$0xff]
  %v4561 = vld [vmem:[%s41 + $0x30] sm:$0xff]
  %v4562 = vld [vmem:[%s41 + $0x38] sm:$0xff]
  %4564 = vset.pattern.permute.xlu0 0
  %4565 = vperm.xlu0 %4564, %v4555
  %v4566 = vpop.permute.xlu0 %4565
  %4569 = vset.pattern.permute.xlu0 0
  %4570 = vperm.xlu0 %4569, %v4556
  %v4571 = vpop.permute.xlu0 %4570
  %4574 = vset.pattern.permute.xlu0 0
  %4575 = vperm.xlu0 %4574, %v4557
  %v4576 = vpop.permute.xlu0 %4575
  %4579 = vset.pattern.permute.xlu0 0
  %4580 = vperm.xlu0 %4579, %v4558
  %v4581 = vpop.permute.xlu0 %4580
  %4584 = vset.pattern.permute.xlu0 0
  %4585 = vperm.xlu0 %4584, %v4559
  %v4586 = vpop.permute.xlu0 %4585
  %4589 = vset.pattern.permute.xlu0 0
  %4590 = vperm.xlu0 %4589, %v4560
  %v4591 = vpop.permute.xlu0 %4590
  %4594 = vset.pattern.permute.xlu0 0
  %4595 = vperm.xlu0 %4594, %v4561
  %v4596 = vpop.permute.xlu0 %4595
  %4599 = vset.pattern.permute.xlu0 0
  %4600 = vperm.xlu0 %4599, %v4562
  %v4601 = vpop.permute.xlu0 %4600
  %v4611 = vunpack.c.l.b16 %v4379
  %v4612 = vunpack.c.h.b16 %v4379
  %v4613 = vunpack.c.l.b16 %v4380
  %v4614 = vunpack.c.h.b16 %v4380
  %v4615 = vunpack.c.l.b16 %v4381
  %v4616 = vunpack.c.h.b16 %v4381
  %v4617 = vunpack.c.l.b16 %v4382
  %v4618 = vunpack.c.h.b16 %v4382
  %v4619 = vunpack.c.l.b16 %v4383
  %v4620 = vunpack.c.h.b16 %v4383
  %v4621 = vunpack.c.l.b16 %v4384
  %v4622 = vunpack.c.h.b16 %v4384
  %v4623 = vunpack.c.l.b16 %v4385
  %v4624 = vunpack.c.h.b16 %v4385
  %v4625 = vunpack.c.l.b16 %v4386
  %v4626 = vunpack.c.h.b16 %v4386
  %v4627 = vpack.c.b16 %v4613, %v4611
  %v4628 = vpack.c.b16 %v4614, %v4612
  %v4629 = vpack.c.b16 %v4617, %v4615
  %v4630 = vpack.c.b16 %v4618, %v4616
  %v4631 = vpack.c.b16 %v4621, %v4619
  %v4632 = vpack.c.b16 %v4622, %v4620
  %v4633 = vpack.c.b16 %v4625, %v4623
  %v4634 = vpack.c.b16 %v4626, %v4624
  %v4640 = vsel %vm873, %v4628, 0
  %v4643 = vsel %vm873, %v4630, 0
  %v4646 = vsel %vm873, %v4632, 0
  %v4649 = vsel %vm873, %v4634, 0
  %4651 = vmatprep.subr.bf16.mxu0 %v4532
  %4652 = vmatpush1.bf16.msra.mxu0 %v4531
  %4653 = vmatprep.subr.bf16.mxu0 %v4534
  %4654 = vmatpush1.bf16.msra.mxu0 %v4533
  %4655 = vmatprep.subr.bf16.mxu0 %v4536
  %4656 = vmatpush1.bf16.msra.mxu0 %v4535
  %4657 = vmatprep.subr.bf16.mxu0 %v4538
  %4658 = vmatpush1.bf16.msra.mxu0 %v4537
  %4659 = vmatprep.subr.bf16.mxu0 %v4540
  %4660 = vmatpush1.bf16.msra.mxu0 %v4539
  %4661 = vmatprep.subr.bf16.mxu0 %v4542
  %4662 = vmatpush1.bf16.msra.mxu0 %v4541
  %4663 = vmatprep.subr.bf16.mxu0 %v4544
  %4664 = vmatpush1.bf16.msra.mxu0 %v4543
  %4665 = vmatprep.subr.bf16.mxu0 %v4546
  %4666 = vmatpush1.bf16.msra.mxu0 %v4545
  %4667 = vmatprep.subr.bf16.mxu0 %v4548
  %4668 = vmatpush1.bf16.msra.mxu0 %v4547
  %4669 = vmatprep.subr.bf16.mxu0 %v4550
  %4670 = vmatpush1.bf16.msra.mxu0 %v4549
  %4671 = vmatprep.subr.bf16.mxu0 %v4552
  %4672 = vmatpush1.bf16.msra.mxu0 %v4551
  %4673 = vmatprep.subr.bf16.mxu0 %v4554
  %4674 = vmatpush1.bf16.msra.mxu0 %v4553
  %4675 = vmatprep.subr.bf16.mxu0 0
  %4676 = vmatpush1.bf16.msra.mxu0 0
  %4677 = vmatprep.subr.bf16.mxu0 0
  %4678 = vmatpush1.bf16.msra.mxu0 0
  %4679 = vmatprep.subr.bf16.mxu0 0
  %4680 = vmatpush1.bf16.msra.mxu0 0
  %4681 = vmatprep.subr.bf16.mxu0 0
  %4682 = vmatpush1.bf16.msra.mxu0 0
  %4683 = vmatprep.mubr.bf16.mxu0 %v4640
  %4684 = vmatmul.mubr.bf16.gmra.mrb[0].mxu0 %v4627
  %v4685 = vpop.f32.mrb[0].mxu0
  %v4686 = vadd.f32 %v4566, %v4685
  %v4687 = vpop.f32.mrb[0].mxu0
  %v4688 = vadd.f32 %v4566, %v4687
  %v4689 = vpop.f32.mrb[0].mxu0
  %v4690 = vadd.f32 %v4571, %v4689
  %v4691 = vpop.f32.mrb[0].mxu0
  %v4692 = vadd.f32 %v4571, %v4691
  %4693 = vmatprep.mubr.bf16.mxu0 %v4643
  %4694 = vmatmul.mubr.bf16.gmra.mrb[0].mxu0 %v4629
  %v4695 = vpop.f32.mrb[0].mxu0
  %v4696 = vadd.f32 %v4576, %v4695
  %v4697 = vpop.f32.mrb[0].mxu0
  %v4698 = vadd.f32 %v4576, %v4697
  %v4699 = vpop.f32.mrb[0].mxu0
  %v4700 = vadd.f32 %v4581, %v4699
  %v4701 = vpop.f32.mrb[0].mxu0
  %v4702 = vadd.f32 %v4581, %v4701
  %4703 = vmatprep.mubr.bf16.mxu0 %v4646
  %4704 = vmatmul.mubr.bf16.gmra.mrb[0].mxu0 %v4631
  %v4705 = vpop.f32.mrb[0].mxu0
  %v4706 = vadd.f32 %v4586, %v4705
  %v4707 = vpop.f32.mrb[0].mxu0
  %v4708 = vadd.f32 %v4586, %v4707
  %v4709 = vpop.f32.mrb[0].mxu0
  %v4710 = vadd.f32 %v4591, %v4709
  %v4711 = vpop.f32.mrb[0].mxu0
  %v4712 = vadd.f32 %v4591, %v4711
  %4713 = vmatprep.mubr.bf16.mxu0 %v4649
  %4714 = vmatmul.mubr.bf16.gmra.mrb[0].mxu0 %v4633
  %v4715 = vpop.f32.mrb[0].mxu0
  %v4716 = vadd.f32 %v4596, %v4715
  %v4717 = vpop.f32.mrb[0].mxu0
  %v4718 = vadd.f32 %v4596, %v4717
  %v4719 = vpop.f32.mrb[0].mxu0
  %v4720 = vadd.f32 %v4601, %v4719
  %v4721 = vpop.f32.mrb[0].mxu0
  %v4722 = vadd.f32 %v4601, %v4721
  %4723 = vdwg.mxu0
  %v4724 = vmul.f32 %v4686, %v424
  %v4725 = vmul.f32 %v4688, %v428
  %v4726 = vmul.f32 %v4690, %v424
  %v4727 = vmul.f32 %v4692, %v428
  %v4728 = vmul.f32 %v4696, %v424
  %v4729 = vmul.f32 %v4698, %v428
  %v4730 = vmul.f32 %v4700, %v424
  %v4731 = vmul.f32 %v4702, %v428
  %v4732 = vmul.f32 %v4706, %v424
  %v4733 = vmul.f32 %v4708, %v428
  %v4734 = vmul.f32 %v4710, %v424
  %v4735 = vmul.f32 %v4712, %v428
  %v4736 = vmul.f32 %v4716, %v424
  %v4737 = vmul.f32 %v4718, %v428
  %v4738 = vmul.f32 %v4720, %v424
  %v4739 = vmul.f32 %v4722, %v428
  %v4740 = vmax.f32 %v4724, 0.0
  %v4741 = vmax.f32 %v4725, 0.0
  %v4742 = vmax.f32 %v4726, 0.0
  %v4743 = vmax.f32 %v4727, 0.0
  %v4744 = vmax.f32 %v4728, 0.0
  %v4745 = vmax.f32 %v4729, 0.0
  %v4746 = vmax.f32 %v4730, 0.0
  %v4747 = vmax.f32 %v4731, 0.0
  %v4748 = vmax.f32 %v4732, 0.0
  %v4749 = vmax.f32 %v4733, 0.0
  %v4750 = vmax.f32 %v4734, 0.0
  %v4751 = vmax.f32 %v4735, 0.0
  %v4752 = vmax.f32 %v4736, 0.0
  %v4753 = vmax.f32 %v4737, 0.0
  %v4754 = vmax.f32 %v4738, 0.0
  %v4755 = vmax.f32 %v4739, 0.0
  %v4756 = vadd.f32 %v4740, %v2959
  %v4757 = vadd.f32 %v4741, %v2960
  %v4758 = vadd.f32 %v4742, %v2961
  %v4759 = vadd.f32 %v4743, %v2962
  %v4760 = vadd.f32 %v4744, %v2963
  %v4761 = vadd.f32 %v4745, %v2964
  %v4762 = vadd.f32 %v4746, %v2965
  %v4763 = vadd.f32 %v4747, %v2966
  %v4764 = vadd.f32 %v4748, %v2967
  %v4765 = vadd.f32 %v4749, %v2968
  %v4766 = vadd.f32 %v4750, %v2969
  %v4767 = vadd.f32 %v4751, %v2970
  %v4768 = vadd.f32 %v4752, %v2971
  %v4769 = vadd.f32 %v4753, %v2972
  %v4770 = vadd.f32 %v4754, %v2973
  %v4771 = vadd.f32 %v4755, %v2974
  %v4772 = vmax.f32 %v4756, 0.0
  %v4773 = vmax.f32 %v4757, 0.0
  %v4774 = vmax.f32 %v4758, 0.0
  %v4775 = vmax.f32 %v4759, 0.0
  %v4776 = vmax.f32 %v4760, 0.0
  %v4777 = vmax.f32 %v4761, 0.0
  %v4778 = vmax.f32 %v4762, 0.0
  %v4779 = vmax.f32 %v4763, 0.0
  %v4780 = vmax.f32 %v4764, 0.0
  %v4781 = vmax.f32 %v4765, 0.0
  %v4782 = vmax.f32 %v4766, 0.0
  %v4783 = vmax.f32 %v4767, 0.0
  %v4784 = vmax.f32 %v4768, 0.0
  %v4785 = vmax.f32 %v4769, 0.0
  %v4786 = vmax.f32 %v4770, 0.0
  %v4787 = vmax.f32 %v4771, 0.0
  %v4788 = vld [vmem:[%s59] sm:$0xf]
  %v4789 = vld [vmem:[%s59 + $0x4] sm:$0xf]
  %v4790 = vld [vmem:[%s59 + $0x8] sm:$0xf]
  %v4791 = vld [vmem:[%s59 + $0xc] sm:$0xf]
  %v4792 = vld [vmem:[%s59 + $0x10] sm:$0xf]
  %v4793 = vld [vmem:[%s59 + $0x14] sm:$0xf]
  %v4794 = vld [vmem:[%s59 + $0x18] sm:$0xf]
  %v4795 = vld [vmem:[%s59 + $0x1c] sm:$0xf]
  %v4796 = vpack.c.bf16 %v4774, %v4772
  %v4797 = vpack.c.bf16 %v4775, %v4773
  %v4798 = vpack.c.bf16 %v4778, %v4776
  %v4799 = vpack.c.bf16 %v4779, %v4777
  %v4800 = vpack.c.bf16 %v4782, %v4780
  %v4801 = vpack.c.bf16 %v4783, %v4781
  %v4802 = vpack.c.bf16 %v4786, %v4784
  %v4803 = vpack.c.bf16 %v4787, %v4785
  %v4804 = vld [vmem:[%s61] sm:$0xff]
  %v4805 = vld [vmem:[%s61 + $0x8] sm:$0xff]
  %v4806 = vld [vmem:[%s61 + $0x10] sm:$0xff]
  %v4807 = vld [vmem:[%s61 + $0x18] sm:$0xff]
  %v4808 = vld [vmem:[%s61 + $0x20] sm:$0xff]
  %v4809 = vld [vmem:[%s61 + $0x28] sm:$0xff]
  %v4810 = vld [vmem:[%s61 + $0x30] sm:$0xff]
  %v4811 = vld [vmem:[%s61 + $0x38] sm:$0xff]
  %4813 = vset.pattern.permute.xlu0 0
  %4814 = vperm.xlu0 %4813, %v4804
  %v4815 = vpop.permute.xlu0 %4814
  %4818 = vset.pattern.permute.xlu0 0
  %4819 = vperm.xlu0 %4818, %v4805
  %v4820 = vpop.permute.xlu0 %4819
  %4823 = vset.pattern.permute.xlu0 0
  %4824 = vperm.xlu0 %4823, %v4806
  %v4825 = vpop.permute.xlu0 %4824
  %4828 = vset.pattern.permute.xlu0 0
  %4829 = vperm.xlu0 %4828, %v4807
  %v4830 = vpop.permute.xlu0 %4829
  %4833 = vset.pattern.permute.xlu0 0
  %4834 = vperm.xlu0 %4833, %v4808
  %v4835 = vpop.permute.xlu0 %4834
  %4838 = vset.pattern.permute.xlu0 0
  %4839 = vperm.xlu0 %4838, %v4809
  %v4840 = vpop.permute.xlu0 %4839
  %4843 = vset.pattern.permute.xlu0 0
  %4844 = vperm.xlu0 %4843, %v4810
  %v4845 = vpop.permute.xlu0 %4844
  %4848 = vset.pattern.permute.xlu0 0
  %4849 = vperm.xlu0 %4848, %v4811
  %v4850 = vpop.permute.xlu0 %4849
  %v4860 = vunpack.c.l.b16 %v4788
  %v4861 = vunpack.c.l.b16 %v4789
  %v4862 = vunpack.c.l.b16 %v4790
  %v4863 = vunpack.c.l.b16 %v4791
  %v4864 = vunpack.c.l.b16 %v4792
  %v4865 = vunpack.c.l.b16 %v4793
  %v4866 = vunpack.c.l.b16 %v4794
  %v4867 = vunpack.c.l.b16 %v4795
  %v4868 = vpack.c.b16 %v4861, %v4860
  %v4869 = vpack.c.b16 %v4863, %v4862
  %v4870 = vpack.c.b16 %v4865, %v4864
  %v4871 = vpack.c.b16 %v4867, %v4866
  %v4873 = vsel %vm873, %v4868, 0
  %v4876 = vsel %vm873, %v4869, 0
  %v4879 = vsel %vm873, %v4870, 0
  %v4882 = vsel %vm873, %v4871, 0
  %4884 = vmatprep.subr.bf16.mxu0 %v4797
  %4885 = vmatpush1.bf16.msra.mxu0 %v4796
  %4886 = vmatprep.subr.bf16.mxu0 %v4799
  %4887 = vmatpush1.bf16.msra.mxu0 %v4798
  %4888 = vmatprep.subr.bf16.mxu0 %v4801
  %4889 = vmatpush1.bf16.msra.mxu0 %v4800
  %4890 = vmatprep.subr.bf16.mxu0 %v4803
  %4891 = vmatpush1.bf16.msra.mxu0 %v4802
  %4892 = vmatprep.subr.bf16.mxu0 0
  %4893 = vmatpush1.bf16.msra.mxu0 0
  %4894 = vmatprep.subr.bf16.mxu0 0
  %4895 = vmatpush1.bf16.msra.mxu0 0
  %4896 = vmatprep.subr.bf16.mxu0 0
  %4897 = vmatpush1.bf16.msra.mxu0 0
  %4898 = vmatprep.subr.bf16.mxu0 0
  %4899 = vmatpush1.bf16.msra.mxu0 0
  %4900 = vmatprep.subr.bf16.mxu0 0
  %4901 = vmatpush1.bf16.msra.mxu0 0
  %4902 = vmatprep.subr.bf16.mxu0 0
  %4903 = vmatpush1.bf16.msra.mxu0 0
  %4904 = vmatprep.subr.bf16.mxu0 0
  %4905 = vmatpush1.bf16.msra.mxu0 0
  %4906 = vmatprep.subr.bf16.mxu0 0
  %4907 = vmatpush1.bf16.msra.mxu0 0
  %4908 = vmatprep.subr.bf16.mxu0 0
  %4909 = vmatpush1.bf16.msra.mxu0 0
  %4910 = vmatprep.subr.bf16.mxu0 0
  %4911 = vmatpush1.bf16.msra.mxu0 0
  %4912 = vmatprep.subr.bf16.mxu0 0
  %4913 = vmatpush1.bf16.msra.mxu0 0
  %4914 = vmatprep.subr.bf16.mxu0 0
  %4915 = vmatpush1.bf16.msra.mxu0 0
  %4916 = vmatprep.mubr.bf16.mxu0 0
  %4917 = vmatmul.mubr.bf16.gmra.mrb[0].mxu0 %v4873
  %v4918 = vpop.f32.mrb[0].mxu0
  %v4919 = vadd.f32 %v4815, %v4918
  %v4920 = vpop.f32.mrb[0].mxu0
  %v4921 = vadd.f32 %v4815, %v4920
  %v4922 = vpop.f32.mrb[0].mxu0
  %v4923 = vadd.f32 %v4820, %v4922
  %v4924 = vpop.f32.mrb[0].mxu0
  %v4925 = vadd.f32 %v4820, %v4924
  %4926 = vmatprep.mubr.bf16.mxu0 0
  %4927 = vmatmul.mubr.bf16.gmra.mrb[0].mxu0 %v4876
  %v4928 = vpop.f32.mrb[0].mxu0
  %v4929 = vadd.f32 %v4825, %v4928
  %v4930 = vpop.f32.mrb[0].mxu0
  %v4931 = vadd.f32 %v4825, %v4930
  %v4932 = vpop.f32.mrb[0].mxu0
  %v4933 = vadd.f32 %v4830, %v4932
  %v4934 = vpop.f32.mrb[0].mxu0
  %v4935 = vadd.f32 %v4830, %v4934
  %4936 = vmatprep.mubr.bf16.mxu0 0
  %4937 = vmatmul.mubr.bf16.gmra.mrb[0].mxu0 %v4879
  %v4938 = vpop.f32.mrb[0].mxu0
  %v4939 = vadd.f32 %v4835, %v4938
  %v4940 = vpop.f32.mrb[0].mxu0
  %v4941 = vadd.f32 %v4835, %v4940
  %v4942 = vpop.f32.mrb[0].mxu0
  %v4943 = vadd.f32 %v4840, %v4942
  %v4944 = vpop.f32.mrb[0].mxu0
  %v4945 = vadd.f32 %v4840, %v4944
  %4946 = vmatprep.mubr.bf16.mxu0 0
  %4947 = vmatmul.mubr.bf16.gmra.mrb[0].mxu0 %v4882
  %v4948 = vpop.f32.mrb[0].mxu0
  %v4949 = vadd.f32 %v4845, %v4948
  %v4950 = vpop.f32.mrb[0].mxu0
  %v4951 = vadd.f32 %v4845, %v4950
  %v4952 = vpop.f32.mrb[0].mxu0
  %v4953 = vadd.f32 %v4850, %v4952
  %v4954 = vpop.f32.mrb[0].mxu0
  %v4955 = vadd.f32 %v4850, %v4954
  %4956 = vdwg.mxu0
  %v4957 = vmul.f32 %v4919, %v424
  %v4958 = vmul.f32 %v4921, %v428
  %v4959 = vmul.f32 %v4923, %v424
  %v4960 = vmul.f32 %v4925, %v428
  %v4961 = vmul.f32 %v4929, %v424
  %v4962 = vmul.f32 %v4931, %v428
  %v4963 = vmul.f32 %v4933, %v424
  %v4964 = vmul.f32 %v4935, %v428
  %v4965 = vmul.f32 %v4939, %v424
  %v4966 = vmul.f32 %v4941, %v428
  %v4967 = vmul.f32 %v4943, %v424
  %v4968 = vmul.f32 %v4945, %v428
  %v4969 = vmul.f32 %v4949, %v424
  %v4970 = vmul.f32 %v4951, %v428
  %v4971 = vmul.f32 %v4953, %v424
  %v4972 = vmul.f32 %v4955, %v428
  %v4973 = vld [vmem:[%s47] sm:$0xff]
  %v4974 = vld [vmem:[%s47 + $0x8] sm:$0xff]
  %v4975 = vld [vmem:[%s47 + $0x10] sm:$0xff]
  %v4976 = vld [vmem:[%s47 + $0x18] sm:$0xff]
  %v4977 = vld [vmem:[%s47 + $0x20] sm:$0xff]
  %v4978 = vld [vmem:[%s47 + $0x28] sm:$0xff]
  %v4979 = vld [vmem:[%s47 + $0x30] sm:$0xff]
  %v4980 = vld [vmem:[%s47 + $0x38] sm:$0xff]
  %v4981 = vld [vmem:[%s47 + $0x40] sm:$0xff]
  %v4982 = vld [vmem:[%s47 + $0x48] sm:$0xff]
  %v4983 = vld [vmem:[%s47 + $0x50] sm:$0xff]
  %v4984 = vld [vmem:[%s47 + $0x58] sm:$0xff]
  %v4985 = vld [vmem:[%s47 + $0x60] sm:$0xff]
  %v4986 = vld [vmem:[%s47 + $0x68] sm:$0xff]
  %v4987 = vld [vmem:[%s47 + $0x70] sm:$0xff]
  %v4988 = vld [vmem:[%s47 + $0x78] sm:$0xff]
  %5005 = vrot.lane.b32.xlu0 %v4772, 3
  %v5006 = vpop.permute.xlu0 %5005
  %5007 = vrot.lane.b32.xlu0 %v4773, 3
  %v5008 = vpop.permute.xlu0 %5007
  %5009 = vrot.lane.b32.xlu0 %v4774, 3
  %v5010 = vpop.permute.xlu0 %5009
  %5011 = vrot.lane.b32.xlu0 %v4775, 3
  %v5012 = vpop.permute.xlu0 %5011
  %5013 = vrot.lane.b32.xlu0 %v4776, 3
  %v5014 = vpop.permute.xlu0 %5013
  %5015 = vrot.lane.b32.xlu0 %v4777, 3
  %v5016 = vpop.permute.xlu0 %5015
  %5017 = vrot.lane.b32.xlu0 %v4778, 3
  %v5018 = vpop.permute.xlu0 %5017
  %5019 = vrot.lane.b32.xlu0 %v4779, 3
  %v5020 = vpop.permute.xlu0 %5019
  %5021 = vrot.lane.b32.xlu0 %v4780, 3
  %v5022 = vpop.permute.xlu0 %5021
  %5023 = vrot.lane.b32.xlu0 %v4781, 3
  %v5024 = vpop.permute.xlu0 %5023
  %5025 = vrot.lane.b32.xlu0 %v4782, 3
  %v5026 = vpop.permute.xlu0 %5025
  %5027 = vrot.lane.b32.xlu0 %v4783, 3
  %v5028 = vpop.permute.xlu0 %5027
  %5029 = vrot.lane.b32.xlu0 %v4784, 3
  %v5030 = vpop.permute.xlu0 %5029
  %5031 = vrot.lane.b32.xlu0 %v4785, 3
  %v5032 = vpop.permute.xlu0 %5031
  %5033 = vrot.lane.b32.xlu0 %v4786, 3
  %v5034 = vpop.permute.xlu0 %5033
  %5035 = vrot.lane.b32.xlu0 %v4787, 3
  %v5036 = vpop.permute.xlu0 %5035
  %v5037 = vsel %vm1039, %v5006, %v5008
  %v5038 = vsel %vm1039, %v5010, %v5012
  %v5039 = vsel %vm1039, %v5014, %v5016
  %v5040 = vsel %vm1039, %v5018, %v5020
  %v5041 = vsel %vm1039, %v5022, %v5024
  %v5042 = vsel %vm1039, %v5026, %v5028
  %v5043 = vsel %vm1039, %v5030, %v5032
  %v5044 = vsel %vm1039, %v5034, %v5036
  %v5061 = vsel %vm1039, 0.0, %v5006
  %v5062 = vsel %vm1039, 0.0, %v5010
  %v5063 = vsel %vm1039, 0.0, %v5014
  %v5064 = vsel %vm1039, 0.0, %v5018
  %v5065 = vsel %vm1039, 0.0, %v5022
  %v5066 = vsel %vm1039, 0.0, %v5026
  %v5067 = vsel %vm1039, 0.0, %v5030
  %v5068 = vsel %vm1039, 0.0, %v5034
  %5069 = vrot.lane.b32.xlu0 %v4772, 2
  %v5070 = vpop.permute.xlu0 %5069
  %5071 = vrot.lane.b32.xlu0 %v4773, 2
  %v5072 = vpop.permute.xlu0 %5071
  %5073 = vrot.lane.b32.xlu0 %v4774, 2
  %v5074 = vpop.permute.xlu0 %5073
  %5075 = vrot.lane.b32.xlu0 %v4775, 2
  %v5076 = vpop.permute.xlu0 %5075
  %5077 = vrot.lane.b32.xlu0 %v4776, 2
  %v5078 = vpop.permute.xlu0 %5077
  %5079 = vrot.lane.b32.xlu0 %v4777, 2
  %v5080 = vpop.permute.xlu0 %5079
  %5081 = vrot.lane.b32.xlu0 %v4778, 2
  %v5082 = vpop.permute.xlu0 %5081
  %5083 = vrot.lane.b32.xlu0 %v4779, 2
  %v5084 = vpop.permute.xlu0 %5083
  %5085 = vrot.lane.b32.xlu0 %v4780, 2
  %v5086 = vpop.permute.xlu0 %5085
  %5087 = vrot.lane.b32.xlu0 %v4781, 2
  %v5088 = vpop.permute.xlu0 %5087
  %5089 = vrot.lane.b32.xlu0 %v4782, 2
  %v5090 = vpop.permute.xlu0 %5089
  %5091 = vrot.lane.b32.xlu0 %v4783, 2
  %v5092 = vpop.permute.xlu0 %5091
  %5093 = vrot.lane.b32.xlu0 %v4784, 2
  %v5094 = vpop.permute.xlu0 %5093
  %5095 = vrot.lane.b32.xlu0 %v4785, 2
  %v5096 = vpop.permute.xlu0 %5095
  %5097 = vrot.lane.b32.xlu0 %v4786, 2
  %v5098 = vpop.permute.xlu0 %5097
  %5099 = vrot.lane.b32.xlu0 %v4787, 2
  %v5100 = vpop.permute.xlu0 %5099
  %v5101 = vsel %vm170, %v5070, %v5072
  %v5102 = vsel %vm170, %v5074, %v5076
  %v5103 = vsel %vm170, %v5078, %v5080
  %v5104 = vsel %vm170, %v5082, %v5084
  %v5105 = vsel %vm170, %v5086, %v5088
  %v5106 = vsel %vm170, %v5090, %v5092
  %v5107 = vsel %vm170, %v5094, %v5096
  %v5108 = vsel %vm170, %v5098, %v5100
  %v5125 = vsel %vm170, 0.0, %v5070
  %v5126 = vsel %vm170, 0.0, %v5074
  %v5127 = vsel %vm170, 0.0, %v5078
  %v5128 = vsel %vm170, 0.0, %v5082
  %v5129 = vsel %vm170, 0.0, %v5086
  %v5130 = vsel %vm170, 0.0, %v5090
  %v5131 = vsel %vm170, 0.0, %v5094
  %v5132 = vsel %vm170, 0.0, %v5098
  %5133 = vrot.lane.b32.xlu0 %v4772, 1
  %v5134 = vpop.permute.xlu0 %5133
  %5135 = vrot.lane.b32.xlu0 %v4773, 1
  %v5136 = vpop.permute.xlu0 %5135
  %5137 = vrot.lane.b32.xlu0 %v4774, 1
  %v5138 = vpop.permute.xlu0 %5137
  %5139 = vrot.lane.b32.xlu0 %v4775, 1
  %v5140 = vpop.permute.xlu0 %5139
  %5141 = vrot.lane.b32.xlu0 %v4776, 1
  %v5142 = vpop.permute.xlu0 %5141
  %5143 = vrot.lane.b32.xlu0 %v4777, 1
  %v5144 = vpop.permute.xlu0 %5143
  %5145 = vrot.lane.b32.xlu0 %v4778, 1
  %v5146 = vpop.permute.xlu0 %5145
  %5147 = vrot.lane.b32.xlu0 %v4779, 1
  %v5148 = vpop.permute.xlu0 %5147
  %5149 = vrot.lane.b32.xlu0 %v4780, 1
  %v5150 = vpop.permute.xlu0 %5149
  %5151 = vrot.lane.b32.xlu0 %v4781, 1
  %v5152 = vpop.permute.xlu0 %5151
  %5153 = vrot.lane.b32.xlu0 %v4782, 1
  %v5154 = vpop.permute.xlu0 %5153
  %5155 = vrot.lane.b32.xlu0 %v4783, 1
  %v5156 = vpop.permute.xlu0 %5155
  %5157 = vrot.lane.b32.xlu0 %v4784, 1
  %v5158 = vpop.permute.xlu0 %5157
  %5159 = vrot.lane.b32.xlu0 %v4785, 1
  %v5160 = vpop.permute.xlu0 %5159
  %5161 = vrot.lane.b32.xlu0 %v4786, 1
  %v5162 = vpop.permute.xlu0 %5161
  %5163 = vrot.lane.b32.xlu0 %v4787, 1
  %v5164 = vpop.permute.xlu0 %5163
  %v5165 = vsel %vm215, %v5134, %v5136
  %v5166 = vsel %vm215, %v5138, %v5140
  %v5167 = vsel %vm215, %v5142, %v5144
  %v5168 = vsel %vm215, %v5146, %v5148
  %v5169 = vsel %vm215, %v5150, %v5152
  %v5170 = vsel %vm215, %v5154, %v5156
  %v5171 = vsel %vm215, %v5158, %v5160
  %v5172 = vsel %vm215, %v5162, %v5164
  %v5189 = vsel %vm215, 0.0, %v5134
  %v5190 = vsel %vm215, 0.0, %v5138
  %v5191 = vsel %vm215, 0.0, %v5142
  %v5192 = vsel %vm215, 0.0, %v5146
  %v5193 = vsel %vm215, 0.0, %v5150
  %v5194 = vsel %vm215, 0.0, %v5154
  %v5195 = vsel %vm215, 0.0, %v5158
  %v5196 = vsel %vm215, 0.0, %v5162
  %5197 = vrot.lane.b32.xlu0 %v4772, 127
  %v5198 = vpop.permute.xlu0 %5197
  %5199 = vrot.lane.b32.xlu0 %v4773, 127
  %v5200 = vpop.permute.xlu0 %5199
  %5201 = vrot.lane.b32.xlu0 %v4774, 127
  %v5202 = vpop.permute.xlu0 %5201
  %5203 = vrot.lane.b32.xlu0 %v4775, 127
  %v5204 = vpop.permute.xlu0 %5203
  %5205 = vrot.lane.b32.xlu0 %v4776, 127
  %v5206 = vpop.permute.xlu0 %5205
  %5207 = vrot.lane.b32.xlu0 %v4777, 127
  %v5208 = vpop.permute.xlu0 %5207
  %5209 = vrot.lane.b32.xlu0 %v4778, 127
  %v5210 = vpop.permute.xlu0 %5209
  %5211 = vrot.lane.b32.xlu0 %v4779, 127
  %v5212 = vpop.permute.xlu0 %5211
  %5213 = vrot.lane.b32.xlu0 %v4780, 127
  %v5214 = vpop.permute.xlu0 %5213
  %5215 = vrot.lane.b32.xlu0 %v4781, 127
  %v5216 = vpop.permute.xlu0 %5215
  %5217 = vrot.lane.b32.xlu0 %v4782, 127
  %v5218 = vpop.permute.xlu0 %5217
  %5219 = vrot.lane.b32.xlu0 %v4783, 127
  %v5220 = vpop.permute.xlu0 %5219
  %5221 = vrot.lane.b32.xlu0 %v4784, 127
  %v5222 = vpop.permute.xlu0 %5221
  %5223 = vrot.lane.b32.xlu0 %v4785, 127
  %v5224 = vpop.permute.xlu0 %5223
  %5225 = vrot.lane.b32.xlu0 %v4786, 127
  %v5226 = vpop.permute.xlu0 %5225
  %5227 = vrot.lane.b32.xlu0 %v4787, 127
  %v5228 = vpop.permute.xlu0 %5227
  %v5229 = vsel %vm298, %v5198, %v5200
  %v5230 = vsel %vm298, %v5202, %v5204
  %v5231 = vsel %vm298, %v5206, %v5208
  %v5232 = vsel %vm298, %v5210, %v5212
  %v5233 = vsel %vm298, %v5214, %v5216
  %v5234 = vsel %vm298, %v5218, %v5220
  %v5235 = vsel %vm298, %v5222, %v5224
  %v5236 = vsel %vm298, %v5226, %v5228
  %v5253 = vsel %vm298, %v5200, 0.0
  %v5254 = vsel %vm298, %v5204, 0.0
  %v5255 = vsel %vm298, %v5208, 0.0
  %v5256 = vsel %vm298, %v5212, 0.0
  %v5257 = vsel %vm298, %v5216, 0.0
  %v5258 = vsel %vm298, %v5220, 0.0
  %v5259 = vsel %vm298, %v5224, 0.0
  %v5260 = vsel %vm298, %v5228, 0.0
  %5261 = vrot.lane.b32.xlu0 %v4772, 126
  %v5262 = vpop.permute.xlu0 %5261
  %5263 = vrot.lane.b32.xlu0 %v4773, 126
  %v5264 = vpop.permute.xlu0 %5263
  %5265 = vrot.lane.b32.xlu0 %v4774, 126
  %v5266 = vpop.permute.xlu0 %5265
  %5267 = vrot.lane.b32.xlu0 %v4775, 126
  %v5268 = vpop.permute.xlu0 %5267
  %5269 = vrot.lane.b32.xlu0 %v4776, 126
  %v5270 = vpop.permute.xlu0 %5269
  %5271 = vrot.lane.b32.xlu0 %v4777, 126
  %v5272 = vpop.permute.xlu0 %5271
  %5273 = vrot.lane.b32.xlu0 %v4778, 126
  %v5274 = vpop.permute.xlu0 %5273
  %5275 = vrot.lane.b32.xlu0 %v4779, 126
  %v5276 = vpop.permute.xlu0 %5275
  %5277 = vrot.lane.b32.xlu0 %v4780, 126
  %v5278 = vpop.permute.xlu0 %5277
  %5279 = vrot.lane.b32.xlu0 %v4781, 126
  %v5280 = vpop.permute.xlu0 %5279
  %5281 = vrot.lane.b32.xlu0 %v4782, 126
  %v5282 = vpop.permute.xlu0 %5281
  %5283 = vrot.lane.b32.xlu0 %v4783, 126
  %v5284 = vpop.permute.xlu0 %5283
  %5285 = vrot.lane.b32.xlu0 %v4784, 126
  %v5286 = vpop.permute.xlu0 %5285
  %5287 = vrot.lane.b32.xlu0 %v4785, 126
  %v5288 = vpop.permute.xlu0 %5287
  %5289 = vrot.lane.b32.xlu0 %v4786, 126
  %v5290 = vpop.permute.xlu0 %5289
  %5291 = vrot.lane.b32.xlu0 %v4787, 126
  %v5292 = vpop.permute.xlu0 %5291
  %v5293 = vsel %vm347, %v5262, %v5264
  %v5294 = vsel %vm347, %v5266, %v5268
  %v5295 = vsel %vm347, %v5270, %v5272
  %v5296 = vsel %vm347, %v5274, %v5276
  %v5297 = vsel %vm347, %v5278, %v5280
  %v5298 = vsel %vm347, %v5282, %v5284
  %v5299 = vsel %vm347, %v5286, %v5288
  %v5300 = vsel %vm347, %v5290, %v5292
  %v5317 = vsel %vm347, %v5264, 0.0
  %v5318 = vsel %vm347, %v5268, 0.0
  %v5319 = vsel %vm347, %v5272, 0.0
  %v5320 = vsel %vm347, %v5276, 0.0
  %v5321 = vsel %vm347, %v5280, 0.0
  %v5322 = vsel %vm347, %v5284, 0.0
  %v5323 = vsel %vm347, %v5288, 0.0
  %v5324 = vsel %vm347, %v5292, 0.0
  %5325 = vrot.lane.b32.xlu0 %v4772, 125
  %v5326 = vpop.permute.xlu0 %5325
  %5327 = vrot.lane.b32.xlu0 %v4773, 125
  %v5328 = vpop.permute.xlu0 %5327
  %5329 = vrot.lane.b32.xlu0 %v4774, 125
  %v5330 = vpop.permute.xlu0 %5329
  %5331 = vrot.lane.b32.xlu0 %v4775, 125
  %v5332 = vpop.permute.xlu0 %5331
  %5333 = vrot.lane.b32.xlu0 %v4776, 125
  %v5334 = vpop.permute.xlu0 %5333
  %5335 = vrot.lane.b32.xlu0 %v4777, 125
  %v5336 = vpop.permute.xlu0 %5335
  %5337 = vrot.lane.b32.xlu0 %v4778, 125
  %v5338 = vpop.permute.xlu0 %5337
  %5339 = vrot.lane.b32.xlu0 %v4779, 125
  %v5340 = vpop.permute.xlu0 %5339
  %5341 = vrot.lane.b32.xlu0 %v4780, 125
  %v5342 = vpop.permute.xlu0 %5341
  %5343 = vrot.lane.b32.xlu0 %v4781, 125
  %v5344 = vpop.permute.xlu0 %5343
  %5345 = vrot.lane.b32.xlu0 %v4782, 125
  %v5346 = vpop.permute.xlu0 %5345
  %5347 = vrot.lane.b32.xlu0 %v4783, 125
  %v5348 = vpop.permute.xlu0 %5347
  %5349 = vrot.lane.b32.xlu0 %v4784, 125
  %v5350 = vpop.permute.xlu0 %5349
  %5351 = vrot.lane.b32.xlu0 %v4785, 125
  %v5352 = vpop.permute.xlu0 %5351
  %5353 = vrot.lane.b32.xlu0 %v4786, 125
  %v5354 = vpop.permute.xlu0 %5353
  %5355 = vrot.lane.b32.xlu0 %v4787, 125
  %v5356 = vpop.permute.xlu0 %5355
  %v5357 = vsel %vm1360, %v5326, %v5328
  %v5358 = vsel %vm1360, %v5330, %v5332
  %v5359 = vsel %vm1360, %v5334, %v5336
  %v5360 = vsel %vm1360, %v5338, %v5340
  %v5361 = vsel %vm1360, %v5342, %v5344
  %v5362 = vsel %vm1360, %v5346, %v5348
  %v5363 = vsel %vm1360, %v5350, %v5352
  %v5364 = vsel %vm1360, %v5354, %v5356
  %v5381 = vsel %vm1360, %v5328, 0.0
  %v5382 = vsel %vm1360, %v5332, 0.0
  %v5383 = vsel %vm1360, %v5336, 0.0
  %v5384 = vsel %vm1360, %v5340, 0.0
  %v5385 = vsel %vm1360, %v5344, 0.0
  %v5386 = vsel %vm1360, %v5348, 0.0
  %v5387 = vsel %vm1360, %v5352, 0.0
  %v5388 = vsel %vm1360, %v5356, 0.0
  %v5389 = vpack.c.bf16 %v5062, %v5061
  %v5390 = vpack.c.bf16 %v5038, %v5037
  %v5391 = vpack.c.bf16 %v5064, %v5063
  %v5392 = vpack.c.bf16 %v5040, %v5039
  %v5393 = vpack.c.bf16 %v5066, %v5065
  %v5394 = vpack.c.bf16 %v5042, %v5041
  %v5395 = vpack.c.bf16 %v5068, %v5067
  %v5396 = vpack.c.bf16 %v5044, %v5043
  %v5397 = vpack.c.bf16 %v5126, %v5125
  %v5398 = vpack.c.bf16 %v5102, %v5101
  %v5399 = vpack.c.bf16 %v5128, %v5127
  %v5400 = vpack.c.bf16 %v5104, %v5103
  %v5401 = vpack.c.bf16 %v5130, %v5129
  %v5402 = vpack.c.bf16 %v5106, %v5105
  %v5403 = vpack.c.bf16 %v5132, %v5131
  %v5404 = vpack.c.bf16 %v5108, %v5107
  %v5405 = vpack.c.bf16 %v5190, %v5189
  %v5406 = vpack.c.bf16 %v5166, %v5165
  %v5407 = vpack.c.bf16 %v5192, %v5191
  %v5408 = vpack.c.bf16 %v5168, %v5167
  %v5409 = vpack.c.bf16 %v5194, %v5193
  %v5410 = vpack.c.bf16 %v5170, %v5169
  %v5411 = vpack.c.bf16 %v5196, %v5195
  %v5412 = vpack.c.bf16 %v5172, %v5171
  %v5413 = vpack.c.bf16 %v5230, %v5229
  %v5414 = vpack.c.bf16 %v5254, %v5253
  %v5415 = vpack.c.bf16 %v5232, %v5231
  %v5416 = vpack.c.bf16 %v5256, %v5255
  %v5417 = vpack.c.bf16 %v5234, %v5233
  %v5418 = vpack.c.bf16 %v5258, %v5257
  %v5419 = vpack.c.bf16 %v5236, %v5235
  %v5420 = vpack.c.bf16 %v5260, %v5259
  %v5421 = vpack.c.bf16 %v5294, %v5293
  %v5422 = vpack.c.bf16 %v5318, %v5317
  %v5423 = vpack.c.bf16 %v5296, %v5295
  %v5424 = vpack.c.bf16 %v5320, %v5319
  %v5425 = vpack.c.bf16 %v5298, %v5297
  %v5426 = vpack.c.bf16 %v5322, %v5321
  %v5427 = vpack.c.bf16 %v5300, %v5299
  %v5428 = vpack.c.bf16 %v5324, %v5323
  %v5429 = vpack.c.bf16 %v5358, %v5357
  %v5430 = vpack.c.bf16 %v5382, %v5381
  %v5431 = vpack.c.bf16 %v5360, %v5359
  %v5432 = vpack.c.bf16 %v5384, %v5383
  %v5433 = vpack.c.bf16 %v5362, %v5361
  %v5434 = vpack.c.bf16 %v5386, %v5385
  %v5435 = vpack.c.bf16 %v5364, %v5363
  %v5436 = vpack.c.bf16 %v5388, %v5387
  %v5437 = vld [vmem:[%s49] sm:$0xff]
  %v5438 = vld [vmem:[%s49 + $0x8] sm:$0xff]
  %v5439 = vld [vmem:[%s49 + $0x10] sm:$0xff]
  %v5440 = vld [vmem:[%s49 + $0x18] sm:$0xff]
  %v5441 = vld [vmem:[%s49 + $0x20] sm:$0xff]
  %v5442 = vld [vmem:[%s49 + $0x28] sm:$0xff]
  %v5443 = vld [vmem:[%s49 + $0x30] sm:$0xff]
  %v5444 = vld [vmem:[%s49 + $0x38] sm:$0xff]
  %5446 = vset.pattern.permute.xlu0 0
  %5447 = vperm.xlu0 %5446, %v5437
  %v5448 = vpop.permute.xlu0 %5447
  %5451 = vset.pattern.permute.xlu0 0
  %5452 = vperm.xlu0 %5451, %v5438
  %v5453 = vpop.permute.xlu0 %5452
  %5456 = vset.pattern.permute.xlu0 0
  %5457 = vperm.xlu0 %5456, %v5439
  %v5458 = vpop.permute.xlu0 %5457
  %5461 = vset.pattern.permute.xlu0 0
  %5462 = vperm.xlu0 %5461, %v5440
  %v5463 = vpop.permute.xlu0 %5462
  %5466 = vset.pattern.permute.xlu0 0
  %5467 = vperm.xlu0 %5466, %v5441
  %v5468 = vpop.permute.xlu0 %5467
  %5471 = vset.pattern.permute.xlu0 0
  %5472 = vperm.xlu0 %5471, %v5442
  %v5473 = vpop.permute.xlu0 %5472
  %5476 = vset.pattern.permute.xlu0 0
  %5477 = vperm.xlu0 %5476, %v5443
  %v5478 = vpop.permute.xlu0 %5477
  %5481 = vset.pattern.permute.xlu0 0
  %5482 = vperm.xlu0 %5481, %v5444
  %v5483 = vpop.permute.xlu0 %5482
  %v5501 = vunpack.c.l.b16 %v4973
  %v5502 = vunpack.c.h.b16 %v4973
  %v5503 = vunpack.c.l.b16 %v4974
  %v5504 = vunpack.c.h.b16 %v4974
  %v5505 = vunpack.c.l.b16 %v4975
  %v5506 = vunpack.c.h.b16 %v4975
  %v5507 = vunpack.c.l.b16 %v4976
  %v5508 = vunpack.c.h.b16 %v4976
  %v5509 = vunpack.c.l.b16 %v4977
  %v5510 = vunpack.c.h.b16 %v4977
  %v5511 = vunpack.c.l.b16 %v4978
  %v5512 = vunpack.c.h.b16 %v4978
  %v5513 = vunpack.c.l.b16 %v4979
  %v5514 = vunpack.c.h.b16 %v4979
  %v5515 = vunpack.c.l.b16 %v4980
  %v5516 = vunpack.c.h.b16 %v4980
  %v5517 = vunpack.c.l.b16 %v4981
  %v5518 = vunpack.c.h.b16 %v4981
  %v5519 = vunpack.c.l.b16 %v4982
  %v5520 = vunpack.c.h.b16 %v4982
  %v5521 = vunpack.c.l.b16 %v4983
  %v5522 = vunpack.c.h.b16 %v4983
  %v5523 = vunpack.c.l.b16 %v4984
  %v5524 = vunpack.c.h.b16 %v4984
  %v5525 = vunpack.c.l.b16 %v4985
  %v5526 = vunpack.c.h.b16 %v4985
  %v5527 = vunpack.c.l.b16 %v4986
  %v5528 = vunpack.c.h.b16 %v4986
  %v5529 = vunpack.c.l.b16 %v4987
  %v5530 = vunpack.c.h.b16 %v4987
  %v5531 = vunpack.c.l.b16 %v4988
  %v5532 = vunpack.c.h.b16 %v4988
  %v5533 = vpack.c.b16 %v5505, %v5501
  %v5534 = vpack.c.b16 %v5506, %v5502
  %v5535 = vpack.c.b16 %v5507, %v5503
  %v5536 = vpack.c.b16 %v5508, %v5504
  %v5537 = vpack.c.b16 %v5513, %v5509
  %v5538 = vpack.c.b16 %v5514, %v5510
  %v5539 = vpack.c.b16 %v5515, %v5511
  %v5540 = vpack.c.b16 %v5516, %v5512
  %v5541 = vpack.c.b16 %v5521, %v5517
  %v5542 = vpack.c.b16 %v5522, %v5518
  %v5543 = vpack.c.b16 %v5523, %v5519
  %v5544 = vpack.c.b16 %v5524, %v5520
  %v5545 = vpack.c.b16 %v5529, %v5525
  %v5546 = vpack.c.b16 %v5530, %v5526
  %v5547 = vpack.c.b16 %v5531, %v5527
  %v5548 = vpack.c.b16 %v5532, %v5528
  %v5562 = vsel %vm873, %v5536, 0
  %v5565 = vsel %vm873, %v5540, 0
  %v5568 = vsel %vm873, %v5544, 0
  %v5571 = vsel %vm873, %v5548, 0
  %5573 = vmatprep.subr.bf16.mxu0 %v5390
  %5574 = vmatpush1.bf16.msra.mxu0 %v5389
  %5575 = vmatprep.subr.bf16.mxu0 %v5392
  %5576 = vmatpush1.bf16.msra.mxu0 %v5391
  %5577 = vmatprep.subr.bf16.mxu0 %v5394
  %5578 = vmatpush1.bf16.msra.mxu0 %v5393
  %5579 = vmatprep.subr.bf16.mxu0 %v5396
  %5580 = vmatpush1.bf16.msra.mxu0 %v5395
  %5581 = vmatprep.subr.bf16.mxu0 %v5398
  %5582 = vmatpush1.bf16.msra.mxu0 %v5397
  %5583 = vmatprep.subr.bf16.mxu0 %v5400
  %5584 = vmatpush1.bf16.msra.mxu0 %v5399
  %5585 = vmatprep.subr.bf16.mxu0 %v5402
  %5586 = vmatpush1.bf16.msra.mxu0 %v5401
  %5587 = vmatprep.subr.bf16.mxu0 %v5404
  %5588 = vmatpush1.bf16.msra.mxu0 %v5403
  %5589 = vmatprep.subr.bf16.mxu0 %v5406
  %5590 = vmatpush1.bf16.msra.mxu0 %v5405
  %5591 = vmatprep.subr.bf16.mxu0 %v5408
  %5592 = vmatpush1.bf16.msra.mxu0 %v5407
  %5593 = vmatprep.subr.bf16.mxu0 %v5410
  %5594 = vmatpush1.bf16.msra.mxu0 %v5409
  %5595 = vmatprep.subr.bf16.mxu0 %v5412
  %5596 = vmatpush1.bf16.msra.mxu0 %v5411
  %5597 = vmatprep.subr.bf16.mxu0 %v4797
  %5598 = vmatpush1.bf16.msra.mxu0 %v4796
  %5599 = vmatprep.subr.bf16.mxu0 %v4799
  %5600 = vmatpush1.bf16.msra.mxu0 %v4798
  %5601 = vmatprep.subr.bf16.mxu0 %v4801
  %5602 = vmatpush1.bf16.msra.mxu0 %v4800
  %5603 = vmatprep.subr.bf16.mxu0 %v4803
  %5604 = vmatpush1.bf16.msra.mxu0 %v4802
  %5605 = vmatprep.mubr.bf16.mxu0 %v5534
  %5606 = vmatmul.mubr.bf16.gmra.mrb[0].mxu0 %v5533
  %v5607 = vpop.f32.mrb[0].mxu0
  %v5608 = vadd.f32 %v5448, %v5607
  %v5609 = vpop.f32.mrb[0].mxu0
  %v5610 = vadd.f32 %v5448, %v5609
  %v5611 = vpop.f32.mrb[0].mxu0
  %v5612 = vadd.f32 %v5453, %v5611
  %v5613 = vpop.f32.mrb[0].mxu0
  %v5614 = vadd.f32 %v5453, %v5613
  %5615 = vmatprep.mubr.bf16.mxu0 %v5538
  %5616 = vmatmul.mubr.bf16.gmra.mrb[0].mxu0 %v5537
  %v5617 = vpop.f32.mrb[0].mxu0
  %v5618 = vadd.f32 %v5458, %v5617
  %v5619 = vpop.f32.mrb[0].mxu0
  %v5620 = vadd.f32 %v5458, %v5619
  %v5621 = vpop.f32.mrb[0].mxu0
  %v5622 = vadd.f32 %v5463, %v5621
  %v5623 = vpop.f32.mrb[0].mxu0
  %v5624 = vadd.f32 %v5463, %v5623
  %5625 = vmatprep.mubr.bf16.mxu0 %v5542
  %5626 = vmatmul.mubr.bf16.gmra.mrb[0].mxu0 %v5541
  %v5627 = vpop.f32.mrb[0].mxu0
  %v5628 = vadd.f32 %v5468, %v5627
  %v5629 = vpop.f32.mrb[0].mxu0
  %v5630 = vadd.f32 %v5468, %v5629
  %v5631 = vpop.f32.mrb[0].mxu0
  %v5632 = vadd.f32 %v5473, %v5631
  %v5633 = vpop.f32.mrb[0].mxu0
  %v5634 = vadd.f32 %v5473, %v5633
  %5635 = vmatprep.mubr.bf16.mxu0 %v5546
  %5636 = vmatmul.mubr.bf16.gmra.mrb[0].mxu0 %v5545
  %v5637 = vpop.f32.mrb[0].mxu0
  %v5638 = vadd.f32 %v5478, %v5637
  %v5639 = vpop.f32.mrb[0].mxu0
  %v5640 = vadd.f32 %v5478, %v5639
  %v5641 = vpop.f32.mrb[0].mxu0
  %v5642 = vadd.f32 %v5483, %v5641
  %v5643 = vpop.f32.mrb[0].mxu0
  %v5644 = vadd.f32 %v5483, %v5643
  %5645 = vdwg.mxu0
  %5646 = vmatprep.subr.bf16.mxu0 %v5414
  %5647 = vmatpush1.bf16.msra.mxu0 %v5413
  %5648 = vmatprep.subr.bf16.mxu0 %v5416
  %5649 = vmatpush1.bf16.msra.mxu0 %v5415
  %5650 = vmatprep.subr.bf16.mxu0 %v5418
  %5651 = vmatpush1.bf16.msra.mxu0 %v5417
  %5652 = vmatprep.subr.bf16.mxu0 %v5420
  %5653 = vmatpush1.bf16.msra.mxu0 %v5419
  %5654 = vmatprep.subr.bf16.mxu0 %v5422
  %5655 = vmatpush1.bf16.msra.mxu0 %v5421
  %5656 = vmatprep.subr.bf16.mxu0 %v5424
  %5657 = vmatpush1.bf16.msra.mxu0 %v5423
  %5658 = vmatprep.subr.bf16.mxu0 %v5426
  %5659 = vmatpush1.bf16.msra.mxu0 %v5425
  %5660 = vmatprep.subr.bf16.mxu0 %v5428
  %5661 = vmatpush1.bf16.msra.mxu0 %v5427
  %5662 = vmatprep.subr.bf16.mxu0 %v5430
  %5663 = vmatpush1.bf16.msra.mxu0 %v5429
  %5664 = vmatprep.subr.bf16.mxu0 %v5432
  %5665 = vmatpush1.bf16.msra.mxu0 %v5431
  %5666 = vmatprep.subr.bf16.mxu0 %v5434
  %5667 = vmatpush1.bf16.msra.mxu0 %v5433
  %5668 = vmatprep.subr.bf16.mxu0 %v5436
  %5669 = vmatpush1.bf16.msra.mxu0 %v5435
  %5670 = vmatprep.subr.bf16.mxu0 0
  %5671 = vmatpush1.bf16.msra.mxu0 0
  %5672 = vmatprep.subr.bf16.mxu0 0
  %5673 = vmatpush1.bf16.msra.mxu0 0
  %5674 = vmatprep.subr.bf16.mxu0 0
  %5675 = vmatpush1.bf16.msra.mxu0 0
  %5676 = vmatprep.subr.bf16.mxu0 0
  %5677 = vmatpush1.bf16.msra.mxu0 0
  %5678 = vmatprep.mubr.bf16.mxu0 %v5562
  %5679 = vmatmul.mubr.bf16.gmra.mrb[0].mxu0 %v5535
  %v5680 = vpop.f32.mrb[0].mxu0
  %v5681 = vadd.f32 %v5608, %v5680
  %v5682 = vpop.f32.mrb[0].mxu0
  %v5683 = vadd.f32 %v5610, %v5682
  %v5684 = vpop.f32.mrb[0].mxu0
  %v5685 = vadd.f32 %v5612, %v5684
  %v5686 = vpop.f32.mrb[0].mxu0
  %v5687 = vadd.f32 %v5614, %v5686
  %5688 = vmatprep.mubr.bf16.mxu0 %v5565
  %5689 = vmatmul.mubr.bf16.gmra.mrb[0].mxu0 %v5539
  %v5690 = vpop.f32.mrb[0].mxu0
  %v5691 = vadd.f32 %v5618, %v5690
  %v5692 = vpop.f32.mrb[0].mxu0
  %v5693 = vadd.f32 %v5620, %v5692
  %v5694 = vpop.f32.mrb[0].mxu0
  %v5695 = vadd.f32 %v5622, %v5694
  %v5696 = vpop.f32.mrb[0].mxu0
  %v5697 = vadd.f32 %v5624, %v5696
  %5698 = vmatprep.mubr.bf16.mxu0 %v5568
  %5699 = vmatmul.mubr.bf16.gmra.mrb[0].mxu0 %v5543
  %v5700 = vpop.f32.mrb[0].mxu0
  %v5701 = vadd.f32 %v5628, %v5700
  %v5702 = vpop.f32.mrb[0].mxu0
  %v5703 = vadd.f32 %v5630, %v5702
  %v5704 = vpop.f32.mrb[0].mxu0
  %v5705 = vadd.f32 %v5632, %v5704
  %v5706 = vpop.f32.mrb[0].mxu0
  %v5707 = vadd.f32 %v5634, %v5706
  %5708 = vmatprep.mubr.bf16.mxu0 %v5571
  %5709 = vmatmul.mubr.bf16.gmra.mrb[0].mxu0 %v5547
  %v5710 = vpop.f32.mrb[0].mxu0
  %v5711 = vadd.f32 %v5638, %v5710
  %v5712 = vpop.f32.mrb[0].mxu0
  %v5713 = vadd.f32 %v5640, %v5712
  %v5714 = vpop.f32.mrb[0].mxu0
  %v5715 = vadd.f32 %v5642, %v5714
  %v5716 = vpop.f32.mrb[0].mxu0
  %v5717 = vadd.f32 %v5644, %v5716
  %5718 = vdwg.mxu0
  %v5719 = vmul.f32 %v5681, %v424
  %v5720 = vmul.f32 %v5683, %v428
  %v5721 = vmul.f32 %v5685, %v424
  %v5722 = vmul.f32 %v5687, %v428
  %v5723 = vmul.f32 %v5691, %v424
  %v5724 = vmul.f32 %v5693, %v428
  %v5725 = vmul.f32 %v5695, %v424
  %v5726 = vmul.f32 %v5697, %v428
  %v5727 = vmul.f32 %v5701, %v424
  %v5728 = vmul.f32 %v5703, %v428
  %v5729 = vmul.f32 %v5705, %v424
  %v5730 = vmul.f32 %v5707, %v428
  %v5731 = vmul.f32 %v5711, %v424
  %v5732 = vmul.f32 %v5713, %v428
  %v5733 = vmul.f32 %v5715, %v424
  %v5734 = vmul.f32 %v5717, %v428
  %v5735 = vmax.f32 %v5719, 0.0
  %v5736 = vmax.f32 %v5720, 0.0
  %v5737 = vmax.f32 %v5721, 0.0
  %v5738 = vmax.f32 %v5722, 0.0
  %v5739 = vmax.f32 %v5723, 0.0
  %v5740 = vmax.f32 %v5724, 0.0
  %v5741 = vmax.f32 %v5725, 0.0
  %v5742 = vmax.f32 %v5726, 0.0
  %v5743 = vmax.f32 %v5727, 0.0
  %v5744 = vmax.f32 %v5728, 0.0
  %v5745 = vmax.f32 %v5729, 0.0
  %v5746 = vmax.f32 %v5730, 0.0
  %v5747 = vmax.f32 %v5731, 0.0
  %v5748 = vmax.f32 %v5732, 0.0
  %v5749 = vmax.f32 %v5733, 0.0
  %v5750 = vmax.f32 %v5734, 0.0
  %v5751 = vld [vmem:[%s51] sm:$0xff]
  %v5752 = vld [vmem:[%s51 + $0x8] sm:$0xf]
  %v5753 = vld [vmem:[%s51 + $0xc] sm:$0xff]
  %v5754 = vld [vmem:[%s51 + $0x14] sm:$0xf]
  %v5755 = vld [vmem:[%s51 + $0x18] sm:$0xff]
  %v5756 = vld [vmem:[%s51 + $0x20] sm:$0xf]
  %v5757 = vld [vmem:[%s51 + $0x24] sm:$0xff]
  %v5758 = vld [vmem:[%s51 + $0x2c] sm:$0xf]
  %v5759 = vld [vmem:[%s51 + $0x30] sm:$0xff]
  %v5760 = vld [vmem:[%s51 + $0x38] sm:$0xf]
  %v5761 = vld [vmem:[%s51 + $0x3c] sm:$0xff]
  %v5762 = vld [vmem:[%s51 + $0x44] sm:$0xf]
  %v5763 = vld [vmem:[%s51 + $0x48] sm:$0xff]
  %v5764 = vld [vmem:[%s51 + $0x50] sm:$0xf]
  %v5765 = vld [vmem:[%s51 + $0x54] sm:$0xff]
  %v5766 = vld [vmem:[%s51 + $0x5c] sm:$0xf]
  %5783 = vrot.lane.b32.xlu0 %v5735, 2
  %v5784 = vpop.permute.xlu0 %5783
  %5785 = vrot.lane.b32.xlu0 %v5736, 2
  %v5786 = vpop.permute.xlu0 %5785
  %5787 = vrot.lane.b32.xlu0 %v5737, 2
  %v5788 = vpop.permute.xlu0 %5787
  %5789 = vrot.lane.b32.xlu0 %v5738, 2
  %v5790 = vpop.permute.xlu0 %5789
  %5791 = vrot.lane.b32.xlu0 %v5739, 2
  %v5792 = vpop.permute.xlu0 %5791
  %5793 = vrot.lane.b32.xlu0 %v5740, 2
  %v5794 = vpop.permute.xlu0 %5793
  %5795 = vrot.lane.b32.xlu0 %v5741, 2
  %v5796 = vpop.permute.xlu0 %5795
  %5797 = vrot.lane.b32.xlu0 %v5742, 2
  %v5798 = vpop.permute.xlu0 %5797
  %5799 = vrot.lane.b32.xlu0 %v5743, 2
  %v5800 = vpop.permute.xlu0 %5799
  %5801 = vrot.lane.b32.xlu0 %v5744, 2
  %v5802 = vpop.permute.xlu0 %5801
  %5803 = vrot.lane.b32.xlu0 %v5745, 2
  %v5804 = vpop.permute.xlu0 %5803
  %5805 = vrot.lane.b32.xlu0 %v5746, 2
  %v5806 = vpop.permute.xlu0 %5805
  %5807 = vrot.lane.b32.xlu0 %v5747, 2
  %v5808 = vpop.permute.xlu0 %5807
  %5809 = vrot.lane.b32.xlu0 %v5748, 2
  %v5810 = vpop.permute.xlu0 %5809
  %5811 = vrot.lane.b32.xlu0 %v5749, 2
  %v5812 = vpop.permute.xlu0 %5811
  %5813 = vrot.lane.b32.xlu0 %v5750, 2
  %v5814 = vpop.permute.xlu0 %5813
  %v5815 = vsel %vm170, %v5784, %v5786
  %v5816 = vsel %vm170, %v5788, %v5790
  %v5817 = vsel %vm170, %v5792, %v5794
  %v5818 = vsel %vm170, %v5796, %v5798
  %v5819 = vsel %vm170, %v5800, %v5802
  %v5820 = vsel %vm170, %v5804, %v5806
  %v5821 = vsel %vm170, %v5808, %v5810
  %v5822 = vsel %vm170, %v5812, %v5814
  %v5839 = vsel %vm170, 0.0, %v5784
  %v5840 = vsel %vm170, 0.0, %v5788
  %v5841 = vsel %vm170, 0.0, %v5792
  %v5842 = vsel %vm170, 0.0, %v5796
  %v5843 = vsel %vm170, 0.0, %v5800
  %v5844 = vsel %vm170, 0.0, %v5804
  %v5845 = vsel %vm170, 0.0, %v5808
  %v5846 = vsel %vm170, 0.0, %v5812
  %5847 = vrot.lane.b32.xlu0 %v5735, 1
  %v5848 = vpop.permute.xlu0 %5847
  %5849 = vrot.lane.b32.xlu0 %v5736, 1
  %v5850 = vpop.permute.xlu0 %5849
  %5851 = vrot.lane.b32.xlu0 %v5737, 1
  %v5852 = vpop.permute.xlu0 %5851
  %5853 = vrot.lane.b32.xlu0 %v5738, 1
  %v5854 = vpop.permute.xlu0 %5853
  %5855 = vrot.lane.b32.xlu0 %v5739, 1
  %v5856 = vpop.permute.xlu0 %5855
  %5857 = vrot.lane.b32.xlu0 %v5740, 1
  %v5858 = vpop.permute.xlu0 %5857
  %5859 = vrot.lane.b32.xlu0 %v5741, 1
  %v5860 = vpop.permute.xlu0 %5859
  %5861 = vrot.lane.b32.xlu0 %v5742, 1
  %v5862 = vpop.permute.xlu0 %5861
  %5863 = vrot.lane.b32.xlu0 %v5743, 1
  %v5864 = vpop.permute.xlu0 %5863
  %5865 = vrot.lane.b32.xlu0 %v5744, 1
  %v5866 = vpop.permute.xlu0 %5865
  %5867 = vrot.lane.b32.xlu0 %v5745, 1
  %v5868 = vpop.permute.xlu0 %5867
  %5869 = vrot.lane.b32.xlu0 %v5746, 1
  %v5870 = vpop.permute.xlu0 %5869
  %5871 = vrot.lane.b32.xlu0 %v5747, 1
  %v5872 = vpop.permute.xlu0 %5871
  %5873 = vrot.lane.b32.xlu0 %v5748, 1
  %v5874 = vpop.permute.xlu0 %5873
  %5875 = vrot.lane.b32.xlu0 %v5749, 1
  %v5876 = vpop.permute.xlu0 %5875
  %5877 = vrot.lane.b32.xlu0 %v5750, 1
  %v5878 = vpop.permute.xlu0 %5877
  %v5879 = vsel %vm215, %v5848, %v5850
  %v5880 = vsel %vm215, %v5852, %v5854
  %v5881 = vsel %vm215, %v5856, %v5858
  %v5882 = vsel %vm215, %v5860, %v5862
  %v5883 = vsel %vm215, %v5864, %v5866
  %v5884 = vsel %vm215, %v5868, %v5870
  %v5885 = vsel %vm215, %v5872, %v5874
  %v5886 = vsel %vm215, %v5876, %v5878
  %v5903 = vsel %vm215, 0.0, %v5848
  %v5904 = vsel %vm215, 0.0, %v5852
  %v5905 = vsel %vm215, 0.0, %v5856
  %v5906 = vsel %vm215, 0.0, %v5860
  %v5907 = vsel %vm215, 0.0, %v5864
  %v5908 = vsel %vm215, 0.0, %v5868
  %v5909 = vsel %vm215, 0.0, %v5872
  %v5910 = vsel %vm215, 0.0, %v5876
  %5911 = vrot.lane.b32.xlu0 %v5735, 127
  %v5912 = vpop.permute.xlu0 %5911
  %5913 = vrot.lane.b32.xlu0 %v5736, 127
  %v5914 = vpop.permute.xlu0 %5913
  %5915 = vrot.lane.b32.xlu0 %v5737, 127
  %v5916 = vpop.permute.xlu0 %5915
  %5917 = vrot.lane.b32.xlu0 %v5738, 127
  %v5918 = vpop.permute.xlu0 %5917
  %5919 = vrot.lane.b32.xlu0 %v5739, 127
  %v5920 = vpop.permute.xlu0 %5919
  %5921 = vrot.lane.b32.xlu0 %v5740, 127
  %v5922 = vpop.permute.xlu0 %5921
  %5923 = vrot.lane.b32.xlu0 %v5741, 127
  %v5924 = vpop.permute.xlu0 %5923
  %5925 = vrot.lane.b32.xlu0 %v5742, 127
  %v5926 = vpop.permute.xlu0 %5925
  %5927 = vrot.lane.b32.xlu0 %v5743, 127
  %v5928 = vpop.permute.xlu0 %5927
  %5929 = vrot.lane.b32.xlu0 %v5744, 127
  %v5930 = vpop.permute.xlu0 %5929
  %5931 = vrot.lane.b32.xlu0 %v5745, 127
  %v5932 = vpop.permute.xlu0 %5931
  %5933 = vrot.lane.b32.xlu0 %v5746, 127
  %v5934 = vpop.permute.xlu0 %5933
  %5935 = vrot.lane.b32.xlu0 %v5747, 127
  %v5936 = vpop.permute.xlu0 %5935
  %5937 = vrot.lane.b32.xlu0 %v5748, 127
  %v5938 = vpop.permute.xlu0 %5937
  %5939 = vrot.lane.b32.xlu0 %v5749, 127
  %v5940 = vpop.permute.xlu0 %5939
  %5941 = vrot.lane.b32.xlu0 %v5750, 127
  %v5942 = vpop.permute.xlu0 %5941
  %v5943 = vsel %vm298, %v5912, %v5914
  %v5944 = vsel %vm298, %v5916, %v5918
  %v5945 = vsel %vm298, %v5920, %v5922
  %v5946 = vsel %vm298, %v5924, %v5926
  %v5947 = vsel %vm298, %v5928, %v5930
  %v5948 = vsel %vm298, %v5932, %v5934
  %v5949 = vsel %vm298, %v5936, %v5938
  %v5950 = vsel %vm298, %v5940, %v5942
  %v5967 = vsel %vm298, %v5914, 0.0
  %v5968 = vsel %vm298, %v5918, 0.0
  %v5969 = vsel %vm298, %v5922, 0.0
  %v5970 = vsel %vm298, %v5926, 0.0
  %v5971 = vsel %vm298, %v5930, 0.0
  %v5972 = vsel %vm298, %v5934, 0.0
  %v5973 = vsel %vm298, %v5938, 0.0
  %v5974 = vsel %vm298, %v5942, 0.0
  %5975 = vrot.lane.b32.xlu0 %v5735, 126
  %v5976 = vpop.permute.xlu0 %5975
  %5977 = vrot.lane.b32.xlu0 %v5736, 126
  %v5978 = vpop.permute.xlu0 %5977
  %5979 = vrot.lane.b32.xlu0 %v5737, 126
  %v5980 = vpop.permute.xlu0 %5979
  %5981 = vrot.lane.b32.xlu0 %v5738, 126
  %v5982 = vpop.permute.xlu0 %5981
  %5983 = vrot.lane.b32.xlu0 %v5739, 126
  %v5984 = vpop.permute.xlu0 %5983
  %5985 = vrot.lane.b32.xlu0 %v5740, 126
  %v5986 = vpop.permute.xlu0 %5985
  %5987 = vrot.lane.b32.xlu0 %v5741, 126
  %v5988 = vpop.permute.xlu0 %5987
  %5989 = vrot.lane.b32.xlu0 %v5742, 126
  %v5990 = vpop.permute.xlu0 %5989
  %5991 = vrot.lane.b32.xlu0 %v5743, 126
  %v5992 = vpop.permute.xlu0 %5991
  %5993 = vrot.lane.b32.xlu0 %v5744, 126
  %v5994 = vpop.permute.xlu0 %5993
  %5995 = vrot.lane.b32.xlu0 %v5745, 126
  %v5996 = vpop.permute.xlu0 %5995
  %5997 = vrot.lane.b32.xlu0 %v5746, 126
  %v5998 = vpop.permute.xlu0 %5997
  %5999 = vrot.lane.b32.xlu0 %v5747, 126
  %v6000 = vpop.permute.xlu0 %5999
  %6001 = vrot.lane.b32.xlu0 %v5748, 126
  %v6002 = vpop.permute.xlu0 %6001
  %6003 = vrot.lane.b32.xlu0 %v5749, 126
  %v6004 = vpop.permute.xlu0 %6003
  %6005 = vrot.lane.b32.xlu0 %v5750, 126
  %v6006 = vpop.permute.xlu0 %6005
  %v6007 = vsel %vm347, %v5976, %v5978
  %v6008 = vsel %vm347, %v5980, %v5982
  %v6009 = vsel %vm347, %v5984, %v5986
  %v6010 = vsel %vm347, %v5988, %v5990
  %v6011 = vsel %vm347, %v5992, %v5994
  %v6012 = vsel %vm347, %v5996, %v5998
  %v6013 = vsel %vm347, %v6000, %v6002
  %v6014 = vsel %vm347, %v6004, %v6006
  %v6031 = vsel %vm347, %v5978, 0.0
  %v6032 = vsel %vm347, %v5982, 0.0
  %v6033 = vsel %vm347, %v5986, 0.0
  %v6034 = vsel %vm347, %v5990, 0.0
  %v6035 = vsel %vm347, %v5994, 0.0
  %v6036 = vsel %vm347, %v5998, 0.0
  %v6037 = vsel %vm347, %v6002, 0.0
  %v6038 = vsel %vm347, %v6006, 0.0
  %v6039 = vpack.c.bf16 %v5840, %v5839
  %v6040 = vpack.c.bf16 %v5816, %v5815
  %v6041 = vpack.c.bf16 %v5842, %v5841
  %v6042 = vpack.c.bf16 %v5818, %v5817
  %v6043 = vpack.c.bf16 %v5844, %v5843
  %v6044 = vpack.c.bf16 %v5820, %v5819
  %v6045 = vpack.c.bf16 %v5846, %v5845
  %v6046 = vpack.c.bf16 %v5822, %v5821
  %v6047 = vpack.c.bf16 %v5904, %v5903
  %v6048 = vpack.c.bf16 %v5880, %v5879
  %v6049 = vpack.c.bf16 %v5906, %v5905
  %v6050 = vpack.c.bf16 %v5882, %v5881
  %v6051 = vpack.c.bf16 %v5908, %v5907
  %v6052 = vpack.c.bf16 %v5884, %v5883
  %v6053 = vpack.c.bf16 %v5910, %v5909
  %v6054 = vpack.c.bf16 %v5886, %v5885
  %v6055 = vpack.c.bf16 %v5737, %v5735
  %v6056 = vpack.c.bf16 %v5738, %v5736
  %v6057 = vpack.c.bf16 %v5741, %v5739
  %v6058 = vpack.c.bf16 %v5742, %v5740
  %v6059 = vpack.c.bf16 %v5745, %v5743
  %v6060 = vpack.c.bf16 %v5746, %v5744
  %v6061 = vpack.c.bf16 %v5749, %v5747
  %v6062 = vpack.c.bf16 %v5750, %v5748
  %v6063 = vpack.c.bf16 %v5944, %v5943
  %v6064 = vpack.c.bf16 %v5968, %v5967
  %v6065 = vpack.c.bf16 %v5946, %v5945
  %v6066 = vpack.c.bf16 %v5970, %v5969
  %v6067 = vpack.c.bf16 %v5948, %v5947
  %v6068 = vpack.c.bf16 %v5972, %v5971
  %v6069 = vpack.c.bf16 %v5950, %v5949
  %v6070 = vpack.c.bf16 %v5974, %v5973
  %v6071 = vpack.c.bf16 %v6008, %v6007
  %v6072 = vpack.c.bf16 %v6032, %v6031
  %v6073 = vpack.c.bf16 %v6010, %v6009
  %v6074 = vpack.c.bf16 %v6034, %v6033
  %v6075 = vpack.c.bf16 %v6012, %v6011
  %v6076 = vpack.c.bf16 %v6036, %v6035
  %v6077 = vpack.c.bf16 %v6014, %v6013
  %v6078 = vpack.c.bf16 %v6038, %v6037
  %v6079 = vld [vmem:[%s53] sm:$0xff]
  %v6080 = vld [vmem:[%s53 + $0x8] sm:$0xff]
  %v6081 = vld [vmem:[%s53 + $0x10] sm:$0xff]
  %v6082 = vld [vmem:[%s53 + $0x18] sm:$0xff]
  %v6083 = vld [vmem:[%s53 + $0x20] sm:$0xff]
  %v6084 = vld [vmem:[%s53 + $0x28] sm:$0xff]
  %v6085 = vld [vmem:[%s53 + $0x30] sm:$0xff]
  %v6086 = vld [vmem:[%s53 + $0x38] sm:$0xff]
  %6088 = vset.pattern.permute.xlu0 0
  %6089 = vperm.xlu0 %6088, %v6079
  %v6090 = vpop.permute.xlu0 %6089
  %6093 = vset.pattern.permute.xlu0 0
  %6094 = vperm.xlu0 %6093, %v6080
  %v6095 = vpop.permute.xlu0 %6094
  %6098 = vset.pattern.permute.xlu0 0
  %6099 = vperm.xlu0 %6098, %v6081
  %v6100 = vpop.permute.xlu0 %6099
  %6103 = vset.pattern.permute.xlu0 0
  %6104 = vperm.xlu0 %6103, %v6082
  %v6105 = vpop.permute.xlu0 %6104
  %6108 = vset.pattern.permute.xlu0 0
  %6109 = vperm.xlu0 %6108, %v6083
  %v6110 = vpop.permute.xlu0 %6109
  %6113 = vset.pattern.permute.xlu0 0
  %6114 = vperm.xlu0 %6113, %v6084
  %v6115 = vpop.permute.xlu0 %6114
  %6118 = vset.pattern.permute.xlu0 0
  %6119 = vperm.xlu0 %6118, %v6085
  %v6120 = vpop.permute.xlu0 %6119
  %6123 = vset.pattern.permute.xlu0 0
  %6124 = vperm.xlu0 %6123, %v6086
  %v6125 = vpop.permute.xlu0 %6124
  %v6143 = vunpack.c.l.b16 %v5751
  %v6144 = vunpack.c.h.b16 %v5751
  %v6145 = vunpack.c.l.b16 %v5752
  %v6146 = vunpack.c.l.b16 %v5753
  %v6147 = vunpack.c.h.b16 %v5753
  %v6148 = vunpack.c.l.b16 %v5754
  %v6149 = vunpack.c.l.b16 %v5755
  %v6150 = vunpack.c.h.b16 %v5755
  %v6151 = vunpack.c.l.b16 %v5756
  %v6152 = vunpack.c.l.b16 %v5757
  %v6153 = vunpack.c.h.b16 %v5757
  %v6154 = vunpack.c.l.b16 %v5758
  %v6155 = vunpack.c.l.b16 %v5759
  %v6156 = vunpack.c.h.b16 %v5759
  %v6157 = vunpack.c.l.b16 %v5760
  %v6158 = vunpack.c.l.b16 %v5761
  %v6159 = vunpack.c.h.b16 %v5761
  %v6160 = vunpack.c.l.b16 %v5762
  %v6161 = vunpack.c.l.b16 %v5763
  %v6162 = vunpack.c.h.b16 %v5763
  %v6163 = vunpack.c.l.b16 %v5764
  %v6164 = vunpack.c.l.b16 %v5765
  %v6165 = vunpack.c.h.b16 %v5765
  %v6166 = vunpack.c.l.b16 %v5766
  %v6167 = vpack.c.b16 %v6146, %v6143
  %v6168 = vpack.c.b16 %v6147, %v6144
  %v6169 = vpack.c.b16 %v6148, %v6145
  %v6170 = vpack.c.b16 %v6152, %v6149
  %v6171 = vpack.c.b16 %v6153, %v6150
  %v6172 = vpack.c.b16 %v6154, %v6151
  %v6173 = vpack.c.b16 %v6158, %v6155
  %v6174 = vpack.c.b16 %v6159, %v6156
  %v6175 = vpack.c.b16 %v6160, %v6157
  %v6176 = vpack.c.b16 %v6164, %v6161
  %v6177 = vpack.c.b16 %v6165, %v6162
  %v6178 = vpack.c.b16 %v6166, %v6163
  %v6188 = vsel %vm873, %v6169, 0
  %v6191 = vsel %vm873, %v6172, 0
  %v6194 = vsel %vm873, %v6175, 0
  %v6197 = vsel %vm873, %v6178, 0
  %6199 = vmatprep.subr.bf16.mxu0 %v6040
  %6200 = vmatpush1.bf16.msra.mxu0 %v6039
  %6201 = vmatprep.subr.bf16.mxu0 %v6042
  %6202 = vmatpush1.bf16.msra.mxu0 %v6041
  %6203 = vmatprep.subr.bf16.mxu0 %v6044
  %6204 = vmatpush1.bf16.msra.mxu0 %v6043
  %6205 = vmatprep.subr.bf16.mxu0 %v6046
  %6206 = vmatpush1.bf16.msra.mxu0 %v6045
  %6207 = vmatprep.subr.bf16.mxu0 %v6048
  %6208 = vmatpush1.bf16.msra.mxu0 %v6047
  %6209 = vmatprep.subr.bf16.mxu0 %v6050
  %6210 = vmatpush1.bf16.msra.mxu0 %v6049
  %6211 = vmatprep.subr.bf16.mxu0 %v6052
  %6212 = vmatpush1.bf16.msra.mxu0 %v6051
  %6213 = vmatprep.subr.bf16.mxu0 %v6054
  %6214 = vmatpush1.bf16.msra.mxu0 %v6053
  %6215 = vmatprep.subr.bf16.mxu0 %v6056
  %6216 = vmatpush1.bf16.msra.mxu0 %v6055
  %6217 = vmatprep.subr.bf16.mxu0 %v6058
  %6218 = vmatpush1.bf16.msra.mxu0 %v6057
  %6219 = vmatprep.subr.bf16.mxu0 %v6060
  %6220 = vmatpush1.bf16.msra.mxu0 %v6059
  %6221 = vmatprep.subr.bf16.mxu0 %v6062
  %6222 = vmatpush1.bf16.msra.mxu0 %v6061
  %6223 = vmatprep.subr.bf16.mxu0 %v6064
  %6224 = vmatpush1.bf16.msra.mxu0 %v6063
  %6225 = vmatprep.subr.bf16.mxu0 %v6066
  %6226 = vmatpush1.bf16.msra.mxu0 %v6065
  %6227 = vmatprep.subr.bf16.mxu0 %v6068
  %6228 = vmatpush1.bf16.msra.mxu0 %v6067
  %6229 = vmatprep.subr.bf16.mxu0 %v6070
  %6230 = vmatpush1.bf16.msra.mxu0 %v6069
  %6231 = vmatprep.mubr.bf16.mxu0 %v6168
  %6232 = vmatmul.mubr.bf16.gmra.mrb[0].mxu0 %v6167
  %v6233 = vpop.f32.mrb[0].mxu0
  %v6234 = vadd.f32 %v6090, %v6233
  %v6235 = vpop.f32.mrb[0].mxu0
  %v6236 = vadd.f32 %v6090, %v6235
  %v6237 = vpop.f32.mrb[0].mxu0
  %v6238 = vadd.f32 %v6095, %v6237
  %v6239 = vpop.f32.mrb[0].mxu0
  %v6240 = vadd.f32 %v6095, %v6239
  %6241 = vmatprep.mubr.bf16.mxu0 %v6171
  %6242 = vmatmul.mubr.bf16.gmra.mrb[0].mxu0 %v6170
  %v6243 = vpop.f32.mrb[0].mxu0
  %v6244 = vadd.f32 %v6100, %v6243
  %v6245 = vpop.f32.mrb[0].mxu0
  %v6246 = vadd.f32 %v6100, %v6245
  %v6247 = vpop.f32.mrb[0].mxu0
  %v6248 = vadd.f32 %v6105, %v6247
  %v6249 = vpop.f32.mrb[0].mxu0
  %v6250 = vadd.f32 %v6105, %v6249
  %6251 = vmatprep.mubr.bf16.mxu0 %v6174
  %6252 = vmatmul.mubr.bf16.gmra.mrb[0].mxu0 %v6173
  %v6253 = vpop.f32.mrb[0].mxu0
  %v6254 = vadd.f32 %v6110, %v6253
  %v6255 = vpop.f32.mrb[0].mxu0
  %v6256 = vadd.f32 %v6110, %v6255
  %v6257 = vpop.f32.mrb[0].mxu0
  %v6258 = vadd.f32 %v6115, %v6257
  %v6259 = vpop.f32.mrb[0].mxu0
  %v6260 = vadd.f32 %v6115, %v6259
  %6261 = vmatprep.mubr.bf16.mxu0 %v6177
  %6262 = vmatmul.mubr.bf16.gmra.mrb[0].mxu0 %v6176
  %v6263 = vpop.f32.mrb[0].mxu0
  %v6264 = vadd.f32 %v6120, %v6263
  %v6265 = vpop.f32.mrb[0].mxu0
  %v6266 = vadd.f32 %v6120, %v6265
  %v6267 = vpop.f32.mrb[0].mxu0
  %v6268 = vadd.f32 %v6125, %v6267
  %v6269 = vpop.f32.mrb[0].mxu0
  %v6270 = vadd.f32 %v6125, %v6269
  %6271 = vdwg.mxu0
  %6272 = vmatprep.subr.bf16.mxu0 %v6072
  %6273 = vmatpush1.bf16.msra.mxu0 %v6071
  %6274 = vmatprep.subr.bf16.mxu0 %v6074
  %6275 = vmatpush1.bf16.msra.mxu0 %v6073
  %6276 = vmatprep.subr.bf16.mxu0 %v6076
  %6277 = vmatpush1.bf16.msra.mxu0 %v6075
  %6278 = vmatprep.subr.bf16.mxu0 %v6078
  %6279 = vmatpush1.bf16.msra.mxu0 %v6077
  %6280 = vmatprep.subr.bf16.mxu0 0
  %6281 = vmatpush1.bf16.msra.mxu0 0
  %6282 = vmatprep.subr.bf16.mxu0 0
  %6283 = vmatpush1.bf16.msra.mxu0 0
  %6284 = vmatprep.subr.bf16.mxu0 0
  %6285 = vmatpush1.bf16.msra.mxu0 0
  %6286 = vmatprep.subr.bf16.mxu0 0
  %6287 = vmatpush1.bf16.msra.mxu0 0
  %6288 = vmatprep.subr.bf16.mxu0 0
  %6289 = vmatpush1.bf16.msra.mxu0 0
  %6290 = vmatprep.subr.bf16.mxu0 0
  %6291 = vmatpush1.bf16.msra.mxu0 0
  %6292 = vmatprep.subr.bf16.mxu0 0
  %6293 = vmatpush1.bf16.msra.mxu0 0
  %6294 = vmatprep.subr.bf16.mxu0 0
  %6295 = vmatpush1.bf16.msra.mxu0 0
  %6296 = vmatprep.subr.bf16.mxu0 0
  %6297 = vmatpush1.bf16.msra.mxu0 0
  %6298 = vmatprep.subr.bf16.mxu0 0
  %6299 = vmatpush1.bf16.msra.mxu0 0
  %6300 = vmatprep.subr.bf16.mxu0 0
  %6301 = vmatpush1.bf16.msra.mxu0 0
  %6302 = vmatprep.subr.bf16.mxu0 0
  %6303 = vmatpush1.bf16.msra.mxu0 0
  %6304 = vmatprep.mubr.bf16.mxu0 0
  %6305 = vmatmul.mubr.bf16.gmra.mrb[0].mxu0 %v6188
  %v6306 = vpop.f32.mrb[0].mxu0
  %v6307 = vadd.f32 %v6234, %v6306
  %v6308 = vpop.f32.mrb[0].mxu0
  %v6309 = vadd.f32 %v6236, %v6308
  %v6310 = vpop.f32.mrb[0].mxu0
  %v6311 = vadd.f32 %v6238, %v6310
  %v6312 = vpop.f32.mrb[0].mxu0
  %v6313 = vadd.f32 %v6240, %v6312
  %6314 = vmatprep.mubr.bf16.mxu0 0
  %6315 = vmatmul.mubr.bf16.gmra.mrb[0].mxu0 %v6191
  %v6316 = vpop.f32.mrb[0].mxu0
  %v6317 = vadd.f32 %v6244, %v6316
  %v6318 = vpop.f32.mrb[0].mxu0
  %v6319 = vadd.f32 %v6246, %v6318
  %v6320 = vpop.f32.mrb[0].mxu0
  %v6321 = vadd.f32 %v6248, %v6320
  %v6322 = vpop.f32.mrb[0].mxu0
  %v6323 = vadd.f32 %v6250, %v6322
  %6324 = vmatprep.mubr.bf16.mxu0 0
  %6325 = vmatmul.mubr.bf16.gmra.mrb[0].mxu0 %v6194
  %v6326 = vpop.f32.mrb[0].mxu0
  %v6327 = vadd.f32 %v6254, %v6326
  %v6328 = vpop.f32.mrb[0].mxu0
  %v6329 = vadd.f32 %v6256, %v6328
  %v6330 = vpop.f32.mrb[0].mxu0
  %v6331 = vadd.f32 %v6258, %v6330
  %v6332 = vpop.f32.mrb[0].mxu0
  %v6333 = vadd.f32 %v6260, %v6332
  %6334 = vmatprep.mubr.bf16.mxu0 0
  %6335 = vmatmul.mubr.bf16.gmra.mrb[0].mxu0 %v6197
  %v6336 = vpop.f32.mrb[0].mxu0
  %v6337 = vadd.f32 %v6264, %v6336
  %v6338 = vpop.f32.mrb[0].mxu0
  %v6339 = vadd.f32 %v6266, %v6338
  %v6340 = vpop.f32.mrb[0].mxu0
  %v6341 = vadd.f32 %v6268, %v6340
  %v6342 = vpop.f32.mrb[0].mxu0
  %v6343 = vadd.f32 %v6270, %v6342
  %6344 = vdwg.mxu0
  %v6345 = vmul.f32 %v6307, %v424
  %v6346 = vmul.f32 %v6309, %v428
  %v6347 = vmul.f32 %v6311, %v424
  %v6348 = vmul.f32 %v6313, %v428
  %v6349 = vmul.f32 %v6317, %v424
  %v6350 = vmul.f32 %v6319, %v428
  %v6351 = vmul.f32 %v6321, %v424
  %v6352 = vmul.f32 %v6323, %v428
  %v6353 = vmul.f32 %v6327, %v424
  %v6354 = vmul.f32 %v6329, %v428
  %v6355 = vmul.f32 %v6331, %v424
  %v6356 = vmul.f32 %v6333, %v428
  %v6357 = vmul.f32 %v6337, %v424
  %v6358 = vmul.f32 %v6339, %v428
  %v6359 = vmul.f32 %v6341, %v424
  %v6360 = vmul.f32 %v6343, %v428
  %v6361 = vmax.f32 %v6345, 0.0
  %v6362 = vmax.f32 %v6346, 0.0
  %v6363 = vmax.f32 %v6347, 0.0
  %v6364 = vmax.f32 %v6348, 0.0
  %v6365 = vmax.f32 %v6349, 0.0
  %v6366 = vmax.f32 %v6350, 0.0
  %v6367 = vmax.f32 %v6351, 0.0
  %v6368 = vmax.f32 %v6352, 0.0
  %v6369 = vmax.f32 %v6353, 0.0
  %v6370 = vmax.f32 %v6354, 0.0
  %v6371 = vmax.f32 %v6355, 0.0
  %v6372 = vmax.f32 %v6356, 0.0
  %v6373 = vmax.f32 %v6357, 0.0
  %v6374 = vmax.f32 %v6358, 0.0
  %v6375 = vmax.f32 %v6359, 0.0
  %v6376 = vmax.f32 %v6360, 0.0
  %v6377 = vld [vmem:[%s55] sm:$0xff]
  %v6378 = vld [vmem:[%s55 + $0x8] sm:$0xff]
  %v6379 = vld [vmem:[%s55 + $0x10] sm:$0xff]
  %v6380 = vld [vmem:[%s55 + $0x18] sm:$0xff]
  %v6381 = vld [vmem:[%s55 + $0x20] sm:$0xff]
  %v6382 = vld [vmem:[%s55 + $0x28] sm:$0xff]
  %v6383 = vld [vmem:[%s55 + $0x30] sm:$0xff]
  %v6384 = vld [vmem:[%s55 + $0x38] sm:$0xff]
  %6401 = vrot.lane.b32.xlu0 %v6361, 1
  %v6402 = vpop.permute.xlu0 %6401
  %6403 = vrot.lane.b32.xlu0 %v6362, 1
  %v6404 = vpop.permute.xlu0 %6403
  %6405 = vrot.lane.b32.xlu0 %v6363, 1
  %v6406 = vpop.permute.xlu0 %6405
  %6407 = vrot.lane.b32.xlu0 %v6364, 1
  %v6408 = vpop.permute.xlu0 %6407
  %6409 = vrot.lane.b32.xlu0 %v6365, 1
  %v6410 = vpop.permute.xlu0 %6409
  %6411 = vrot.lane.b32.xlu0 %v6366, 1
  %v6412 = vpop.permute.xlu0 %6411
  %6413 = vrot.lane.b32.xlu0 %v6367, 1
  %v6414 = vpop.permute.xlu0 %6413
  %6415 = vrot.lane.b32.xlu0 %v6368, 1
  %v6416 = vpop.permute.xlu0 %6415
  %6417 = vrot.lane.b32.xlu0 %v6369, 1
  %v6418 = vpop.permute.xlu0 %6417
  %6419 = vrot.lane.b32.xlu0 %v6370, 1
  %v6420 = vpop.permute.xlu0 %6419
  %6421 = vrot.lane.b32.xlu0 %v6371, 1
  %v6422 = vpop.permute.xlu0 %6421
  %6423 = vrot.lane.b32.xlu0 %v6372, 1
  %v6424 = vpop.permute.xlu0 %6423
  %6425 = vrot.lane.b32.xlu0 %v6373, 1
  %v6426 = vpop.permute.xlu0 %6425
  %6427 = vrot.lane.b32.xlu0 %v6374, 1
  %v6428 = vpop.permute.xlu0 %6427
  %6429 = vrot.lane.b32.xlu0 %v6375, 1
  %v6430 = vpop.permute.xlu0 %6429
  %6431 = vrot.lane.b32.xlu0 %v6376, 1
  %v6432 = vpop.permute.xlu0 %6431
  %v6433 = vsel %vm215, %v6402, %v6404
  %v6434 = vsel %vm215, %v6406, %v6408
  %v6435 = vsel %vm215, %v6410, %v6412
  %v6436 = vsel %vm215, %v6414, %v6416
  %v6437 = vsel %vm215, %v6418, %v6420
  %v6438 = vsel %vm215, %v6422, %v6424
  %v6439 = vsel %vm215, %v6426, %v6428
  %v6440 = vsel %vm215, %v6430, %v6432
  %v6457 = vsel %vm215, 0.0, %v6402
  %v6458 = vsel %vm215, 0.0, %v6406
  %v6459 = vsel %vm215, 0.0, %v6410
  %v6460 = vsel %vm215, 0.0, %v6414
  %v6461 = vsel %vm215, 0.0, %v6418
  %v6462 = vsel %vm215, 0.0, %v6422
  %v6463 = vsel %vm215, 0.0, %v6426
  %v6464 = vsel %vm215, 0.0, %v6430
  %6465 = vrot.lane.b32.xlu0 %v6361, 127
  %v6466 = vpop.permute.xlu0 %6465
  %6467 = vrot.lane.b32.xlu0 %v6362, 127
  %v6468 = vpop.permute.xlu0 %6467
  %6469 = vrot.lane.b32.xlu0 %v6363, 127
  %v6470 = vpop.permute.xlu0 %6469
  %6471 = vrot.lane.b32.xlu0 %v6364, 127
  %v6472 = vpop.permute.xlu0 %6471
  %6473 = vrot.lane.b32.xlu0 %v6365, 127
  %v6474 = vpop.permute.xlu0 %6473
  %6475 = vrot.lane.b32.xlu0 %v6366, 127
  %v6476 = vpop.permute.xlu0 %6475
  %6477 = vrot.lane.b32.xlu0 %v6367, 127
  %v6478 = vpop.permute.xlu0 %6477
  %6479 = vrot.lane.b32.xlu0 %v6368, 127
  %v6480 = vpop.permute.xlu0 %6479
  %6481 = vrot.lane.b32.xlu0 %v6369, 127
  %v6482 = vpop.permute.xlu0 %6481
  %6483 = vrot.lane.b32.xlu0 %v6370, 127
  %v6484 = vpop.permute.xlu0 %6483
  %6485 = vrot.lane.b32.xlu0 %v6371, 127
  %v6486 = vpop.permute.xlu0 %6485
  %6487 = vrot.lane.b32.xlu0 %v6372, 127
  %v6488 = vpop.permute.xlu0 %6487
  %6489 = vrot.lane.b32.xlu0 %v6373, 127
  %v6490 = vpop.permute.xlu0 %6489
  %6491 = vrot.lane.b32.xlu0 %v6374, 127
  %v6492 = vpop.permute.xlu0 %6491
  %6493 = vrot.lane.b32.xlu0 %v6375, 127
  %v6494 = vpop.permute.xlu0 %6493
  %6495 = vrot.lane.b32.xlu0 %v6376, 127
  %v6496 = vpop.permute.xlu0 %6495
  %v6497 = vsel %vm298, %v6466, %v6468
  %v6498 = vsel %vm298, %v6470, %v6472
  %v6499 = vsel %vm298, %v6474, %v6476
  %v6500 = vsel %vm298, %v6478, %v6480
  %v6501 = vsel %vm298, %v6482, %v6484
  %v6502 = vsel %vm298, %v6486, %v6488
  %v6503 = vsel %vm298, %v6490, %v6492
  %v6504 = vsel %vm298, %v6494, %v6496
  %v6521 = vsel %vm298, %v6468, 0.0
  %v6522 = vsel %vm298, %v6472, 0.0
  %v6523 = vsel %vm298, %v6476, 0.0
  %v6524 = vsel %vm298, %v6480, 0.0
  %v6525 = vsel %vm298, %v6484, 0.0
  %v6526 = vsel %vm298, %v6488, 0.0
  %v6527 = vsel %vm298, %v6492, 0.0
  %v6528 = vsel %vm298, %v6496, 0.0
  %v6529 = vpack.c.bf16 %v6458, %v6457
  %v6530 = vpack.c.bf16 %v6434, %v6433
  %v6531 = vpack.c.bf16 %v6460, %v6459
  %v6532 = vpack.c.bf16 %v6436, %v6435
  %v6533 = vpack.c.bf16 %v6462, %v6461
  %v6534 = vpack.c.bf16 %v6438, %v6437
  %v6535 = vpack.c.bf16 %v6464, %v6463
  %v6536 = vpack.c.bf16 %v6440, %v6439
  %v6537 = vpack.c.bf16 %v6363, %v6361
  %v6538 = vpack.c.bf16 %v6364, %v6362
  %v6539 = vpack.c.bf16 %v6367, %v6365
  %v6540 = vpack.c.bf16 %v6368, %v6366
  %v6541 = vpack.c.bf16 %v6371, %v6369
  %v6542 = vpack.c.bf16 %v6372, %v6370
  %v6543 = vpack.c.bf16 %v6375, %v6373
  %v6544 = vpack.c.bf16 %v6376, %v6374
  %v6545 = vpack.c.bf16 %v6498, %v6497
  %v6546 = vpack.c.bf16 %v6522, %v6521
  %v6547 = vpack.c.bf16 %v6500, %v6499
  %v6548 = vpack.c.bf16 %v6524, %v6523
  %v6549 = vpack.c.bf16 %v6502, %v6501
  %v6550 = vpack.c.bf16 %v6526, %v6525
  %v6551 = vpack.c.bf16 %v6504, %v6503
  %v6552 = vpack.c.bf16 %v6528, %v6527
  %v6553 = vld [vmem:[%s57] sm:$0xff]
  %v6554 = vld [vmem:[%s57 + $0x8] sm:$0xff]
  %v6555 = vld [vmem:[%s57 + $0x10] sm:$0xff]
  %v6556 = vld [vmem:[%s57 + $0x18] sm:$0xff]
  %v6557 = vld [vmem:[%s57 + $0x20] sm:$0xff]
  %v6558 = vld [vmem:[%s57 + $0x28] sm:$0xff]
  %v6559 = vld [vmem:[%s57 + $0x30] sm:$0xff]
  %v6560 = vld [vmem:[%s57 + $0x38] sm:$0xff]
  %6562 = vset.pattern.permute.xlu0 0
  %6563 = vperm.xlu0 %6562, %v6553
  %v6564 = vpop.permute.xlu0 %6563
  %6567 = vset.pattern.permute.xlu0 0
  %6568 = vperm.xlu0 %6567, %v6554
  %v6569 = vpop.permute.xlu0 %6568
  %6572 = vset.pattern.permute.xlu0 0
  %6573 = vperm.xlu0 %6572, %v6555
  %v6574 = vpop.permute.xlu0 %6573
  %6577 = vset.pattern.permute.xlu0 0
  %6578 = vperm.xlu0 %6577, %v6556
  %v6579 = vpop.permute.xlu0 %6578
  %6582 = vset.pattern.permute.xlu0 0
  %6583 = vperm.xlu0 %6582, %v6557
  %v6584 = vpop.permute.xlu0 %6583
  %6587 = vset.pattern.permute.xlu0 0
  %6588 = vperm.xlu0 %6587, %v6558
  %v6589 = vpop.permute.xlu0 %6588
  %6592 = vset.pattern.permute.xlu0 0
  %6593 = vperm.xlu0 %6592, %v6559
  %v6594 = vpop.permute.xlu0 %6593
  %6597 = vset.pattern.permute.xlu0 0
  %6598 = vperm.xlu0 %6597, %v6560
  %v6599 = vpop.permute.xlu0 %6598
  %v6609 = vunpack.c.l.b16 %v6377
  %v6610 = vunpack.c.h.b16 %v6377
  %v6611 = vunpack.c.l.b16 %v6378
  %v6612 = vunpack.c.h.b16 %v6378
  %v6613 = vunpack.c.l.b16 %v6379
  %v6614 = vunpack.c.h.b16 %v6379
  %v6615 = vunpack.c.l.b16 %v6380
  %v6616 = vunpack.c.h.b16 %v6380
  %v6617 = vunpack.c.l.b16 %v6381
  %v6618 = vunpack.c.h.b16 %v6381
  %v6619 = vunpack.c.l.b16 %v6382
  %v6620 = vunpack.c.h.b16 %v6382
  %v6621 = vunpack.c.l.b16 %v6383
  %v6622 = vunpack.c.h.b16 %v6383
  %v6623 = vunpack.c.l.b16 %v6384
  %v6624 = vunpack.c.h.b16 %v6384
  %v6625 = vpack.c.b16 %v6611, %v6609
  %v6626 = vpack.c.b16 %v6612, %v6610
  %v6627 = vpack.c.b16 %v6615, %v6613
  %v6628 = vpack.c.b16 %v6616, %v6614
  %v6629 = vpack.c.b16 %v6619, %v6617
  %v6630 = vpack.c.b16 %v6620, %v6618
  %v6631 = vpack.c.b16 %v6623, %v6621
  %v6632 = vpack.c.b16 %v6624, %v6622
  %v6638 = vsel %vm873, %v6626, 0
  %v6641 = vsel %vm873, %v6628, 0
  %v6644 = vsel %vm873, %v6630, 0
  %v6647 = vsel %vm873, %v6632, 0
  %6649 = vmatprep.subr.bf16.mxu0 %v6530
  %6650 = vmatpush1.bf16.msra.mxu0 %v6529
  %6651 = vmatprep.subr.bf16.mxu0 %v6532
  %6652 = vmatpush1.bf16.msra.mxu0 %v6531
  %6653 = vmatprep.subr.bf16.mxu0 %v6534
  %6654 = vmatpush1.bf16.msra.mxu0 %v6533
  %6655 = vmatprep.subr.bf16.mxu0 %v6536
  %6656 = vmatpush1.bf16.msra.mxu0 %v6535
  %6657 = vmatprep.subr.bf16.mxu0 %v6538
  %6658 = vmatpush1.bf16.msra.mxu0 %v6537
  %6659 = vmatprep.subr.bf16.mxu0 %v6540
  %6660 = vmatpush1.bf16.msra.mxu0 %v6539
  %6661 = vmatprep.subr.bf16.mxu0 %v6542
  %6662 = vmatpush1.bf16.msra.mxu0 %v6541
  %6663 = vmatprep.subr.bf16.mxu0 %v6544
  %6664 = vmatpush1.bf16.msra.mxu0 %v6543
  %6665 = vmatprep.subr.bf16.mxu0 %v6546
  %6666 = vmatpush1.bf16.msra.mxu0 %v6545
  %6667 = vmatprep.subr.bf16.mxu0 %v6548
  %6668 = vmatpush1.bf16.msra.mxu0 %v6547
  %6669 = vmatprep.subr.bf16.mxu0 %v6550
  %6670 = vmatpush1.bf16.msra.mxu0 %v6549
  %6671 = vmatprep.subr.bf16.mxu0 %v6552
  %6672 = vmatpush1.bf16.msra.mxu0 %v6551
  %6673 = vmatprep.subr.bf16.mxu0 0
  %6674 = vmatpush1.bf16.msra.mxu0 0
  %6675 = vmatprep.subr.bf16.mxu0 0
  %6676 = vmatpush1.bf16.msra.mxu0 0
  %6677 = vmatprep.subr.bf16.mxu0 0
  %6678 = vmatpush1.bf16.msra.mxu0 0
  %6679 = vmatprep.subr.bf16.mxu0 0
  %6680 = vmatpush1.bf16.msra.mxu0 0
  %6681 = vmatprep.mubr.bf16.mxu0 %v6638
  %6682 = vmatmul.mubr.bf16.gmra.mrb[0].mxu0 %v6625
  %v6683 = vpop.f32.mrb[0].mxu0
  %v6684 = vadd.f32 %v6564, %v6683
  %v6685 = vpop.f32.mrb[0].mxu0
  %v6686 = vadd.f32 %v6564, %v6685
  %v6687 = vpop.f32.mrb[0].mxu0
  %v6688 = vadd.f32 %v6569, %v6687
  %v6689 = vpop.f32.mrb[0].mxu0
  %v6690 = vadd.f32 %v6569, %v6689
  %6691 = vmatprep.mubr.bf16.mxu0 %v6641
  %6692 = vmatmul.mubr.bf16.gmra.mrb[0].mxu0 %v6627
  %v6693 = vpop.f32.mrb[0].mxu0
  %v6694 = vadd.f32 %v6574, %v6693
  %v6695 = vpop.f32.mrb[0].mxu0
  %v6696 = vadd.f32 %v6574, %v6695
  %v6697 = vpop.f32.mrb[0].mxu0
  %v6698 = vadd.f32 %v6579, %v6697
  %v6699 = vpop.f32.mrb[0].mxu0
  %v6700 = vadd.f32 %v6579, %v6699
  %6701 = vmatprep.mubr.bf16.mxu0 %v6644
  %6702 = vmatmul.mubr.bf16.gmra.mrb[0].mxu0 %v6629
  %v6703 = vpop.f32.mrb[0].mxu0
  %v6704 = vadd.f32 %v6584, %v6703
  %v6705 = vpop.f32.mrb[0].mxu0
  %v6706 = vadd.f32 %v6584, %v6705
  %v6707 = vpop.f32.mrb[0].mxu0
  %v6708 = vadd.f32 %v6589, %v6707
  %v6709 = vpop.f32.mrb[0].mxu0
  %v6710 = vadd.f32 %v6589, %v6709
  %6711 = vmatprep.mubr.bf16.mxu0 %v6647
  %6712 = vmatmul.mubr.bf16.gmra.mrb[0].mxu0 %v6631
  %v6713 = vpop.f32.mrb[0].mxu0
  %v6714 = vadd.f32 %v6594, %v6713
  %v6715 = vpop.f32.mrb[0].mxu0
  %v6716 = vadd.f32 %v6594, %v6715
  %v6717 = vpop.f32.mrb[0].mxu0
  %v6718 = vadd.f32 %v6599, %v6717
  %v6719 = vpop.f32.mrb[0].mxu0
  %v6720 = vadd.f32 %v6599, %v6719
  %6721 = vdwg.mxu0
  %v6722 = vmul.f32 %v6684, %v424
  %v6723 = vmul.f32 %v6686, %v428
  %v6724 = vmul.f32 %v6688, %v424
  %v6725 = vmul.f32 %v6690, %v428
  %v6726 = vmul.f32 %v6694, %v424
  %v6727 = vmul.f32 %v6696, %v428
  %v6728 = vmul.f32 %v6698, %v424
  %v6729 = vmul.f32 %v6700, %v428
  %v6730 = vmul.f32 %v6704, %v424
  %v6731 = vmul.f32 %v6706, %v428
  %v6732 = vmul.f32 %v6708, %v424
  %v6733 = vmul.f32 %v6710, %v428
  %v6734 = vmul.f32 %v6714, %v424
  %v6735 = vmul.f32 %v6716, %v428
  %v6736 = vmul.f32 %v6718, %v424
  %v6737 = vmul.f32 %v6720, %v428
  %v6738 = vmax.f32 %v6722, 0.0
  %v6739 = vmax.f32 %v6723, 0.0
  %v6740 = vmax.f32 %v6724, 0.0
  %v6741 = vmax.f32 %v6725, 0.0
  %v6742 = vmax.f32 %v6726, 0.0
  %v6743 = vmax.f32 %v6727, 0.0
  %v6744 = vmax.f32 %v6728, 0.0
  %v6745 = vmax.f32 %v6729, 0.0
  %v6746 = vmax.f32 %v6730, 0.0
  %v6747 = vmax.f32 %v6731, 0.0
  %v6748 = vmax.f32 %v6732, 0.0
  %v6749 = vmax.f32 %v6733, 0.0
  %v6750 = vmax.f32 %v6734, 0.0
  %v6751 = vmax.f32 %v6735, 0.0
  %v6752 = vmax.f32 %v6736, 0.0
  %v6753 = vmax.f32 %v6737, 0.0
  %v6754 = vadd.f32 %v6738, %v4957
  %v6755 = vadd.f32 %v6739, %v4958
  %v6756 = vadd.f32 %v6740, %v4959
  %v6757 = vadd.f32 %v6741, %v4960
  %v6758 = vadd.f32 %v6742, %v4961
  %v6759 = vadd.f32 %v6743, %v4962
  %v6760 = vadd.f32 %v6744, %v4963
  %v6761 = vadd.f32 %v6745, %v4964
  %v6762 = vadd.f32 %v6746, %v4965
  %v6763 = vadd.f32 %v6747, %v4966
  %v6764 = vadd.f32 %v6748, %v4967
  %v6765 = vadd.f32 %v6749, %v4968
  %v6766 = vadd.f32 %v6750, %v4969
  %v6767 = vadd.f32 %v6751, %v4970
  %v6768 = vadd.f32 %v6752, %v4971
  %v6769 = vadd.f32 %v6753, %v4972
  %v6770 = vmax.f32 %v6754, 0.0
  %v6771 = vmax.f32 %v6755, 0.0
  %v6772 = vmax.f32 %v6756, 0.0
  %v6773 = vmax.f32 %v6757, 0.0
  %v6774 = vmax.f32 %v6758, 0.0
  %v6775 = vmax.f32 %v6759, 0.0
  %v6776 = vmax.f32 %v6760, 0.0
  %v6777 = vmax.f32 %v6761, 0.0
  %v6778 = vmax.f32 %v6762, 0.0
  %v6779 = vmax.f32 %v6763, 0.0
  %v6780 = vmax.f32 %v6764, 0.0
  %v6781 = vmax.f32 %v6765, 0.0
  %v6782 = vmax.f32 %v6766, 0.0
  %v6783 = vmax.f32 %v6767, 0.0
  %v6784 = vmax.f32 %v6768, 0.0
  %v6785 = vmax.f32 %v6769, 0.0
  %v6786 = vld [vmem:[%s5] sm:$0xff]
  %v6787 = vld [vmem:[%s5 + $0x8] sm:$0xff]
  %v6788 = vld [vmem:[%s5 + $0x10] sm:$0xff]
  %v6789 = vld [vmem:[%s5 + $0x18] sm:$0xff]
  %v6790 = vld [vmem:[%s5 + $0x20] sm:$0xff]
  %v6791 = vld [vmem:[%s5 + $0x28] sm:$0xff]
  %v6792 = vld [vmem:[%s5 + $0x30] sm:$0xff]
  %v6793 = vld [vmem:[%s5 + $0x38] sm:$0xff]
  %v6794 = vld [vmem:[%s5 + $0x40] sm:$0xff]
  %v6795 = vld [vmem:[%s5 + $0x48] sm:$0xff]
  %v6796 = vld [vmem:[%s5 + $0x50] sm:$0xff]
  %v6797 = vld [vmem:[%s5 + $0x58] sm:$0xff]
  %v6798 = vld [vmem:[%s5 + $0x60] sm:$0xff]
  %v6799 = vld [vmem:[%s5 + $0x68] sm:$0xff]
  %v6800 = vld [vmem:[%s5 + $0x70] sm:$0xff]
  %v6801 = vld [vmem:[%s5 + $0x78] sm:$0xff]
  %v6802 = vld [vmem:[%s5 + $0x80] sm:$0xff]
  %v6803 = vld [vmem:[%s5 + $0x88] sm:$0xff]
  %v6804 = vld [vmem:[%s5 + $0x90] sm:$0xff]
  %v6805 = vld [vmem:[%s5 + $0x98] sm:$0xff]
  %v6806 = vld [vmem:[%s5 + $0xa0] sm:$0xff]
  %v6807 = vld [vmem:[%s5 + $0xa8] sm:$0xff]
  %v6808 = vld [vmem:[%s5 + $0xb0] sm:$0xff]
  %v6809 = vld [vmem:[%s5 + $0xb8] sm:$0xff]
  %v6810 = vld [vmem:[%s5 + $0xc0] sm:$0xff]
  %v6811 = vld [vmem:[%s5 + $0xc8] sm:$0xff]
  %v6812 = vld [vmem:[%s5 + $0xd0] sm:$0xff]
  %v6813 = vld [vmem:[%s5 + $0xd8] sm:$0xff]
  %v6814 = vld [vmem:[%s5 + $0xe0] sm:$0xff]
  %v6815 = vld [vmem:[%s5 + $0xe8] sm:$0xff]
  %v6816 = vld [vmem:[%s5 + $0xf0] sm:$0xff]
  %v6817 = vld [vmem:[%s5 + $0xf8] sm:$0xff]
  %6818 = vmatprep.subr.mxu0 0.0
  %6819 = vmatpush1.msra.mxu0 %v6786
  %6820 = vmatprep.subr.mxu0 0.0
  %6821 = vmatpush1.msra.mxu0 %v6787
  %6822 = vmatprep.subr.mxu0 0.0
  %6823 = vmatpush1.msra.mxu0 %v6788
  %6824 = vmatprep.subr.mxu0 0.0
  %6825 = vmatpush1.msra.mxu0 %v6789
  %6826 = vmatprep.subr.mxu0 0.0
  %6827 = vmatpush1.msra.mxu0 %v6790
  %6828 = vmatprep.subr.mxu0 0.0
  %6829 = vmatpush1.msra.mxu0 %v6791
  %6830 = vmatprep.subr.mxu0 0.0
  %6831 = vmatpush1.msra.mxu0 %v6792
  %6832 = vmatprep.subr.mxu0 0.0
  %6833 = vmatpush1.msra.mxu0 %v6793
  %6834 = vmatprep.subr.mxu0 0.0
  %6835 = vmatpush1.msra.mxu0 %v6794
  %6836 = vmatprep.subr.mxu0 0.0
  %6837 = vmatpush1.msra.mxu0 %v6795
  %6838 = vmatprep.subr.mxu0 0.0
  %6839 = vmatpush1.msra.mxu0 %v6796
  %6840 = vmatprep.subr.mxu0 0.0
  %6841 = vmatpush1.msra.mxu0 %v6797
  %6842 = vmatprep.subr.mxu0 0.0
  %6843 = vmatpush1.msra.mxu0 %v6798
  %6844 = vmatprep.subr.mxu0 0.0
  %6845 = vmatpush1.msra.mxu0 %v6799
  %6846 = vmatprep.subr.mxu0 0.0
  %6847 = vmatpush1.msra.mxu0 %v6800
  %6848 = vmatprep.subr.mxu0 0.0
  %6849 = vmatpush1.msra.mxu0 %v6801
  %6850 = vmatprep.subr.mxu0 0.0
  %6851 = vmatpush1.msra.mxu0 %v6802
  %6852 = vmatprep.subr.mxu0 0.0
  %6853 = vmatpush1.msra.mxu0 %v6803
  %6854 = vmatprep.subr.mxu0 0.0
  %6855 = vmatpush1.msra.mxu0 %v6804
  %6856 = vmatprep.subr.mxu0 0.0
  %6857 = vmatpush1.msra.mxu0 %v6805
  %6858 = vmatprep.subr.mxu0 0.0
  %6859 = vmatpush1.msra.mxu0 %v6806
  %6860 = vmatprep.subr.mxu0 0.0
  %6861 = vmatpush1.msra.mxu0 %v6807
  %6862 = vmatprep.subr.mxu0 0.0
  %6863 = vmatpush1.msra.mxu0 %v6808
  %6864 = vmatprep.subr.mxu0 0.0
  %6865 = vmatpush1.msra.mxu0 %v6809
  %6866 = vmatprep.subr.mxu0 0.0
  %6867 = vmatpush1.msra.mxu0 %v6810
  %6868 = vmatprep.subr.mxu0 0.0
  %6869 = vmatpush1.msra.mxu0 %v6811
  %6870 = vmatprep.subr.mxu0 0.0
  %6871 = vmatpush1.msra.mxu0 %v6812
  %6872 = vmatprep.subr.mxu0 0.0
  %6873 = vmatpush1.msra.mxu0 %v6813
  %6874 = vmatprep.subr.mxu0 0.0
  %6875 = vmatpush1.msra.mxu0 %v6814
  %6876 = vmatprep.subr.mxu0 0.0
  %6877 = vmatpush1.msra.mxu0 %v6815
  %6878 = vmatprep.subr.mxu0 0.0
  %6879 = vmatpush1.msra.mxu0 %v6816
  %6880 = vmatprep.subr.mxu0 0.0
  %6881 = vmatpush1.msra.mxu0 %v6817
  %6882 = vmatprep.mubr.f32.mxu0 %v6771
  %6883 = vmatmul.mubr.f32.gmra.mrb[0].mxu0 %v6770
  %v6884 = vpop.f32.mrb[0].mxu0
  %v6885 = vadd.f32 0.0, %v6884
  %v6886 = vpop.f32.mrb[0].mxu0
  %6887 = vmatprep.mubr.f32.mxu0 %v6773
  %6888 = vmatmul.mubr.f32.gmra.mrb[0].mxu0 %v6772
  %v6889 = vpop.f32.mrb[0].mxu0
  %v6890 = vadd.f32 0.0, %v6889
  %v6891 = vpop.f32.mrb[0].mxu0
  %6892 = vmatprep.mubr.f32.mxu0 %v6775
  %6893 = vmatmul.mubr.f32.gmra.mrb[0].mxu0 %v6774
  %v6894 = vpop.f32.mrb[0].mxu0
  %v6895 = vadd.f32 0.0, %v6894
  %v6896 = vpop.f32.mrb[0].mxu0
  %6897 = vmatprep.mubr.f32.mxu0 %v6777
  %6898 = vmatmul.mubr.f32.gmra.mrb[0].mxu0 %v6776
  %v6899 = vpop.f32.mrb[0].mxu0
  %v6900 = vadd.f32 0.0, %v6899
  %v6901 = vpop.f32.mrb[0].mxu0
  %6902 = vmatprep.mubr.f32.mxu0 %v6779
  %6903 = vmatmul.mubr.f32.gmra.mrb[0].mxu0 %v6778
  %v6904 = vpop.f32.mrb[0].mxu0
  %v6905 = vadd.f32 0.0, %v6904
  %v6906 = vpop.f32.mrb[0].mxu0
  %6907 = vmatprep.mubr.f32.mxu0 %v6781
  %6908 = vmatmul.mubr.f32.gmra.mrb[0].mxu0 %v6780
  %v6909 = vpop.f32.mrb[0].mxu0
  %v6910 = vadd.f32 0.0, %v6909
  %v6911 = vpop.f32.mrb[0].mxu0
  %6912 = vmatprep.mubr.f32.mxu0 %v6783
  %6913 = vmatmul.mubr.f32.gmra.mrb[0].mxu0 %v6782
  %v6914 = vpop.f32.mrb[0].mxu0
  %v6915 = vadd.f32 0.0, %v6914
  %v6916 = vpop.f32.mrb[0].mxu0
  %6917 = vmatprep.mubr.f32.mxu0 %v6785
  %6918 = vmatmul.mubr.f32.gmra.mrb[0].mxu0 %v6784
  %v6919 = vpop.f32.mrb[0].mxu0
  %v6920 = vadd.f32 0.0, %v6919
  %v6921 = vpop.f32.mrb[0].mxu0
  %6922 = vdwg.mxu0
  %v6923 = vld [vmem:[%s63] sm:$0xff]
  %v6924 = vld [vmem:[%s63 + $0x8] sm:$0xff]
  %v6925 = vld [vmem:[%s63 + $0x10] sm:$0xff]
  %v6926 = vld [vmem:[%s63 + $0x18] sm:$0xff]
  %v6927 = vld [vmem:[%s65] sm:$0xff]
  %v6928 = vld [vmem:[%s65 + $0x8] sm:$0xff]
  %v6929 = vld [vmem:[%s65 + $0x10] sm:$0xff]
  %v6930 = vld [vmem:[%s65 + $0x18] sm:$0xff]
  %6932 = vset.pattern.permute.xlu0 0
  %6933 = vperm.xlu0 %6932, %v6927
  %v6934 = vpop.permute.xlu0 %6933
  %6937 = vset.pattern.permute.xlu0 0
  %6938 = vperm.xlu0 %6937, %v6928
  %v6939 = vpop.permute.xlu0 %6938
  %6942 = vset.pattern.permute.xlu0 0
  %6943 = vperm.xlu0 %6942, %v6929
  %v6944 = vpop.permute.xlu0 %6943
  %6947 = vset.pattern.permute.xlu0 0
  %6948 = vperm.xlu0 %6947, %v6930
  %v6949 = vpop.permute.xlu0 %6948
  %v6952 = vsel %vm873, %v6923, 0
  %v6955 = vsel %vm873, %v6924, 0
  %v6958 = vsel %vm873, %v6925, 0
  %v6961 = vsel %vm873, %v6926, 0
  %6963 = vmatprep.subr.mxu0 0.0
  %6964 = vmatpush1.msra.mxu0 %v6885
  %6965 = vmatprep.subr.mxu0 0.0
  %6966 = vmatpush1.msra.mxu0 %v6890
  %6967 = vmatprep.subr.mxu0 0.0
  %6968 = vmatpush1.msra.mxu0 %v6895
  %6969 = vmatprep.subr.mxu0 0.0
  %6970 = vmatpush1.msra.mxu0 %v6900
  %6971 = vmatprep.subr.mxu0 0.0
  %6972 = vmatpush1.msra.mxu0 %v6905
  %6973 = vmatprep.subr.mxu0 0.0
  %6974 = vmatpush1.msra.mxu0 %v6910
  %6975 = vmatprep.subr.mxu0 0.0
  %6976 = vmatpush1.msra.mxu0 %v6915
  %6977 = vmatprep.subr.mxu0 0.0
  %6978 = vmatpush1.msra.mxu0 %v6920
  %6979 = vmatprep.subr.mxu0 0.0
  %6980 = vmatpush1.msra.mxu0 0.0
  %6981 = vmatprep.subr.mxu0 0.0
  %6982 = vmatpush1.msra.mxu0 0.0
  %6983 = vmatprep.subr.mxu0 0.0
  %6984 = vmatpush1.msra.mxu0 0.0
  %6985 = vmatprep.subr.mxu0 0.0
  %6986 = vmatpush1.msra.mxu0 0.0
  %6987 = vmatprep.subr.mxu0 0.0
  %6988 = vmatpush1.msra.mxu0 0.0
  %6989 = vmatprep.subr.mxu0 0.0
  %6990 = vmatpush1.msra.mxu0 0.0
  %6991 = vmatprep.subr.mxu0 0.0
  %6992 = vmatpush1.msra.mxu0 0.0
  %6993 = vmatprep.subr.mxu0 0.0
  %6994 = vmatpush1.msra.mxu0 0.0
  %6995 = vmatprep.subr.mxu0 0.0
  %6996 = vmatpush1.msra.mxu0 0.0
  %6997 = vmatprep.subr.mxu0 0.0
  %6998 = vmatpush1.msra.mxu0 0.0
  %6999 = vmatprep.subr.mxu0 0.0
  %7000 = vmatpush1.msra.mxu0 0.0
  %7001 = vmatprep.subr.mxu0 0.0
  %7002 = vmatpush1.msra.mxu0 0.0
  %7003 = vmatprep.subr.mxu0 0.0
  %7004 = vmatpush1.msra.mxu0 0.0
  %7005 = vmatprep.subr.mxu0 0.0
  %7006 = vmatpush1.msra.mxu0 0.0
  %7007 = vmatprep.subr.mxu0 0.0
  %7008 = vmatpush1.msra.mxu0 0.0
  %7009 = vmatprep.subr.mxu0 0.0
  %7010 = vmatpush1.msra.mxu0 0.0
  %7011 = vmatprep.subr.mxu0 0.0
  %7012 = vmatpush1.msra.mxu0 0.0
  %7013 = vmatprep.subr.mxu0 0.0
  %7014 = vmatpush1.msra.mxu0 0.0
  %7015 = vmatprep.subr.mxu0 0.0
  %7016 = vmatpush1.msra.mxu0 0.0
  %7017 = vmatprep.subr.mxu0 0.0
  %7018 = vmatpush1.msra.mxu0 0.0
  %7019 = vmatprep.subr.mxu0 0.0
  %7020 = vmatpush1.msra.mxu0 0.0
  %7021 = vmatprep.subr.mxu0 0.0
  %7022 = vmatpush1.msra.mxu0 0.0
  %7023 = vmatprep.subr.mxu0 0.0
  %7024 = vmatpush1.msra.mxu0 0.0
  %7025 = vmatprep.subr.mxu0 0.0
  %7026 = vmatpush1.msra.mxu0 0.0
  %7027 = vmatprep.mubr.f32.mxu0 0.0
  %7028 = vmatmul.mubr.f32.gmra.mrb[0].mxu0 %v6952
  %v7029 = vpop.f32.mrb[0].mxu0
  %v7030 = vadd.f32 %v6934, %v7029
  %v7031 = vpop.f32.mrb[0].mxu0
  %7032 = vmatprep.mubr.f32.mxu0 0.0
  %7033 = vmatmul.mubr.f32.gmra.mrb[0].mxu0 %v6955
  %v7034 = vpop.f32.mrb[0].mxu0
  %v7035 = vadd.f32 %v6939, %v7034
  %v7036 = vpop.f32.mrb[0].mxu0
  %7037 = vmatprep.mubr.f32.mxu0 0.0
  %7038 = vmatmul.mubr.f32.gmra.mrb[0].mxu0 %v6958
  %v7039 = vpop.f32.mrb[0].mxu0
  %v7040 = vadd.f32 %v6944, %v7039
  %v7041 = vpop.f32.mrb[0].mxu0
  %7042 = vmatprep.mubr.f32.mxu0 0.0
  %7043 = vmatmul.mubr.f32.gmra.mrb[0].mxu0 %v6961
  %v7044 = vpop.f32.mrb[0].mxu0
  %v7045 = vadd.f32 %v6949, %v7044
  %v7046 = vpop.f32.mrb[0].mxu0
  %7047 = vdwg.mxu0
  %v7048 = vld [vmem:[%s67] sm:$0x7f]
  %v7049 = vld [vmem:[%s69] sm:$0x7f]
  %7051 = vset.pattern.permute.xlu0 0
  %7052 = vperm.xlu0 %7051, %v7049
  %v7053 = vpop.permute.xlu0 %7052
  %v7056 = vsel %vm687, %v7048, 0
  %7058 = vmatprep.subr.mxu0 0.0
  %7059 = vmatpush1.msra.mxu0 %v7030
  %7060 = vmatprep.subr.mxu0 0.0
  %7061 = vmatpush1.msra.mxu0 %v7035
  %7062 = vmatprep.subr.mxu0 0.0
  %7063 = vmatpush1.msra.mxu0 %v7040
  %7064 = vmatprep.subr.mxu0 0.0
  %7065 = vmatpush1.msra.mxu0 %v7045
  %7066 = vmatprep.subr.mxu0 0.0
  %7067 = vmatpush1.msra.mxu0 0.0
  %7068 = vmatprep.subr.mxu0 0.0
  %7069 = vmatpush1.msra.mxu0 0.0
  %7070 = vmatprep.subr.mxu0 0.0
  %7071 = vmatpush1.msra.mxu0 0.0
  %7072 = vmatprep.subr.mxu0 0.0
  %7073 = vmatpush1.msra.mxu0 0.0
  %7074 = vmatprep.subr.mxu0 0.0
  %7075 = vmatpush1.msra.mxu0 0.0
  %7076 = vmatprep.subr.mxu0 0.0
  %7077 = vmatpush1.msra.mxu0 0.0
  %7078 = vmatprep.subr.mxu0 0.0
  %7079 = vmatpush1.msra.mxu0 0.0
  %7080 = vmatprep.subr.mxu0 0.0
  %7081 = vmatpush1.msra.mxu0 0.0
  %7082 = vmatprep.subr.mxu0 0.0
  %7083 = vmatpush1.msra.mxu0 0.0
  %7084 = vmatprep.subr.mxu0 0.0
  %7085 = vmatpush1.msra.mxu0 0.0
  %7086 = vmatprep.subr.mxu0 0.0
  %7087 = vmatpush1.msra.mxu0 0.0
  %7088 = vmatprep.subr.mxu0 0.0
  %7089 = vmatpush1.msra.mxu0 0.0
  %7090 = vmatprep.subr.mxu0 0.0
  %7091 = vmatpush1.msra.mxu0 0.0
  %7092 = vmatprep.subr.mxu0 0.0
  %7093 = vmatpush1.msra.mxu0 0.0
  %7094 = vmatprep.subr.mxu0 0.0
  %7095 = vmatpush1.msra.mxu0 0.0
  %7096 = vmatprep.subr.mxu0 0.0
  %7097 = vmatpush1.msra.mxu0 0.0
  %7098 = vmatprep.subr.mxu0 0.0
  %7099 = vmatpush1.msra.mxu0 0.0
  %7100 = vmatprep.subr.mxu0 0.0
  %7101 = vmatpush1.msra.mxu0 0.0
  %7102 = vmatprep.subr.mxu0 0.0
  %7103 = vmatpush1.msra.mxu0 0.0
  %7104 = vmatprep.subr.mxu0 0.0
  %7105 = vmatpush1.msra.mxu0 0.0
  %7106 = vmatprep.subr.mxu0 0.0
  %7107 = vmatpush1.msra.mxu0 0.0
  %7108 = vmatprep.subr.mxu0 0.0
  %7109 = vmatpush1.msra.mxu0 0.0
  %7110 = vmatprep.subr.mxu0 0.0
  %7111 = vmatpush1.msra.mxu0 0.0
  %7112 = vmatprep.subr.mxu0 0.0
  %7113 = vmatpush1.msra.mxu0 0.0
  %7114 = vmatprep.subr.mxu0 0.0
  %7115 = vmatpush1.msra.mxu0 0.0
  %7116 = vmatprep.subr.mxu0 0.0
  %7117 = vmatpush1.msra.mxu0 0.0
  %7118 = vmatprep.subr.mxu0 0.0
  %7119 = vmatpush1.msra.mxu0 0.0
  %7120 = vmatprep.subr.mxu0 0.0
  %7121 = vmatpush1.msra.mxu0 0.0
  %7122 = vmatprep.mubr.f32.mxu0 0.0
  %7123 = vmatmul.mubr.f32.gmra.mrb[0].mxu0 %v7056
  %v7124 = vpop.f32.mrb[0].mxu0
  %v7125 = vadd.f32 %v7053, %v7124
  %v7126 = vpop.f32.mrb[0].mxu0
  %7127 = vdwg.mxu0
  %v7128 = vsel %vm170, %v7125, 0.0
  %vm7129 = vcmask 1046528
  %v7130 = vsel %vm7129, %v7128, 0.0
  %7131 = vst [vmem:[%s71] sm:$0xff] %v7130
  // Predicated region
  $region142: #{net_forward.1} parent=0 // pred_check
    _
  $region143: #{net_forward.1} parent=0 // pred_check_branch
    %7133 = sbr.rel (0) target = $region145
  $region144: #{net_forward.1} parent=0 // pred_region
    _
  $region145: #{net_forward.1} parent=0 // pred_fallthru
    _
  // Predicated region
  $region146: #{net_forward.1} parent=0 // pred_check
    _
  $region147: #{net_forward.1} parent=0 // pred_check_branch
    %7135 = sbr.rel (0) target = $region149
  $region148: #{net_forward.1} parent=0 // pred_region
    _
  $region149: #{net_forward.1} parent=0 // pred_fallthru
    _

</llo_original>
